<compile_context>
chip_gen: v6e
topology: v6e:2x2x1
jax: 0.10.0
libtpu: 0.0.40
codegen_flags: <defaults>
</compile_context>

<pallas_src>
import jax
import jax.numpy as jnp
import numpy as np
from jax import lax
from jax.experimental import pallas as pl
from jax.experimental.pallas import tpu as pltpu

NUM_MODES = 12
NUM_SLICES = 10


# ----------------------------------------------------------------------------
# Pallas kernel 1: lane-stacked conv GEMM + bias + ReLU
#   out (Cout, ipb*Mp) = W (Cout, K) @ patches (K, ipb*Mp)   -- one dot/step
# ----------------------------------------------------------------------------
def _conv_gemm_kernel(p_ref, w_ref, b_ref, o_ref):
    _, ipb, _, mp = o_ref.shape
    acc = jnp.dot(w_ref[...], p_ref[0], preferred_element_type=jnp.float32)
    # Single broadcast / relu / cast over the full lane-stacked slab.
    res = jnp.maximum(acc + b_ref[...], 0.0).astype(o_ref.dtype)
    for img in range(ipb):                      # static, 128-aligned lane slices
        o_ref[0, img] = res[:, img * mp:(img + 1) * mp]


def conv_gemm(p, wt, b_col, ipb, mp):
    """p: (nb, K, ipb*Mp) bf16, wt: (Cout, K) bf16, b_col: (Cout, 1) f32
       -> (nb, ipb, Cout, Mp) bf16."""
    nb, K, L = p.shape
    Cout = wt.shape[0]
    return pl.pallas_call(
        _conv_gemm_kernel,
        out_shape=jax.ShapeDtypeStruct((nb, ipb, Cout, mp), jnp.bfloat16),
        grid=(nb,),
        in_specs=[
            pl.BlockSpec((1, K, L), lambda i: (i, 0, 0)),   # patch block
            pl.BlockSpec((Cout, K), lambda i: (0, 0)),      # weights, resident
            pl.BlockSpec((Cout, 1), lambda i: (0, 0)),      # bias column
        ],
        out_specs=pl.BlockSpec((1, ipb, Cout, mp), lambda i: (i, 0, 0, 0)),
        compiler_params=pltpu.CompilerParams(
            dimension_semantics=("parallel",),
            # Let XLA fuse the im2col producer into the kernel's input pipeline
            # instead of materializing the patch tensor in HBM (no-op if the
            # fusion heuristic declines).
            allow_input_fusion=[True, False, False],
        ),
    )(p, wt, b_col)


# ----------------------------------------------------------------------------
# im2col (K-major) in plain JAX.  K ordering is (ki, kj, ci) which matches
# w_hwio.reshape(9*Cin, Cout).
# ----------------------------------------------------------------------------
def _im2col_T(act, stride):
    """act: (BS, Cin, H, W) -> (BS, 9*Cin, Hout*Wout), Hout, Wout (VALID)."""
    BS, Cin, H, W = act.shape
    Hout = (H - 3) // stride + 1
    Wout = (W - 3) // stride + 1
    slabs = []
    for ki in range(3):
        for kj in range(3):
            slabs.append(act[:, :,
                             ki:ki + stride * (Hout - 1) + 1:stride,
                             kj:kj + stride * (Wout - 1) + 1:stride])
    p = jnp.stack(slabs, axis=1)                     # (BS, 9, Cin, Hout, Wout)
    return p.reshape(BS, 9 * Cin, Hout * Wout), Hout, Wout


def conv_relu(act, w_hwio, b, stride):
    """act: (BS, Cin, H, W), w_hwio: (3,3,Cin,Cout) -> (BS, Cout, Hout, Wout)."""
    BS = act.shape[0]
    Cout = w_hwio.shape[-1]
    ipb = next(d for d in (4, 2, 1) if BS % d == 0)          # images per step
    p, Hout, Wout = _im2col_T(act.astype(jnp.bfloat16), stride)
    M = Hout * Wout
    Mp = ((M + 127) // 128) * 128                            # lane-pad to 128
    p = jnp.pad(p, ((0, 0), (0, 0), (0, Mp - M)))
    nb = BS // ipb
    K = p.shape[1]
    # Stack the ipb images of each block along the lane axis: (nb, K, ipb*Mp).
    p = p.reshape(nb, ipb, K, Mp).transpose(0, 2, 1, 3).reshape(nb, K, ipb * Mp)
    wt = w_hwio.reshape(-1, Cout).T.astype(jnp.bfloat16)     # (Cout, 9*Cin)
    out = conv_gemm(p, wt, b.reshape(Cout, 1), ipb, Mp)      # (nb, ipb, Cout, Mp)
    return out.reshape(BS, Cout, Mp)[:, :, :M].reshape(BS, Cout, Hout, Wout)


# ----------------------------------------------------------------------------
# Pallas kernel 2: fused FC tail (fc1 -> fc2 -> fc3 -> 5 heads in one GEMM).
# All weights stay resident in VMEM; weights are in PyTorch (out, in) layout
# so every dot contracts last-with-last (x @ W.T).
# ----------------------------------------------------------------------------
_NT = (((1,), (1,)), ((), ()))   # contract last dims of lhs and rhs


def _fc_stack_kernel(f_ref, w1_ref, b1_ref, w2_ref, b2_ref, w3_ref, b3_ref,
                     wh_ref, bh_ref, o_ref):
    h = lax.dot_general(f_ref[...], w1_ref[...], _NT,
                        preferred_element_type=jnp.float32)
    h = jnp.maximum(h + b1_ref[...], 0.0)
    h = lax.dot_general(h, w2_ref[...], _NT, preferred_element_type=jnp.float32)
    h = jnp.maximum(h + b2_ref[...], 0.0)
    h = lax.dot_general(h, w3_ref[...], _NT, preferred_element_type=jnp.float32)
    h = jnp.maximum(h + b3_ref[...], 0.0)
    o = lax.dot_general(h, wh_ref[...], _NT,
                        preferred_element_type=jnp.float32) + bh_ref[...]
    o_ref[...] = o.astype(o_ref.dtype)


def fc_stack(feat, params):
    """feat: (B, 10816) -> (B, num_modes + 3 + 2*num_slices + 3) f32."""
    B = feat.shape[0]
    n_out = params["head_b"].shape[0]
    args = (
        feat.astype(jnp.bfloat16),
        params["fc1_w"],                                  # (56, 10816) bf16
        params["fc1_b"].reshape(1, -1),
        params["fc2_w"], params["fc2_b"].reshape(1, -1),
        params["fc3_w"], params["fc3_b"].reshape(1, -1),
        params["head_w"], params["head_b"].reshape(1, -1),
    )
    in_specs = [pl.BlockSpec(a.shape, lambda i: (0, 0)) for a in args]
    return pl.pallas_call(
        _fc_stack_kernel,
        out_shape=jax.ShapeDtypeStruct((B, n_out), jnp.float32),
        grid=(1,),
        in_specs=in_specs,
        out_specs=pl.BlockSpec((B, n_out), lambda i: (0, 0)),
        compiler_params=pltpu.CompilerParams(dimension_semantics=("arbitrary",)),
    )(*args)


# ----------------------------------------------------------------------------
# Full SimpleCNN forward
# ----------------------------------------------------------------------------
def simple_cnn_forward(x, params):
    """x: (B, 1, 128, 128, 8) f32 (PyTorch NCDHW; (3,3,1) kernels act on (D,H))."""
    B, Cin, D, H, S = x.shape
    # Each of the S W-slices is an independent 2D image: -> (B*S, Cin, D, H).
    xs = jnp.transpose(x, (0, 4, 1, 2, 3)).reshape(B * S, Cin, D, H)

    a = conv_relu(xs, params["conv1_w"], params["conv1_b"], 2)   # (BS, 8, 63, 63)
    a = conv_relu(a, params["conv2_w"], params["conv2_b"], 2)    # (BS, 8, 31, 31)
    a = conv_relu(a, params["conv3_w"], params["conv3_b"], 2)    # (BS, 8, 15, 15)
    a = conv_relu(a, params["conv4_w"], params["conv4_b"], 1)    # (BS, 8, 13, 13)

    # PyTorch flattens the conv output (B, C, D, H, W) in (C, D, H, W) order,
    # where here W is the slice dim S.
    BS, C, Dh, Hh = a.shape
    feat = (a.reshape(B, S, C, Dh, Hh)
              .transpose(0, 2, 3, 4, 1)
              .reshape(B, C * Dh * Hh * S))                      # (B, 10816) bf16

    heads = fc_stack(feat, params)                               # (B, 38)
    nm, ns = NUM_MODES, NUM_SLICES
    o0, o1, o2, o3 = nm, nm + 3, nm + 3 + ns, nm + 3 + 2 * ns
    modes_output = heads[:, :o0]                                 # (B, num_modes)
    volume_shift = heads[:, o0:o1].reshape(B, 1, 3)
    x_shifts = heads[:, o1:o2].reshape(B, ns, 1)
    y_shifts = heads[:, o2:o3].reshape(B, ns, 1)
    global_rotations = heads[:, o3:o3 + 3].reshape(B, 1, 3)
    return modes_output, volume_shift, x_shifts, y_shifts, global_rotations


# ----------------------------------------------------------------------------
# Deterministic parameter init (shapes from SimpleCNN.__init__).
# FC weights are stored in PyTorch (out, in) layout; fc1_w is stored bf16 so
# the dominant FC weight DMA is halved with no per-call convert (the reference
# upcasts the same values, so both paths see identical weights).
# ----------------------------------------------------------------------------
def init_params(key, num_modes=NUM_MODES, num_slices=NUM_SLICES):
    keys = jax.random.split(key, 32)
    it = iter(keys)

    def u(shape, fan_in):
        bound = float(fan_in) ** -0.5
        return jax.random.uniform(next(it), shape, jnp.float32, -bound, bound)

    p = {}
    p["conv1_w"], p["conv1_b"] = u((3, 3, 1, 8), 9), u((8,), 9)
    p["conv2_w"], p["conv2_b"] = u((3, 3, 8, 8), 72), u((8,), 72)
    p["conv3_w"], p["conv3_b"] = u((3, 3, 8, 8), 72), u((8,), 72)
    p["conv4_w"], p["conv4_b"] = u((3, 3, 8, 8), 72), u((8,), 72)
    im_feat = 8 * 13 * 13 * 8
    p["fc1_w"] = u((56, im_feat), im_feat).astype(jnp.bfloat16)
    p["fc1_b"] = u((56,), im_feat)
    p["fc2_w"], p["fc2_b"] = u((28, 56), 56), u((28,), 56)
    p["fc3_w"], p["fc3_b"] = u((28, 28), 28), u((28,), 28)
    head_ws = [u((num_modes, 28), 28), u((3, 28), 28), u((num_slices, 28), 28),
               u((num_slices, 28), 28), u((3, 28), 28)]
    head_bs = [u((num_modes,), 28), u((3,), 28), u((num_slices,), 28),
               u((num_slices,), 28), u((3,), 28)]
    p["head_w"] = jnp.concatenate(head_ws, axis=0)               # (38, 28)
    p["head_b"] = jnp.concatenate(head_bs, axis=0)               # (38,)
    return p


# ----------------------------------------------------------------------------
# Pure-JAX reference (numerical sanity check of the Pallas path)
# ----------------------------------------------------------------------------
def ref_forward(x, params):
    def conv3d(y, w_hwio, b, stride):
        w = jnp.transpose(w_hwio, (3, 2, 0, 1))[..., None]        # OIDHW, kW=1
        y = jax.lax.conv_general_dilated(
            y, w, window_strides=(stride, stride, 1), padding="VALID",
            dimension_numbers=("NCDHW", "OIDHW", "NCDHW"),
            precision=jax.lax.Precision.HIGHEST)
        return jax.nn.relu(y + b.reshape(1, -1, 1, 1, 1))

    y = conv3d(x, params["conv1_w"], params["conv1_b"], 2)
    y = conv3d(y, params["conv2_w"], params["conv2_b"], 2)
    y = conv3d(y, params["conv3_w"], params["conv3_b"], 2)
    y = conv3d(y, params["conv4_w"], params["conv4_b"], 1)
    B = y.shape[0]
    feat = y.reshape(B, -1)

    def dense(h, w, b, relu=True):
        o = jnp.dot(h, w.astype(jnp.float32).T,
                    precision=jax.lax.Precision.HIGHEST) + b
        return jax.nn.relu(o) if relu else o

    h = dense(feat, params["fc1_w"], params["fc1_b"])
    h = dense(h, params["fc2_w"], params["fc2_b"])
    h = dense(h, params["fc3_w"], params["fc3_b"])
    heads = dense(h, params["head_w"], params["head_b"], relu=False)
    nm, ns = NUM_MODES, NUM_SLICES
    o0, o1, o2, o3 = nm, nm + 3, nm + 3 + ns, nm + 3 + 2 * ns
    return (heads[:, :o0], heads[:, o0:o1].reshape(B, 1, 3),
            heads[:, o1:o2].reshape(B, ns, 1), heads[:, o2:o3].reshape(B, ns, 1),
            heads[:, o3:o3 + 3].reshape(B, 1, 3))


if __name__ == "__main__":
    key = jax.random.PRNGKey(0)
    pkey, xkey = jax.random.split(key)
    params = init_params(pkey)
    # Small batch; spatial dims are fixed by the module (fc1 expects 8*13*13*8).
    x = jax.random.normal(xkey, (2, 1, 128, 128, 8), jnp.float32)

    fwd = jax.jit(simple_cnn_forward)
    outs = jax.block_until_ready(fwd(x, params))
    refs = jax.block_until_ready(jax.jit(ref_forward)(x, params))

    names = ["modes", "volume_shift", "x_shifts", "y_shifts", "rotations"]
    for name, o, r in zip(names, outs, refs):
        assert o.shape == r.shape, (name, o.shape, r.shape)
        np.testing.assert_allclose(np.asarray(o), np.asarray(r),
                                   rtol=1e-2, atol=1e-2, err_msg=name)
    print("KERNEL_OK")
</pallas_src>

<mosaic_0001>
module attributes {stable_mosaic.version = 11 : i64} {
  func.func @_conv_gemm_kernel(%arg0: i32, %arg1: memref<1x9x16384xbf16, #tpu.memory_space<vmem>>, %arg2: memref<8x9xbf16, #tpu.memory_space<vmem>>, %arg3: memref<8x1xf32, #tpu.memory_space<vmem>>, %arg4: memref<1x4x8x4096xbf16, #tpu.memory_space<vmem>>) attributes {dimension_semantics = [#tpu.dimension_semantics<parallel>], iteration_bounds = array<i64: 4>, scalar_prefetch = 0 : i64, scratch_operands = 0 : i64, tpu.core_type = #tpu.core_type<tc>, window_params = [{transform_indices = @transform_0, window_bounds = array<i64: 1, 9, 16384>}, {pipeline_mode = #tpu.pipeline_mode<synchronous>, transform_indices = @transform_1, window_bounds = array<i64: 8, 9>}, {pipeline_mode = #tpu.pipeline_mode<synchronous>, transform_indices = @transform_2, window_bounds = array<i64: 8, 1>}, {transform_indices = @transform_3, window_bounds = array<i64: 1, 4, 8, 4096>}]} {
    %c0 = arith.constant 0 : index
    %c0_0 = arith.constant 0 : index
    %0 = vector.load %arg2[%c0, %c0_0] : memref<8x9xbf16, #tpu.memory_space<vmem>>, vector<8x9xbf16>
    %c0_1 = arith.constant 0 : index
    %c0_2 = arith.constant 0 : index
    %c0_3 = arith.constant 0 : index
    %1 = vector.load %arg1[%c0_1, %c0_2, %c0_3] : memref<1x9x16384xbf16, #tpu.memory_space<vmem>>, vector<1x9x16384xbf16>
    %2 = vector.shape_cast %1 : vector<1x9x16384xbf16> to vector<9x16384xbf16>
    %cst = arith.constant dense<0.000000e+00> : vector<8x16384xf32>
    %3 = tpu.matmul %0, %2, %cst {dimension_numbers = #tpu.dot_dimension_numbers<[1], [0], [0], [1], [0, 0, 1, 1], [], []>} : vector<8x9xbf16>, vector<9x16384xbf16>, vector<8x16384xf32> -> vector<8x16384xf32>
    %c0_4 = arith.constant 0 : index
    %c0_5 = arith.constant 0 : index
    %4 = vector.load %arg3[%c0_4, %c0_5] : memref<8x1xf32, #tpu.memory_space<vmem>>, vector<8x1xf32>
    %5 = vector.broadcast %4 : vector<8x1xf32> to vector<8x16384xf32>
    %6 = arith.addf %3, %5 : vector<8x16384xf32>
    %cst_6 = arith.constant 0.000000e+00 : f32
    %7 = vector.broadcast %cst_6 : f32 to vector<8x16384xf32>
    %8 = arith.maximumf %6, %7 : vector<8x16384xf32>
    %9 = arith.truncf %8 : vector<8x16384xf32> to vector<8x16384xbf16>
    %10 = vector.extract_strided_slice %9 {offsets = [0, 0], sizes = [8, 4096], strides = [1, 1]} : vector<8x16384xbf16> to vector<8x4096xbf16>
    %c0_7 = arith.constant 0 : index
    %c0_8 = arith.constant 0 : index
    %c0_9 = arith.constant 0 : index
    %c0_10 = arith.constant 0 : index
    %11 = vector.load %arg4[%c0_7, %c0_8, %c0_9, %c0_10] : memref<1x4x8x4096xbf16, #tpu.memory_space<vmem>>, vector<1x1x8x4096xbf16>
    %12 = vector.shape_cast %11 : vector<1x1x8x4096xbf16> to vector<8x4096xbf16>
    %13 = vector.shape_cast %10 : vector<8x4096xbf16> to vector<1x1x8x4096xbf16>
    tpu.vector_store %arg4[%c0_7, %c0_8, %c0_9, %c0_10], %13 {strides = array<i32>} : memref<1x4x8x4096xbf16, #tpu.memory_space<vmem>>, vector<1x1x8x4096xbf16>,
    %14 = vector.extract_strided_slice %9 {offsets = [0, 4096], sizes = [8, 4096], strides = [1, 1]} : vector<8x16384xbf16> to vector<8x4096xbf16>
    %c0_11 = arith.constant 0 : index
    %c1 = arith.constant 1 : index
    %c0_12 = arith.constant 0 : index
    %c0_13 = arith.constant 0 : index
    %15 = vector.load %arg4[%c0_11, %c1, %c0_12, %c0_13] : memref<1x4x8x4096xbf16, #tpu.memory_space<vmem>>, vector<1x1x8x4096xbf16>
    %16 = vector.shape_cast %15 : vector<1x1x8x4096xbf16> to vector<8x4096xbf16>
    %17 = vector.shape_cast %14 : vector<8x4096xbf16> to vector<1x1x8x4096xbf16>
    tpu.vector_store %arg4[%c0_11, %c1, %c0_12, %c0_13], %17 {strides = array<i32>} : memref<1x4x8x4096xbf16, #tpu.memory_space<vmem>>, vector<1x1x8x4096xbf16>,
    %18 = vector.extract_strided_slice %9 {offsets = [0, 8192], sizes = [8, 4096], strides = [1, 1]} : vector<8x16384xbf16> to vector<8x4096xbf16>
    %c0_14 = arith.constant 0 : index
    %c2 = arith.constant 2 : index
    %c0_15 = arith.constant 0 : index
    %c0_16 = arith.constant 0 : index
    %19 = vector.load %arg4[%c0_14, %c2, %c0_15, %c0_16] : memref<1x4x8x4096xbf16, #tpu.memory_space<vmem>>, vector<1x1x8x4096xbf16>
    %20 = vector.shape_cast %19 : vector<1x1x8x4096xbf16> to vector<8x4096xbf16>
    %21 = vector.shape_cast %18 : vector<8x4096xbf16> to vector<1x1x8x4096xbf16>
    tpu.vector_store %arg4[%c0_14, %c2, %c0_15, %c0_16], %21 {strides = array<i32>} : memref<1x4x8x4096xbf16, #tpu.memory_space<vmem>>, vector<1x1x8x4096xbf16>,
    %22 = vector.extract_strided_slice %9 {offsets = [0, 12288], sizes = [8, 4096], strides = [1, 1]} : vector<8x16384xbf16> to vector<8x4096xbf16>
    %c0_17 = arith.constant 0 : index
    %c3 = arith.constant 3 : index
    %c0_18 = arith.constant 0 : index
    %c0_19 = arith.constant 0 : index
    %23 = vector.load %arg4[%c0_17, %c3, %c0_18, %c0_19] : memref<1x4x8x4096xbf16, #tpu.memory_space<vmem>>, vector<1x1x8x4096xbf16>
    %24 = vector.shape_cast %23 : vector<1x1x8x4096xbf16> to vector<8x4096xbf16>
    %25 = vector.shape_cast %22 : vector<8x4096xbf16> to vector<1x1x8x4096xbf16>
    tpu.vector_store %arg4[%c0_17, %c3, %c0_18, %c0_19], %25 {strides = array<i32>} : memref<1x4x8x4096xbf16, #tpu.memory_space<vmem>>, vector<1x1x8x4096xbf16>,
    return
  }
  func.func @transform_0(%arg0: i32) -> (i32, i32, i32) {
    %c0_i32 = arith.constant 0 : i32
    %c0_i32_0 = arith.constant 0 : i32
    %c0_i32_1 = arith.constant 0 : i32
    return %arg0, %c0_i32, %c0_i32_0 : i32, i32, i32
  }
  func.func @transform_1(%arg0: i32) -> (i32, i32) {
    %c0_i32 = arith.constant 0 : i32
    %c0_i32_0 = arith.constant 0 : i32
    %c0_i32_1 = arith.constant 0 : i32
    return %c0_i32, %c0_i32_0 : i32, i32
  }
  func.func @transform_2(%arg0: i32) -> (i32, i32) {
    %c0_i32 = arith.constant 0 : i32
    %c0_i32_0 = arith.constant 0 : i32
    %c0_i32_1 = arith.constant 0 : i32
    return %c0_i32, %c0_i32_0 : i32, i32
  }
  func.func @transform_3(%arg0: i32) -> (i32, i32, i32, i32) {
    %c0_i32 = arith.constant 0 : i32
    %c0_i32_0 = arith.constant 0 : i32
    %c0_i32_1 = arith.constant 0 : i32
    %c0_i32_2 = arith.constant 0 : i32
    return %arg0, %c0_i32, %c0_i32_0, %c0_i32_1 : i32, i32, i32, i32
  }
}

module attributes {stable_mosaic.version = 11 : i64} {
  func.func @_conv_gemm_kernel(%arg0: i32, %arg1: memref<1x72x4096xbf16, #tpu.memory_space<vmem>>, %arg2: memref<8x72xbf16, #tpu.memory_space<vmem>>, %arg3: memref<8x1xf32, #tpu.memory_space<vmem>>, %arg4: memref<1x4x8x1024xbf16, #tpu.memory_space<vmem>>) attributes {dimension_semantics = [#tpu.dimension_semantics<parallel>], iteration_bounds = array<i64: 4>, scalar_prefetch = 0 : i64, scratch_operands = 0 : i64, tpu.core_type = #tpu.core_type<tc>, window_params = [{transform_indices = @transform_0, window_bounds = array<i64: 1, 72, 4096>}, {pipeline_mode = #tpu.pipeline_mode<synchronous>, transform_indices = @transform_1, window_bounds = array<i64: 8, 72>}, {pipeline_mode = #tpu.pipeline_mode<synchronous>, transform_indices = @transform_2, window_bounds = array<i64: 8, 1>}, {transform_indices = @transform_3, window_bounds = array<i64: 1, 4, 8, 1024>}]} {
    %c0 = arith.constant 0 : index
    %c0_0 = arith.constant 0 : index
    %0 = vector.load %arg2[%c0, %c0_0] : memref<8x72xbf16, #tpu.memory_space<vmem>>, vector<8x72xbf16>
    %c0_1 = arith.constant 0 : index
    %c0_2 = arith.constant 0 : index
    %c0_3 = arith.constant 0 : index
    %1 = vector.load %arg1[%c0_1, %c0_2, %c0_3] : memref<1x72x4096xbf16, #tpu.memory_space<vmem>>, vector<1x72x4096xbf16>
    %2 = vector.shape_cast %1 : vector<1x72x4096xbf16> to vector<72x4096xbf16>
    %cst = arith.constant dense<0.000000e+00> : vector<8x4096xf32>
    %3 = tpu.matmul %0, %2, %cst {dimension_numbers = #tpu.dot_dimension_numbers<[1], [0], [0], [1], [0, 0, 1, 1], [], []>} : vector<8x72xbf16>, vector<72x4096xbf16>, vector<8x4096xf32> -> vector<8x4096xf32>
    %c0_4 = arith.constant 0 : index
    %c0_5 = arith.constant 0 : index
    %4 = vector.load %arg3[%c0_4, %c0_5] : memref<8x1xf32, #tpu.memory_space<vmem>>, vector<8x1xf32>
    %5 = vector.broadcast %4 : vector<8x1xf32> to vector<8x4096xf32>
    %6 = arith.addf %3, %5 : vector<8x4096xf32>
    %cst_6 = arith.constant 0.000000e+00 : f32
    %7 = vector.broadcast %cst_6 : f32 to vector<8x4096xf32>
    %8 = arith.maximumf %6, %7 : vector<8x4096xf32>
    %9 = arith.truncf %8 : vector<8x4096xf32> to vector<8x4096xbf16>
    %10 = vector.extract_strided_slice %9 {offsets = [0, 0], sizes = [8, 1024], strides = [1, 1]} : vector<8x4096xbf16> to vector<8x1024xbf16>
    %c0_7 = arith.constant 0 : index
    %c0_8 = arith.constant 0 : index
    %c0_9 = arith.constant 0 : index
    %c0_10 = arith.constant 0 : index
    %11 = vector.load %arg4[%c0_7, %c0_8, %c0_9, %c0_10] : memref<1x4x8x1024xbf16, #tpu.memory_space<vmem>>, vector<1x1x8x1024xbf16>
    %12 = vector.shape_cast %11 : vector<1x1x8x1024xbf16> to vector<8x1024xbf16>
    %13 = vector.shape_cast %10 : vector<8x1024xbf16> to vector<1x1x8x1024xbf16>
    tpu.vector_store %arg4[%c0_7, %c0_8, %c0_9, %c0_10], %13 {strides = array<i32>} : memref<1x4x8x1024xbf16, #tpu.memory_space<vmem>>, vector<1x1x8x1024xbf16>,
    %14 = vector.extract_strided_slice %9 {offsets = [0, 1024], sizes = [8, 1024], strides = [1, 1]} : vector<8x4096xbf16> to vector<8x1024xbf16>
    %c0_11 = arith.constant 0 : index
    %c1 = arith.constant 1 : index
    %c0_12 = arith.constant 0 : index
    %c0_13 = arith.constant 0 : index
    %15 = vector.load %arg4[%c0_11, %c1, %c0_12, %c0_13] : memref<1x4x8x1024xbf16, #tpu.memory_space<vmem>>, vector<1x1x8x1024xbf16>
    %16 = vector.shape_cast %15 : vector<1x1x8x1024xbf16> to vector<8x1024xbf16>
    %17 = vector.shape_cast %14 : vector<8x1024xbf16> to vector<1x1x8x1024xbf16>
    tpu.vector_store %arg4[%c0_11, %c1, %c0_12, %c0_13], %17 {strides = array<i32>} : memref<1x4x8x1024xbf16, #tpu.memory_space<vmem>>, vector<1x1x8x1024xbf16>,
    %18 = vector.extract_strided_slice %9 {offsets = [0, 2048], sizes = [8, 1024], strides = [1, 1]} : vector<8x4096xbf16> to vector<8x1024xbf16>
    %c0_14 = arith.constant 0 : index
    %c2 = arith.constant 2 : index
    %c0_15 = arith.constant 0 : index
    %c0_16 = arith.constant 0 : index
    %19 = vector.load %arg4[%c0_14, %c2, %c0_15, %c0_16] : memref<1x4x8x1024xbf16, #tpu.memory_space<vmem>>, vector<1x1x8x1024xbf16>
    %20 = vector.shape_cast %19 : vector<1x1x8x1024xbf16> to vector<8x1024xbf16>
    %21 = vector.shape_cast %18 : vector<8x1024xbf16> to vector<1x1x8x1024xbf16>
    tpu.vector_store %arg4[%c0_14, %c2, %c0_15, %c0_16], %21 {strides = array<i32>} : memref<1x4x8x1024xbf16, #tpu.memory_space<vmem>>, vector<1x1x8x1024xbf16>,
    %22 = vector.extract_strided_slice %9 {offsets = [0, 3072], sizes = [8, 1024], strides = [1, 1]} : vector<8x4096xbf16> to vector<8x1024xbf16>
    %c0_17 = arith.constant 0 : index
    %c3 = arith.constant 3 : index
    %c0_18 = arith.constant 0 : index
    %c0_19 = arith.constant 0 : index
    %23 = vector.load %arg4[%c0_17, %c3, %c0_18, %c0_19] : memref<1x4x8x1024xbf16, #tpu.memory_space<vmem>>, vector<1x1x8x1024xbf16>
    %24 = vector.shape_cast %23 : vector<1x1x8x1024xbf16> to vector<8x1024xbf16>
    %25 = vector.shape_cast %22 : vector<8x1024xbf16> to vector<1x1x8x1024xbf16>
    tpu.vector_store %arg4[%c0_17, %c3, %c0_18, %c0_19], %25 {strides = array<i32>} : memref<1x4x8x1024xbf16, #tpu.memory_space<vmem>>, vector<1x1x8x1024xbf16>,
    return
  }
  func.func @transform_0(%arg0: i32) -> (i32, i32, i32) {
    %c0_i32 = arith.constant 0 : i32
    %c0_i32_0 = arith.constant 0 : i32
    %c0_i32_1 = arith.constant 0 : i32
    return %arg0, %c0_i32, %c0_i32_0 : i32, i32, i32
  }
  func.func @transform_1(%arg0: i32) -> (i32, i32) {
    %c0_i32 = arith.constant 0 : i32
    %c0_i32_0 = arith.constant 0 : i32
    %c0_i32_1 = arith.constant 0 : i32
    return %c0_i32, %c0_i32_0 : i32, i32
  }
  func.func @transform_2(%arg0: i32) -> (i32, i32) {
    %c0_i32 = arith.constant 0 : i32
    %c0_i32_0 = arith.constant 0 : i32
    %c0_i32_1 = arith.constant 0 : i32
    return %c0_i32, %c0_i32_0 : i32, i32
  }
  func.func @transform_3(%arg0: i32) -> (i32, i32, i32, i32) {
    %c0_i32 = arith.constant 0 : i32
    %c0_i32_0 = arith.constant 0 : i32
    %c0_i32_1 = arith.constant 0 : i32
    %c0_i32_2 = arith.constant 0 : i32
    return %arg0, %c0_i32, %c0_i32_0, %c0_i32_1 : i32, i32, i32, i32
  }
}

module attributes {stable_mosaic.version = 11 : i64} {
  func.func @_conv_gemm_kernel(%arg0: i32, %arg1: memref<1x72x1024xbf16, #tpu.memory_space<vmem>>, %arg2: memref<8x72xbf16, #tpu.memory_space<vmem>>, %arg3: memref<8x1xf32, #tpu.memory_space<vmem>>, %arg4: memref<1x4x8x256xbf16, #tpu.memory_space<vmem>>) attributes {dimension_semantics = [#tpu.dimension_semantics<parallel>], iteration_bounds = array<i64: 4>, scalar_prefetch = 0 : i64, scratch_operands = 0 : i64, tpu.core_type = #tpu.core_type<tc>, window_params = [{transform_indices = @transform_0, window_bounds = array<i64: 1, 72, 1024>}, {pipeline_mode = #tpu.pipeline_mode<synchronous>, transform_indices = @transform_1, window_bounds = array<i64: 8, 72>}, {pipeline_mode = #tpu.pipeline_mode<synchronous>, transform_indices = @transform_2, window_bounds = array<i64: 8, 1>}, {transform_indices = @transform_3, window_bounds = array<i64: 1, 4, 8, 256>}]} {
    %c0 = arith.constant 0 : index
    %c0_0 = arith.constant 0 : index
    %0 = vector.load %arg2[%c0, %c0_0] : memref<8x72xbf16, #tpu.memory_space<vmem>>, vector<8x72xbf16>
    %c0_1 = arith.constant 0 : index
    %c0_2 = arith.constant 0 : index
    %c0_3 = arith.constant 0 : index
    %1 = vector.load %arg1[%c0_1, %c0_2, %c0_3] : memref<1x72x1024xbf16, #tpu.memory_space<vmem>>, vector<1x72x1024xbf16>
    %2 = vector.shape_cast %1 : vector<1x72x1024xbf16> to vector<72x1024xbf16>
    %cst = arith.constant dense<0.000000e+00> : vector<8x1024xf32>
    %3 = tpu.matmul %0, %2, %cst {dimension_numbers = #tpu.dot_dimension_numbers<[1], [0], [0], [1], [0, 0, 1, 1], [], []>} : vector<8x72xbf16>, vector<72x1024xbf16>, vector<8x1024xf32> -> vector<8x1024xf32>
    %c0_4 = arith.constant 0 : index
    %c0_5 = arith.constant 0 : index
    %4 = vector.load %arg3[%c0_4, %c0_5] : memref<8x1xf32, #tpu.memory_space<vmem>>, vector<8x1xf32>
    %5 = vector.broadcast %4 : vector<8x1xf32> to vector<8x1024xf32>
    %6 = arith.addf %3, %5 : vector<8x1024xf32>
    %cst_6 = arith.constant 0.000000e+00 : f32
    %7 = vector.broadcast %cst_6 : f32 to vector<8x1024xf32>
    %8 = arith.maximumf %6, %7 : vector<8x1024xf32>
    %9 = arith.truncf %8 : vector<8x1024xf32> to vector<8x1024xbf16>
    %10 = vector.extract_strided_slice %9 {offsets = [0, 0], sizes = [8, 256], strides = [1, 1]} : vector<8x1024xbf16> to vector<8x256xbf16>
    %c0_7 = arith.constant 0 : index
    %c0_8 = arith.constant 0 : index
    %c0_9 = arith.constant 0 : index
    %c0_10 = arith.constant 0 : index
    %11 = vector.load %arg4[%c0_7, %c0_8, %c0_9, %c0_10] : memref<1x4x8x256xbf16, #tpu.memory_space<vmem>>, vector<1x1x8x256xbf16>
    %12 = vector.shape_cast %11 : vector<1x1x8x256xbf16> to vector<8x256xbf16>
    %13 = vector.shape_cast %10 : vector<8x256xbf16> to vector<1x1x8x256xbf16>
    tpu.vector_store %arg4[%c0_7, %c0_8, %c0_9, %c0_10], %13 {strides = array<i32>} : memref<1x4x8x256xbf16, #tpu.memory_space<vmem>>, vector<1x1x8x256xbf16>,
    %14 = vector.extract_strided_slice %9 {offsets = [0, 256], sizes = [8, 256], strides = [1, 1]} : vector<8x1024xbf16> to vector<8x256xbf16>
    %c0_11 = arith.constant 0 : index
    %c1 = arith.constant 1 : index
    %c0_12 = arith.constant 0 : index
    %c0_13 = arith.constant 0 : index
    %15 = vector.load %arg4[%c0_11, %c1, %c0_12, %c0_13] : memref<1x4x8x256xbf16, #tpu.memory_space<vmem>>, vector<1x1x8x256xbf16>
    %16 = vector.shape_cast %15 : vector<1x1x8x256xbf16> to vector<8x256xbf16>
    %17 = vector.shape_cast %14 : vector<8x256xbf16> to vector<1x1x8x256xbf16>
    tpu.vector_store %arg4[%c0_11, %c1, %c0_12, %c0_13], %17 {strides = array<i32>} : memref<1x4x8x256xbf16, #tpu.memory_space<vmem>>, vector<1x1x8x256xbf16>,
    %18 = vector.extract_strided_slice %9 {offsets = [0, 512], sizes = [8, 256], strides = [1, 1]} : vector<8x1024xbf16> to vector<8x256xbf16>
    %c0_14 = arith.constant 0 : index
    %c2 = arith.constant 2 : index
    %c0_15 = arith.constant 0 : index
    %c0_16 = arith.constant 0 : index
    %19 = vector.load %arg4[%c0_14, %c2, %c0_15, %c0_16] : memref<1x4x8x256xbf16, #tpu.memory_space<vmem>>, vector<1x1x8x256xbf16>
    %20 = vector.shape_cast %19 : vector<1x1x8x256xbf16> to vector<8x256xbf16>
    %21 = vector.shape_cast %18 : vector<8x256xbf16> to vector<1x1x8x256xbf16>
    tpu.vector_store %arg4[%c0_14, %c2, %c0_15, %c0_16], %21 {strides = array<i32>} : memref<1x4x8x256xbf16, #tpu.memory_space<vmem>>, vector<1x1x8x256xbf16>,
    %22 = vector.extract_strided_slice %9 {offsets = [0, 768], sizes = [8, 256], strides = [1, 1]} : vector<8x1024xbf16> to vector<8x256xbf16>
    %c0_17 = arith.constant 0 : index
    %c3 = arith.constant 3 : index
    %c0_18 = arith.constant 0 : index
    %c0_19 = arith.constant 0 : index
    %23 = vector.load %arg4[%c0_17, %c3, %c0_18, %c0_19] : memref<1x4x8x256xbf16, #tpu.memory_space<vmem>>, vector<1x1x8x256xbf16>
    %24 = vector.shape_cast %23 : vector<1x1x8x256xbf16> to vector<8x256xbf16>
    %25 = vector.shape_cast %22 : vector<8x256xbf16> to vector<1x1x8x256xbf16>
    tpu.vector_store %arg4[%c0_17, %c3, %c0_18, %c0_19], %25 {strides = array<i32>} : memref<1x4x8x256xbf16, #tpu.memory_space<vmem>>, vector<1x1x8x256xbf16>,
    return
  }
  func.func @transform_0(%arg0: i32) -> (i32, i32, i32) {
    %c0_i32 = arith.constant 0 : i32
    %c0_i32_0 = arith.constant 0 : i32
    %c0_i32_1 = arith.constant 0 : i32
    return %arg0, %c0_i32, %c0_i32_0 : i32, i32, i32
  }
  func.func @transform_1(%arg0: i32) -> (i32, i32) {
    %c0_i32 = arith.constant 0 : i32
    %c0_i32_0 = arith.constant 0 : i32
    %c0_i32_1 = arith.constant 0 : i32
    return %c0_i32, %c0_i32_0 : i32, i32
  }
  func.func @transform_2(%arg0: i32) -> (i32, i32) {
    %c0_i32 = arith.constant 0 : i32
    %c0_i32_0 = arith.constant 0 : i32
    %c0_i32_1 = arith.constant 0 : i32
    return %c0_i32, %c0_i32_0 : i32, i32
  }
  func.func @transform_3(%arg0: i32) -> (i32, i32, i32, i32) {
    %c0_i32 = arith.constant 0 : i32
    %c0_i32_0 = arith.constant 0 : i32
    %c0_i32_1 = arith.constant 0 : i32
    %c0_i32_2 = arith.constant 0 : i32
    return %arg0, %c0_i32, %c0_i32_0, %c0_i32_1 : i32, i32, i32, i32
  }
}

module attributes {stable_mosaic.version = 11 : i64} {
  func.func @_fc_stack_kernel(%arg0: i32, %arg1: memref<2x10816xbf16, #tpu.memory_space<vmem>>, %arg2: memref<56x10816xbf16, #tpu.memory_space<vmem>>, %arg3: memref<1x56xf32, #tpu.memory_space<vmem>>, %arg4: memref<28x56xf32, #tpu.memory_space<vmem>>, %arg5: memref<1x28xf32, #tpu.memory_space<vmem>>, %arg6: memref<28x28xf32, #tpu.memory_space<vmem>>, %arg7: memref<1x28xf32, #tpu.memory_space<vmem>>, %arg8: memref<38x28xf32, #tpu.memory_space<vmem>>, %arg9: memref<1x38xf32, #tpu.memory_space<vmem>>, %arg10: memref<2x38xf32, #tpu.memory_space<vmem>>) attributes {dimension_semantics = [#tpu.dimension_semantics<arbitrary>], iteration_bounds = array<i64: 1>, scalar_prefetch = 0 : i64, scratch_operands = 0 : i64, tpu.core_type = #tpu.core_type<tc>, window_params = [{pipeline_mode = #tpu.pipeline_mode<synchronous>, transform_indices = @transform_0, window_bounds = array<i64: 2, 10816>}, {pipeline_mode = #tpu.pipeline_mode<synchronous>, transform_indices = @transform_1, window_bounds = array<i64: 56, 10816>}, {pipeline_mode = #tpu.pipeline_mode<synchronous>, transform_indices = @transform_2, window_bounds = array<i64: 1, 56>}, {pipeline_mode = #tpu.pipeline_mode<synchronous>, transform_indices = @transform_3, window_bounds = array<i64: 28, 56>}, {pipeline_mode = #tpu.pipeline_mode<synchronous>, transform_indices = @transform_4, window_bounds = array<i64: 1, 28>}, {pipeline_mode = #tpu.pipeline_mode<synchronous>, transform_indices = @transform_5, window_bounds = array<i64: 28, 28>}, {pipeline_mode = #tpu.pipeline_mode<synchronous>, transform_indices = @transform_6, window_bounds = array<i64: 1, 28>}, {pipeline_mode = #tpu.pipeline_mode<synchronous>, transform_indices = @transform_7, window_bounds = array<i64: 38, 28>}, {pipeline_mode = #tpu.pipeline_mode<synchronous>, transform_indices = @transform_8, window_bounds = array<i64: 1, 38>}, {pipeline_mode = #tpu.pipeline_mode<synchronous>, transform_indices = @transform_9, window_bounds = array<i64: 2, 38>}]} {
    %c0 = arith.constant 0 : index
    %c0_0 = arith.constant 0 : index
    %0 = vector.load %arg1[%c0, %c0_0] : memref<2x10816xbf16, #tpu.memory_space<vmem>>, vector<2x10816xbf16>
    %c0_1 = arith.constant 0 : index
    %c0_2 = arith.constant 0 : index
    %1 = vector.load %arg2[%c0_1, %c0_2] : memref<56x10816xbf16, #tpu.memory_space<vmem>>, vector<56x10816xbf16>
    %cst = arith.constant dense<0.000000e+00> : vector<2x56xf32>
    %2 = tpu.matmul %0, %1, %cst {dimension_numbers = #tpu.dot_dimension_numbers<[1], [1], [0], [0], [0, 0, 1, 0], [], []>} : vector<2x10816xbf16>, vector<56x10816xbf16>, vector<2x56xf32> -> vector<2x56xf32>
    %c0_3 = arith.constant 0 : index
    %c0_4 = arith.constant 0 : index
    %3 = vector.load %arg3[%c0_3, %c0_4] : memref<1x56xf32, #tpu.memory_space<vmem>>, vector<1x56xf32>
    %4 = vector.broadcast %3 : vector<1x56xf32> to vector<2x56xf32>
    %5 = arith.addf %2, %4 : vector<2x56xf32>
    %cst_5 = arith.constant 0.000000e+00 : f32
    %6 = vector.broadcast %cst_5 : f32 to vector<2x56xf32>
    %7 = arith.maximumf %5, %6 : vector<2x56xf32>
    %c0_6 = arith.constant 0 : index
    %c0_7 = arith.constant 0 : index
    %8 = vector.load %arg4[%c0_6, %c0_7] : memref<28x56xf32, #tpu.memory_space<vmem>>, vector<28x56xf32>
    %cst_8 = arith.constant dense<0.000000e+00> : vector<2x28xf32>
    %9 = tpu.matmul %7, %8, %cst_8 {dimension_numbers = #tpu.dot_dimension_numbers<[1], [1], [0], [0], [0, 0, 1, 0], [], []>} : vector<2x56xf32>, vector<28x56xf32>, vector<2x28xf32> -> vector<2x28xf32>
    %c0_9 = arith.constant 0 : index
    %c0_10 = arith.constant 0 : index
    %10 = vector.load %arg5[%c0_9, %c0_10] : memref<1x28xf32, #tpu.memory_space<vmem>>, vector<1x28xf32>
    %11 = vector.broadcast %10 : vector<1x28xf32> to vector<2x28xf32>
    %12 = arith.addf %9, %11 : vector<2x28xf32>
    %cst_11 = arith.constant 0.000000e+00 : f32
    %13 = vector.broadcast %cst_11 : f32 to vector<2x28xf32>
    %14 = arith.maximumf %12, %13 : vector<2x28xf32>
    %c0_12 = arith.constant 0 : index
    %c0_13 = arith.constant 0 : index
    %15 = vector.load %arg6[%c0_12, %c0_13] : memref<28x28xf32, #tpu.memory_space<vmem>>, vector<28x28xf32>
    %cst_14 = arith.constant dense<0.000000e+00> : vector<2x28xf32>
    %16 = tpu.matmul %14, %15, %cst_14 {dimension_numbers = #tpu.dot_dimension_numbers<[1], [1], [0], [0], [0, 0, 1, 0], [], []>} : vector<2x28xf32>, vector<28x28xf32>, vector<2x28xf32> -> vector<2x28xf32>
    %c0_15 = arith.constant 0 : index
    %c0_16 = arith.constant 0 : index
    %17 = vector.load %arg7[%c0_15, %c0_16] : memref<1x28xf32, #tpu.memory_space<vmem>>, vector<1x28xf32>
    %18 = vector.broadcast %17 : vector<1x28xf32> to vector<2x28xf32>
    %19 = arith.addf %16, %18 : vector<2x28xf32>
    %cst_17 = arith.constant 0.000000e+00 : f32
    %20 = vector.broadcast %cst_17 : f32 to vector<2x28xf32>
    %21 = arith.maximumf %19, %20 : vector<2x28xf32>
    %c0_18 = arith.constant 0 : index
    %c0_19 = arith.constant 0 : index
    %22 = vector.load %arg8[%c0_18, %c0_19] : memref<38x28xf32, #tpu.memory_space<vmem>>, vector<38x28xf32>
    %cst_20 = arith.constant dense<0.000000e+00> : vector<2x38xf32>
    %23 = tpu.matmul %21, %22, %cst_20 {dimension_numbers = #tpu.dot_dimension_numbers<[1], [1], [0], [0], [0, 0, 1, 0], [], []>} : vector<2x28xf32>, vector<38x28xf32>, vector<2x38xf32> -> vector<2x38xf32>
    %c0_21 = arith.constant 0 : index
    %c0_22 = arith.constant 0 : index
    %24 = vector.load %arg9[%c0_21, %c0_22] : memref<1x38xf32, #tpu.memory_space<vmem>>, vector<1x38xf32>
    %25 = vector.broadcast %24 : vector<1x38xf32> to vector<2x38xf32>
    %26 = arith.addf %23, %25 : vector<2x38xf32>
    %c0_23 = arith.constant 0 : index
    %c0_24 = arith.constant 0 : index
    %27 = vector.load %arg10[%c0_23, %c0_24] : memref<2x38xf32, #tpu.memory_space<vmem>>, vector<2x38xf32>
    tpu.vector_store %arg10[%c0_23, %c0_24], %26 {strides = array<i32>} : memref<2x38xf32, #tpu.memory_space<vmem>>, vector<2x38xf32>,
    return
  }
  func.func @transform_0(%arg0: i32) -> (i32, i32) {
    %c0_i32 = arith.constant 0 : i32
    %c0_i32_0 = arith.constant 0 : i32
    %c0_i32_1 = arith.constant 0 : i32
    return %c0_i32, %c0_i32_0 : i32, i32
  }
  func.func @transform_1(%arg0: i32) -> (i32, i32) {
    %c0_i32 = arith.constant 0 : i32
    %c0_i32_0 = arith.constant 0 : i32
    %c0_i32_1 = arith.constant 0 : i32
    return %c0_i32, %c0_i32_0 : i32, i32
  }
  func.func @transform_2(%arg0: i32) -> (i32, i32) {
    %c0_i32 = arith.constant 0 : i32
    %c0_i32_0 = arith.constant 0 : i32
    %c0_i32_1 = arith.constant 0 : i32
    return %c0_i32, %c0_i32_0 : i32, i32
  }
  func.func @transform_3(%arg0: i32) -> (i32, i32) {
    %c0_i32 = arith.constant 0 : i32
    %c0_i32_0 = arith.constant 0 : i32
    %c0_i32_1 = arith.constant 0 : i32
    return %c0_i32, %c0_i32_0 : i32, i32
  }
  func.func @transform_4(%arg0: i32) -> (i32, i32) {
    %c0_i32 = arith.constant 0 : i32
    %c0_i32_0 = arith.constant 0 : i32
    %c0_i32_1 = arith.constant 0 : i32
    return %c0_i32, %c0_i32_0 : i32, i32
  }
  func.func @transform_5(%arg0: i32) -> (i32, i32) {
    %c0_i32 = arith.constant 0 : i32
    %c0_i32_0 = arith.constant 0 : i32
    %c0_i32_1 = arith.constant 0 : i32
    return %c0_i32, %c0_i32_0 : i32, i32
  }
  func.func @transform_6(%arg0: i32) -> (i32, i32) {
    %c0_i32 = arith.constant 0 : i32
    %c0_i32_0 = arith.constant 0 : i32
    %c0_i32_1 = arith.constant 0 : i32
    return %c0_i32, %c0_i32_0 : i32, i32
  }
  func.func @transform_7(%arg0: i32) -> (i32, i32) {
    %c0_i32 = arith.constant 0 : i32
    %c0_i32_0 = arith.constant 0 : i32
    %c0_i32_1 = arith.constant 0 : i32
    return %c0_i32, %c0_i32_0 : i32, i32
  }
  func.func @transform_8(%arg0: i32) -> (i32, i32) {
    %c0_i32 = arith.constant 0 : i32
    %c0_i32_0 = arith.constant 0 : i32
    %c0_i32_1 = arith.constant 0 : i32
    return %c0_i32, %c0_i32_0 : i32, i32
  }
  func.func @transform_9(%arg0: i32) -> (i32, i32) {
    %c0_i32 = arith.constant 0 : i32
    %c0_i32_0 = arith.constant 0 : i32
    %c0_i32_1 = arith.constant 0 : i32
    return %c0_i32, %c0_i32_0 : i32, i32
  }
}

</mosaic_0001>

<llo_original>
// kernel: simple_cnn_forward.5
$region0: #{simple_cnn_forward.5}
  #allocation0 [shape = 'u32[]', space=smem, size = 0x4, offset = 0x4, fixed_abs, tag = 'smem constant byte address 0x4 - core index']
  #allocation1 [shape = 'u32[144,128]{1,0:T(1,128)}', space=vmem, size = 0x12000, scoped, tag = 'internal scratch']
  %s0 = inlined_call_operand.vmem [shape: bf16[4,9,16384], index: 0, kind: input, shape index: {}]
  %s1 = inlined_call_operand.vmem [shape: bf16[8,9], index: 1, kind: input, shape index: {}]
  %s2 = inlined_call_operand.vmem [shape: f32[8,1], index: 2, kind: input, shape index: {}]
  %s3 = inlined_call_operand.vmem [shape: bf16[4,4,8,4096], index: 3, kind: output, shape index: {}]
  %s4 = sld [smem:[#allocation0]]
  $region45: #{simple_cnn_forward.5} parent=0
    _
  %s6 = ssub.s32 1, %s4
  %s7 = scalar_select 0, %s6, %s4
  loop: start=0, step=1, limit=6
  $region2: #{simple_cnn_forward.5} parent=0 // loop_pre_header
    _
  $region3: #{simple_cnn_forward.5} parent=0 // loop_header
    %s9 = sphi 0, %s13
    %p10 = scmp.ge.s32.totalorder %s9, 6
    %s19 = sphi 0, %s21
    %s22 = sphi 0, %s19
    %s23 = sphi 0, %s22
    %s39 = sphi 0, %s23
    %s43 = sphi 0, %s43
    %s45 = sphi 0, %s43
    %s46 = sphi 0, %s45
    %s60 = sphi 0, %s46
    %s64 = sphi 0, %s64
    %s66 = sphi 0, %s64
    %s67 = sphi 0, %s66
    %s81 = sphi 0, %s67
    %s87 = sphi 0, %s89
    %s90 = sphi 0, %s87
    %s91 = sphi 0, %s90
    %s107 = sphi 0, %s91
  $region4: #{simple_cnn_forward.5} parent=0 // loop_header_branch
    %12 = sbr.rel (%p10) target = $region8
  $region5: #{simple_cnn_forward.5} parent=0 // loop_body
    %s14 = ssub.s32 %s9, 1
    %s15 = ssub.s32 %s9, 2
    %s16 = sadd.s32 %s9, 1
    %s17 = ssub.s32 %s9, %s16
    %p18 = scmp.eq.s32.totalorder %s17, 0
    %s20 = sadd.s32 %s19, 1
    %s21 = scalar_select %p18, %s19, %s20
    %p24 = pneg %p18
    %p25 = scmp.eq.s32.totalorder %s9, 3
    %p26 = por %p24, %p25
    %p27 = scmp.ne.s32.totalorder %s19, %s22
    %p28 = scmp.eq.s32.totalorder %s9, 0
    %p29 = por %p27, %p28
    %p30 = scmp.ne.s32.totalorder %s19, %s22
    %p31 = scmp.eq.s32.totalorder %s14, 3
    %p32 = por %p30, %p31
    %p33 = scmp.ne.s32.totalorder %s22, %s23
    %p34 = scmp.eq.s32.totalorder %s14, 0
    %p35 = por %p33, %p34
    %p36 = scmp.ne.s32.totalorder %s22, %s23
    %p37 = scmp.eq.s32.totalorder %s15, 3
    %p38 = por %p36, %p37
    %p40 = scmp.ne.s32.totalorder %s23, %s39
    %p41 = scmp.eq.s32.totalorder %s15, 0
    %p42 = por %p40, %p41
    %s44 = sadd.s32 %s43, 1
    %p47 = scmp.eq.s32.totalorder %s9, 3
    %p48 = scmp.ne.s32.totalorder %s43, %s45
    %p49 = scmp.eq.s32.totalorder %s9, 0
    %p50 = por %p48, %p49
    %p51 = scmp.ne.s32.totalorder %s43, %s45
    %p52 = scmp.eq.s32.totalorder %s14, 3
    %p53 = por %p51, %p52
    %p54 = scmp.ne.s32.totalorder %s45, %s46
    %p55 = scmp.eq.s32.totalorder %s14, 0
    %p56 = por %p54, %p55
    %p57 = scmp.ne.s32.totalorder %s45, %s46
    %p58 = scmp.eq.s32.totalorder %s15, 3
    %p59 = por %p57, %p58
    %p61 = scmp.ne.s32.totalorder %s46, %s60
    %p62 = scmp.eq.s32.totalorder %s15, 0
    %p63 = por %p61, %p62
    %s65 = sadd.s32 %s64, 1
    %p68 = scmp.eq.s32.totalorder %s9, 3
    %p69 = scmp.ne.s32.totalorder %s64, %s66
    %p70 = scmp.eq.s32.totalorder %s9, 0
    %p71 = por %p69, %p70
    %p72 = scmp.ne.s32.totalorder %s64, %s66
    %p73 = scmp.eq.s32.totalorder %s14, 3
    %p74 = por %p72, %p73
    %p75 = scmp.ne.s32.totalorder %s66, %s67
    %p76 = scmp.eq.s32.totalorder %s14, 0
    %p77 = por %p75, %p76
    %p78 = scmp.ne.s32.totalorder %s66, %s67
    %p79 = scmp.eq.s32.totalorder %s15, 3
    %p80 = por %p78, %p79
    %p82 = scmp.ne.s32.totalorder %s67, %s81
    %p83 = scmp.eq.s32.totalorder %s15, 0
    %p84 = por %p82, %p83
    %s85 = ssub.s32 %s9, %s16
    %p86 = scmp.eq.s32.totalorder %s85, 0
    %s88 = sadd.s32 %s87, 1
    %s89 = scalar_select %p86, %s87, %s88
    %p92 = pneg %p86
    %p93 = scmp.eq.s32.totalorder %s9, 3
    %p94 = por %p92, %p93
    %p95 = scmp.ne.s32.totalorder %s87, %s90
    %p96 = scmp.eq.s32.totalorder %s9, 0
    %p97 = por %p95, %p96
    %p98 = scmp.ne.s32.totalorder %s87, %s90
    %p99 = scmp.eq.s32.totalorder %s14, 3
    %p100 = por %p98, %p99
    %p101 = scmp.ne.s32.totalorder %s90, %s91
    %p102 = scmp.eq.s32.totalorder %s14, 0
    %p103 = por %p101, %p102
    %p104 = scmp.ne.s32.totalorder %s90, %s91
    %p105 = scmp.eq.s32.totalorder %s15, 3
    %p106 = por %p104, %p105
    %p108 = scmp.ne.s32.totalorder %s91, %s107
    %p109 = scmp.eq.s32.totalorder %s15, 0
    %p110 = por %p108, %p109
    %p111 = scmp.le.s32.totalorder 1, %s9
    %p112 = scmp.lt.s32.totalorder %s9, 5
    %p113 = pnand %p111, %p112
    %p114 = pneg %p113
    // Predicated region
    $region9: #{simple_cnn_forward.5} parent=5 // pred_check
      _
    $region10: #{simple_cnn_forward.5} parent=5 // pred_check_branch
      %116 = sbr.rel (%p113) target = $region12
    $region11: #{simple_cnn_forward.5} parent=5 // pred_region
      %s117 = ssub.s32 %s9, 1
      // Predicated region
      $region13: #{simple_cnn_forward.5} parent=11 // pred_check
        %p118 = pneg %p56
      $region14: #{simple_cnn_forward.5} parent=11 // pred_check_branch
        %120 = sbr.rel (%p118) target = $region16
      $region15: #{simple_cnn_forward.5} parent=11 // pred_region
        _
      $region16: #{simple_cnn_forward.5} parent=11 // pred_fallthru
        _
      // Predicated region
      $region17: #{simple_cnn_forward.5} parent=11 // pred_check
        %p121 = pneg %p77
      $region18: #{simple_cnn_forward.5} parent=11 // pred_check_branch
        %123 = sbr.rel (%p121) target = $region20
      $region19: #{simple_cnn_forward.5} parent=11 // pred_region
        _
      $region20: #{simple_cnn_forward.5} parent=11 // pred_fallthru
        _
    $region12: #{simple_cnn_forward.5} parent=5 // pred_fallthru
      _
    %p124 = scmp.lt.s32.totalorder %s9, 4
    // Predicated region
    $region21: #{simple_cnn_forward.5} parent=5 // pred_check
      %p125 = pneg %p124
    $region22: #{simple_cnn_forward.5} parent=5 // pred_check_branch
      %127 = sbr.rel (%p125) target = $region24
    $region23: #{simple_cnn_forward.5} parent=5 // pred_region
      // Predicated region
      $region25: #{simple_cnn_forward.5} parent=23 // pred_check
        %p128 = pneg %p29
      $region26: #{simple_cnn_forward.5} parent=23 // pred_check_branch
        %130 = sbr.rel (%p128) target = $region28
      $region27: #{simple_cnn_forward.5} parent=23 // pred_region
        %p131 = scmp.lt.s32.totalorder %s9, 3
        %s132 = scalar_select %p131, %s9, 3
        %s133 = smul.addr %s132, 256
        %s134 = smul.addr %s133, 4
        %s135 = scalar_lea.vmem %s0, %s134
      $region28: #{simple_cnn_forward.5} parent=23 // pred_fallthru
        _
    $region24: #{simple_cnn_forward.5} parent=5 // pred_fallthru
      _
    %p136 = scmp.le.s32.totalorder 1, %s9
    %p137 = scmp.lt.s32.totalorder %s9, 5
    %p138 = pnand %p136, %p137
    %p139 = pneg %p138
    // Predicated region
    $region29: #{simple_cnn_forward.5} parent=5 // pred_check
      _
    $region30: #{simple_cnn_forward.5} parent=5 // pred_check_branch
      %141 = sbr.rel (%p138) target = $region32
    $region31: #{simple_cnn_forward.5} parent=5 // pred_region
      %s142 = ssub.s32 %s9, 1
      %p143 = scmp.lt.s32.totalorder %s14, 3
      %s144 = scalar_select %p143, %s14, 3
      %s145 = smul.addr %s144, 256
      %s146 = smul.addr %s145, 4
      %s147 = scalar_lea.vmem %s0, %s146
      %p148 = pneg %p35
      %p149 = pneg %p32
      %p150 = pneg %p56
      %p151 = pneg %p53
      %p152 = pneg %p77
      %p153 = pneg %p74
      %p154 = pneg %p103
      %p155 = pneg %p100
      %p156 = scmp.lt.s32.totalorder %s14, 3
      %s157 = scalar_select %p156, %s14, 3
      %s158 = smul.addr %s157, 128
      %s159 = smul.addr %s158, 4
      %s160 = scalar_lea.vmem %s3, %s159
      %p161 = scmp.lt.s32.totalorder %s14, 3
      %s162 = scalar_select %p161, %s14, 3
      %s163 = smul.addr %s162, 256
      %s164 = smul.addr %s163, 4
      %s165 = scalar_lea.vmem %s0, %s164
      %p166 = scmp.lt.s32.totalorder %s14, 3
      %s167 = scalar_select %p166, %s14, 3
      %s168 = smul.addr %s167, 128
      %s169 = smul.addr %s168, 4
      %s170 = scalar_lea.vmem %s3, %s169
      %v172 = vld [vmem:[%s1] sm:$0xf]
      %v173 = vld [vmem:[%s165] sm:$0xff]
      %v174 = vld [vmem:[%s165 + $0x8] sm:$0xff]
      %v175 = vld [vmem:[%s165 + $0x10] sm:$0xff]
      %v176 = vld [vmem:[%s165 + $0x18] sm:$0xff]
      %v177 = vld [vmem:[%s165 + $0x20] sm:$0xff]
      %v178 = vld [vmem:[%s165 + $0x28] sm:$0xff]
      %v179 = vld [vmem:[%s165 + $0x30] sm:$0xff]
      %v180 = vld [vmem:[%s165 + $0x38] sm:$0xff]
      %v181 = vld [vmem:[%s165 + $0x40] sm:$0xff]
      %v182 = vld [vmem:[%s165 + $0x48] sm:$0xff]
      %v183 = vld [vmem:[%s165 + $0x50] sm:$0xff]
      %v184 = vld [vmem:[%s165 + $0x58] sm:$0xff]
      %v185 = vld [vmem:[%s165 + $0x60] sm:$0xff]
      %v186 = vld [vmem:[%s165 + $0x68] sm:$0xff]
      %v187 = vld [vmem:[%s165 + $0x70] sm:$0xff]
      %v188 = vld [vmem:[%s165 + $0x78] sm:$0xff]
      %v189 = vld [vmem:[%s165 + $0x80] sm:$0xff]
      %v190 = vld [vmem:[%s165 + $0x88] sm:$0xff]
      %v191 = vld [vmem:[%s165 + $0x90] sm:$0xff]
      %v192 = vld [vmem:[%s165 + $0x98] sm:$0xff]
      %v193 = vld [vmem:[%s165 + $0xa0] sm:$0xff]
      %v194 = vld [vmem:[%s165 + $0xa8] sm:$0xff]
      %v195 = vld [vmem:[%s165 + $0xb0] sm:$0xff]
      %v196 = vld [vmem:[%s165 + $0xb8] sm:$0xff]
      %v197 = vld [vmem:[%s165 + $0xc0] sm:$0xff]
      %v198 = vld [vmem:[%s165 + $0xc8] sm:$0xff]
      %v199 = vld [vmem:[%s165 + $0xd0] sm:$0xff]
      %v200 = vld [vmem:[%s165 + $0xd8] sm:$0xff]
      %v201 = vld [vmem:[%s165 + $0xe0] sm:$0xff]
      %v202 = vld [vmem:[%s165 + $0xe8] sm:$0xff]
      %v203 = vld [vmem:[%s165 + $0xf0] sm:$0xff]
      %v204 = vld [vmem:[%s165 + $0xf8] sm:$0xff]
      %v205 = vld [vmem:[%s165 + $0x100] sm:$0xff]
      %v206 = vld [vmem:[%s165 + $0x108] sm:$0xff]
      %v207 = vld [vmem:[%s165 + $0x110] sm:$0xff]
      %v208 = vld [vmem:[%s165 + $0x118] sm:$0xff]
      %v209 = vld [vmem:[%s165 + $0x120] sm:$0xff]
      %v210 = vld [vmem:[%s165 + $0x128] sm:$0xff]
      %v211 = vld [vmem:[%s165 + $0x130] sm:$0xff]
      %v212 = vld [vmem:[%s165 + $0x138] sm:$0xff]
      %v213 = vld [vmem:[%s165 + $0x140] sm:$0xff]
      %v214 = vld [vmem:[%s165 + $0x148] sm:$0xff]
      %v215 = vld [vmem:[%s165 + $0x150] sm:$0xff]
      %v216 = vld [vmem:[%s165 + $0x158] sm:$0xff]
      %v217 = vld [vmem:[%s165 + $0x160] sm:$0xff]
      %v218 = vld [vmem:[%s165 + $0x168] sm:$0xff]
      %v219 = vld [vmem:[%s165 + $0x170] sm:$0xff]
      %v220 = vld [vmem:[%s165 + $0x178] sm:$0xff]
      %v221 = vld [vmem:[%s165 + $0x180] sm:$0xff]
      %v222 = vld [vmem:[%s165 + $0x188] sm:$0xff]
      %v223 = vld [vmem:[%s165 + $0x190] sm:$0xff]
      %v224 = vld [vmem:[%s165 + $0x198] sm:$0xff]
      %v225 = vld [vmem:[%s165 + $0x1a0] sm:$0xff]
      %v226 = vld [vmem:[%s165 + $0x1a8] sm:$0xff]
      %v227 = vld [vmem:[%s165 + $0x1b0] sm:$0xff]
      %v228 = vld [vmem:[%s165 + $0x1b8] sm:$0xff]
      %v229 = vld [vmem:[%s165 + $0x1c0] sm:$0xff]
      %v230 = vld [vmem:[%s165 + $0x1c8] sm:$0xff]
      %v231 = vld [vmem:[%s165 + $0x1d0] sm:$0xff]
      %v232 = vld [vmem:[%s165 + $0x1d8] sm:$0xff]
      %v233 = vld [vmem:[%s165 + $0x1e0] sm:$0xff]
      %v234 = vld [vmem:[%s165 + $0x1e8] sm:$0xff]
      %v235 = vld [vmem:[%s165 + $0x1f0] sm:$0xff]
      %v236 = vld [vmem:[%s165 + $0x1f8] sm:$0xff]
      %v237 = vld [vmem:[%s165 + $0x200] sm:$0x11]
      %v238 = vld [vmem:[%s165 + $0x208] sm:$0x11]
      %v239 = vld [vmem:[%s165 + $0x210] sm:$0x11]
      %v240 = vld [vmem:[%s165 + $0x218] sm:$0x11]
      %v241 = vld [vmem:[%s165 + $0x220] sm:$0x11]
      %v242 = vld [vmem:[%s165 + $0x228] sm:$0x11]
      %v243 = vld [vmem:[%s165 + $0x230] sm:$0x11]
      %v244 = vld [vmem:[%s165 + $0x238] sm:$0x11]
      %v245 = vld [vmem:[%s165 + $0x240] sm:$0x11]
      %v246 = vld [vmem:[%s165 + $0x248] sm:$0x11]
      %v247 = vld [vmem:[%s165 + $0x250] sm:$0x11]
      %v248 = vld [vmem:[%s165 + $0x258] sm:$0x11]
      %v249 = vld [vmem:[%s165 + $0x260] sm:$0x11]
      %v250 = vld [vmem:[%s165 + $0x268] sm:$0x11]
      %v251 = vld [vmem:[%s165 + $0x270] sm:$0x11]
      %v252 = vld [vmem:[%s165 + $0x278] sm:$0x11]
      %v253 = vld [vmem:[%s165 + $0x280] sm:$0x11]
      %v254 = vld [vmem:[%s165 + $0x288] sm:$0x11]
      %v255 = vld [vmem:[%s165 + $0x290] sm:$0x11]
      %v256 = vld [vmem:[%s165 + $0x298] sm:$0x11]
      %v257 = vld [vmem:[%s165 + $0x2a0] sm:$0x11]
      %v258 = vld [vmem:[%s165 + $0x2a8] sm:$0x11]
      %v259 = vld [vmem:[%s165 + $0x2b0] sm:$0x11]
      %v260 = vld [vmem:[%s165 + $0x2b8] sm:$0x11]
      %v261 = vld [vmem:[%s165 + $0x2c0] sm:$0x11]
      %v262 = vld [vmem:[%s165 + $0x2c8] sm:$0x11]
      %v263 = vld [vmem:[%s165 + $0x2d0] sm:$0x11]
      %v264 = vld [vmem:[%s165 + $0x2d8] sm:$0x11]
      %v265 = vld [vmem:[%s165 + $0x2e0] sm:$0x11]
      %v266 = vld [vmem:[%s165 + $0x2e8] sm:$0x11]
      %v267 = vld [vmem:[%s165 + $0x2f0] sm:$0x11]
      %v268 = vld [vmem:[%s165 + $0x2f8] sm:$0x11]
      %v269 = vld [vmem:[%s165 + $0x300] sm:$0x11]
      %v270 = vld [vmem:[%s165 + $0x308] sm:$0x11]
      %v271 = vld [vmem:[%s165 + $0x310] sm:$0x11]
      %v272 = vld [vmem:[%s165 + $0x318] sm:$0x11]
      %v273 = vld [vmem:[%s165 + $0x320] sm:$0x11]
      %v274 = vld [vmem:[%s165 + $0x328] sm:$0x11]
      %v275 = vld [vmem:[%s165 + $0x330] sm:$0x11]
      %v276 = vld [vmem:[%s165 + $0x338] sm:$0x11]
      %v277 = vld [vmem:[%s165 + $0x340] sm:$0x11]
      %v278 = vld [vmem:[%s165 + $0x348] sm:$0x11]
      %v279 = vld [vmem:[%s165 + $0x350] sm:$0x11]
      %v280 = vld [vmem:[%s165 + $0x358] sm:$0x11]
      %v281 = vld [vmem:[%s165 + $0x360] sm:$0x11]
      %v282 = vld [vmem:[%s165 + $0x368] sm:$0x11]
      %v283 = vld [vmem:[%s165 + $0x370] sm:$0x11]
      %v284 = vld [vmem:[%s165 + $0x378] sm:$0x11]
      %v285 = vld [vmem:[%s165 + $0x380] sm:$0x11]
      %v286 = vld [vmem:[%s165 + $0x388] sm:$0x11]
      %v287 = vld [vmem:[%s165 + $0x390] sm:$0x11]
      %v288 = vld [vmem:[%s165 + $0x398] sm:$0x11]
      %v289 = vld [vmem:[%s165 + $0x3a0] sm:$0x11]
      %v290 = vld [vmem:[%s165 + $0x3a8] sm:$0x11]
      %v291 = vld [vmem:[%s165 + $0x3b0] sm:$0x11]
      %v292 = vld [vmem:[%s165 + $0x3b8] sm:$0x11]
      %v293 = vld [vmem:[%s165 + $0x3c0] sm:$0x11]
      %v294 = vld [vmem:[%s165 + $0x3c8] sm:$0x11]
      %v295 = vld [vmem:[%s165 + $0x3d0] sm:$0x11]
      %v296 = vld [vmem:[%s165 + $0x3d8] sm:$0x11]
      %v297 = vld [vmem:[%s165 + $0x3e0] sm:$0x11]
      %v298 = vld [vmem:[%s165 + $0x3e8] sm:$0x11]
      %v299 = vld [vmem:[%s165 + $0x3f0] sm:$0x11]
      %v300 = vld [vmem:[%s165 + $0x3f8] sm:$0x11]
      %v301 = vld [vmem:[%s2] sm:$0xff]
      %303 = vset.pattern.permute.xlu0 0
      %304 = vperm.xlu0 %303, %v301
      %v305 = vpop.permute.xlu0 %304
      %v435 = vunpack.c.l.b16 %v173
      %v436 = vunpack.c.h.b16 %v173
      %v437 = vunpack.c.l.b16 %v174
      %v438 = vunpack.c.h.b16 %v174
      %v439 = vunpack.c.l.b16 %v175
      %v440 = vunpack.c.h.b16 %v175
      %v441 = vunpack.c.l.b16 %v176
      %v442 = vunpack.c.h.b16 %v176
      %v443 = vunpack.c.l.b16 %v177
      %v444 = vunpack.c.h.b16 %v177
      %v445 = vunpack.c.l.b16 %v178
      %v446 = vunpack.c.h.b16 %v178
      %v447 = vunpack.c.l.b16 %v179
      %v448 = vunpack.c.h.b16 %v179
      %v449 = vunpack.c.l.b16 %v180
      %v450 = vunpack.c.h.b16 %v180
      %v451 = vunpack.c.l.b16 %v181
      %v452 = vunpack.c.h.b16 %v181
      %v453 = vunpack.c.l.b16 %v182
      %v454 = vunpack.c.h.b16 %v182
      %v455 = vunpack.c.l.b16 %v183
      %v456 = vunpack.c.h.b16 %v183
      %v457 = vunpack.c.l.b16 %v184
      %v458 = vunpack.c.h.b16 %v184
      %v459 = vunpack.c.l.b16 %v185
      %v460 = vunpack.c.h.b16 %v185
      %v461 = vunpack.c.l.b16 %v186
      %v462 = vunpack.c.h.b16 %v186
      %v463 = vunpack.c.l.b16 %v187
      %v464 = vunpack.c.h.b16 %v187
      %v465 = vunpack.c.l.b16 %v188
      %v466 = vunpack.c.h.b16 %v188
      %v467 = vunpack.c.l.b16 %v189
      %v468 = vunpack.c.h.b16 %v189
      %v469 = vunpack.c.l.b16 %v190
      %v470 = vunpack.c.h.b16 %v190
      %v471 = vunpack.c.l.b16 %v191
      %v472 = vunpack.c.h.b16 %v191
      %v473 = vunpack.c.l.b16 %v192
      %v474 = vunpack.c.h.b16 %v192
      %v475 = vunpack.c.l.b16 %v193
      %v476 = vunpack.c.h.b16 %v193
      %v477 = vunpack.c.l.b16 %v194
      %v478 = vunpack.c.h.b16 %v194
      %v479 = vunpack.c.l.b16 %v195
      %v480 = vunpack.c.h.b16 %v195
      %v481 = vunpack.c.l.b16 %v196
      %v482 = vunpack.c.h.b16 %v196
      %v483 = vunpack.c.l.b16 %v197
      %v484 = vunpack.c.h.b16 %v197
      %v485 = vunpack.c.l.b16 %v198
      %v486 = vunpack.c.h.b16 %v198
      %v487 = vunpack.c.l.b16 %v199
      %v488 = vunpack.c.h.b16 %v199
      %v489 = vunpack.c.l.b16 %v200
      %v490 = vunpack.c.h.b16 %v200
      %v491 = vunpack.c.l.b16 %v201
      %v492 = vunpack.c.h.b16 %v201
      %v493 = vunpack.c.l.b16 %v202
      %v494 = vunpack.c.h.b16 %v202
      %v495 = vunpack.c.l.b16 %v203
      %v496 = vunpack.c.h.b16 %v203
      %v497 = vunpack.c.l.b16 %v204
      %v498 = vunpack.c.h.b16 %v204
      %v499 = vunpack.c.l.b16 %v205
      %v500 = vunpack.c.h.b16 %v205
      %v501 = vunpack.c.l.b16 %v206
      %v502 = vunpack.c.h.b16 %v206
      %v503 = vunpack.c.l.b16 %v207
      %v504 = vunpack.c.h.b16 %v207
      %v505 = vunpack.c.l.b16 %v208
      %v506 = vunpack.c.h.b16 %v208
      %v507 = vunpack.c.l.b16 %v209
      %v508 = vunpack.c.h.b16 %v209
      %v509 = vunpack.c.l.b16 %v210
      %v510 = vunpack.c.h.b16 %v210
      %v511 = vunpack.c.l.b16 %v211
      %v512 = vunpack.c.h.b16 %v211
      %v513 = vunpack.c.l.b16 %v212
      %v514 = vunpack.c.h.b16 %v212
      %v515 = vunpack.c.l.b16 %v213
      %v516 = vunpack.c.h.b16 %v213
      %v517 = vunpack.c.l.b16 %v214
      %v518 = vunpack.c.h.b16 %v214
      %v519 = vunpack.c.l.b16 %v215
      %v520 = vunpack.c.h.b16 %v215
      %v521 = vunpack.c.l.b16 %v216
      %v522 = vunpack.c.h.b16 %v216
      %v523 = vunpack.c.l.b16 %v217
      %v524 = vunpack.c.h.b16 %v217
      %v525 = vunpack.c.l.b16 %v218
      %v526 = vunpack.c.h.b16 %v218
      %v527 = vunpack.c.l.b16 %v219
      %v528 = vunpack.c.h.b16 %v219
      %v529 = vunpack.c.l.b16 %v220
      %v530 = vunpack.c.h.b16 %v220
      %v531 = vunpack.c.l.b16 %v221
      %v532 = vunpack.c.h.b16 %v221
      %v533 = vunpack.c.l.b16 %v222
      %v534 = vunpack.c.h.b16 %v222
      %v535 = vunpack.c.l.b16 %v223
      %v536 = vunpack.c.h.b16 %v223
      %v537 = vunpack.c.l.b16 %v224
      %v538 = vunpack.c.h.b16 %v224
      %v539 = vunpack.c.l.b16 %v225
      %v540 = vunpack.c.h.b16 %v225
      %v541 = vunpack.c.l.b16 %v226
      %v542 = vunpack.c.h.b16 %v226
      %v543 = vunpack.c.l.b16 %v227
      %v544 = vunpack.c.h.b16 %v227
      %v545 = vunpack.c.l.b16 %v228
      %v546 = vunpack.c.h.b16 %v228
      %v547 = vunpack.c.l.b16 %v229
      %v548 = vunpack.c.h.b16 %v229
      %v549 = vunpack.c.l.b16 %v230
      %v550 = vunpack.c.h.b16 %v230
      %v551 = vunpack.c.l.b16 %v231
      %v552 = vunpack.c.h.b16 %v231
      %v553 = vunpack.c.l.b16 %v232
      %v554 = vunpack.c.h.b16 %v232
      %v555 = vunpack.c.l.b16 %v233
      %v556 = vunpack.c.h.b16 %v233
      %v557 = vunpack.c.l.b16 %v234
      %v558 = vunpack.c.h.b16 %v234
      %v559 = vunpack.c.l.b16 %v235
      %v560 = vunpack.c.h.b16 %v235
      %v561 = vunpack.c.l.b16 %v236
      %v562 = vunpack.c.h.b16 %v236
      %v563 = vunpack.c.l.b16 %v237
      %v564 = vunpack.c.h.b16 %v237
      %v565 = vunpack.c.l.b16 %v238
      %v566 = vunpack.c.h.b16 %v238
      %v567 = vunpack.c.l.b16 %v239
      %v568 = vunpack.c.h.b16 %v239
      %v569 = vunpack.c.l.b16 %v240
      %v570 = vunpack.c.h.b16 %v240
      %v571 = vunpack.c.l.b16 %v241
      %v572 = vunpack.c.h.b16 %v241
      %v573 = vunpack.c.l.b16 %v242
      %v574 = vunpack.c.h.b16 %v242
      %v575 = vunpack.c.l.b16 %v243
      %v576 = vunpack.c.h.b16 %v243
      %v577 = vunpack.c.l.b16 %v244
      %v578 = vunpack.c.h.b16 %v244
      %v579 = vunpack.c.l.b16 %v245
      %v580 = vunpack.c.h.b16 %v245
      %v581 = vunpack.c.l.b16 %v246
      %v582 = vunpack.c.h.b16 %v246
      %v583 = vunpack.c.l.b16 %v247
      %v584 = vunpack.c.h.b16 %v247
      %v585 = vunpack.c.l.b16 %v248
      %v586 = vunpack.c.h.b16 %v248
      %v587 = vunpack.c.l.b16 %v249
      %v588 = vunpack.c.h.b16 %v249
      %v589 = vunpack.c.l.b16 %v250
      %v590 = vunpack.c.h.b16 %v250
      %v591 = vunpack.c.l.b16 %v251
      %v592 = vunpack.c.h.b16 %v251
      %v593 = vunpack.c.l.b16 %v252
      %v594 = vunpack.c.h.b16 %v252
      %v595 = vunpack.c.l.b16 %v253
      %v596 = vunpack.c.h.b16 %v253
      %v597 = vunpack.c.l.b16 %v254
      %v598 = vunpack.c.h.b16 %v254
      %v599 = vunpack.c.l.b16 %v255
      %v600 = vunpack.c.h.b16 %v255
      %v601 = vunpack.c.l.b16 %v256
      %v602 = vunpack.c.h.b16 %v256
      %v603 = vunpack.c.l.b16 %v257
      %v604 = vunpack.c.h.b16 %v257
      %v605 = vunpack.c.l.b16 %v258
      %v606 = vunpack.c.h.b16 %v258
      %v607 = vunpack.c.l.b16 %v259
      %v608 = vunpack.c.h.b16 %v259
      %v609 = vunpack.c.l.b16 %v260
      %v610 = vunpack.c.h.b16 %v260
      %v611 = vunpack.c.l.b16 %v261
      %v612 = vunpack.c.h.b16 %v261
      %v613 = vunpack.c.l.b16 %v262
      %v614 = vunpack.c.h.b16 %v262
      %v615 = vunpack.c.l.b16 %v263
      %v616 = vunpack.c.h.b16 %v263
      %v617 = vunpack.c.l.b16 %v264
      %v618 = vunpack.c.h.b16 %v264
      %v619 = vunpack.c.l.b16 %v265
      %v620 = vunpack.c.h.b16 %v265
      %v621 = vunpack.c.l.b16 %v266
      %v622 = vunpack.c.h.b16 %v266
      %v623 = vunpack.c.l.b16 %v267
      %v624 = vunpack.c.h.b16 %v267
      %v625 = vunpack.c.l.b16 %v268
      %v626 = vunpack.c.h.b16 %v268
      %v627 = vunpack.c.l.b16 %v269
      %v628 = vunpack.c.h.b16 %v269
      %v629 = vunpack.c.l.b16 %v270
      %v630 = vunpack.c.h.b16 %v270
      %v631 = vunpack.c.l.b16 %v271
      %v632 = vunpack.c.h.b16 %v271
      %v633 = vunpack.c.l.b16 %v272
      %v634 = vunpack.c.h.b16 %v272
      %v635 = vunpack.c.l.b16 %v273
      %v636 = vunpack.c.h.b16 %v273
      %v637 = vunpack.c.l.b16 %v274
      %v638 = vunpack.c.h.b16 %v274
      %v639 = vunpack.c.l.b16 %v275
      %v640 = vunpack.c.h.b16 %v275
      %v641 = vunpack.c.l.b16 %v276
      %v642 = vunpack.c.h.b16 %v276
      %v643 = vunpack.c.l.b16 %v277
      %v644 = vunpack.c.h.b16 %v277
      %v645 = vunpack.c.l.b16 %v278
      %v646 = vunpack.c.h.b16 %v278
      %v647 = vunpack.c.l.b16 %v279
      %v648 = vunpack.c.h.b16 %v279
      %v649 = vunpack.c.l.b16 %v280
      %v650 = vunpack.c.h.b16 %v280
      %v651 = vunpack.c.l.b16 %v281
      %v652 = vunpack.c.h.b16 %v281
      %v653 = vunpack.c.l.b16 %v282
      %v654 = vunpack.c.h.b16 %v282
      %v655 = vunpack.c.l.b16 %v283
      %v656 = vunpack.c.h.b16 %v283
      %v657 = vunpack.c.l.b16 %v284
      %v658 = vunpack.c.h.b16 %v284
      %v659 = vunpack.c.l.b16 %v285
      %v660 = vunpack.c.h.b16 %v285
      %v661 = vunpack.c.l.b16 %v286
      %v662 = vunpack.c.h.b16 %v286
      %v663 = vunpack.c.l.b16 %v287
      %v664 = vunpack.c.h.b16 %v287
      %v665 = vunpack.c.l.b16 %v288
      %v666 = vunpack.c.h.b16 %v288
      %v667 = vunpack.c.l.b16 %v289
      %v668 = vunpack.c.h.b16 %v289
      %v669 = vunpack.c.l.b16 %v290
      %v670 = vunpack.c.h.b16 %v290
      %v671 = vunpack.c.l.b16 %v291
      %v672 = vunpack.c.h.b16 %v291
      %v673 = vunpack.c.l.b16 %v292
      %v674 = vunpack.c.h.b16 %v292
      %v675 = vunpack.c.l.b16 %v293
      %v676 = vunpack.c.h.b16 %v293
      %v677 = vunpack.c.l.b16 %v294
      %v678 = vunpack.c.h.b16 %v294
      %v679 = vunpack.c.l.b16 %v295
      %v680 = vunpack.c.h.b16 %v295
      %v681 = vunpack.c.l.b16 %v296
      %v682 = vunpack.c.h.b16 %v296
      %v683 = vunpack.c.l.b16 %v297
      %v684 = vunpack.c.h.b16 %v297
      %v685 = vunpack.c.l.b16 %v298
      %v686 = vunpack.c.h.b16 %v298
      %v687 = vunpack.c.l.b16 %v299
      %v688 = vunpack.c.h.b16 %v299
      %v689 = vunpack.c.l.b16 %v300
      %v690 = vunpack.c.h.b16 %v300
      %v691 = vpack.c.b16 %v563, %v435
      %v692 = vpack.c.b16 %v564, %v436
      %v693 = vpack.c.b16 %v565, %v437
      %v694 = vpack.c.b16 %v566, %v438
      %v695 = vpack.c.b16 %v567, %v439
      %v696 = vpack.c.b16 %v568, %v440
      %v697 = vpack.c.b16 %v569, %v441
      %v698 = vpack.c.b16 %v570, %v442
      %v699 = vpack.c.b16 %v571, %v443
      %v700 = vpack.c.b16 %v572, %v444
      %v701 = vpack.c.b16 %v573, %v445
      %v702 = vpack.c.b16 %v574, %v446
      %v703 = vpack.c.b16 %v575, %v447
      %v704 = vpack.c.b16 %v576, %v448
      %v705 = vpack.c.b16 %v577, %v449
      %v706 = vpack.c.b16 %v578, %v450
      %v707 = vpack.c.b16 %v579, %v451
      %v708 = vpack.c.b16 %v580, %v452
      %v709 = vpack.c.b16 %v581, %v453
      %v710 = vpack.c.b16 %v582, %v454
      %v711 = vpack.c.b16 %v583, %v455
      %v712 = vpack.c.b16 %v584, %v456
      %v713 = vpack.c.b16 %v585, %v457
      %v714 = vpack.c.b16 %v586, %v458
      %v715 = vpack.c.b16 %v587, %v459
      %v716 = vpack.c.b16 %v588, %v460
      %v717 = vpack.c.b16 %v589, %v461
      %v718 = vpack.c.b16 %v590, %v462
      %v719 = vpack.c.b16 %v591, %v463
      %v720 = vpack.c.b16 %v592, %v464
      %v721 = vpack.c.b16 %v593, %v465
      %v722 = vpack.c.b16 %v594, %v466
      %v723 = vpack.c.b16 %v595, %v467
      %v724 = vpack.c.b16 %v596, %v468
      %v725 = vpack.c.b16 %v597, %v469
      %v726 = vpack.c.b16 %v598, %v470
      %v727 = vpack.c.b16 %v599, %v471
      %v728 = vpack.c.b16 %v600, %v472
      %v729 = vpack.c.b16 %v601, %v473
      %v730 = vpack.c.b16 %v602, %v474
      %v731 = vpack.c.b16 %v603, %v475
      %v732 = vpack.c.b16 %v604, %v476
      %v733 = vpack.c.b16 %v605, %v477
      %v734 = vpack.c.b16 %v606, %v478
      %v735 = vpack.c.b16 %v607, %v479
      %v736 = vpack.c.b16 %v608, %v480
      %v737 = vpack.c.b16 %v609, %v481
      %v738 = vpack.c.b16 %v610, %v482
      %v739 = vpack.c.b16 %v611, %v483
      %v740 = vpack.c.b16 %v612, %v484
      %v741 = vpack.c.b16 %v613, %v485
      %v742 = vpack.c.b16 %v614, %v486
      %v743 = vpack.c.b16 %v615, %v487
      %v744 = vpack.c.b16 %v616, %v488
      %v745 = vpack.c.b16 %v617, %v489
      %v746 = vpack.c.b16 %v618, %v490
      %v747 = vpack.c.b16 %v619, %v491
      %v748 = vpack.c.b16 %v620, %v492
      %v749 = vpack.c.b16 %v621, %v493
      %v750 = vpack.c.b16 %v622, %v494
      %v751 = vpack.c.b16 %v623, %v495
      %v752 = vpack.c.b16 %v624, %v496
      %v753 = vpack.c.b16 %v625, %v497
      %v754 = vpack.c.b16 %v626, %v498
      %v755 = vpack.c.b16 %v627, %v499
      %v756 = vpack.c.b16 %v628, %v500
      %v757 = vpack.c.b16 %v629, %v501
      %v758 = vpack.c.b16 %v630, %v502
      %v759 = vpack.c.b16 %v631, %v503
      %v760 = vpack.c.b16 %v632, %v504
      %v761 = vpack.c.b16 %v633, %v505
      %v762 = vpack.c.b16 %v634, %v506
      %v763 = vpack.c.b16 %v635, %v507
      %v764 = vpack.c.b16 %v636, %v508
      %v765 = vpack.c.b16 %v637, %v509
      %v766 = vpack.c.b16 %v638, %v510
      %v767 = vpack.c.b16 %v639, %v511
      %v768 = vpack.c.b16 %v640, %v512
      %v769 = vpack.c.b16 %v641, %v513
      %v770 = vpack.c.b16 %v642, %v514
      %v771 = vpack.c.b16 %v643, %v515
      %v772 = vpack.c.b16 %v644, %v516
      %v773 = vpack.c.b16 %v645, %v517
      %v774 = vpack.c.b16 %v646, %v518
      %v775 = vpack.c.b16 %v647, %v519
      %v776 = vpack.c.b16 %v648, %v520
      %v777 = vpack.c.b16 %v649, %v521
      %v778 = vpack.c.b16 %v650, %v522
      %v779 = vpack.c.b16 %v651, %v523
      %v780 = vpack.c.b16 %v652, %v524
      %v781 = vpack.c.b16 %v653, %v525
      %v782 = vpack.c.b16 %v654, %v526
      %v783 = vpack.c.b16 %v655, %v527
      %v784 = vpack.c.b16 %v656, %v528
      %v785 = vpack.c.b16 %v657, %v529
      %v786 = vpack.c.b16 %v658, %v530
      %v787 = vpack.c.b16 %v659, %v531
      %v788 = vpack.c.b16 %v660, %v532
      %v789 = vpack.c.b16 %v661, %v533
      %v790 = vpack.c.b16 %v662, %v534
      %v791 = vpack.c.b16 %v663, %v535
      %v792 = vpack.c.b16 %v664, %v536
      %v793 = vpack.c.b16 %v665, %v537
      %v794 = vpack.c.b16 %v666, %v538
      %v795 = vpack.c.b16 %v667, %v539
      %v796 = vpack.c.b16 %v668, %v540
      %v797 = vpack.c.b16 %v669, %v541
      %v798 = vpack.c.b16 %v670, %v542
      %v799 = vpack.c.b16 %v671, %v543
      %v800 = vpack.c.b16 %v672, %v544
      %v801 = vpack.c.b16 %v673, %v545
      %v802 = vpack.c.b16 %v674, %v546
      %v803 = vpack.c.b16 %v675, %v547
      %v804 = vpack.c.b16 %v676, %v548
      %v805 = vpack.c.b16 %v677, %v549
      %v806 = vpack.c.b16 %v678, %v550
      %v807 = vpack.c.b16 %v679, %v551
      %v808 = vpack.c.b16 %v680, %v552
      %v809 = vpack.c.b16 %v681, %v553
      %v810 = vpack.c.b16 %v682, %v554
      %v811 = vpack.c.b16 %v683, %v555
      %v812 = vpack.c.b16 %v684, %v556
      %v813 = vpack.c.b16 %v685, %v557
      %v814 = vpack.c.b16 %v686, %v558
      %v815 = vpack.c.b16 %v687, %v559
      %v816 = vpack.c.b16 %v688, %v560
      %v817 = vpack.c.b16 %v689, %v561
      %v818 = vpack.c.b16 %v690, %v562
      %vm819 = vcmask 72704
      %v821 = vsel %vm819, %v172, 0
      %vm823 = vcmask 1043456
      %vm824 = vcmask 1044480
      %v825 = vsel %vm823, 4294967295, 65535
      %v826 = vsel %vm824, %v825, 0
      %v828 = vand.u32 %v691, %v826
      %v831 = vand.u32 %v692, %v826
      %v834 = vand.u32 %v693, %v826
      %v837 = vand.u32 %v694, %v826
      %v840 = vand.u32 %v695, %v826
      %v843 = vand.u32 %v696, %v826
      %v846 = vand.u32 %v697, %v826
      %v849 = vand.u32 %v698, %v826
      %v852 = vand.u32 %v699, %v826
      %v855 = vand.u32 %v700, %v826
      %v858 = vand.u32 %v701, %v826
      %v861 = vand.u32 %v702, %v826
      %v864 = vand.u32 %v703, %v826
      %v867 = vand.u32 %v704, %v826
      %v870 = vand.u32 %v705, %v826
      %v873 = vand.u32 %v706, %v826
      %v876 = vand.u32 %v707, %v826
      %v879 = vand.u32 %v708, %v826
      %v882 = vand.u32 %v709, %v826
      %v885 = vand.u32 %v710, %v826
      %v888 = vand.u32 %v711, %v826
      %v891 = vand.u32 %v712, %v826
      %v894 = vand.u32 %v713, %v826
      %v897 = vand.u32 %v714, %v826
      %v900 = vand.u32 %v715, %v826
      %v903 = vand.u32 %v716, %v826
      %v906 = vand.u32 %v717, %v826
      %v909 = vand.u32 %v718, %v826
      %v912 = vand.u32 %v719, %v826
      %v915 = vand.u32 %v720, %v826
      %v918 = vand.u32 %v721, %v826
      %v921 = vand.u32 %v722, %v826
      %v924 = vand.u32 %v723, %v826
      %v927 = vand.u32 %v724, %v826
      %v930 = vand.u32 %v725, %v826
      %v933 = vand.u32 %v726, %v826
      %v936 = vand.u32 %v727, %v826
      %v939 = vand.u32 %v728, %v826
      %v942 = vand.u32 %v729, %v826
      %v945 = vand.u32 %v730, %v826
      %v948 = vand.u32 %v731, %v826
      %v951 = vand.u32 %v732, %v826
      %v954 = vand.u32 %v733, %v826
      %v957 = vand.u32 %v734, %v826
      %v960 = vand.u32 %v735, %v826
      %v963 = vand.u32 %v736, %v826
      %v966 = vand.u32 %v737, %v826
      %v969 = vand.u32 %v738, %v826
      %v972 = vand.u32 %v739, %v826
      %v975 = vand.u32 %v740, %v826
      %v978 = vand.u32 %v741, %v826
      %v981 = vand.u32 %v742, %v826
      %v984 = vand.u32 %v743, %v826
      %v987 = vand.u32 %v744, %v826
      %v990 = vand.u32 %v745, %v826
      %v993 = vand.u32 %v746, %v826
      %v996 = vand.u32 %v747, %v826
      %v999 = vand.u32 %v748, %v826
      %v1002 = vand.u32 %v749, %v826
      %v1005 = vand.u32 %v750, %v826
      %v1008 = vand.u32 %v751, %v826
      %v1011 = vand.u32 %v752, %v826
      %v1014 = vand.u32 %v753, %v826
      %v1017 = vand.u32 %v754, %v826
      %v1020 = vand.u32 %v755, %v826
      %v1023 = vand.u32 %v756, %v826
      %v1026 = vand.u32 %v757, %v826
      %v1029 = vand.u32 %v758, %v826
      %v1032 = vand.u32 %v759, %v826
      %v1035 = vand.u32 %v760, %v826
      %v1038 = vand.u32 %v761, %v826
      %v1041 = vand.u32 %v762, %v826
      %v1044 = vand.u32 %v763, %v826
      %v1047 = vand.u32 %v764, %v826
      %v1050 = vand.u32 %v765, %v826
      %v1053 = vand.u32 %v766, %v826
      %v1056 = vand.u32 %v767, %v826
      %v1059 = vand.u32 %v768, %v826
      %v1062 = vand.u32 %v769, %v826
      %v1065 = vand.u32 %v770, %v826
      %v1068 = vand.u32 %v771, %v826
      %v1071 = vand.u32 %v772, %v826
      %v1074 = vand.u32 %v773, %v826
      %v1077 = vand.u32 %v774, %v826
      %v1080 = vand.u32 %v775, %v826
      %v1083 = vand.u32 %v776, %v826
      %v1086 = vand.u32 %v777, %v826
      %v1089 = vand.u32 %v778, %v826
      %v1092 = vand.u32 %v779, %v826
      %v1095 = vand.u32 %v780, %v826
      %v1098 = vand.u32 %v781, %v826
      %v1101 = vand.u32 %v782, %v826
      %v1104 = vand.u32 %v783, %v826
      %v1107 = vand.u32 %v784, %v826
      %v1110 = vand.u32 %v785, %v826
      %v1113 = vand.u32 %v786, %v826
      %v1116 = vand.u32 %v787, %v826
      %v1119 = vand.u32 %v788, %v826
      %v1122 = vand.u32 %v789, %v826
      %v1125 = vand.u32 %v790, %v826
      %v1128 = vand.u32 %v791, %v826
      %v1131 = vand.u32 %v792, %v826
      %v1134 = vand.u32 %v793, %v826
      %v1137 = vand.u32 %v794, %v826
      %v1140 = vand.u32 %v795, %v826
      %v1143 = vand.u32 %v796, %v826
      %v1146 = vand.u32 %v797, %v826
      %v1149 = vand.u32 %v798, %v826
      %v1152 = vand.u32 %v799, %v826
      %v1155 = vand.u32 %v800, %v826
      %v1158 = vand.u32 %v801, %v826
      %v1161 = vand.u32 %v802, %v826
      %v1164 = vand.u32 %v803, %v826
      %v1167 = vand.u32 %v804, %v826
      %v1170 = vand.u32 %v805, %v826
      %v1173 = vand.u32 %v806, %v826
      %v1176 = vand.u32 %v807, %v826
      %v1179 = vand.u32 %v808, %v826
      %v1182 = vand.u32 %v809, %v826
      %v1185 = vand.u32 %v810, %v826
      %v1188 = vand.u32 %v811, %v826
      %v1191 = vand.u32 %v812, %v826
      %v1194 = vand.u32 %v813, %v826
      %v1197 = vand.u32 %v814, %v826
      %v1200 = vand.u32 %v815, %v826
      %v1203 = vand.u32 %v816, %v826
      %v1206 = vand.u32 %v817, %v826
      %v1209 = vand.u32 %v818, %v826
      %1211 = vmatprep.subr.bf16.mxu0 0
      %1212 = vmatpush1.bf16.msra.mxu0 0
      %1213 = vmatprep.subr.bf16.mxu0 0
      %1214 = vmatpush1.bf16.msra.mxu0 0
      %1215 = vmatprep.subr.bf16.mxu0 0
      %1216 = vmatpush1.bf16.msra.mxu0 0
      %1217 = vmatprep.subr.bf16.mxu0 0
      %1218 = vmatpush1.bf16.msra.mxu0 0
      %1219 = vmatprep.subr.bf16.mxu0 0
      %1220 = vmatpush1.bf16.msra.mxu0 0
      %1221 = vmatprep.subr.bf16.mxu0 0
      %1222 = vmatpush1.bf16.msra.mxu0 0
      %1223 = vmatprep.subr.bf16.mxu0 0
      %1224 = vmatpush1.bf16.msra.mxu0 0
      %1225 = vmatprep.subr.bf16.mxu0 %v831
      %1226 = vmatpush1.bf16.msra.mxu0 %v828
      %1227 = vmatprep.subr.bf16.mxu0 0
      %1228 = vmatpush2.bf16.msra.mxu0 0
      %1229 = vmatprep.subr.bf16.mxu0 0
      %1230 = vmatpush2.bf16.msra.mxu0 0
      %1231 = vmatprep.subr.bf16.mxu0 0
      %1232 = vmatpush2.bf16.msra.mxu0 0
      %1233 = vmatprep.subr.bf16.mxu0 0
      %1234 = vmatpush2.bf16.msra.mxu0 0
      %1235 = vmatprep.subr.bf16.mxu0 0
      %1236 = vmatpush2.bf16.msra.mxu0 0
      %1237 = vmatprep.subr.bf16.mxu0 0
      %1238 = vmatpush2.bf16.msra.mxu0 0
      %1239 = vmatprep.subr.bf16.mxu0 0
      %1240 = vmatpush2.bf16.msra.mxu0 0
      %1241 = vmatprep.subr.bf16.mxu0 0
      %1242 = vmatpush2.bf16.msra.mxu0 0
      %1243 = vmatprep.mubr.bf16.mxu0 0
      %1244 = vmatmul.mubr.bf16.gmra.mxu0 %v821
      %v1245 = vpop.f32.mrf.mxu0
      %v1246 = vadd.f32 %v305, %v1245
      %v1247 = vpop.f32.mrf.mxu0
      %v1248 = vadd.f32 %v305, %v1247
      %v1249 = vpop.f32.mrf.mxu0
      %v1250 = vpop.f32.mrf.mxu0
      %1251 = vdwg.mxu0
      %1252 = vmatprep.subr.bf16.mxu0 0
      %1253 = vmatpush1.bf16.msra.mxu0 0
      %1254 = vmatprep.subr.bf16.mxu0 0
      %1255 = vmatpush1.bf16.msra.mxu0 0
      %1256 = vmatprep.subr.bf16.mxu0 0
      %1257 = vmatpush1.bf16.msra.mxu0 0
      %1258 = vmatprep.subr.bf16.mxu0 0
      %1259 = vmatpush1.bf16.msra.mxu0 0
      %1260 = vmatprep.subr.bf16.mxu0 0
      %1261 = vmatpush1.bf16.msra.mxu0 0
      %1262 = vmatprep.subr.bf16.mxu0 0
      %1263 = vmatpush1.bf16.msra.mxu0 0
      %1264 = vmatprep.subr.bf16.mxu0 0
      %1265 = vmatpush1.bf16.msra.mxu0 0
      %1266 = vmatprep.subr.bf16.mxu0 %v837
      %1267 = vmatpush1.bf16.msra.mxu0 %v834
      %1268 = vmatprep.subr.bf16.mxu0 0
      %1269 = vmatpush2.bf16.msra.mxu0 0
      %1270 = vmatprep.subr.bf16.mxu0 0
      %1271 = vmatpush2.bf16.msra.mxu0 0
      %1272 = vmatprep.subr.bf16.mxu0 0
      %1273 = vmatpush2.bf16.msra.mxu0 0
      %1274 = vmatprep.subr.bf16.mxu0 0
      %1275 = vmatpush2.bf16.msra.mxu0 0
      %1276 = vmatprep.subr.bf16.mxu0 0
      %1277 = vmatpush2.bf16.msra.mxu0 0
      %1278 = vmatprep.subr.bf16.mxu0 0
      %1279 = vmatpush2.bf16.msra.mxu0 0
      %1280 = vmatprep.subr.bf16.mxu0 0
      %1281 = vmatpush2.bf16.msra.mxu0 0
      %1282 = vmatprep.subr.bf16.mxu0 0
      %1283 = vmatpush2.bf16.msra.mxu0 0
      %1284 = vmatprep.mubr.bf16.mxu0 0
      %1285 = vmatmul.mubr.bf16.gmra.mxu0 %v821
      %v1286 = vpop.f32.mrf.mxu0
      %v1287 = vadd.f32 %v305, %v1286
      %v1288 = vpop.f32.mrf.mxu0
      %v1289 = vadd.f32 %v305, %v1288
      %v1290 = vpop.f32.mrf.mxu0
      %v1291 = vpop.f32.mrf.mxu0
      %1292 = vdwg.mxu0
      %1293 = vmatprep.subr.bf16.mxu0 0
      %1294 = vmatpush1.bf16.msra.mxu0 0
      %1295 = vmatprep.subr.bf16.mxu0 0
      %1296 = vmatpush1.bf16.msra.mxu0 0
      %1297 = vmatprep.subr.bf16.mxu0 0
      %1298 = vmatpush1.bf16.msra.mxu0 0
      %1299 = vmatprep.subr.bf16.mxu0 0
      %1300 = vmatpush1.bf16.msra.mxu0 0
      %1301 = vmatprep.subr.bf16.mxu0 0
      %1302 = vmatpush1.bf16.msra.mxu0 0
      %1303 = vmatprep.subr.bf16.mxu0 0
      %1304 = vmatpush1.bf16.msra.mxu0 0
      %1305 = vmatprep.subr.bf16.mxu0 0
      %1306 = vmatpush1.bf16.msra.mxu0 0
      %1307 = vmatprep.subr.bf16.mxu0 %v843
      %1308 = vmatpush1.bf16.msra.mxu0 %v840
      %1309 = vmatprep.subr.bf16.mxu0 0
      %1310 = vmatpush2.bf16.msra.mxu0 0
      %1311 = vmatprep.subr.bf16.mxu0 0
      %1312 = vmatpush2.bf16.msra.mxu0 0
      %1313 = vmatprep.subr.bf16.mxu0 0
      %1314 = vmatpush2.bf16.msra.mxu0 0
      %1315 = vmatprep.subr.bf16.mxu0 0
      %1316 = vmatpush2.bf16.msra.mxu0 0
      %1317 = vmatprep.subr.bf16.mxu0 0
      %1318 = vmatpush2.bf16.msra.mxu0 0
      %1319 = vmatprep.subr.bf16.mxu0 0
      %1320 = vmatpush2.bf16.msra.mxu0 0
      %1321 = vmatprep.subr.bf16.mxu0 0
      %1322 = vmatpush2.bf16.msra.mxu0 0
      %1323 = vmatprep.subr.bf16.mxu0 0
      %1324 = vmatpush2.bf16.msra.mxu0 0
      %1325 = vmatprep.mubr.bf16.mxu0 0
      %1326 = vmatmul.mubr.bf16.gmra.mxu0 %v821
      %v1327 = vpop.f32.mrf.mxu0
      %v1328 = vadd.f32 %v305, %v1327
      %v1329 = vpop.f32.mrf.mxu0
      %v1330 = vadd.f32 %v305, %v1329
      %v1331 = vpop.f32.mrf.mxu0
      %v1332 = vpop.f32.mrf.mxu0
      %1333 = vdwg.mxu0
      %1334 = vmatprep.subr.bf16.mxu0 0
      %1335 = vmatpush1.bf16.msra.mxu0 0
      %1336 = vmatprep.subr.bf16.mxu0 0
      %1337 = vmatpush1.bf16.msra.mxu0 0
      %1338 = vmatprep.subr.bf16.mxu0 0
      %1339 = vmatpush1.bf16.msra.mxu0 0
      %1340 = vmatprep.subr.bf16.mxu0 0
      %1341 = vmatpush1.bf16.msra.mxu0 0
      %1342 = vmatprep.subr.bf16.mxu0 0
      %1343 = vmatpush1.bf16.msra.mxu0 0
      %1344 = vmatprep.subr.bf16.mxu0 0
      %1345 = vmatpush1.bf16.msra.mxu0 0
      %1346 = vmatprep.subr.bf16.mxu0 0
      %1347 = vmatpush1.bf16.msra.mxu0 0
      %1348 = vmatprep.subr.bf16.mxu0 %v849
      %1349 = vmatpush1.bf16.msra.mxu0 %v846
      %1350 = vmatprep.subr.bf16.mxu0 0
      %1351 = vmatpush2.bf16.msra.mxu0 0
      %1352 = vmatprep.subr.bf16.mxu0 0
      %1353 = vmatpush2.bf16.msra.mxu0 0
      %1354 = vmatprep.subr.bf16.mxu0 0
      %1355 = vmatpush2.bf16.msra.mxu0 0
      %1356 = vmatprep.subr.bf16.mxu0 0
      %1357 = vmatpush2.bf16.msra.mxu0 0
      %1358 = vmatprep.subr.bf16.mxu0 0
      %1359 = vmatpush2.bf16.msra.mxu0 0
      %1360 = vmatprep.subr.bf16.mxu0 0
      %1361 = vmatpush2.bf16.msra.mxu0 0
      %1362 = vmatprep.subr.bf16.mxu0 0
      %1363 = vmatpush2.bf16.msra.mxu0 0
      %1364 = vmatprep.subr.bf16.mxu0 0
      %1365 = vmatpush2.bf16.msra.mxu0 0
      %1366 = vmatprep.mubr.bf16.mxu0 0
      %1367 = vmatmul.mubr.bf16.gmra.mxu0 %v821
      %v1368 = vpop.f32.mrf.mxu0
      %v1369 = vadd.f32 %v305, %v1368
      %v1370 = vpop.f32.mrf.mxu0
      %v1371 = vadd.f32 %v305, %v1370
      %v1372 = vpop.f32.mrf.mxu0
      %v1373 = vpop.f32.mrf.mxu0
      %1374 = vdwg.mxu0
      %1375 = vmatprep.subr.bf16.mxu0 0
      %1376 = vmatpush1.bf16.msra.mxu0 0
      %1377 = vmatprep.subr.bf16.mxu0 0
      %1378 = vmatpush1.bf16.msra.mxu0 0
      %1379 = vmatprep.subr.bf16.mxu0 0
      %1380 = vmatpush1.bf16.msra.mxu0 0
      %1381 = vmatprep.subr.bf16.mxu0 0
      %1382 = vmatpush1.bf16.msra.mxu0 0
      %1383 = vmatprep.subr.bf16.mxu0 0
      %1384 = vmatpush1.bf16.msra.mxu0 0
      %1385 = vmatprep.subr.bf16.mxu0 0
      %1386 = vmatpush1.bf16.msra.mxu0 0
      %1387 = vmatprep.subr.bf16.mxu0 0
      %1388 = vmatpush1.bf16.msra.mxu0 0
      %1389 = vmatprep.subr.bf16.mxu0 %v855
      %1390 = vmatpush1.bf16.msra.mxu0 %v852
      %1391 = vmatprep.subr.bf16.mxu0 0
      %1392 = vmatpush2.bf16.msra.mxu0 0
      %1393 = vmatprep.subr.bf16.mxu0 0
      %1394 = vmatpush2.bf16.msra.mxu0 0
      %1395 = vmatprep.subr.bf16.mxu0 0
      %1396 = vmatpush2.bf16.msra.mxu0 0
      %1397 = vmatprep.subr.bf16.mxu0 0
      %1398 = vmatpush2.bf16.msra.mxu0 0
      %1399 = vmatprep.subr.bf16.mxu0 0
      %1400 = vmatpush2.bf16.msra.mxu0 0
      %1401 = vmatprep.subr.bf16.mxu0 0
      %1402 = vmatpush2.bf16.msra.mxu0 0
      %1403 = vmatprep.subr.bf16.mxu0 0
      %1404 = vmatpush2.bf16.msra.mxu0 0
      %1405 = vmatprep.subr.bf16.mxu0 0
      %1406 = vmatpush2.bf16.msra.mxu0 0
      %1407 = vmatprep.mubr.bf16.mxu0 0
      %1408 = vmatmul.mubr.bf16.gmra.mxu0 %v821
      %v1409 = vpop.f32.mrf.mxu0
      %v1410 = vadd.f32 %v305, %v1409
      %v1411 = vpop.f32.mrf.mxu0
      %v1412 = vadd.f32 %v305, %v1411
      %v1413 = vpop.f32.mrf.mxu0
      %v1414 = vpop.f32.mrf.mxu0
      %1415 = vdwg.mxu0
      %1416 = vmatprep.subr.bf16.mxu0 0
      %1417 = vmatpush1.bf16.msra.mxu0 0
      %1418 = vmatprep.subr.bf16.mxu0 0
      %1419 = vmatpush1.bf16.msra.mxu0 0
      %1420 = vmatprep.subr.bf16.mxu0 0
      %1421 = vmatpush1.bf16.msra.mxu0 0
      %1422 = vmatprep.subr.bf16.mxu0 0
      %1423 = vmatpush1.bf16.msra.mxu0 0
      %1424 = vmatprep.subr.bf16.mxu0 0
      %1425 = vmatpush1.bf16.msra.mxu0 0
      %1426 = vmatprep.subr.bf16.mxu0 0
      %1427 = vmatpush1.bf16.msra.mxu0 0
      %1428 = vmatprep.subr.bf16.mxu0 0
      %1429 = vmatpush1.bf16.msra.mxu0 0
      %1430 = vmatprep.subr.bf16.mxu0 %v861
      %1431 = vmatpush1.bf16.msra.mxu0 %v858
      %1432 = vmatprep.subr.bf16.mxu0 0
      %1433 = vmatpush2.bf16.msra.mxu0 0
      %1434 = vmatprep.subr.bf16.mxu0 0
      %1435 = vmatpush2.bf16.msra.mxu0 0
      %1436 = vmatprep.subr.bf16.mxu0 0
      %1437 = vmatpush2.bf16.msra.mxu0 0
      %1438 = vmatprep.subr.bf16.mxu0 0
      %1439 = vmatpush2.bf16.msra.mxu0 0
      %1440 = vmatprep.subr.bf16.mxu0 0
      %1441 = vmatpush2.bf16.msra.mxu0 0
      %1442 = vmatprep.subr.bf16.mxu0 0
      %1443 = vmatpush2.bf16.msra.mxu0 0
      %1444 = vmatprep.subr.bf16.mxu0 0
      %1445 = vmatpush2.bf16.msra.mxu0 0
      %1446 = vmatprep.subr.bf16.mxu0 0
      %1447 = vmatpush2.bf16.msra.mxu0 0
      %1448 = vmatprep.mubr.bf16.mxu0 0
      %1449 = vmatmul.mubr.bf16.gmra.mxu0 %v821
      %v1450 = vpop.f32.mrf.mxu0
      %v1451 = vadd.f32 %v305, %v1450
      %v1452 = vpop.f32.mrf.mxu0
      %v1453 = vadd.f32 %v305, %v1452
      %v1454 = vpop.f32.mrf.mxu0
      %v1455 = vpop.f32.mrf.mxu0
      %1456 = vdwg.mxu0
      %1457 = vmatprep.subr.bf16.mxu0 0
      %1458 = vmatpush1.bf16.msra.mxu0 0
      %1459 = vmatprep.subr.bf16.mxu0 0
      %1460 = vmatpush1.bf16.msra.mxu0 0
      %1461 = vmatprep.subr.bf16.mxu0 0
      %1462 = vmatpush1.bf16.msra.mxu0 0
      %1463 = vmatprep.subr.bf16.mxu0 0
      %1464 = vmatpush1.bf16.msra.mxu0 0
      %1465 = vmatprep.subr.bf16.mxu0 0
      %1466 = vmatpush1.bf16.msra.mxu0 0
      %1467 = vmatprep.subr.bf16.mxu0 0
      %1468 = vmatpush1.bf16.msra.mxu0 0
      %1469 = vmatprep.subr.bf16.mxu0 0
      %1470 = vmatpush1.bf16.msra.mxu0 0
      %1471 = vmatprep.subr.bf16.mxu0 %v867
      %1472 = vmatpush1.bf16.msra.mxu0 %v864
      %1473 = vmatprep.subr.bf16.mxu0 0
      %1474 = vmatpush2.bf16.msra.mxu0 0
      %1475 = vmatprep.subr.bf16.mxu0 0
      %1476 = vmatpush2.bf16.msra.mxu0 0
      %1477 = vmatprep.subr.bf16.mxu0 0
      %1478 = vmatpush2.bf16.msra.mxu0 0
      %1479 = vmatprep.subr.bf16.mxu0 0
      %1480 = vmatpush2.bf16.msra.mxu0 0
      %1481 = vmatprep.subr.bf16.mxu0 0
      %1482 = vmatpush2.bf16.msra.mxu0 0
      %1483 = vmatprep.subr.bf16.mxu0 0
      %1484 = vmatpush2.bf16.msra.mxu0 0
      %1485 = vmatprep.subr.bf16.mxu0 0
      %1486 = vmatpush2.bf16.msra.mxu0 0
      %1487 = vmatprep.subr.bf16.mxu0 0
      %1488 = vmatpush2.bf16.msra.mxu0 0
      %1489 = vmatprep.mubr.bf16.mxu0 0
      %1490 = vmatmul.mubr.bf16.gmra.mxu0 %v821
      %v1491 = vpop.f32.mrf.mxu0
      %v1492 = vadd.f32 %v305, %v1491
      %v1493 = vpop.f32.mrf.mxu0
      %v1494 = vadd.f32 %v305, %v1493
      %v1495 = vpop.f32.mrf.mxu0
      %v1496 = vpop.f32.mrf.mxu0
      %1497 = vdwg.mxu0
      %1498 = vmatprep.subr.bf16.mxu0 0
      %1499 = vmatpush1.bf16.msra.mxu0 0
      %1500 = vmatprep.subr.bf16.mxu0 0
      %1501 = vmatpush1.bf16.msra.mxu0 0
      %1502 = vmatprep.subr.bf16.mxu0 0
      %1503 = vmatpush1.bf16.msra.mxu0 0
      %1504 = vmatprep.subr.bf16.mxu0 0
      %1505 = vmatpush1.bf16.msra.mxu0 0
      %1506 = vmatprep.subr.bf16.mxu0 0
      %1507 = vmatpush1.bf16.msra.mxu0 0
      %1508 = vmatprep.subr.bf16.mxu0 0
      %1509 = vmatpush1.bf16.msra.mxu0 0
      %1510 = vmatprep.subr.bf16.mxu0 0
      %1511 = vmatpush1.bf16.msra.mxu0 0
      %1512 = vmatprep.subr.bf16.mxu0 %v873
      %1513 = vmatpush1.bf16.msra.mxu0 %v870
      %1514 = vmatprep.subr.bf16.mxu0 0
      %1515 = vmatpush2.bf16.msra.mxu0 0
      %1516 = vmatprep.subr.bf16.mxu0 0
      %1517 = vmatpush2.bf16.msra.mxu0 0
      %1518 = vmatprep.subr.bf16.mxu0 0
      %1519 = vmatpush2.bf16.msra.mxu0 0
      %1520 = vmatprep.subr.bf16.mxu0 0
      %1521 = vmatpush2.bf16.msra.mxu0 0
      %1522 = vmatprep.subr.bf16.mxu0 0
      %1523 = vmatpush2.bf16.msra.mxu0 0
      %1524 = vmatprep.subr.bf16.mxu0 0
      %1525 = vmatpush2.bf16.msra.mxu0 0
      %1526 = vmatprep.subr.bf16.mxu0 0
      %1527 = vmatpush2.bf16.msra.mxu0 0
      %1528 = vmatprep.subr.bf16.mxu0 0
      %1529 = vmatpush2.bf16.msra.mxu0 0
      %1530 = vmatprep.mubr.bf16.mxu0 0
      %1531 = vmatmul.mubr.bf16.gmra.mxu0 %v821
      %v1532 = vpop.f32.mrf.mxu0
      %v1533 = vadd.f32 %v305, %v1532
      %v1534 = vpop.f32.mrf.mxu0
      %v1535 = vadd.f32 %v305, %v1534
      %v1536 = vpop.f32.mrf.mxu0
      %v1537 = vpop.f32.mrf.mxu0
      %1538 = vdwg.mxu0
      %1539 = vmatprep.subr.bf16.mxu0 0
      %1540 = vmatpush1.bf16.msra.mxu0 0
      %1541 = vmatprep.subr.bf16.mxu0 0
      %1542 = vmatpush1.bf16.msra.mxu0 0
      %1543 = vmatprep.subr.bf16.mxu0 0
      %1544 = vmatpush1.bf16.msra.mxu0 0
      %1545 = vmatprep.subr.bf16.mxu0 0
      %1546 = vmatpush1.bf16.msra.mxu0 0
      %1547 = vmatprep.subr.bf16.mxu0 0
      %1548 = vmatpush1.bf16.msra.mxu0 0
      %1549 = vmatprep.subr.bf16.mxu0 0
      %1550 = vmatpush1.bf16.msra.mxu0 0
      %1551 = vmatprep.subr.bf16.mxu0 0
      %1552 = vmatpush1.bf16.msra.mxu0 0
      %1553 = vmatprep.subr.bf16.mxu0 %v879
      %1554 = vmatpush1.bf16.msra.mxu0 %v876
      %1555 = vmatprep.subr.bf16.mxu0 0
      %1556 = vmatpush2.bf16.msra.mxu0 0
      %1557 = vmatprep.subr.bf16.mxu0 0
      %1558 = vmatpush2.bf16.msra.mxu0 0
      %1559 = vmatprep.subr.bf16.mxu0 0
      %1560 = vmatpush2.bf16.msra.mxu0 0
      %1561 = vmatprep.subr.bf16.mxu0 0
      %1562 = vmatpush2.bf16.msra.mxu0 0
      %1563 = vmatprep.subr.bf16.mxu0 0
      %1564 = vmatpush2.bf16.msra.mxu0 0
      %1565 = vmatprep.subr.bf16.mxu0 0
      %1566 = vmatpush2.bf16.msra.mxu0 0
      %1567 = vmatprep.subr.bf16.mxu0 0
      %1568 = vmatpush2.bf16.msra.mxu0 0
      %1569 = vmatprep.subr.bf16.mxu0 0
      %1570 = vmatpush2.bf16.msra.mxu0 0
      %1571 = vmatprep.mubr.bf16.mxu0 0
      %1572 = vmatmul.mubr.bf16.gmra.mxu0 %v821
      %v1573 = vpop.f32.mrf.mxu0
      %v1574 = vadd.f32 %v305, %v1573
      %v1575 = vpop.f32.mrf.mxu0
      %v1576 = vadd.f32 %v305, %v1575
      %v1577 = vpop.f32.mrf.mxu0
      %v1578 = vpop.f32.mrf.mxu0
      %1579 = vdwg.mxu0
      %1580 = vmatprep.subr.bf16.mxu0 0
      %1581 = vmatpush1.bf16.msra.mxu0 0
      %1582 = vmatprep.subr.bf16.mxu0 0
      %1583 = vmatpush1.bf16.msra.mxu0 0
      %1584 = vmatprep.subr.bf16.mxu0 0
      %1585 = vmatpush1.bf16.msra.mxu0 0
      %1586 = vmatprep.subr.bf16.mxu0 0
      %1587 = vmatpush1.bf16.msra.mxu0 0
      %1588 = vmatprep.subr.bf16.mxu0 0
      %1589 = vmatpush1.bf16.msra.mxu0 0
      %1590 = vmatprep.subr.bf16.mxu0 0
      %1591 = vmatpush1.bf16.msra.mxu0 0
      %1592 = vmatprep.subr.bf16.mxu0 0
      %1593 = vmatpush1.bf16.msra.mxu0 0
      %1594 = vmatprep.subr.bf16.mxu0 %v885
      %1595 = vmatpush1.bf16.msra.mxu0 %v882
      %1596 = vmatprep.subr.bf16.mxu0 0
      %1597 = vmatpush2.bf16.msra.mxu0 0
      %1598 = vmatprep.subr.bf16.mxu0 0
      %1599 = vmatpush2.bf16.msra.mxu0 0
      %1600 = vmatprep.subr.bf16.mxu0 0
      %1601 = vmatpush2.bf16.msra.mxu0 0
      %1602 = vmatprep.subr.bf16.mxu0 0
      %1603 = vmatpush2.bf16.msra.mxu0 0
      %1604 = vmatprep.subr.bf16.mxu0 0
      %1605 = vmatpush2.bf16.msra.mxu0 0
      %1606 = vmatprep.subr.bf16.mxu0 0
      %1607 = vmatpush2.bf16.msra.mxu0 0
      %1608 = vmatprep.subr.bf16.mxu0 0
      %1609 = vmatpush2.bf16.msra.mxu0 0
      %1610 = vmatprep.subr.bf16.mxu0 0
      %1611 = vmatpush2.bf16.msra.mxu0 0
      %1612 = vmatprep.mubr.bf16.mxu0 0
      %1613 = vmatmul.mubr.bf16.gmra.mxu0 %v821
      %v1614 = vpop.f32.mrf.mxu0
      %v1615 = vadd.f32 %v305, %v1614
      %v1616 = vpop.f32.mrf.mxu0
      %v1617 = vadd.f32 %v305, %v1616
      %v1618 = vpop.f32.mrf.mxu0
      %v1619 = vpop.f32.mrf.mxu0
      %1620 = vdwg.mxu0
      %1621 = vmatprep.subr.bf16.mxu0 0
      %1622 = vmatpush1.bf16.msra.mxu0 0
      %1623 = vmatprep.subr.bf16.mxu0 0
      %1624 = vmatpush1.bf16.msra.mxu0 0
      %1625 = vmatprep.subr.bf16.mxu0 0
      %1626 = vmatpush1.bf16.msra.mxu0 0
      %1627 = vmatprep.subr.bf16.mxu0 0
      %1628 = vmatpush1.bf16.msra.mxu0 0
      %1629 = vmatprep.subr.bf16.mxu0 0
      %1630 = vmatpush1.bf16.msra.mxu0 0
      %1631 = vmatprep.subr.bf16.mxu0 0
      %1632 = vmatpush1.bf16.msra.mxu0 0
      %1633 = vmatprep.subr.bf16.mxu0 0
      %1634 = vmatpush1.bf16.msra.mxu0 0
      %1635 = vmatprep.subr.bf16.mxu0 %v891
      %1636 = vmatpush1.bf16.msra.mxu0 %v888
      %1637 = vmatprep.subr.bf16.mxu0 0
      %1638 = vmatpush2.bf16.msra.mxu0 0
      %1639 = vmatprep.subr.bf16.mxu0 0
      %1640 = vmatpush2.bf16.msra.mxu0 0
      %1641 = vmatprep.subr.bf16.mxu0 0
      %1642 = vmatpush2.bf16.msra.mxu0 0
      %1643 = vmatprep.subr.bf16.mxu0 0
      %1644 = vmatpush2.bf16.msra.mxu0 0
      %1645 = vmatprep.subr.bf16.mxu0 0
      %1646 = vmatpush2.bf16.msra.mxu0 0
      %1647 = vmatprep.subr.bf16.mxu0 0
      %1648 = vmatpush2.bf16.msra.mxu0 0
      %1649 = vmatprep.subr.bf16.mxu0 0
      %1650 = vmatpush2.bf16.msra.mxu0 0
      %1651 = vmatprep.subr.bf16.mxu0 0
      %1652 = vmatpush2.bf16.msra.mxu0 0
      %1653 = vmatprep.mubr.bf16.mxu0 0
      %1654 = vmatmul.mubr.bf16.gmra.mxu0 %v821
      %v1655 = vpop.f32.mrf.mxu0
      %v1656 = vadd.f32 %v305, %v1655
      %v1657 = vpop.f32.mrf.mxu0
      %v1658 = vadd.f32 %v305, %v1657
      %v1659 = vpop.f32.mrf.mxu0
      %v1660 = vpop.f32.mrf.mxu0
      %1661 = vdwg.mxu0
      %1662 = vmatprep.subr.bf16.mxu0 0
      %1663 = vmatpush1.bf16.msra.mxu0 0
      %1664 = vmatprep.subr.bf16.mxu0 0
      %1665 = vmatpush1.bf16.msra.mxu0 0
      %1666 = vmatprep.subr.bf16.mxu0 0
      %1667 = vmatpush1.bf16.msra.mxu0 0
      %1668 = vmatprep.subr.bf16.mxu0 0
      %1669 = vmatpush1.bf16.msra.mxu0 0
      %1670 = vmatprep.subr.bf16.mxu0 0
      %1671 = vmatpush1.bf16.msra.mxu0 0
      %1672 = vmatprep.subr.bf16.mxu0 0
      %1673 = vmatpush1.bf16.msra.mxu0 0
      %1674 = vmatprep.subr.bf16.mxu0 0
      %1675 = vmatpush1.bf16.msra.mxu0 0
      %1676 = vmatprep.subr.bf16.mxu0 %v897
      %1677 = vmatpush1.bf16.msra.mxu0 %v894
      %1678 = vmatprep.subr.bf16.mxu0 0
      %1679 = vmatpush2.bf16.msra.mxu0 0
      %1680 = vmatprep.subr.bf16.mxu0 0
      %1681 = vmatpush2.bf16.msra.mxu0 0
      %1682 = vmatprep.subr.bf16.mxu0 0
      %1683 = vmatpush2.bf16.msra.mxu0 0
      %1684 = vmatprep.subr.bf16.mxu0 0
      %1685 = vmatpush2.bf16.msra.mxu0 0
      %1686 = vmatprep.subr.bf16.mxu0 0
      %1687 = vmatpush2.bf16.msra.mxu0 0
      %1688 = vmatprep.subr.bf16.mxu0 0
      %1689 = vmatpush2.bf16.msra.mxu0 0
      %1690 = vmatprep.subr.bf16.mxu0 0
      %1691 = vmatpush2.bf16.msra.mxu0 0
      %1692 = vmatprep.subr.bf16.mxu0 0
      %1693 = vmatpush2.bf16.msra.mxu0 0
      %1694 = vmatprep.mubr.bf16.mxu0 0
      %1695 = vmatmul.mubr.bf16.gmra.mxu0 %v821
      %v1696 = vpop.f32.mrf.mxu0
      %v1697 = vadd.f32 %v305, %v1696
      %v1698 = vpop.f32.mrf.mxu0
      %v1699 = vadd.f32 %v305, %v1698
      %v1700 = vpop.f32.mrf.mxu0
      %v1701 = vpop.f32.mrf.mxu0
      %1702 = vdwg.mxu0
      %1703 = vmatprep.subr.bf16.mxu0 0
      %1704 = vmatpush1.bf16.msra.mxu0 0
      %1705 = vmatprep.subr.bf16.mxu0 0
      %1706 = vmatpush1.bf16.msra.mxu0 0
      %1707 = vmatprep.subr.bf16.mxu0 0
      %1708 = vmatpush1.bf16.msra.mxu0 0
      %1709 = vmatprep.subr.bf16.mxu0 0
      %1710 = vmatpush1.bf16.msra.mxu0 0
      %1711 = vmatprep.subr.bf16.mxu0 0
      %1712 = vmatpush1.bf16.msra.mxu0 0
      %1713 = vmatprep.subr.bf16.mxu0 0
      %1714 = vmatpush1.bf16.msra.mxu0 0
      %1715 = vmatprep.subr.bf16.mxu0 0
      %1716 = vmatpush1.bf16.msra.mxu0 0
      %1717 = vmatprep.subr.bf16.mxu0 %v903
      %1718 = vmatpush1.bf16.msra.mxu0 %v900
      %1719 = vmatprep.subr.bf16.mxu0 0
      %1720 = vmatpush2.bf16.msra.mxu0 0
      %1721 = vmatprep.subr.bf16.mxu0 0
      %1722 = vmatpush2.bf16.msra.mxu0 0
      %1723 = vmatprep.subr.bf16.mxu0 0
      %1724 = vmatpush2.bf16.msra.mxu0 0
      %1725 = vmatprep.subr.bf16.mxu0 0
      %1726 = vmatpush2.bf16.msra.mxu0 0
      %1727 = vmatprep.subr.bf16.mxu0 0
      %1728 = vmatpush2.bf16.msra.mxu0 0
      %1729 = vmatprep.subr.bf16.mxu0 0
      %1730 = vmatpush2.bf16.msra.mxu0 0
      %1731 = vmatprep.subr.bf16.mxu0 0
      %1732 = vmatpush2.bf16.msra.mxu0 0
      %1733 = vmatprep.subr.bf16.mxu0 0
      %1734 = vmatpush2.bf16.msra.mxu0 0
      %1735 = vmatprep.mubr.bf16.mxu0 0
      %1736 = vmatmul.mubr.bf16.gmra.mxu0 %v821
      %v1737 = vpop.f32.mrf.mxu0
      %v1738 = vadd.f32 %v305, %v1737
      %v1739 = vpop.f32.mrf.mxu0
      %v1740 = vadd.f32 %v305, %v1739
      %v1741 = vpop.f32.mrf.mxu0
      %v1742 = vpop.f32.mrf.mxu0
      %1743 = vdwg.mxu0
      %1744 = vmatprep.subr.bf16.mxu0 0
      %1745 = vmatpush1.bf16.msra.mxu0 0
      %1746 = vmatprep.subr.bf16.mxu0 0
      %1747 = vmatpush1.bf16.msra.mxu0 0
      %1748 = vmatprep.subr.bf16.mxu0 0
      %1749 = vmatpush1.bf16.msra.mxu0 0
      %1750 = vmatprep.subr.bf16.mxu0 0
      %1751 = vmatpush1.bf16.msra.mxu0 0
      %1752 = vmatprep.subr.bf16.mxu0 0
      %1753 = vmatpush1.bf16.msra.mxu0 0
      %1754 = vmatprep.subr.bf16.mxu0 0
      %1755 = vmatpush1.bf16.msra.mxu0 0
      %1756 = vmatprep.subr.bf16.mxu0 0
      %1757 = vmatpush1.bf16.msra.mxu0 0
      %1758 = vmatprep.subr.bf16.mxu0 %v909
      %1759 = vmatpush1.bf16.msra.mxu0 %v906
      %1760 = vmatprep.subr.bf16.mxu0 0
      %1761 = vmatpush2.bf16.msra.mxu0 0
      %1762 = vmatprep.subr.bf16.mxu0 0
      %1763 = vmatpush2.bf16.msra.mxu0 0
      %1764 = vmatprep.subr.bf16.mxu0 0
      %1765 = vmatpush2.bf16.msra.mxu0 0
      %1766 = vmatprep.subr.bf16.mxu0 0
      %1767 = vmatpush2.bf16.msra.mxu0 0
      %1768 = vmatprep.subr.bf16.mxu0 0
      %1769 = vmatpush2.bf16.msra.mxu0 0
      %1770 = vmatprep.subr.bf16.mxu0 0
      %1771 = vmatpush2.bf16.msra.mxu0 0
      %1772 = vmatprep.subr.bf16.mxu0 0
      %1773 = vmatpush2.bf16.msra.mxu0 0
      %1774 = vmatprep.subr.bf16.mxu0 0
      %1775 = vmatpush2.bf16.msra.mxu0 0
      %1776 = vmatprep.mubr.bf16.mxu0 0
      %1777 = vmatmul.mubr.bf16.gmra.mxu0 %v821
      %v1778 = vpop.f32.mrf.mxu0
      %v1779 = vadd.f32 %v305, %v1778
      %v1780 = vpop.f32.mrf.mxu0
      %v1781 = vadd.f32 %v305, %v1780
      %v1782 = vpop.f32.mrf.mxu0
      %v1783 = vpop.f32.mrf.mxu0
      %1784 = vdwg.mxu0
      %1785 = vmatprep.subr.bf16.mxu0 0
      %1786 = vmatpush1.bf16.msra.mxu0 0
      %1787 = vmatprep.subr.bf16.mxu0 0
      %1788 = vmatpush1.bf16.msra.mxu0 0
      %1789 = vmatprep.subr.bf16.mxu0 0
      %1790 = vmatpush1.bf16.msra.mxu0 0
      %1791 = vmatprep.subr.bf16.mxu0 0
      %1792 = vmatpush1.bf16.msra.mxu0 0
      %1793 = vmatprep.subr.bf16.mxu0 0
      %1794 = vmatpush1.bf16.msra.mxu0 0
      %1795 = vmatprep.subr.bf16.mxu0 0
      %1796 = vmatpush1.bf16.msra.mxu0 0
      %1797 = vmatprep.subr.bf16.mxu0 0
      %1798 = vmatpush1.bf16.msra.mxu0 0
      %1799 = vmatprep.subr.bf16.mxu0 %v915
      %1800 = vmatpush1.bf16.msra.mxu0 %v912
      %1801 = vmatprep.subr.bf16.mxu0 0
      %1802 = vmatpush2.bf16.msra.mxu0 0
      %1803 = vmatprep.subr.bf16.mxu0 0
      %1804 = vmatpush2.bf16.msra.mxu0 0
      %1805 = vmatprep.subr.bf16.mxu0 0
      %1806 = vmatpush2.bf16.msra.mxu0 0
      %1807 = vmatprep.subr.bf16.mxu0 0
      %1808 = vmatpush2.bf16.msra.mxu0 0
      %1809 = vmatprep.subr.bf16.mxu0 0
      %1810 = vmatpush2.bf16.msra.mxu0 0
      %1811 = vmatprep.subr.bf16.mxu0 0
      %1812 = vmatpush2.bf16.msra.mxu0 0
      %1813 = vmatprep.subr.bf16.mxu0 0
      %1814 = vmatpush2.bf16.msra.mxu0 0
      %1815 = vmatprep.subr.bf16.mxu0 0
      %1816 = vmatpush2.bf16.msra.mxu0 0
      %1817 = vmatprep.mubr.bf16.mxu0 0
      %1818 = vmatmul.mubr.bf16.gmra.mxu0 %v821
      %v1819 = vpop.f32.mrf.mxu0
      %v1820 = vadd.f32 %v305, %v1819
      %v1821 = vpop.f32.mrf.mxu0
      %v1822 = vadd.f32 %v305, %v1821
      %v1823 = vpop.f32.mrf.mxu0
      %v1824 = vpop.f32.mrf.mxu0
      %1825 = vdwg.mxu0
      %1826 = vmatprep.subr.bf16.mxu0 0
      %1827 = vmatpush1.bf16.msra.mxu0 0
      %1828 = vmatprep.subr.bf16.mxu0 0
      %1829 = vmatpush1.bf16.msra.mxu0 0
      %1830 = vmatprep.subr.bf16.mxu0 0
      %1831 = vmatpush1.bf16.msra.mxu0 0
      %1832 = vmatprep.subr.bf16.mxu0 0
      %1833 = vmatpush1.bf16.msra.mxu0 0
      %1834 = vmatprep.subr.bf16.mxu0 0
      %1835 = vmatpush1.bf16.msra.mxu0 0
      %1836 = vmatprep.subr.bf16.mxu0 0
      %1837 = vmatpush1.bf16.msra.mxu0 0
      %1838 = vmatprep.subr.bf16.mxu0 0
      %1839 = vmatpush1.bf16.msra.mxu0 0
      %1840 = vmatprep.subr.bf16.mxu0 %v921
      %1841 = vmatpush1.bf16.msra.mxu0 %v918
      %1842 = vmatprep.subr.bf16.mxu0 0
      %1843 = vmatpush2.bf16.msra.mxu0 0
      %1844 = vmatprep.subr.bf16.mxu0 0
      %1845 = vmatpush2.bf16.msra.mxu0 0
      %1846 = vmatprep.subr.bf16.mxu0 0
      %1847 = vmatpush2.bf16.msra.mxu0 0
      %1848 = vmatprep.subr.bf16.mxu0 0
      %1849 = vmatpush2.bf16.msra.mxu0 0
      %1850 = vmatprep.subr.bf16.mxu0 0
      %1851 = vmatpush2.bf16.msra.mxu0 0
      %1852 = vmatprep.subr.bf16.mxu0 0
      %1853 = vmatpush2.bf16.msra.mxu0 0
      %1854 = vmatprep.subr.bf16.mxu0 0
      %1855 = vmatpush2.bf16.msra.mxu0 0
      %1856 = vmatprep.subr.bf16.mxu0 0
      %1857 = vmatpush2.bf16.msra.mxu0 0
      %1858 = vmatprep.mubr.bf16.mxu0 0
      %1859 = vmatmul.mubr.bf16.gmra.mxu0 %v821
      %v1860 = vpop.f32.mrf.mxu0
      %v1861 = vadd.f32 %v305, %v1860
      %v1862 = vpop.f32.mrf.mxu0
      %v1863 = vadd.f32 %v305, %v1862
      %v1864 = vpop.f32.mrf.mxu0
      %v1865 = vpop.f32.mrf.mxu0
      %1866 = vdwg.mxu0
      %1867 = vmatprep.subr.bf16.mxu0 0
      %1868 = vmatpush1.bf16.msra.mxu0 0
      %1869 = vmatprep.subr.bf16.mxu0 0
      %1870 = vmatpush1.bf16.msra.mxu0 0
      %1871 = vmatprep.subr.bf16.mxu0 0
      %1872 = vmatpush1.bf16.msra.mxu0 0
      %1873 = vmatprep.subr.bf16.mxu0 0
      %1874 = vmatpush1.bf16.msra.mxu0 0
      %1875 = vmatprep.subr.bf16.mxu0 0
      %1876 = vmatpush1.bf16.msra.mxu0 0
      %1877 = vmatprep.subr.bf16.mxu0 0
      %1878 = vmatpush1.bf16.msra.mxu0 0
      %1879 = vmatprep.subr.bf16.mxu0 0
      %1880 = vmatpush1.bf16.msra.mxu0 0
      %1881 = vmatprep.subr.bf16.mxu0 %v927
      %1882 = vmatpush1.bf16.msra.mxu0 %v924
      %1883 = vmatprep.subr.bf16.mxu0 0
      %1884 = vmatpush2.bf16.msra.mxu0 0
      %1885 = vmatprep.subr.bf16.mxu0 0
      %1886 = vmatpush2.bf16.msra.mxu0 0
      %1887 = vmatprep.subr.bf16.mxu0 0
      %1888 = vmatpush2.bf16.msra.mxu0 0
      %1889 = vmatprep.subr.bf16.mxu0 0
      %1890 = vmatpush2.bf16.msra.mxu0 0
      %1891 = vmatprep.subr.bf16.mxu0 0
      %1892 = vmatpush2.bf16.msra.mxu0 0
      %1893 = vmatprep.subr.bf16.mxu0 0
      %1894 = vmatpush2.bf16.msra.mxu0 0
      %1895 = vmatprep.subr.bf16.mxu0 0
      %1896 = vmatpush2.bf16.msra.mxu0 0
      %1897 = vmatprep.subr.bf16.mxu0 0
      %1898 = vmatpush2.bf16.msra.mxu0 0
      %1899 = vmatprep.mubr.bf16.mxu0 0
      %1900 = vmatmul.mubr.bf16.gmra.mxu0 %v821
      %v1901 = vpop.f32.mrf.mxu0
      %v1902 = vadd.f32 %v305, %v1901
      %v1903 = vpop.f32.mrf.mxu0
      %v1904 = vadd.f32 %v305, %v1903
      %v1905 = vpop.f32.mrf.mxu0
      %v1906 = vpop.f32.mrf.mxu0
      %1907 = vdwg.mxu0
      %1908 = vmatprep.subr.bf16.mxu0 0
      %1909 = vmatpush1.bf16.msra.mxu0 0
      %1910 = vmatprep.subr.bf16.mxu0 0
      %1911 = vmatpush1.bf16.msra.mxu0 0
      %1912 = vmatprep.subr.bf16.mxu0 0
      %1913 = vmatpush1.bf16.msra.mxu0 0
      %1914 = vmatprep.subr.bf16.mxu0 0
      %1915 = vmatpush1.bf16.msra.mxu0 0
      %1916 = vmatprep.subr.bf16.mxu0 0
      %1917 = vmatpush1.bf16.msra.mxu0 0
      %1918 = vmatprep.subr.bf16.mxu0 0
      %1919 = vmatpush1.bf16.msra.mxu0 0
      %1920 = vmatprep.subr.bf16.mxu0 0
      %1921 = vmatpush1.bf16.msra.mxu0 0
      %1922 = vmatprep.subr.bf16.mxu0 %v933
      %1923 = vmatpush1.bf16.msra.mxu0 %v930
      %1924 = vmatprep.subr.bf16.mxu0 0
      %1925 = vmatpush2.bf16.msra.mxu0 0
      %1926 = vmatprep.subr.bf16.mxu0 0
      %1927 = vmatpush2.bf16.msra.mxu0 0
      %1928 = vmatprep.subr.bf16.mxu0 0
      %1929 = vmatpush2.bf16.msra.mxu0 0
      %1930 = vmatprep.subr.bf16.mxu0 0
      %1931 = vmatpush2.bf16.msra.mxu0 0
      %1932 = vmatprep.subr.bf16.mxu0 0
      %1933 = vmatpush2.bf16.msra.mxu0 0
      %1934 = vmatprep.subr.bf16.mxu0 0
      %1935 = vmatpush2.bf16.msra.mxu0 0
      %1936 = vmatprep.subr.bf16.mxu0 0
      %1937 = vmatpush2.bf16.msra.mxu0 0
      %1938 = vmatprep.subr.bf16.mxu0 0
      %1939 = vmatpush2.bf16.msra.mxu0 0
      %1940 = vmatprep.mubr.bf16.mxu0 0
      %1941 = vmatmul.mubr.bf16.gmra.mxu0 %v821
      %v1942 = vpop.f32.mrf.mxu0
      %v1943 = vadd.f32 %v305, %v1942
      %v1944 = vpop.f32.mrf.mxu0
      %v1945 = vadd.f32 %v305, %v1944
      %v1946 = vpop.f32.mrf.mxu0
      %v1947 = vpop.f32.mrf.mxu0
      %1948 = vdwg.mxu0
      %1949 = vmatprep.subr.bf16.mxu0 0
      %1950 = vmatpush1.bf16.msra.mxu0 0
      %1951 = vmatprep.subr.bf16.mxu0 0
      %1952 = vmatpush1.bf16.msra.mxu0 0
      %1953 = vmatprep.subr.bf16.mxu0 0
      %1954 = vmatpush1.bf16.msra.mxu0 0
      %1955 = vmatprep.subr.bf16.mxu0 0
      %1956 = vmatpush1.bf16.msra.mxu0 0
      %1957 = vmatprep.subr.bf16.mxu0 0
      %1958 = vmatpush1.bf16.msra.mxu0 0
      %1959 = vmatprep.subr.bf16.mxu0 0
      %1960 = vmatpush1.bf16.msra.mxu0 0
      %1961 = vmatprep.subr.bf16.mxu0 0
      %1962 = vmatpush1.bf16.msra.mxu0 0
      %1963 = vmatprep.subr.bf16.mxu0 %v939
      %1964 = vmatpush1.bf16.msra.mxu0 %v936
      %1965 = vmatprep.subr.bf16.mxu0 0
      %1966 = vmatpush2.bf16.msra.mxu0 0
      %1967 = vmatprep.subr.bf16.mxu0 0
      %1968 = vmatpush2.bf16.msra.mxu0 0
      %1969 = vmatprep.subr.bf16.mxu0 0
      %1970 = vmatpush2.bf16.msra.mxu0 0
      %1971 = vmatprep.subr.bf16.mxu0 0
      %1972 = vmatpush2.bf16.msra.mxu0 0
      %1973 = vmatprep.subr.bf16.mxu0 0
      %1974 = vmatpush2.bf16.msra.mxu0 0
      %1975 = vmatprep.subr.bf16.mxu0 0
      %1976 = vmatpush2.bf16.msra.mxu0 0
      %1977 = vmatprep.subr.bf16.mxu0 0
      %1978 = vmatpush2.bf16.msra.mxu0 0
      %1979 = vmatprep.subr.bf16.mxu0 0
      %1980 = vmatpush2.bf16.msra.mxu0 0
      %1981 = vmatprep.mubr.bf16.mxu0 0
      %1982 = vmatmul.mubr.bf16.gmra.mxu0 %v821
      %v1983 = vpop.f32.mrf.mxu0
      %v1984 = vadd.f32 %v305, %v1983
      %v1985 = vpop.f32.mrf.mxu0
      %v1986 = vadd.f32 %v305, %v1985
      %v1987 = vpop.f32.mrf.mxu0
      %v1988 = vpop.f32.mrf.mxu0
      %1989 = vdwg.mxu0
      %1990 = vmatprep.subr.bf16.mxu0 0
      %1991 = vmatpush1.bf16.msra.mxu0 0
      %1992 = vmatprep.subr.bf16.mxu0 0
      %1993 = vmatpush1.bf16.msra.mxu0 0
      %1994 = vmatprep.subr.bf16.mxu0 0
      %1995 = vmatpush1.bf16.msra.mxu0 0
      %1996 = vmatprep.subr.bf16.mxu0 0
      %1997 = vmatpush1.bf16.msra.mxu0 0
      %1998 = vmatprep.subr.bf16.mxu0 0
      %1999 = vmatpush1.bf16.msra.mxu0 0
      %2000 = vmatprep.subr.bf16.mxu0 0
      %2001 = vmatpush1.bf16.msra.mxu0 0
      %2002 = vmatprep.subr.bf16.mxu0 0
      %2003 = vmatpush1.bf16.msra.mxu0 0
      %2004 = vmatprep.subr.bf16.mxu0 %v945
      %2005 = vmatpush1.bf16.msra.mxu0 %v942
      %2006 = vmatprep.subr.bf16.mxu0 0
      %2007 = vmatpush2.bf16.msra.mxu0 0
      %2008 = vmatprep.subr.bf16.mxu0 0
      %2009 = vmatpush2.bf16.msra.mxu0 0
      %2010 = vmatprep.subr.bf16.mxu0 0
      %2011 = vmatpush2.bf16.msra.mxu0 0
      %2012 = vmatprep.subr.bf16.mxu0 0
      %2013 = vmatpush2.bf16.msra.mxu0 0
      %2014 = vmatprep.subr.bf16.mxu0 0
      %2015 = vmatpush2.bf16.msra.mxu0 0
      %2016 = vmatprep.subr.bf16.mxu0 0
      %2017 = vmatpush2.bf16.msra.mxu0 0
      %2018 = vmatprep.subr.bf16.mxu0 0
      %2019 = vmatpush2.bf16.msra.mxu0 0
      %2020 = vmatprep.subr.bf16.mxu0 0
      %2021 = vmatpush2.bf16.msra.mxu0 0
      %2022 = vmatprep.mubr.bf16.mxu0 0
      %2023 = vmatmul.mubr.bf16.gmra.mxu0 %v821
      %v2024 = vpop.f32.mrf.mxu0
      %v2025 = vadd.f32 %v305, %v2024
      %v2026 = vpop.f32.mrf.mxu0
      %v2027 = vadd.f32 %v305, %v2026
      %v2028 = vpop.f32.mrf.mxu0
      %v2029 = vpop.f32.mrf.mxu0
      %2030 = vdwg.mxu0
      %2031 = vmatprep.subr.bf16.mxu0 0
      %2032 = vmatpush1.bf16.msra.mxu0 0
      %2033 = vmatprep.subr.bf16.mxu0 0
      %2034 = vmatpush1.bf16.msra.mxu0 0
      %2035 = vmatprep.subr.bf16.mxu0 0
      %2036 = vmatpush1.bf16.msra.mxu0 0
      %2037 = vmatprep.subr.bf16.mxu0 0
      %2038 = vmatpush1.bf16.msra.mxu0 0
      %2039 = vmatprep.subr.bf16.mxu0 0
      %2040 = vmatpush1.bf16.msra.mxu0 0
      %2041 = vmatprep.subr.bf16.mxu0 0
      %2042 = vmatpush1.bf16.msra.mxu0 0
      %2043 = vmatprep.subr.bf16.mxu0 0
      %2044 = vmatpush1.bf16.msra.mxu0 0
      %2045 = vmatprep.subr.bf16.mxu0 %v951
      %2046 = vmatpush1.bf16.msra.mxu0 %v948
      %2047 = vmatprep.subr.bf16.mxu0 0
      %2048 = vmatpush2.bf16.msra.mxu0 0
      %2049 = vmatprep.subr.bf16.mxu0 0
      %2050 = vmatpush2.bf16.msra.mxu0 0
      %2051 = vmatprep.subr.bf16.mxu0 0
      %2052 = vmatpush2.bf16.msra.mxu0 0
      %2053 = vmatprep.subr.bf16.mxu0 0
      %2054 = vmatpush2.bf16.msra.mxu0 0
      %2055 = vmatprep.subr.bf16.mxu0 0
      %2056 = vmatpush2.bf16.msra.mxu0 0
      %2057 = vmatprep.subr.bf16.mxu0 0
      %2058 = vmatpush2.bf16.msra.mxu0 0
      %2059 = vmatprep.subr.bf16.mxu0 0
      %2060 = vmatpush2.bf16.msra.mxu0 0
      %2061 = vmatprep.subr.bf16.mxu0 0
      %2062 = vmatpush2.bf16.msra.mxu0 0
      %2063 = vmatprep.mubr.bf16.mxu0 0
      %2064 = vmatmul.mubr.bf16.gmra.mxu0 %v821
      %v2065 = vpop.f32.mrf.mxu0
      %v2066 = vadd.f32 %v305, %v2065
      %v2067 = vpop.f32.mrf.mxu0
      %v2068 = vadd.f32 %v305, %v2067
      %v2069 = vpop.f32.mrf.mxu0
      %v2070 = vpop.f32.mrf.mxu0
      %2071 = vdwg.mxu0
      %2072 = vmatprep.subr.bf16.mxu0 0
      %2073 = vmatpush1.bf16.msra.mxu0 0
      %2074 = vmatprep.subr.bf16.mxu0 0
      %2075 = vmatpush1.bf16.msra.mxu0 0
      %2076 = vmatprep.subr.bf16.mxu0 0
      %2077 = vmatpush1.bf16.msra.mxu0 0
      %2078 = vmatprep.subr.bf16.mxu0 0
      %2079 = vmatpush1.bf16.msra.mxu0 0
      %2080 = vmatprep.subr.bf16.mxu0 0
      %2081 = vmatpush1.bf16.msra.mxu0 0
      %2082 = vmatprep.subr.bf16.mxu0 0
      %2083 = vmatpush1.bf16.msra.mxu0 0
      %2084 = vmatprep.subr.bf16.mxu0 0
      %2085 = vmatpush1.bf16.msra.mxu0 0
      %2086 = vmatprep.subr.bf16.mxu0 %v957
      %2087 = vmatpush1.bf16.msra.mxu0 %v954
      %2088 = vmatprep.subr.bf16.mxu0 0
      %2089 = vmatpush2.bf16.msra.mxu0 0
      %2090 = vmatprep.subr.bf16.mxu0 0
      %2091 = vmatpush2.bf16.msra.mxu0 0
      %2092 = vmatprep.subr.bf16.mxu0 0
      %2093 = vmatpush2.bf16.msra.mxu0 0
      %2094 = vmatprep.subr.bf16.mxu0 0
      %2095 = vmatpush2.bf16.msra.mxu0 0
      %2096 = vmatprep.subr.bf16.mxu0 0
      %2097 = vmatpush2.bf16.msra.mxu0 0
      %2098 = vmatprep.subr.bf16.mxu0 0
      %2099 = vmatpush2.bf16.msra.mxu0 0
      %2100 = vmatprep.subr.bf16.mxu0 0
      %2101 = vmatpush2.bf16.msra.mxu0 0
      %2102 = vmatprep.subr.bf16.mxu0 0
      %2103 = vmatpush2.bf16.msra.mxu0 0
      %2104 = vmatprep.mubr.bf16.mxu0 0
      %2105 = vmatmul.mubr.bf16.gmra.mxu0 %v821
      %v2106 = vpop.f32.mrf.mxu0
      %v2107 = vadd.f32 %v305, %v2106
      %v2108 = vpop.f32.mrf.mxu0
      %v2109 = vadd.f32 %v305, %v2108
      %v2110 = vpop.f32.mrf.mxu0
      %v2111 = vpop.f32.mrf.mxu0
      %2112 = vdwg.mxu0
      %2113 = vmatprep.subr.bf16.mxu0 0
      %2114 = vmatpush1.bf16.msra.mxu0 0
      %2115 = vmatprep.subr.bf16.mxu0 0
      %2116 = vmatpush1.bf16.msra.mxu0 0
      %2117 = vmatprep.subr.bf16.mxu0 0
      %2118 = vmatpush1.bf16.msra.mxu0 0
      %2119 = vmatprep.subr.bf16.mxu0 0
      %2120 = vmatpush1.bf16.msra.mxu0 0
      %2121 = vmatprep.subr.bf16.mxu0 0
      %2122 = vmatpush1.bf16.msra.mxu0 0
      %2123 = vmatprep.subr.bf16.mxu0 0
      %2124 = vmatpush1.bf16.msra.mxu0 0
      %2125 = vmatprep.subr.bf16.mxu0 0
      %2126 = vmatpush1.bf16.msra.mxu0 0
      %2127 = vmatprep.subr.bf16.mxu0 %v963
      %2128 = vmatpush1.bf16.msra.mxu0 %v960
      %2129 = vmatprep.subr.bf16.mxu0 0
      %2130 = vmatpush2.bf16.msra.mxu0 0
      %2131 = vmatprep.subr.bf16.mxu0 0
      %2132 = vmatpush2.bf16.msra.mxu0 0
      %2133 = vmatprep.subr.bf16.mxu0 0
      %2134 = vmatpush2.bf16.msra.mxu0 0
      %2135 = vmatprep.subr.bf16.mxu0 0
      %2136 = vmatpush2.bf16.msra.mxu0 0
      %2137 = vmatprep.subr.bf16.mxu0 0
      %2138 = vmatpush2.bf16.msra.mxu0 0
      %2139 = vmatprep.subr.bf16.mxu0 0
      %2140 = vmatpush2.bf16.msra.mxu0 0
      %2141 = vmatprep.subr.bf16.mxu0 0
      %2142 = vmatpush2.bf16.msra.mxu0 0
      %2143 = vmatprep.subr.bf16.mxu0 0
      %2144 = vmatpush2.bf16.msra.mxu0 0
      %2145 = vmatprep.mubr.bf16.mxu0 0
      %2146 = vmatmul.mubr.bf16.gmra.mxu0 %v821
      %v2147 = vpop.f32.mrf.mxu0
      %v2148 = vadd.f32 %v305, %v2147
      %v2149 = vpop.f32.mrf.mxu0
      %v2150 = vadd.f32 %v305, %v2149
      %v2151 = vpop.f32.mrf.mxu0
      %v2152 = vpop.f32.mrf.mxu0
      %2153 = vdwg.mxu0
      %2154 = vmatprep.subr.bf16.mxu0 0
      %2155 = vmatpush1.bf16.msra.mxu0 0
      %2156 = vmatprep.subr.bf16.mxu0 0
      %2157 = vmatpush1.bf16.msra.mxu0 0
      %2158 = vmatprep.subr.bf16.mxu0 0
      %2159 = vmatpush1.bf16.msra.mxu0 0
      %2160 = vmatprep.subr.bf16.mxu0 0
      %2161 = vmatpush1.bf16.msra.mxu0 0
      %2162 = vmatprep.subr.bf16.mxu0 0
      %2163 = vmatpush1.bf16.msra.mxu0 0
      %2164 = vmatprep.subr.bf16.mxu0 0
      %2165 = vmatpush1.bf16.msra.mxu0 0
      %2166 = vmatprep.subr.bf16.mxu0 0
      %2167 = vmatpush1.bf16.msra.mxu0 0
      %2168 = vmatprep.subr.bf16.mxu0 %v969
      %2169 = vmatpush1.bf16.msra.mxu0 %v966
      %2170 = vmatprep.subr.bf16.mxu0 0
      %2171 = vmatpush2.bf16.msra.mxu0 0
      %2172 = vmatprep.subr.bf16.mxu0 0
      %2173 = vmatpush2.bf16.msra.mxu0 0
      %2174 = vmatprep.subr.bf16.mxu0 0
      %2175 = vmatpush2.bf16.msra.mxu0 0
      %2176 = vmatprep.subr.bf16.mxu0 0
      %2177 = vmatpush2.bf16.msra.mxu0 0
      %2178 = vmatprep.subr.bf16.mxu0 0
      %2179 = vmatpush2.bf16.msra.mxu0 0
      %2180 = vmatprep.subr.bf16.mxu0 0
      %2181 = vmatpush2.bf16.msra.mxu0 0
      %2182 = vmatprep.subr.bf16.mxu0 0
      %2183 = vmatpush2.bf16.msra.mxu0 0
      %2184 = vmatprep.subr.bf16.mxu0 0
      %2185 = vmatpush2.bf16.msra.mxu0 0
      %2186 = vmatprep.mubr.bf16.mxu0 0
      %2187 = vmatmul.mubr.bf16.gmra.mxu0 %v821
      %v2188 = vpop.f32.mrf.mxu0
      %v2189 = vadd.f32 %v305, %v2188
      %v2190 = vpop.f32.mrf.mxu0
      %v2191 = vadd.f32 %v305, %v2190
      %v2192 = vpop.f32.mrf.mxu0
      %v2193 = vpop.f32.mrf.mxu0
      %2194 = vdwg.mxu0
      %2195 = vmatprep.subr.bf16.mxu0 0
      %2196 = vmatpush1.bf16.msra.mxu0 0
      %2197 = vmatprep.subr.bf16.mxu0 0
      %2198 = vmatpush1.bf16.msra.mxu0 0
      %2199 = vmatprep.subr.bf16.mxu0 0
      %2200 = vmatpush1.bf16.msra.mxu0 0
      %2201 = vmatprep.subr.bf16.mxu0 0
      %2202 = vmatpush1.bf16.msra.mxu0 0
      %2203 = vmatprep.subr.bf16.mxu0 0
      %2204 = vmatpush1.bf16.msra.mxu0 0
      %2205 = vmatprep.subr.bf16.mxu0 0
      %2206 = vmatpush1.bf16.msra.mxu0 0
      %2207 = vmatprep.subr.bf16.mxu0 0
      %2208 = vmatpush1.bf16.msra.mxu0 0
      %2209 = vmatprep.subr.bf16.mxu0 %v975
      %2210 = vmatpush1.bf16.msra.mxu0 %v972
      %2211 = vmatprep.subr.bf16.mxu0 0
      %2212 = vmatpush2.bf16.msra.mxu0 0
      %2213 = vmatprep.subr.bf16.mxu0 0
      %2214 = vmatpush2.bf16.msra.mxu0 0
      %2215 = vmatprep.subr.bf16.mxu0 0
      %2216 = vmatpush2.bf16.msra.mxu0 0
      %2217 = vmatprep.subr.bf16.mxu0 0
      %2218 = vmatpush2.bf16.msra.mxu0 0
      %2219 = vmatprep.subr.bf16.mxu0 0
      %2220 = vmatpush2.bf16.msra.mxu0 0
      %2221 = vmatprep.subr.bf16.mxu0 0
      %2222 = vmatpush2.bf16.msra.mxu0 0
      %2223 = vmatprep.subr.bf16.mxu0 0
      %2224 = vmatpush2.bf16.msra.mxu0 0
      %2225 = vmatprep.subr.bf16.mxu0 0
      %2226 = vmatpush2.bf16.msra.mxu0 0
      %2227 = vmatprep.mubr.bf16.mxu0 0
      %2228 = vmatmul.mubr.bf16.gmra.mxu0 %v821
      %v2229 = vpop.f32.mrf.mxu0
      %v2230 = vadd.f32 %v305, %v2229
      %v2231 = vpop.f32.mrf.mxu0
      %v2232 = vadd.f32 %v305, %v2231
      %v2233 = vpop.f32.mrf.mxu0
      %v2234 = vpop.f32.mrf.mxu0
      %2235 = vdwg.mxu0
      %2236 = vmatprep.subr.bf16.mxu0 0
      %2237 = vmatpush1.bf16.msra.mxu0 0
      %2238 = vmatprep.subr.bf16.mxu0 0
      %2239 = vmatpush1.bf16.msra.mxu0 0
      %2240 = vmatprep.subr.bf16.mxu0 0
      %2241 = vmatpush1.bf16.msra.mxu0 0
      %2242 = vmatprep.subr.bf16.mxu0 0
      %2243 = vmatpush1.bf16.msra.mxu0 0
      %2244 = vmatprep.subr.bf16.mxu0 0
      %2245 = vmatpush1.bf16.msra.mxu0 0
      %2246 = vmatprep.subr.bf16.mxu0 0
      %2247 = vmatpush1.bf16.msra.mxu0 0
      %2248 = vmatprep.subr.bf16.mxu0 0
      %2249 = vmatpush1.bf16.msra.mxu0 0
      %2250 = vmatprep.subr.bf16.mxu0 %v981
      %2251 = vmatpush1.bf16.msra.mxu0 %v978
      %2252 = vmatprep.subr.bf16.mxu0 0
      %2253 = vmatpush2.bf16.msra.mxu0 0
      %2254 = vmatprep.subr.bf16.mxu0 0
      %2255 = vmatpush2.bf16.msra.mxu0 0
      %2256 = vmatprep.subr.bf16.mxu0 0
      %2257 = vmatpush2.bf16.msra.mxu0 0
      %2258 = vmatprep.subr.bf16.mxu0 0
      %2259 = vmatpush2.bf16.msra.mxu0 0
      %2260 = vmatprep.subr.bf16.mxu0 0
      %2261 = vmatpush2.bf16.msra.mxu0 0
      %2262 = vmatprep.subr.bf16.mxu0 0
      %2263 = vmatpush2.bf16.msra.mxu0 0
      %2264 = vmatprep.subr.bf16.mxu0 0
      %2265 = vmatpush2.bf16.msra.mxu0 0
      %2266 = vmatprep.subr.bf16.mxu0 0
      %2267 = vmatpush2.bf16.msra.mxu0 0
      %2268 = vmatprep.mubr.bf16.mxu0 0
      %2269 = vmatmul.mubr.bf16.gmra.mxu0 %v821
      %v2270 = vpop.f32.mrf.mxu0
      %v2271 = vadd.f32 %v305, %v2270
      %v2272 = vpop.f32.mrf.mxu0
      %v2273 = vadd.f32 %v305, %v2272
      %v2274 = vpop.f32.mrf.mxu0
      %v2275 = vpop.f32.mrf.mxu0
      %2276 = vdwg.mxu0
      %2277 = vmatprep.subr.bf16.mxu0 0
      %2278 = vmatpush1.bf16.msra.mxu0 0
      %2279 = vmatprep.subr.bf16.mxu0 0
      %2280 = vmatpush1.bf16.msra.mxu0 0
      %2281 = vmatprep.subr.bf16.mxu0 0
      %2282 = vmatpush1.bf16.msra.mxu0 0
      %2283 = vmatprep.subr.bf16.mxu0 0
      %2284 = vmatpush1.bf16.msra.mxu0 0
      %2285 = vmatprep.subr.bf16.mxu0 0
      %2286 = vmatpush1.bf16.msra.mxu0 0
      %2287 = vmatprep.subr.bf16.mxu0 0
      %2288 = vmatpush1.bf16.msra.mxu0 0
      %2289 = vmatprep.subr.bf16.mxu0 0
      %2290 = vmatpush1.bf16.msra.mxu0 0
      %2291 = vmatprep.subr.bf16.mxu0 %v987
      %2292 = vmatpush1.bf16.msra.mxu0 %v984
      %2293 = vmatprep.subr.bf16.mxu0 0
      %2294 = vmatpush2.bf16.msra.mxu0 0
      %2295 = vmatprep.subr.bf16.mxu0 0
      %2296 = vmatpush2.bf16.msra.mxu0 0
      %2297 = vmatprep.subr.bf16.mxu0 0
      %2298 = vmatpush2.bf16.msra.mxu0 0
      %2299 = vmatprep.subr.bf16.mxu0 0
      %2300 = vmatpush2.bf16.msra.mxu0 0
      %2301 = vmatprep.subr.bf16.mxu0 0
      %2302 = vmatpush2.bf16.msra.mxu0 0
      %2303 = vmatprep.subr.bf16.mxu0 0
      %2304 = vmatpush2.bf16.msra.mxu0 0
      %2305 = vmatprep.subr.bf16.mxu0 0
      %2306 = vmatpush2.bf16.msra.mxu0 0
      %2307 = vmatprep.subr.bf16.mxu0 0
      %2308 = vmatpush2.bf16.msra.mxu0 0
      %2309 = vmatprep.mubr.bf16.mxu0 0
      %2310 = vmatmul.mubr.bf16.gmra.mxu0 %v821
      %v2311 = vpop.f32.mrf.mxu0
      %v2312 = vadd.f32 %v305, %v2311
      %v2313 = vpop.f32.mrf.mxu0
      %v2314 = vadd.f32 %v305, %v2313
      %v2315 = vpop.f32.mrf.mxu0
      %v2316 = vpop.f32.mrf.mxu0
      %2317 = vdwg.mxu0
      %2318 = vmatprep.subr.bf16.mxu0 0
      %2319 = vmatpush1.bf16.msra.mxu0 0
      %2320 = vmatprep.subr.bf16.mxu0 0
      %2321 = vmatpush1.bf16.msra.mxu0 0
      %2322 = vmatprep.subr.bf16.mxu0 0
      %2323 = vmatpush1.bf16.msra.mxu0 0
      %2324 = vmatprep.subr.bf16.mxu0 0
      %2325 = vmatpush1.bf16.msra.mxu0 0
      %2326 = vmatprep.subr.bf16.mxu0 0
      %2327 = vmatpush1.bf16.msra.mxu0 0
      %2328 = vmatprep.subr.bf16.mxu0 0
      %2329 = vmatpush1.bf16.msra.mxu0 0
      %2330 = vmatprep.subr.bf16.mxu0 0
      %2331 = vmatpush1.bf16.msra.mxu0 0
      %2332 = vmatprep.subr.bf16.mxu0 %v993
      %2333 = vmatpush1.bf16.msra.mxu0 %v990
      %2334 = vmatprep.subr.bf16.mxu0 0
      %2335 = vmatpush2.bf16.msra.mxu0 0
      %2336 = vmatprep.subr.bf16.mxu0 0
      %2337 = vmatpush2.bf16.msra.mxu0 0
      %2338 = vmatprep.subr.bf16.mxu0 0
      %2339 = vmatpush2.bf16.msra.mxu0 0
      %2340 = vmatprep.subr.bf16.mxu0 0
      %2341 = vmatpush2.bf16.msra.mxu0 0
      %2342 = vmatprep.subr.bf16.mxu0 0
      %2343 = vmatpush2.bf16.msra.mxu0 0
      %2344 = vmatprep.subr.bf16.mxu0 0
      %2345 = vmatpush2.bf16.msra.mxu0 0
      %2346 = vmatprep.subr.bf16.mxu0 0
      %2347 = vmatpush2.bf16.msra.mxu0 0
      %2348 = vmatprep.subr.bf16.mxu0 0
      %2349 = vmatpush2.bf16.msra.mxu0 0
      %2350 = vmatprep.mubr.bf16.mxu0 0
      %2351 = vmatmul.mubr.bf16.gmra.mxu0 %v821
      %v2352 = vpop.f32.mrf.mxu0
      %v2353 = vadd.f32 %v305, %v2352
      %v2354 = vpop.f32.mrf.mxu0
      %v2355 = vadd.f32 %v305, %v2354
      %v2356 = vpop.f32.mrf.mxu0
      %v2357 = vpop.f32.mrf.mxu0
      %2358 = vdwg.mxu0
      %2359 = vmatprep.subr.bf16.mxu0 0
      %2360 = vmatpush1.bf16.msra.mxu0 0
      %2361 = vmatprep.subr.bf16.mxu0 0
      %2362 = vmatpush1.bf16.msra.mxu0 0
      %2363 = vmatprep.subr.bf16.mxu0 0
      %2364 = vmatpush1.bf16.msra.mxu0 0
      %2365 = vmatprep.subr.bf16.mxu0 0
      %2366 = vmatpush1.bf16.msra.mxu0 0
      %2367 = vmatprep.subr.bf16.mxu0 0
      %2368 = vmatpush1.bf16.msra.mxu0 0
      %2369 = vmatprep.subr.bf16.mxu0 0
      %2370 = vmatpush1.bf16.msra.mxu0 0
      %2371 = vmatprep.subr.bf16.mxu0 0
      %2372 = vmatpush1.bf16.msra.mxu0 0
      %2373 = vmatprep.subr.bf16.mxu0 %v999
      %2374 = vmatpush1.bf16.msra.mxu0 %v996
      %2375 = vmatprep.subr.bf16.mxu0 0
      %2376 = vmatpush2.bf16.msra.mxu0 0
      %2377 = vmatprep.subr.bf16.mxu0 0
      %2378 = vmatpush2.bf16.msra.mxu0 0
      %2379 = vmatprep.subr.bf16.mxu0 0
      %2380 = vmatpush2.bf16.msra.mxu0 0
      %2381 = vmatprep.subr.bf16.mxu0 0
      %2382 = vmatpush2.bf16.msra.mxu0 0
      %2383 = vmatprep.subr.bf16.mxu0 0
      %2384 = vmatpush2.bf16.msra.mxu0 0
      %2385 = vmatprep.subr.bf16.mxu0 0
      %2386 = vmatpush2.bf16.msra.mxu0 0
      %2387 = vmatprep.subr.bf16.mxu0 0
      %2388 = vmatpush2.bf16.msra.mxu0 0
      %2389 = vmatprep.subr.bf16.mxu0 0
      %2390 = vmatpush2.bf16.msra.mxu0 0
      %2391 = vmatprep.mubr.bf16.mxu0 0
      %2392 = vmatmul.mubr.bf16.gmra.mxu0 %v821
      %v2393 = vpop.f32.mrf.mxu0
      %v2394 = vadd.f32 %v305, %v2393
      %v2395 = vpop.f32.mrf.mxu0
      %v2396 = vadd.f32 %v305, %v2395
      %v2397 = vpop.f32.mrf.mxu0
      %v2398 = vpop.f32.mrf.mxu0
      %2399 = vdwg.mxu0
      %2400 = vmatprep.subr.bf16.mxu0 0
      %2401 = vmatpush1.bf16.msra.mxu0 0
      %2402 = vmatprep.subr.bf16.mxu0 0
      %2403 = vmatpush1.bf16.msra.mxu0 0
      %2404 = vmatprep.subr.bf16.mxu0 0
      %2405 = vmatpush1.bf16.msra.mxu0 0
      %2406 = vmatprep.subr.bf16.mxu0 0
      %2407 = vmatpush1.bf16.msra.mxu0 0
      %2408 = vmatprep.subr.bf16.mxu0 0
      %2409 = vmatpush1.bf16.msra.mxu0 0
      %2410 = vmatprep.subr.bf16.mxu0 0
      %2411 = vmatpush1.bf16.msra.mxu0 0
      %2412 = vmatprep.subr.bf16.mxu0 0
      %2413 = vmatpush1.bf16.msra.mxu0 0
      %2414 = vmatprep.subr.bf16.mxu0 %v1005
      %2415 = vmatpush1.bf16.msra.mxu0 %v1002
      %2416 = vmatprep.subr.bf16.mxu0 0
      %2417 = vmatpush2.bf16.msra.mxu0 0
      %2418 = vmatprep.subr.bf16.mxu0 0
      %2419 = vmatpush2.bf16.msra.mxu0 0
      %2420 = vmatprep.subr.bf16.mxu0 0
      %2421 = vmatpush2.bf16.msra.mxu0 0
      %2422 = vmatprep.subr.bf16.mxu0 0
      %2423 = vmatpush2.bf16.msra.mxu0 0
      %2424 = vmatprep.subr.bf16.mxu0 0
      %2425 = vmatpush2.bf16.msra.mxu0 0
      %2426 = vmatprep.subr.bf16.mxu0 0
      %2427 = vmatpush2.bf16.msra.mxu0 0
      %2428 = vmatprep.subr.bf16.mxu0 0
      %2429 = vmatpush2.bf16.msra.mxu0 0
      %2430 = vmatprep.subr.bf16.mxu0 0
      %2431 = vmatpush2.bf16.msra.mxu0 0
      %2432 = vmatprep.mubr.bf16.mxu0 0
      %2433 = vmatmul.mubr.bf16.gmra.mxu0 %v821
      %v2434 = vpop.f32.mrf.mxu0
      %v2435 = vadd.f32 %v305, %v2434
      %v2436 = vpop.f32.mrf.mxu0
      %v2437 = vadd.f32 %v305, %v2436
      %v2438 = vpop.f32.mrf.mxu0
      %v2439 = vpop.f32.mrf.mxu0
      %2440 = vdwg.mxu0
      %2441 = vmatprep.subr.bf16.mxu0 0
      %2442 = vmatpush1.bf16.msra.mxu0 0
      %2443 = vmatprep.subr.bf16.mxu0 0
      %2444 = vmatpush1.bf16.msra.mxu0 0
      %2445 = vmatprep.subr.bf16.mxu0 0
      %2446 = vmatpush1.bf16.msra.mxu0 0
      %2447 = vmatprep.subr.bf16.mxu0 0
      %2448 = vmatpush1.bf16.msra.mxu0 0
      %2449 = vmatprep.subr.bf16.mxu0 0
      %2450 = vmatpush1.bf16.msra.mxu0 0
      %2451 = vmatprep.subr.bf16.mxu0 0
      %2452 = vmatpush1.bf16.msra.mxu0 0
      %2453 = vmatprep.subr.bf16.mxu0 0
      %2454 = vmatpush1.bf16.msra.mxu0 0
      %2455 = vmatprep.subr.bf16.mxu0 %v1011
      %2456 = vmatpush1.bf16.msra.mxu0 %v1008
      %2457 = vmatprep.subr.bf16.mxu0 0
      %2458 = vmatpush2.bf16.msra.mxu0 0
      %2459 = vmatprep.subr.bf16.mxu0 0
      %2460 = vmatpush2.bf16.msra.mxu0 0
      %2461 = vmatprep.subr.bf16.mxu0 0
      %2462 = vmatpush2.bf16.msra.mxu0 0
      %2463 = vmatprep.subr.bf16.mxu0 0
      %2464 = vmatpush2.bf16.msra.mxu0 0
      %2465 = vmatprep.subr.bf16.mxu0 0
      %2466 = vmatpush2.bf16.msra.mxu0 0
      %2467 = vmatprep.subr.bf16.mxu0 0
      %2468 = vmatpush2.bf16.msra.mxu0 0
      %2469 = vmatprep.subr.bf16.mxu0 0
      %2470 = vmatpush2.bf16.msra.mxu0 0
      %2471 = vmatprep.subr.bf16.mxu0 0
      %2472 = vmatpush2.bf16.msra.mxu0 0
      %2473 = vmatprep.mubr.bf16.mxu0 0
      %2474 = vmatmul.mubr.bf16.gmra.mxu0 %v821
      %v2475 = vpop.f32.mrf.mxu0
      %v2476 = vadd.f32 %v305, %v2475
      %v2477 = vpop.f32.mrf.mxu0
      %v2478 = vadd.f32 %v305, %v2477
      %v2479 = vpop.f32.mrf.mxu0
      %v2480 = vpop.f32.mrf.mxu0
      %2481 = vdwg.mxu0
      %2482 = vmatprep.subr.bf16.mxu0 0
      %2483 = vmatpush1.bf16.msra.mxu0 0
      %2484 = vmatprep.subr.bf16.mxu0 0
      %2485 = vmatpush1.bf16.msra.mxu0 0
      %2486 = vmatprep.subr.bf16.mxu0 0
      %2487 = vmatpush1.bf16.msra.mxu0 0
      %2488 = vmatprep.subr.bf16.mxu0 0
      %2489 = vmatpush1.bf16.msra.mxu0 0
      %2490 = vmatprep.subr.bf16.mxu0 0
      %2491 = vmatpush1.bf16.msra.mxu0 0
      %2492 = vmatprep.subr.bf16.mxu0 0
      %2493 = vmatpush1.bf16.msra.mxu0 0
      %2494 = vmatprep.subr.bf16.mxu0 0
      %2495 = vmatpush1.bf16.msra.mxu0 0
      %2496 = vmatprep.subr.bf16.mxu0 %v1017
      %2497 = vmatpush1.bf16.msra.mxu0 %v1014
      %2498 = vmatprep.subr.bf16.mxu0 0
      %2499 = vmatpush2.bf16.msra.mxu0 0
      %2500 = vmatprep.subr.bf16.mxu0 0
      %2501 = vmatpush2.bf16.msra.mxu0 0
      %2502 = vmatprep.subr.bf16.mxu0 0
      %2503 = vmatpush2.bf16.msra.mxu0 0
      %2504 = vmatprep.subr.bf16.mxu0 0
      %2505 = vmatpush2.bf16.msra.mxu0 0
      %2506 = vmatprep.subr.bf16.mxu0 0
      %2507 = vmatpush2.bf16.msra.mxu0 0
      %2508 = vmatprep.subr.bf16.mxu0 0
      %2509 = vmatpush2.bf16.msra.mxu0 0
      %2510 = vmatprep.subr.bf16.mxu0 0
      %2511 = vmatpush2.bf16.msra.mxu0 0
      %2512 = vmatprep.subr.bf16.mxu0 0
      %2513 = vmatpush2.bf16.msra.mxu0 0
      %2514 = vmatprep.mubr.bf16.mxu0 0
      %2515 = vmatmul.mubr.bf16.gmra.mxu0 %v821
      %v2516 = vpop.f32.mrf.mxu0
      %v2517 = vadd.f32 %v305, %v2516
      %v2518 = vpop.f32.mrf.mxu0
      %v2519 = vadd.f32 %v305, %v2518
      %v2520 = vpop.f32.mrf.mxu0
      %v2521 = vpop.f32.mrf.mxu0
      %2522 = vdwg.mxu0
      %2523 = vmatprep.subr.bf16.mxu0 0
      %2524 = vmatpush1.bf16.msra.mxu0 0
      %2525 = vmatprep.subr.bf16.mxu0 0
      %2526 = vmatpush1.bf16.msra.mxu0 0
      %2527 = vmatprep.subr.bf16.mxu0 0
      %2528 = vmatpush1.bf16.msra.mxu0 0
      %2529 = vmatprep.subr.bf16.mxu0 0
      %2530 = vmatpush1.bf16.msra.mxu0 0
      %2531 = vmatprep.subr.bf16.mxu0 0
      %2532 = vmatpush1.bf16.msra.mxu0 0
      %2533 = vmatprep.subr.bf16.mxu0 0
      %2534 = vmatpush1.bf16.msra.mxu0 0
      %2535 = vmatprep.subr.bf16.mxu0 0
      %2536 = vmatpush1.bf16.msra.mxu0 0
      %2537 = vmatprep.subr.bf16.mxu0 %v1023
      %2538 = vmatpush1.bf16.msra.mxu0 %v1020
      %2539 = vmatprep.subr.bf16.mxu0 0
      %2540 = vmatpush2.bf16.msra.mxu0 0
      %2541 = vmatprep.subr.bf16.mxu0 0
      %2542 = vmatpush2.bf16.msra.mxu0 0
      %2543 = vmatprep.subr.bf16.mxu0 0
      %2544 = vmatpush2.bf16.msra.mxu0 0
      %2545 = vmatprep.subr.bf16.mxu0 0
      %2546 = vmatpush2.bf16.msra.mxu0 0
      %2547 = vmatprep.subr.bf16.mxu0 0
      %2548 = vmatpush2.bf16.msra.mxu0 0
      %2549 = vmatprep.subr.bf16.mxu0 0
      %2550 = vmatpush2.bf16.msra.mxu0 0
      %2551 = vmatprep.subr.bf16.mxu0 0
      %2552 = vmatpush2.bf16.msra.mxu0 0
      %2553 = vmatprep.subr.bf16.mxu0 0
      %2554 = vmatpush2.bf16.msra.mxu0 0
      %2555 = vmatprep.mubr.bf16.mxu0 0
      %2556 = vmatmul.mubr.bf16.gmra.mxu0 %v821
      %v2557 = vpop.f32.mrf.mxu0
      %v2558 = vadd.f32 %v305, %v2557
      %v2559 = vpop.f32.mrf.mxu0
      %v2560 = vadd.f32 %v305, %v2559
      %v2561 = vpop.f32.mrf.mxu0
      %v2562 = vpop.f32.mrf.mxu0
      %2563 = vdwg.mxu0
      %2564 = vmatprep.subr.bf16.mxu0 0
      %2565 = vmatpush1.bf16.msra.mxu0 0
      %2566 = vmatprep.subr.bf16.mxu0 0
      %2567 = vmatpush1.bf16.msra.mxu0 0
      %2568 = vmatprep.subr.bf16.mxu0 0
      %2569 = vmatpush1.bf16.msra.mxu0 0
      %2570 = vmatprep.subr.bf16.mxu0 0
      %2571 = vmatpush1.bf16.msra.mxu0 0
      %2572 = vmatprep.subr.bf16.mxu0 0
      %2573 = vmatpush1.bf16.msra.mxu0 0
      %2574 = vmatprep.subr.bf16.mxu0 0
      %2575 = vmatpush1.bf16.msra.mxu0 0
      %2576 = vmatprep.subr.bf16.mxu0 0
      %2577 = vmatpush1.bf16.msra.mxu0 0
      %2578 = vmatprep.subr.bf16.mxu0 %v1029
      %2579 = vmatpush1.bf16.msra.mxu0 %v1026
      %2580 = vmatprep.subr.bf16.mxu0 0
      %2581 = vmatpush2.bf16.msra.mxu0 0
      %2582 = vmatprep.subr.bf16.mxu0 0
      %2583 = vmatpush2.bf16.msra.mxu0 0
      %2584 = vmatprep.subr.bf16.mxu0 0
      %2585 = vmatpush2.bf16.msra.mxu0 0
      %2586 = vmatprep.subr.bf16.mxu0 0
      %2587 = vmatpush2.bf16.msra.mxu0 0
      %2588 = vmatprep.subr.bf16.mxu0 0
      %2589 = vmatpush2.bf16.msra.mxu0 0
      %2590 = vmatprep.subr.bf16.mxu0 0
      %2591 = vmatpush2.bf16.msra.mxu0 0
      %2592 = vmatprep.subr.bf16.mxu0 0
      %2593 = vmatpush2.bf16.msra.mxu0 0
      %2594 = vmatprep.subr.bf16.mxu0 0
      %2595 = vmatpush2.bf16.msra.mxu0 0
      %2596 = vmatprep.mubr.bf16.mxu0 0
      %2597 = vmatmul.mubr.bf16.gmra.mxu0 %v821
      %v2598 = vpop.f32.mrf.mxu0
      %v2599 = vadd.f32 %v305, %v2598
      %v2600 = vpop.f32.mrf.mxu0
      %v2601 = vadd.f32 %v305, %v2600
      %v2602 = vpop.f32.mrf.mxu0
      %v2603 = vpop.f32.mrf.mxu0
      %2604 = vdwg.mxu0
      %2605 = vmatprep.subr.bf16.mxu0 0
      %2606 = vmatpush1.bf16.msra.mxu0 0
      %2607 = vmatprep.subr.bf16.mxu0 0
      %2608 = vmatpush1.bf16.msra.mxu0 0
      %2609 = vmatprep.subr.bf16.mxu0 0
      %2610 = vmatpush1.bf16.msra.mxu0 0
      %2611 = vmatprep.subr.bf16.mxu0 0
      %2612 = vmatpush1.bf16.msra.mxu0 0
      %2613 = vmatprep.subr.bf16.mxu0 0
      %2614 = vmatpush1.bf16.msra.mxu0 0
      %2615 = vmatprep.subr.bf16.mxu0 0
      %2616 = vmatpush1.bf16.msra.mxu0 0
      %2617 = vmatprep.subr.bf16.mxu0 0
      %2618 = vmatpush1.bf16.msra.mxu0 0
      %2619 = vmatprep.subr.bf16.mxu0 %v1035
      %2620 = vmatpush1.bf16.msra.mxu0 %v1032
      %2621 = vmatprep.subr.bf16.mxu0 0
      %2622 = vmatpush2.bf16.msra.mxu0 0
      %2623 = vmatprep.subr.bf16.mxu0 0
      %2624 = vmatpush2.bf16.msra.mxu0 0
      %2625 = vmatprep.subr.bf16.mxu0 0
      %2626 = vmatpush2.bf16.msra.mxu0 0
      %2627 = vmatprep.subr.bf16.mxu0 0
      %2628 = vmatpush2.bf16.msra.mxu0 0
      %2629 = vmatprep.subr.bf16.mxu0 0
      %2630 = vmatpush2.bf16.msra.mxu0 0
      %2631 = vmatprep.subr.bf16.mxu0 0
      %2632 = vmatpush2.bf16.msra.mxu0 0
      %2633 = vmatprep.subr.bf16.mxu0 0
      %2634 = vmatpush2.bf16.msra.mxu0 0
      %2635 = vmatprep.subr.bf16.mxu0 0
      %2636 = vmatpush2.bf16.msra.mxu0 0
      %2637 = vmatprep.mubr.bf16.mxu0 0
      %2638 = vmatmul.mubr.bf16.gmra.mxu0 %v821
      %v2639 = vpop.f32.mrf.mxu0
      %v2640 = vadd.f32 %v305, %v2639
      %v2641 = vpop.f32.mrf.mxu0
      %v2642 = vadd.f32 %v305, %v2641
      %v2643 = vpop.f32.mrf.mxu0
      %v2644 = vpop.f32.mrf.mxu0
      %2645 = vdwg.mxu0
      %2646 = vmatprep.subr.bf16.mxu0 0
      %2647 = vmatpush1.bf16.msra.mxu0 0
      %2648 = vmatprep.subr.bf16.mxu0 0
      %2649 = vmatpush1.bf16.msra.mxu0 0
      %2650 = vmatprep.subr.bf16.mxu0 0
      %2651 = vmatpush1.bf16.msra.mxu0 0
      %2652 = vmatprep.subr.bf16.mxu0 0
      %2653 = vmatpush1.bf16.msra.mxu0 0
      %2654 = vmatprep.subr.bf16.mxu0 0
      %2655 = vmatpush1.bf16.msra.mxu0 0
      %2656 = vmatprep.subr.bf16.mxu0 0
      %2657 = vmatpush1.bf16.msra.mxu0 0
      %2658 = vmatprep.subr.bf16.mxu0 0
      %2659 = vmatpush1.bf16.msra.mxu0 0
      %2660 = vmatprep.subr.bf16.mxu0 %v1041
      %2661 = vmatpush1.bf16.msra.mxu0 %v1038
      %2662 = vmatprep.subr.bf16.mxu0 0
      %2663 = vmatpush2.bf16.msra.mxu0 0
      %2664 = vmatprep.subr.bf16.mxu0 0
      %2665 = vmatpush2.bf16.msra.mxu0 0
      %2666 = vmatprep.subr.bf16.mxu0 0
      %2667 = vmatpush2.bf16.msra.mxu0 0
      %2668 = vmatprep.subr.bf16.mxu0 0
      %2669 = vmatpush2.bf16.msra.mxu0 0
      %2670 = vmatprep.subr.bf16.mxu0 0
      %2671 = vmatpush2.bf16.msra.mxu0 0
      %2672 = vmatprep.subr.bf16.mxu0 0
      %2673 = vmatpush2.bf16.msra.mxu0 0
      %2674 = vmatprep.subr.bf16.mxu0 0
      %2675 = vmatpush2.bf16.msra.mxu0 0
      %2676 = vmatprep.subr.bf16.mxu0 0
      %2677 = vmatpush2.bf16.msra.mxu0 0
      %2678 = vmatprep.mubr.bf16.mxu0 0
      %2679 = vmatmul.mubr.bf16.gmra.mxu0 %v821
      %v2680 = vpop.f32.mrf.mxu0
      %v2681 = vadd.f32 %v305, %v2680
      %v2682 = vpop.f32.mrf.mxu0
      %v2683 = vadd.f32 %v305, %v2682
      %v2684 = vpop.f32.mrf.mxu0
      %v2685 = vpop.f32.mrf.mxu0
      %2686 = vdwg.mxu0
      %2687 = vmatprep.subr.bf16.mxu0 0
      %2688 = vmatpush1.bf16.msra.mxu0 0
      %2689 = vmatprep.subr.bf16.mxu0 0
      %2690 = vmatpush1.bf16.msra.mxu0 0
      %2691 = vmatprep.subr.bf16.mxu0 0
      %2692 = vmatpush1.bf16.msra.mxu0 0
      %2693 = vmatprep.subr.bf16.mxu0 0
      %2694 = vmatpush1.bf16.msra.mxu0 0
      %2695 = vmatprep.subr.bf16.mxu0 0
      %2696 = vmatpush1.bf16.msra.mxu0 0
      %2697 = vmatprep.subr.bf16.mxu0 0
      %2698 = vmatpush1.bf16.msra.mxu0 0
      %2699 = vmatprep.subr.bf16.mxu0 0
      %2700 = vmatpush1.bf16.msra.mxu0 0
      %2701 = vmatprep.subr.bf16.mxu0 %v1047
      %2702 = vmatpush1.bf16.msra.mxu0 %v1044
      %2703 = vmatprep.subr.bf16.mxu0 0
      %2704 = vmatpush2.bf16.msra.mxu0 0
      %2705 = vmatprep.subr.bf16.mxu0 0
      %2706 = vmatpush2.bf16.msra.mxu0 0
      %2707 = vmatprep.subr.bf16.mxu0 0
      %2708 = vmatpush2.bf16.msra.mxu0 0
      %2709 = vmatprep.subr.bf16.mxu0 0
      %2710 = vmatpush2.bf16.msra.mxu0 0
      %2711 = vmatprep.subr.bf16.mxu0 0
      %2712 = vmatpush2.bf16.msra.mxu0 0
      %2713 = vmatprep.subr.bf16.mxu0 0
      %2714 = vmatpush2.bf16.msra.mxu0 0
      %2715 = vmatprep.subr.bf16.mxu0 0
      %2716 = vmatpush2.bf16.msra.mxu0 0
      %2717 = vmatprep.subr.bf16.mxu0 0
      %2718 = vmatpush2.bf16.msra.mxu0 0
      %2719 = vmatprep.mubr.bf16.mxu0 0
      %2720 = vmatmul.mubr.bf16.gmra.mxu0 %v821
      %v2721 = vpop.f32.mrf.mxu0
      %v2722 = vadd.f32 %v305, %v2721
      %v2723 = vpop.f32.mrf.mxu0
      %v2724 = vadd.f32 %v305, %v2723
      %v2725 = vpop.f32.mrf.mxu0
      %v2726 = vpop.f32.mrf.mxu0
      %2727 = vdwg.mxu0
      %2728 = vmatprep.subr.bf16.mxu0 0
      %2729 = vmatpush1.bf16.msra.mxu0 0
      %2730 = vmatprep.subr.bf16.mxu0 0
      %2731 = vmatpush1.bf16.msra.mxu0 0
      %2732 = vmatprep.subr.bf16.mxu0 0
      %2733 = vmatpush1.bf16.msra.mxu0 0
      %2734 = vmatprep.subr.bf16.mxu0 0
      %2735 = vmatpush1.bf16.msra.mxu0 0
      %2736 = vmatprep.subr.bf16.mxu0 0
      %2737 = vmatpush1.bf16.msra.mxu0 0
      %2738 = vmatprep.subr.bf16.mxu0 0
      %2739 = vmatpush1.bf16.msra.mxu0 0
      %2740 = vmatprep.subr.bf16.mxu0 0
      %2741 = vmatpush1.bf16.msra.mxu0 0
      %2742 = vmatprep.subr.bf16.mxu0 %v1053
      %2743 = vmatpush1.bf16.msra.mxu0 %v1050
      %2744 = vmatprep.subr.bf16.mxu0 0
      %2745 = vmatpush2.bf16.msra.mxu0 0
      %2746 = vmatprep.subr.bf16.mxu0 0
      %2747 = vmatpush2.bf16.msra.mxu0 0
      %2748 = vmatprep.subr.bf16.mxu0 0
      %2749 = vmatpush2.bf16.msra.mxu0 0
      %2750 = vmatprep.subr.bf16.mxu0 0
      %2751 = vmatpush2.bf16.msra.mxu0 0
      %2752 = vmatprep.subr.bf16.mxu0 0
      %2753 = vmatpush2.bf16.msra.mxu0 0
      %2754 = vmatprep.subr.bf16.mxu0 0
      %2755 = vmatpush2.bf16.msra.mxu0 0
      %2756 = vmatprep.subr.bf16.mxu0 0
      %2757 = vmatpush2.bf16.msra.mxu0 0
      %2758 = vmatprep.subr.bf16.mxu0 0
      %2759 = vmatpush2.bf16.msra.mxu0 0
      %2760 = vmatprep.mubr.bf16.mxu0 0
      %2761 = vmatmul.mubr.bf16.gmra.mxu0 %v821
      %v2762 = vpop.f32.mrf.mxu0
      %v2763 = vadd.f32 %v305, %v2762
      %v2764 = vpop.f32.mrf.mxu0
      %v2765 = vadd.f32 %v305, %v2764
      %v2766 = vpop.f32.mrf.mxu0
      %v2767 = vpop.f32.mrf.mxu0
      %2768 = vdwg.mxu0
      %2769 = vmatprep.subr.bf16.mxu0 0
      %2770 = vmatpush1.bf16.msra.mxu0 0
      %2771 = vmatprep.subr.bf16.mxu0 0
      %2772 = vmatpush1.bf16.msra.mxu0 0
      %2773 = vmatprep.subr.bf16.mxu0 0
      %2774 = vmatpush1.bf16.msra.mxu0 0
      %2775 = vmatprep.subr.bf16.mxu0 0
      %2776 = vmatpush1.bf16.msra.mxu0 0
      %2777 = vmatprep.subr.bf16.mxu0 0
      %2778 = vmatpush1.bf16.msra.mxu0 0
      %2779 = vmatprep.subr.bf16.mxu0 0
      %2780 = vmatpush1.bf16.msra.mxu0 0
      %2781 = vmatprep.subr.bf16.mxu0 0
      %2782 = vmatpush1.bf16.msra.mxu0 0
      %2783 = vmatprep.subr.bf16.mxu0 %v1059
      %2784 = vmatpush1.bf16.msra.mxu0 %v1056
      %2785 = vmatprep.subr.bf16.mxu0 0
      %2786 = vmatpush2.bf16.msra.mxu0 0
      %2787 = vmatprep.subr.bf16.mxu0 0
      %2788 = vmatpush2.bf16.msra.mxu0 0
      %2789 = vmatprep.subr.bf16.mxu0 0
      %2790 = vmatpush2.bf16.msra.mxu0 0
      %2791 = vmatprep.subr.bf16.mxu0 0
      %2792 = vmatpush2.bf16.msra.mxu0 0
      %2793 = vmatprep.subr.bf16.mxu0 0
      %2794 = vmatpush2.bf16.msra.mxu0 0
      %2795 = vmatprep.subr.bf16.mxu0 0
      %2796 = vmatpush2.bf16.msra.mxu0 0
      %2797 = vmatprep.subr.bf16.mxu0 0
      %2798 = vmatpush2.bf16.msra.mxu0 0
      %2799 = vmatprep.subr.bf16.mxu0 0
      %2800 = vmatpush2.bf16.msra.mxu0 0
      %2801 = vmatprep.mubr.bf16.mxu0 0
      %2802 = vmatmul.mubr.bf16.gmra.mxu0 %v821
      %v2803 = vpop.f32.mrf.mxu0
      %v2804 = vadd.f32 %v305, %v2803
      %v2805 = vpop.f32.mrf.mxu0
      %v2806 = vadd.f32 %v305, %v2805
      %v2807 = vpop.f32.mrf.mxu0
      %v2808 = vpop.f32.mrf.mxu0
      %2809 = vdwg.mxu0
      %2810 = vmatprep.subr.bf16.mxu0 0
      %2811 = vmatpush1.bf16.msra.mxu0 0
      %2812 = vmatprep.subr.bf16.mxu0 0
      %2813 = vmatpush1.bf16.msra.mxu0 0
      %2814 = vmatprep.subr.bf16.mxu0 0
      %2815 = vmatpush1.bf16.msra.mxu0 0
      %2816 = vmatprep.subr.bf16.mxu0 0
      %2817 = vmatpush1.bf16.msra.mxu0 0
      %2818 = vmatprep.subr.bf16.mxu0 0
      %2819 = vmatpush1.bf16.msra.mxu0 0
      %2820 = vmatprep.subr.bf16.mxu0 0
      %2821 = vmatpush1.bf16.msra.mxu0 0
      %2822 = vmatprep.subr.bf16.mxu0 0
      %2823 = vmatpush1.bf16.msra.mxu0 0
      %2824 = vmatprep.subr.bf16.mxu0 %v1065
      %2825 = vmatpush1.bf16.msra.mxu0 %v1062
      %2826 = vmatprep.subr.bf16.mxu0 0
      %2827 = vmatpush2.bf16.msra.mxu0 0
      %2828 = vmatprep.subr.bf16.mxu0 0
      %2829 = vmatpush2.bf16.msra.mxu0 0
      %2830 = vmatprep.subr.bf16.mxu0 0
      %2831 = vmatpush2.bf16.msra.mxu0 0
      %2832 = vmatprep.subr.bf16.mxu0 0
      %2833 = vmatpush2.bf16.msra.mxu0 0
      %2834 = vmatprep.subr.bf16.mxu0 0
      %2835 = vmatpush2.bf16.msra.mxu0 0
      %2836 = vmatprep.subr.bf16.mxu0 0
      %2837 = vmatpush2.bf16.msra.mxu0 0
      %2838 = vmatprep.subr.bf16.mxu0 0
      %2839 = vmatpush2.bf16.msra.mxu0 0
      %2840 = vmatprep.subr.bf16.mxu0 0
      %2841 = vmatpush2.bf16.msra.mxu0 0
      %2842 = vmatprep.mubr.bf16.mxu0 0
      %2843 = vmatmul.mubr.bf16.gmra.mxu0 %v821
      %v2844 = vpop.f32.mrf.mxu0
      %v2845 = vadd.f32 %v305, %v2844
      %v2846 = vpop.f32.mrf.mxu0
      %v2847 = vadd.f32 %v305, %v2846
      %v2848 = vpop.f32.mrf.mxu0
      %v2849 = vpop.f32.mrf.mxu0
      %2850 = vdwg.mxu0
      %2851 = vmatprep.subr.bf16.mxu0 0
      %2852 = vmatpush1.bf16.msra.mxu0 0
      %2853 = vmatprep.subr.bf16.mxu0 0
      %2854 = vmatpush1.bf16.msra.mxu0 0
      %2855 = vmatprep.subr.bf16.mxu0 0
      %2856 = vmatpush1.bf16.msra.mxu0 0
      %2857 = vmatprep.subr.bf16.mxu0 0
      %2858 = vmatpush1.bf16.msra.mxu0 0
      %2859 = vmatprep.subr.bf16.mxu0 0
      %2860 = vmatpush1.bf16.msra.mxu0 0
      %2861 = vmatprep.subr.bf16.mxu0 0
      %2862 = vmatpush1.bf16.msra.mxu0 0
      %2863 = vmatprep.subr.bf16.mxu0 0
      %2864 = vmatpush1.bf16.msra.mxu0 0
      %2865 = vmatprep.subr.bf16.mxu0 %v1071
      %2866 = vmatpush1.bf16.msra.mxu0 %v1068
      %2867 = vmatprep.subr.bf16.mxu0 0
      %2868 = vmatpush2.bf16.msra.mxu0 0
      %2869 = vmatprep.subr.bf16.mxu0 0
      %2870 = vmatpush2.bf16.msra.mxu0 0
      %2871 = vmatprep.subr.bf16.mxu0 0
      %2872 = vmatpush2.bf16.msra.mxu0 0
      %2873 = vmatprep.subr.bf16.mxu0 0
      %2874 = vmatpush2.bf16.msra.mxu0 0
      %2875 = vmatprep.subr.bf16.mxu0 0
      %2876 = vmatpush2.bf16.msra.mxu0 0
      %2877 = vmatprep.subr.bf16.mxu0 0
      %2878 = vmatpush2.bf16.msra.mxu0 0
      %2879 = vmatprep.subr.bf16.mxu0 0
      %2880 = vmatpush2.bf16.msra.mxu0 0
      %2881 = vmatprep.subr.bf16.mxu0 0
      %2882 = vmatpush2.bf16.msra.mxu0 0
      %2883 = vmatprep.mubr.bf16.mxu0 0
      %2884 = vmatmul.mubr.bf16.gmra.mxu0 %v821
      %v2885 = vpop.f32.mrf.mxu0
      %v2886 = vadd.f32 %v305, %v2885
      %v2887 = vpop.f32.mrf.mxu0
      %v2888 = vadd.f32 %v305, %v2887
      %v2889 = vpop.f32.mrf.mxu0
      %v2890 = vpop.f32.mrf.mxu0
      %2891 = vdwg.mxu0
      %2892 = vmatprep.subr.bf16.mxu0 0
      %2893 = vmatpush1.bf16.msra.mxu0 0
      %2894 = vmatprep.subr.bf16.mxu0 0
      %2895 = vmatpush1.bf16.msra.mxu0 0
      %2896 = vmatprep.subr.bf16.mxu0 0
      %2897 = vmatpush1.bf16.msra.mxu0 0
      %2898 = vmatprep.subr.bf16.mxu0 0
      %2899 = vmatpush1.bf16.msra.mxu0 0
      %2900 = vmatprep.subr.bf16.mxu0 0
      %2901 = vmatpush1.bf16.msra.mxu0 0
      %2902 = vmatprep.subr.bf16.mxu0 0
      %2903 = vmatpush1.bf16.msra.mxu0 0
      %2904 = vmatprep.subr.bf16.mxu0 0
      %2905 = vmatpush1.bf16.msra.mxu0 0
      %2906 = vmatprep.subr.bf16.mxu0 %v1077
      %2907 = vmatpush1.bf16.msra.mxu0 %v1074
      %2908 = vmatprep.subr.bf16.mxu0 0
      %2909 = vmatpush2.bf16.msra.mxu0 0
      %2910 = vmatprep.subr.bf16.mxu0 0
      %2911 = vmatpush2.bf16.msra.mxu0 0
      %2912 = vmatprep.subr.bf16.mxu0 0
      %2913 = vmatpush2.bf16.msra.mxu0 0
      %2914 = vmatprep.subr.bf16.mxu0 0
      %2915 = vmatpush2.bf16.msra.mxu0 0
      %2916 = vmatprep.subr.bf16.mxu0 0
      %2917 = vmatpush2.bf16.msra.mxu0 0
      %2918 = vmatprep.subr.bf16.mxu0 0
      %2919 = vmatpush2.bf16.msra.mxu0 0
      %2920 = vmatprep.subr.bf16.mxu0 0
      %2921 = vmatpush2.bf16.msra.mxu0 0
      %2922 = vmatprep.subr.bf16.mxu0 0
      %2923 = vmatpush2.bf16.msra.mxu0 0
      %2924 = vmatprep.mubr.bf16.mxu0 0
      %2925 = vmatmul.mubr.bf16.gmra.mxu0 %v821
      %v2926 = vpop.f32.mrf.mxu0
      %v2927 = vadd.f32 %v305, %v2926
      %v2928 = vpop.f32.mrf.mxu0
      %v2929 = vadd.f32 %v305, %v2928
      %v2930 = vpop.f32.mrf.mxu0
      %v2931 = vpop.f32.mrf.mxu0
      %2932 = vdwg.mxu0
      %2933 = vmatprep.subr.bf16.mxu0 0
      %2934 = vmatpush1.bf16.msra.mxu0 0
      %2935 = vmatprep.subr.bf16.mxu0 0
      %2936 = vmatpush1.bf16.msra.mxu0 0
      %2937 = vmatprep.subr.bf16.mxu0 0
      %2938 = vmatpush1.bf16.msra.mxu0 0
      %2939 = vmatprep.subr.bf16.mxu0 0
      %2940 = vmatpush1.bf16.msra.mxu0 0
      %2941 = vmatprep.subr.bf16.mxu0 0
      %2942 = vmatpush1.bf16.msra.mxu0 0
      %2943 = vmatprep.subr.bf16.mxu0 0
      %2944 = vmatpush1.bf16.msra.mxu0 0
      %2945 = vmatprep.subr.bf16.mxu0 0
      %2946 = vmatpush1.bf16.msra.mxu0 0
      %2947 = vmatprep.subr.bf16.mxu0 %v1083
      %2948 = vmatpush1.bf16.msra.mxu0 %v1080
      %2949 = vmatprep.subr.bf16.mxu0 0
      %2950 = vmatpush2.bf16.msra.mxu0 0
      %2951 = vmatprep.subr.bf16.mxu0 0
      %2952 = vmatpush2.bf16.msra.mxu0 0
      %2953 = vmatprep.subr.bf16.mxu0 0
      %2954 = vmatpush2.bf16.msra.mxu0 0
      %2955 = vmatprep.subr.bf16.mxu0 0
      %2956 = vmatpush2.bf16.msra.mxu0 0
      %2957 = vmatprep.subr.bf16.mxu0 0
      %2958 = vmatpush2.bf16.msra.mxu0 0
      %2959 = vmatprep.subr.bf16.mxu0 0
      %2960 = vmatpush2.bf16.msra.mxu0 0
      %2961 = vmatprep.subr.bf16.mxu0 0
      %2962 = vmatpush2.bf16.msra.mxu0 0
      %2963 = vmatprep.subr.bf16.mxu0 0
      %2964 = vmatpush2.bf16.msra.mxu0 0
      %2965 = vmatprep.mubr.bf16.mxu0 0
      %2966 = vmatmul.mubr.bf16.gmra.mxu0 %v821
      %v2967 = vpop.f32.mrf.mxu0
      %v2968 = vadd.f32 %v305, %v2967
      %v2969 = vpop.f32.mrf.mxu0
      %v2970 = vadd.f32 %v305, %v2969
      %v2971 = vpop.f32.mrf.mxu0
      %v2972 = vpop.f32.mrf.mxu0
      %2973 = vdwg.mxu0
      %2974 = vmatprep.subr.bf16.mxu0 0
      %2975 = vmatpush1.bf16.msra.mxu0 0
      %2976 = vmatprep.subr.bf16.mxu0 0
      %2977 = vmatpush1.bf16.msra.mxu0 0
      %2978 = vmatprep.subr.bf16.mxu0 0
      %2979 = vmatpush1.bf16.msra.mxu0 0
      %2980 = vmatprep.subr.bf16.mxu0 0
      %2981 = vmatpush1.bf16.msra.mxu0 0
      %2982 = vmatprep.subr.bf16.mxu0 0
      %2983 = vmatpush1.bf16.msra.mxu0 0
      %2984 = vmatprep.subr.bf16.mxu0 0
      %2985 = vmatpush1.bf16.msra.mxu0 0
      %2986 = vmatprep.subr.bf16.mxu0 0
      %2987 = vmatpush1.bf16.msra.mxu0 0
      %2988 = vmatprep.subr.bf16.mxu0 %v1089
      %2989 = vmatpush1.bf16.msra.mxu0 %v1086
      %2990 = vmatprep.subr.bf16.mxu0 0
      %2991 = vmatpush2.bf16.msra.mxu0 0
      %2992 = vmatprep.subr.bf16.mxu0 0
      %2993 = vmatpush2.bf16.msra.mxu0 0
      %2994 = vmatprep.subr.bf16.mxu0 0
      %2995 = vmatpush2.bf16.msra.mxu0 0
      %2996 = vmatprep.subr.bf16.mxu0 0
      %2997 = vmatpush2.bf16.msra.mxu0 0
      %2998 = vmatprep.subr.bf16.mxu0 0
      %2999 = vmatpush2.bf16.msra.mxu0 0
      %3000 = vmatprep.subr.bf16.mxu0 0
      %3001 = vmatpush2.bf16.msra.mxu0 0
      %3002 = vmatprep.subr.bf16.mxu0 0
      %3003 = vmatpush2.bf16.msra.mxu0 0
      %3004 = vmatprep.subr.bf16.mxu0 0
      %3005 = vmatpush2.bf16.msra.mxu0 0
      %3006 = vmatprep.mubr.bf16.mxu0 0
      %3007 = vmatmul.mubr.bf16.gmra.mxu0 %v821
      %v3008 = vpop.f32.mrf.mxu0
      %v3009 = vadd.f32 %v305, %v3008
      %v3010 = vpop.f32.mrf.mxu0
      %v3011 = vadd.f32 %v305, %v3010
      %v3012 = vpop.f32.mrf.mxu0
      %v3013 = vpop.f32.mrf.mxu0
      %3014 = vdwg.mxu0
      %3015 = vmatprep.subr.bf16.mxu0 0
      %3016 = vmatpush1.bf16.msra.mxu0 0
      %3017 = vmatprep.subr.bf16.mxu0 0
      %3018 = vmatpush1.bf16.msra.mxu0 0
      %3019 = vmatprep.subr.bf16.mxu0 0
      %3020 = vmatpush1.bf16.msra.mxu0 0
      %3021 = vmatprep.subr.bf16.mxu0 0
      %3022 = vmatpush1.bf16.msra.mxu0 0
      %3023 = vmatprep.subr.bf16.mxu0 0
      %3024 = vmatpush1.bf16.msra.mxu0 0
      %3025 = vmatprep.subr.bf16.mxu0 0
      %3026 = vmatpush1.bf16.msra.mxu0 0
      %3027 = vmatprep.subr.bf16.mxu0 0
      %3028 = vmatpush1.bf16.msra.mxu0 0
      %3029 = vmatprep.subr.bf16.mxu0 %v1095
      %3030 = vmatpush1.bf16.msra.mxu0 %v1092
      %3031 = vmatprep.subr.bf16.mxu0 0
      %3032 = vmatpush2.bf16.msra.mxu0 0
      %3033 = vmatprep.subr.bf16.mxu0 0
      %3034 = vmatpush2.bf16.msra.mxu0 0
      %3035 = vmatprep.subr.bf16.mxu0 0
      %3036 = vmatpush2.bf16.msra.mxu0 0
      %3037 = vmatprep.subr.bf16.mxu0 0
      %3038 = vmatpush2.bf16.msra.mxu0 0
      %3039 = vmatprep.subr.bf16.mxu0 0
      %3040 = vmatpush2.bf16.msra.mxu0 0
      %3041 = vmatprep.subr.bf16.mxu0 0
      %3042 = vmatpush2.bf16.msra.mxu0 0
      %3043 = vmatprep.subr.bf16.mxu0 0
      %3044 = vmatpush2.bf16.msra.mxu0 0
      %3045 = vmatprep.subr.bf16.mxu0 0
      %3046 = vmatpush2.bf16.msra.mxu0 0
      %3047 = vmatprep.mubr.bf16.mxu0 0
      %3048 = vmatmul.mubr.bf16.gmra.mxu0 %v821
      %v3049 = vpop.f32.mrf.mxu0
      %v3050 = vadd.f32 %v305, %v3049
      %v3051 = vpop.f32.mrf.mxu0
      %v3052 = vadd.f32 %v305, %v3051
      %v3053 = vpop.f32.mrf.mxu0
      %v3054 = vpop.f32.mrf.mxu0
      %3055 = vdwg.mxu0
      %3056 = vmatprep.subr.bf16.mxu0 0
      %3057 = vmatpush1.bf16.msra.mxu0 0
      %3058 = vmatprep.subr.bf16.mxu0 0
      %3059 = vmatpush1.bf16.msra.mxu0 0
      %3060 = vmatprep.subr.bf16.mxu0 0
      %3061 = vmatpush1.bf16.msra.mxu0 0
      %3062 = vmatprep.subr.bf16.mxu0 0
      %3063 = vmatpush1.bf16.msra.mxu0 0
      %3064 = vmatprep.subr.bf16.mxu0 0
      %3065 = vmatpush1.bf16.msra.mxu0 0
      %3066 = vmatprep.subr.bf16.mxu0 0
      %3067 = vmatpush1.bf16.msra.mxu0 0
      %3068 = vmatprep.subr.bf16.mxu0 0
      %3069 = vmatpush1.bf16.msra.mxu0 0
      %3070 = vmatprep.subr.bf16.mxu0 %v1101
      %3071 = vmatpush1.bf16.msra.mxu0 %v1098
      %3072 = vmatprep.subr.bf16.mxu0 0
      %3073 = vmatpush2.bf16.msra.mxu0 0
      %3074 = vmatprep.subr.bf16.mxu0 0
      %3075 = vmatpush2.bf16.msra.mxu0 0
      %3076 = vmatprep.subr.bf16.mxu0 0
      %3077 = vmatpush2.bf16.msra.mxu0 0
      %3078 = vmatprep.subr.bf16.mxu0 0
      %3079 = vmatpush2.bf16.msra.mxu0 0
      %3080 = vmatprep.subr.bf16.mxu0 0
      %3081 = vmatpush2.bf16.msra.mxu0 0
      %3082 = vmatprep.subr.bf16.mxu0 0
      %3083 = vmatpush2.bf16.msra.mxu0 0
      %3084 = vmatprep.subr.bf16.mxu0 0
      %3085 = vmatpush2.bf16.msra.mxu0 0
      %3086 = vmatprep.subr.bf16.mxu0 0
      %3087 = vmatpush2.bf16.msra.mxu0 0
      %3088 = vmatprep.mubr.bf16.mxu0 0
      %3089 = vmatmul.mubr.bf16.gmra.mxu0 %v821
      %v3090 = vpop.f32.mrf.mxu0
      %v3091 = vadd.f32 %v305, %v3090
      %v3092 = vpop.f32.mrf.mxu0
      %v3093 = vadd.f32 %v305, %v3092
      %v3094 = vpop.f32.mrf.mxu0
      %v3095 = vpop.f32.mrf.mxu0
      %3096 = vdwg.mxu0
      %3097 = vmatprep.subr.bf16.mxu0 0
      %3098 = vmatpush1.bf16.msra.mxu0 0
      %3099 = vmatprep.subr.bf16.mxu0 0
      %3100 = vmatpush1.bf16.msra.mxu0 0
      %3101 = vmatprep.subr.bf16.mxu0 0
      %3102 = vmatpush1.bf16.msra.mxu0 0
      %3103 = vmatprep.subr.bf16.mxu0 0
      %3104 = vmatpush1.bf16.msra.mxu0 0
      %3105 = vmatprep.subr.bf16.mxu0 0
      %3106 = vmatpush1.bf16.msra.mxu0 0
      %3107 = vmatprep.subr.bf16.mxu0 0
      %3108 = vmatpush1.bf16.msra.mxu0 0
      %3109 = vmatprep.subr.bf16.mxu0 0
      %3110 = vmatpush1.bf16.msra.mxu0 0
      %3111 = vmatprep.subr.bf16.mxu0 %v1107
      %3112 = vmatpush1.bf16.msra.mxu0 %v1104
      %3113 = vmatprep.subr.bf16.mxu0 0
      %3114 = vmatpush2.bf16.msra.mxu0 0
      %3115 = vmatprep.subr.bf16.mxu0 0
      %3116 = vmatpush2.bf16.msra.mxu0 0
      %3117 = vmatprep.subr.bf16.mxu0 0
      %3118 = vmatpush2.bf16.msra.mxu0 0
      %3119 = vmatprep.subr.bf16.mxu0 0
      %3120 = vmatpush2.bf16.msra.mxu0 0
      %3121 = vmatprep.subr.bf16.mxu0 0
      %3122 = vmatpush2.bf16.msra.mxu0 0
      %3123 = vmatprep.subr.bf16.mxu0 0
      %3124 = vmatpush2.bf16.msra.mxu0 0
      %3125 = vmatprep.subr.bf16.mxu0 0
      %3126 = vmatpush2.bf16.msra.mxu0 0
      %3127 = vmatprep.subr.bf16.mxu0 0
      %3128 = vmatpush2.bf16.msra.mxu0 0
      %3129 = vmatprep.mubr.bf16.mxu0 0
      %3130 = vmatmul.mubr.bf16.gmra.mxu0 %v821
      %v3131 = vpop.f32.mrf.mxu0
      %v3132 = vadd.f32 %v305, %v3131
      %v3133 = vpop.f32.mrf.mxu0
      %v3134 = vadd.f32 %v305, %v3133
      %v3135 = vpop.f32.mrf.mxu0
      %v3136 = vpop.f32.mrf.mxu0
      %3137 = vdwg.mxu0
      %3138 = vmatprep.subr.bf16.mxu0 0
      %3139 = vmatpush1.bf16.msra.mxu0 0
      %3140 = vmatprep.subr.bf16.mxu0 0
      %3141 = vmatpush1.bf16.msra.mxu0 0
      %3142 = vmatprep.subr.bf16.mxu0 0
      %3143 = vmatpush1.bf16.msra.mxu0 0
      %3144 = vmatprep.subr.bf16.mxu0 0
      %3145 = vmatpush1.bf16.msra.mxu0 0
      %3146 = vmatprep.subr.bf16.mxu0 0
      %3147 = vmatpush1.bf16.msra.mxu0 0
      %3148 = vmatprep.subr.bf16.mxu0 0
      %3149 = vmatpush1.bf16.msra.mxu0 0
      %3150 = vmatprep.subr.bf16.mxu0 0
      %3151 = vmatpush1.bf16.msra.mxu0 0
      %3152 = vmatprep.subr.bf16.mxu0 %v1113
      %3153 = vmatpush1.bf16.msra.mxu0 %v1110
      %3154 = vmatprep.subr.bf16.mxu0 0
      %3155 = vmatpush2.bf16.msra.mxu0 0
      %3156 = vmatprep.subr.bf16.mxu0 0
      %3157 = vmatpush2.bf16.msra.mxu0 0
      %3158 = vmatprep.subr.bf16.mxu0 0
      %3159 = vmatpush2.bf16.msra.mxu0 0
      %3160 = vmatprep.subr.bf16.mxu0 0
      %3161 = vmatpush2.bf16.msra.mxu0 0
      %3162 = vmatprep.subr.bf16.mxu0 0
      %3163 = vmatpush2.bf16.msra.mxu0 0
      %3164 = vmatprep.subr.bf16.mxu0 0
      %3165 = vmatpush2.bf16.msra.mxu0 0
      %3166 = vmatprep.subr.bf16.mxu0 0
      %3167 = vmatpush2.bf16.msra.mxu0 0
      %3168 = vmatprep.subr.bf16.mxu0 0
      %3169 = vmatpush2.bf16.msra.mxu0 0
      %3170 = vmatprep.mubr.bf16.mxu0 0
      %3171 = vmatmul.mubr.bf16.gmra.mxu0 %v821
      %v3172 = vpop.f32.mrf.mxu0
      %v3173 = vadd.f32 %v305, %v3172
      %v3174 = vpop.f32.mrf.mxu0
      %v3175 = vadd.f32 %v305, %v3174
      %v3176 = vpop.f32.mrf.mxu0
      %v3177 = vpop.f32.mrf.mxu0
      %3178 = vdwg.mxu0
      %3179 = vmatprep.subr.bf16.mxu0 0
      %3180 = vmatpush1.bf16.msra.mxu0 0
      %3181 = vmatprep.subr.bf16.mxu0 0
      %3182 = vmatpush1.bf16.msra.mxu0 0
      %3183 = vmatprep.subr.bf16.mxu0 0
      %3184 = vmatpush1.bf16.msra.mxu0 0
      %3185 = vmatprep.subr.bf16.mxu0 0
      %3186 = vmatpush1.bf16.msra.mxu0 0
      %3187 = vmatprep.subr.bf16.mxu0 0
      %3188 = vmatpush1.bf16.msra.mxu0 0
      %3189 = vmatprep.subr.bf16.mxu0 0
      %3190 = vmatpush1.bf16.msra.mxu0 0
      %3191 = vmatprep.subr.bf16.mxu0 0
      %3192 = vmatpush1.bf16.msra.mxu0 0
      %3193 = vmatprep.subr.bf16.mxu0 %v1119
      %3194 = vmatpush1.bf16.msra.mxu0 %v1116
      %3195 = vmatprep.subr.bf16.mxu0 0
      %3196 = vmatpush2.bf16.msra.mxu0 0
      %3197 = vmatprep.subr.bf16.mxu0 0
      %3198 = vmatpush2.bf16.msra.mxu0 0
      %3199 = vmatprep.subr.bf16.mxu0 0
      %3200 = vmatpush2.bf16.msra.mxu0 0
      %3201 = vmatprep.subr.bf16.mxu0 0
      %3202 = vmatpush2.bf16.msra.mxu0 0
      %3203 = vmatprep.subr.bf16.mxu0 0
      %3204 = vmatpush2.bf16.msra.mxu0 0
      %3205 = vmatprep.subr.bf16.mxu0 0
      %3206 = vmatpush2.bf16.msra.mxu0 0
      %3207 = vmatprep.subr.bf16.mxu0 0
      %3208 = vmatpush2.bf16.msra.mxu0 0
      %3209 = vmatprep.subr.bf16.mxu0 0
      %3210 = vmatpush2.bf16.msra.mxu0 0
      %3211 = vmatprep.mubr.bf16.mxu0 0
      %3212 = vmatmul.mubr.bf16.gmra.mxu0 %v821
      %v3213 = vpop.f32.mrf.mxu0
      %v3214 = vadd.f32 %v305, %v3213
      %v3215 = vpop.f32.mrf.mxu0
      %v3216 = vadd.f32 %v305, %v3215
      %v3217 = vpop.f32.mrf.mxu0
      %v3218 = vpop.f32.mrf.mxu0
      %3219 = vdwg.mxu0
      %3220 = vmatprep.subr.bf16.mxu0 0
      %3221 = vmatpush1.bf16.msra.mxu0 0
      %3222 = vmatprep.subr.bf16.mxu0 0
      %3223 = vmatpush1.bf16.msra.mxu0 0
      %3224 = vmatprep.subr.bf16.mxu0 0
      %3225 = vmatpush1.bf16.msra.mxu0 0
      %3226 = vmatprep.subr.bf16.mxu0 0
      %3227 = vmatpush1.bf16.msra.mxu0 0
      %3228 = vmatprep.subr.bf16.mxu0 0
      %3229 = vmatpush1.bf16.msra.mxu0 0
      %3230 = vmatprep.subr.bf16.mxu0 0
      %3231 = vmatpush1.bf16.msra.mxu0 0
      %3232 = vmatprep.subr.bf16.mxu0 0
      %3233 = vmatpush1.bf16.msra.mxu0 0
      %3234 = vmatprep.subr.bf16.mxu0 %v1125
      %3235 = vmatpush1.bf16.msra.mxu0 %v1122
      %3236 = vmatprep.subr.bf16.mxu0 0
      %3237 = vmatpush2.bf16.msra.mxu0 0
      %3238 = vmatprep.subr.bf16.mxu0 0
      %3239 = vmatpush2.bf16.msra.mxu0 0
      %3240 = vmatprep.subr.bf16.mxu0 0
      %3241 = vmatpush2.bf16.msra.mxu0 0
      %3242 = vmatprep.subr.bf16.mxu0 0
      %3243 = vmatpush2.bf16.msra.mxu0 0
      %3244 = vmatprep.subr.bf16.mxu0 0
      %3245 = vmatpush2.bf16.msra.mxu0 0
      %3246 = vmatprep.subr.bf16.mxu0 0
      %3247 = vmatpush2.bf16.msra.mxu0 0
      %3248 = vmatprep.subr.bf16.mxu0 0
      %3249 = vmatpush2.bf16.msra.mxu0 0
      %3250 = vmatprep.subr.bf16.mxu0 0
      %3251 = vmatpush2.bf16.msra.mxu0 0
      %3252 = vmatprep.mubr.bf16.mxu0 0
      %3253 = vmatmul.mubr.bf16.gmra.mxu0 %v821
      %v3254 = vpop.f32.mrf.mxu0
      %v3255 = vadd.f32 %v305, %v3254
      %v3256 = vpop.f32.mrf.mxu0
      %v3257 = vadd.f32 %v305, %v3256
      %v3258 = vpop.f32.mrf.mxu0
      %v3259 = vpop.f32.mrf.mxu0
      %3260 = vdwg.mxu0
      %3261 = vmatprep.subr.bf16.mxu0 0
      %3262 = vmatpush1.bf16.msra.mxu0 0
      %3263 = vmatprep.subr.bf16.mxu0 0
      %3264 = vmatpush1.bf16.msra.mxu0 0
      %3265 = vmatprep.subr.bf16.mxu0 0
      %3266 = vmatpush1.bf16.msra.mxu0 0
      %3267 = vmatprep.subr.bf16.mxu0 0
      %3268 = vmatpush1.bf16.msra.mxu0 0
      %3269 = vmatprep.subr.bf16.mxu0 0
      %3270 = vmatpush1.bf16.msra.mxu0 0
      %3271 = vmatprep.subr.bf16.mxu0 0
      %3272 = vmatpush1.bf16.msra.mxu0 0
      %3273 = vmatprep.subr.bf16.mxu0 0
      %3274 = vmatpush1.bf16.msra.mxu0 0
      %3275 = vmatprep.subr.bf16.mxu0 %v1131
      %3276 = vmatpush1.bf16.msra.mxu0 %v1128
      %3277 = vmatprep.subr.bf16.mxu0 0
      %3278 = vmatpush2.bf16.msra.mxu0 0
      %3279 = vmatprep.subr.bf16.mxu0 0
      %3280 = vmatpush2.bf16.msra.mxu0 0
      %3281 = vmatprep.subr.bf16.mxu0 0
      %3282 = vmatpush2.bf16.msra.mxu0 0
      %3283 = vmatprep.subr.bf16.mxu0 0
      %3284 = vmatpush2.bf16.msra.mxu0 0
      %3285 = vmatprep.subr.bf16.mxu0 0
      %3286 = vmatpush2.bf16.msra.mxu0 0
      %3287 = vmatprep.subr.bf16.mxu0 0
      %3288 = vmatpush2.bf16.msra.mxu0 0
      %3289 = vmatprep.subr.bf16.mxu0 0
      %3290 = vmatpush2.bf16.msra.mxu0 0
      %3291 = vmatprep.subr.bf16.mxu0 0
      %3292 = vmatpush2.bf16.msra.mxu0 0
      %3293 = vmatprep.mubr.bf16.mxu0 0
      %3294 = vmatmul.mubr.bf16.gmra.mxu0 %v821
      %v3295 = vpop.f32.mrf.mxu0
      %v3296 = vadd.f32 %v305, %v3295
      %v3297 = vpop.f32.mrf.mxu0
      %v3298 = vadd.f32 %v305, %v3297
      %v3299 = vpop.f32.mrf.mxu0
      %v3300 = vpop.f32.mrf.mxu0
      %3301 = vdwg.mxu0
      %3302 = vmatprep.subr.bf16.mxu0 0
      %3303 = vmatpush1.bf16.msra.mxu0 0
      %3304 = vmatprep.subr.bf16.mxu0 0
      %3305 = vmatpush1.bf16.msra.mxu0 0
      %3306 = vmatprep.subr.bf16.mxu0 0
      %3307 = vmatpush1.bf16.msra.mxu0 0
      %3308 = vmatprep.subr.bf16.mxu0 0
      %3309 = vmatpush1.bf16.msra.mxu0 0
      %3310 = vmatprep.subr.bf16.mxu0 0
      %3311 = vmatpush1.bf16.msra.mxu0 0
      %3312 = vmatprep.subr.bf16.mxu0 0
      %3313 = vmatpush1.bf16.msra.mxu0 0
      %3314 = vmatprep.subr.bf16.mxu0 0
      %3315 = vmatpush1.bf16.msra.mxu0 0
      %3316 = vmatprep.subr.bf16.mxu0 %v1137
      %3317 = vmatpush1.bf16.msra.mxu0 %v1134
      %3318 = vmatprep.subr.bf16.mxu0 0
      %3319 = vmatpush2.bf16.msra.mxu0 0
      %3320 = vmatprep.subr.bf16.mxu0 0
      %3321 = vmatpush2.bf16.msra.mxu0 0
      %3322 = vmatprep.subr.bf16.mxu0 0
      %3323 = vmatpush2.bf16.msra.mxu0 0
      %3324 = vmatprep.subr.bf16.mxu0 0
      %3325 = vmatpush2.bf16.msra.mxu0 0
      %3326 = vmatprep.subr.bf16.mxu0 0
      %3327 = vmatpush2.bf16.msra.mxu0 0
      %3328 = vmatprep.subr.bf16.mxu0 0
      %3329 = vmatpush2.bf16.msra.mxu0 0
      %3330 = vmatprep.subr.bf16.mxu0 0
      %3331 = vmatpush2.bf16.msra.mxu0 0
      %3332 = vmatprep.subr.bf16.mxu0 0
      %3333 = vmatpush2.bf16.msra.mxu0 0
      %3334 = vmatprep.mubr.bf16.mxu0 0
      %3335 = vmatmul.mubr.bf16.gmra.mxu0 %v821
      %v3336 = vpop.f32.mrf.mxu0
      %v3337 = vadd.f32 %v305, %v3336
      %v3338 = vpop.f32.mrf.mxu0
      %v3339 = vadd.f32 %v305, %v3338
      %v3340 = vpop.f32.mrf.mxu0
      %v3341 = vpop.f32.mrf.mxu0
      %3342 = vdwg.mxu0
      %3343 = vmatprep.subr.bf16.mxu0 0
      %3344 = vmatpush1.bf16.msra.mxu0 0
      %3345 = vmatprep.subr.bf16.mxu0 0
      %3346 = vmatpush1.bf16.msra.mxu0 0
      %3347 = vmatprep.subr.bf16.mxu0 0
      %3348 = vmatpush1.bf16.msra.mxu0 0
      %3349 = vmatprep.subr.bf16.mxu0 0
      %3350 = vmatpush1.bf16.msra.mxu0 0
      %3351 = vmatprep.subr.bf16.mxu0 0
      %3352 = vmatpush1.bf16.msra.mxu0 0
      %3353 = vmatprep.subr.bf16.mxu0 0
      %3354 = vmatpush1.bf16.msra.mxu0 0
      %3355 = vmatprep.subr.bf16.mxu0 0
      %3356 = vmatpush1.bf16.msra.mxu0 0
      %3357 = vmatprep.subr.bf16.mxu0 %v1143
      %3358 = vmatpush1.bf16.msra.mxu0 %v1140
      %3359 = vmatprep.subr.bf16.mxu0 0
      %3360 = vmatpush2.bf16.msra.mxu0 0
      %3361 = vmatprep.subr.bf16.mxu0 0
      %3362 = vmatpush2.bf16.msra.mxu0 0
      %3363 = vmatprep.subr.bf16.mxu0 0
      %3364 = vmatpush2.bf16.msra.mxu0 0
      %3365 = vmatprep.subr.bf16.mxu0 0
      %3366 = vmatpush2.bf16.msra.mxu0 0
      %3367 = vmatprep.subr.bf16.mxu0 0
      %3368 = vmatpush2.bf16.msra.mxu0 0
      %3369 = vmatprep.subr.bf16.mxu0 0
      %3370 = vmatpush2.bf16.msra.mxu0 0
      %3371 = vmatprep.subr.bf16.mxu0 0
      %3372 = vmatpush2.bf16.msra.mxu0 0
      %3373 = vmatprep.subr.bf16.mxu0 0
      %3374 = vmatpush2.bf16.msra.mxu0 0
      %3375 = vmatprep.mubr.bf16.mxu0 0
      %3376 = vmatmul.mubr.bf16.gmra.mxu0 %v821
      %v3377 = vpop.f32.mrf.mxu0
      %v3378 = vadd.f32 %v305, %v3377
      %v3379 = vpop.f32.mrf.mxu0
      %v3380 = vadd.f32 %v305, %v3379
      %v3381 = vpop.f32.mrf.mxu0
      %v3382 = vpop.f32.mrf.mxu0
      %3383 = vdwg.mxu0
      %3384 = vmatprep.subr.bf16.mxu0 0
      %3385 = vmatpush1.bf16.msra.mxu0 0
      %3386 = vmatprep.subr.bf16.mxu0 0
      %3387 = vmatpush1.bf16.msra.mxu0 0
      %3388 = vmatprep.subr.bf16.mxu0 0
      %3389 = vmatpush1.bf16.msra.mxu0 0
      %3390 = vmatprep.subr.bf16.mxu0 0
      %3391 = vmatpush1.bf16.msra.mxu0 0
      %3392 = vmatprep.subr.bf16.mxu0 0
      %3393 = vmatpush1.bf16.msra.mxu0 0
      %3394 = vmatprep.subr.bf16.mxu0 0
      %3395 = vmatpush1.bf16.msra.mxu0 0
      %3396 = vmatprep.subr.bf16.mxu0 0
      %3397 = vmatpush1.bf16.msra.mxu0 0
      %3398 = vmatprep.subr.bf16.mxu0 %v1149
      %3399 = vmatpush1.bf16.msra.mxu0 %v1146
      %3400 = vmatprep.subr.bf16.mxu0 0
      %3401 = vmatpush2.bf16.msra.mxu0 0
      %3402 = vmatprep.subr.bf16.mxu0 0
      %3403 = vmatpush2.bf16.msra.mxu0 0
      %3404 = vmatprep.subr.bf16.mxu0 0
      %3405 = vmatpush2.bf16.msra.mxu0 0
      %3406 = vmatprep.subr.bf16.mxu0 0
      %3407 = vmatpush2.bf16.msra.mxu0 0
      %3408 = vmatprep.subr.bf16.mxu0 0
      %3409 = vmatpush2.bf16.msra.mxu0 0
      %3410 = vmatprep.subr.bf16.mxu0 0
      %3411 = vmatpush2.bf16.msra.mxu0 0
      %3412 = vmatprep.subr.bf16.mxu0 0
      %3413 = vmatpush2.bf16.msra.mxu0 0
      %3414 = vmatprep.subr.bf16.mxu0 0
      %3415 = vmatpush2.bf16.msra.mxu0 0
      %3416 = vmatprep.mubr.bf16.mxu0 0
      %3417 = vmatmul.mubr.bf16.gmra.mxu0 %v821
      %v3418 = vpop.f32.mrf.mxu0
      %v3419 = vadd.f32 %v305, %v3418
      %v3420 = vpop.f32.mrf.mxu0
      %v3421 = vadd.f32 %v305, %v3420
      %v3422 = vpop.f32.mrf.mxu0
      %v3423 = vpop.f32.mrf.mxu0
      %3424 = vdwg.mxu0
      %3425 = vmatprep.subr.bf16.mxu0 0
      %3426 = vmatpush1.bf16.msra.mxu0 0
      %3427 = vmatprep.subr.bf16.mxu0 0
      %3428 = vmatpush1.bf16.msra.mxu0 0
      %3429 = vmatprep.subr.bf16.mxu0 0
      %3430 = vmatpush1.bf16.msra.mxu0 0
      %3431 = vmatprep.subr.bf16.mxu0 0
      %3432 = vmatpush1.bf16.msra.mxu0 0
      %3433 = vmatprep.subr.bf16.mxu0 0
      %3434 = vmatpush1.bf16.msra.mxu0 0
      %3435 = vmatprep.subr.bf16.mxu0 0
      %3436 = vmatpush1.bf16.msra.mxu0 0
      %3437 = vmatprep.subr.bf16.mxu0 0
      %3438 = vmatpush1.bf16.msra.mxu0 0
      %3439 = vmatprep.subr.bf16.mxu0 %v1155
      %3440 = vmatpush1.bf16.msra.mxu0 %v1152
      %3441 = vmatprep.subr.bf16.mxu0 0
      %3442 = vmatpush2.bf16.msra.mxu0 0
      %3443 = vmatprep.subr.bf16.mxu0 0
      %3444 = vmatpush2.bf16.msra.mxu0 0
      %3445 = vmatprep.subr.bf16.mxu0 0
      %3446 = vmatpush2.bf16.msra.mxu0 0
      %3447 = vmatprep.subr.bf16.mxu0 0
      %3448 = vmatpush2.bf16.msra.mxu0 0
      %3449 = vmatprep.subr.bf16.mxu0 0
      %3450 = vmatpush2.bf16.msra.mxu0 0
      %3451 = vmatprep.subr.bf16.mxu0 0
      %3452 = vmatpush2.bf16.msra.mxu0 0
      %3453 = vmatprep.subr.bf16.mxu0 0
      %3454 = vmatpush2.bf16.msra.mxu0 0
      %3455 = vmatprep.subr.bf16.mxu0 0
      %3456 = vmatpush2.bf16.msra.mxu0 0
      %3457 = vmatprep.mubr.bf16.mxu0 0
      %3458 = vmatmul.mubr.bf16.gmra.mxu0 %v821
      %v3459 = vpop.f32.mrf.mxu0
      %v3460 = vadd.f32 %v305, %v3459
      %v3461 = vpop.f32.mrf.mxu0
      %v3462 = vadd.f32 %v305, %v3461
      %v3463 = vpop.f32.mrf.mxu0
      %v3464 = vpop.f32.mrf.mxu0
      %3465 = vdwg.mxu0
      %3466 = vmatprep.subr.bf16.mxu0 0
      %3467 = vmatpush1.bf16.msra.mxu0 0
      %3468 = vmatprep.subr.bf16.mxu0 0
      %3469 = vmatpush1.bf16.msra.mxu0 0
      %3470 = vmatprep.subr.bf16.mxu0 0
      %3471 = vmatpush1.bf16.msra.mxu0 0
      %3472 = vmatprep.subr.bf16.mxu0 0
      %3473 = vmatpush1.bf16.msra.mxu0 0
      %3474 = vmatprep.subr.bf16.mxu0 0
      %3475 = vmatpush1.bf16.msra.mxu0 0
      %3476 = vmatprep.subr.bf16.mxu0 0
      %3477 = vmatpush1.bf16.msra.mxu0 0
      %3478 = vmatprep.subr.bf16.mxu0 0
      %3479 = vmatpush1.bf16.msra.mxu0 0
      %3480 = vmatprep.subr.bf16.mxu0 %v1161
      %3481 = vmatpush1.bf16.msra.mxu0 %v1158
      %3482 = vmatprep.subr.bf16.mxu0 0
      %3483 = vmatpush2.bf16.msra.mxu0 0
      %3484 = vmatprep.subr.bf16.mxu0 0
      %3485 = vmatpush2.bf16.msra.mxu0 0
      %3486 = vmatprep.subr.bf16.mxu0 0
      %3487 = vmatpush2.bf16.msra.mxu0 0
      %3488 = vmatprep.subr.bf16.mxu0 0
      %3489 = vmatpush2.bf16.msra.mxu0 0
      %3490 = vmatprep.subr.bf16.mxu0 0
      %3491 = vmatpush2.bf16.msra.mxu0 0
      %3492 = vmatprep.subr.bf16.mxu0 0
      %3493 = vmatpush2.bf16.msra.mxu0 0
      %3494 = vmatprep.subr.bf16.mxu0 0
      %3495 = vmatpush2.bf16.msra.mxu0 0
      %3496 = vmatprep.subr.bf16.mxu0 0
      %3497 = vmatpush2.bf16.msra.mxu0 0
      %3498 = vmatprep.mubr.bf16.mxu0 0
      %3499 = vmatmul.mubr.bf16.gmra.mxu0 %v821
      %v3500 = vpop.f32.mrf.mxu0
      %v3501 = vadd.f32 %v305, %v3500
      %v3502 = vpop.f32.mrf.mxu0
      %v3503 = vadd.f32 %v305, %v3502
      %v3504 = vpop.f32.mrf.mxu0
      %v3505 = vpop.f32.mrf.mxu0
      %3506 = vdwg.mxu0
      %3507 = vmatprep.subr.bf16.mxu0 0
      %3508 = vmatpush1.bf16.msra.mxu0 0
      %3509 = vmatprep.subr.bf16.mxu0 0
      %3510 = vmatpush1.bf16.msra.mxu0 0
      %3511 = vmatprep.subr.bf16.mxu0 0
      %3512 = vmatpush1.bf16.msra.mxu0 0
      %3513 = vmatprep.subr.bf16.mxu0 0
      %3514 = vmatpush1.bf16.msra.mxu0 0
      %3515 = vmatprep.subr.bf16.mxu0 0
      %3516 = vmatpush1.bf16.msra.mxu0 0
      %3517 = vmatprep.subr.bf16.mxu0 0
      %3518 = vmatpush1.bf16.msra.mxu0 0
      %3519 = vmatprep.subr.bf16.mxu0 0
      %3520 = vmatpush1.bf16.msra.mxu0 0
      %3521 = vmatprep.subr.bf16.mxu0 %v1167
      %3522 = vmatpush1.bf16.msra.mxu0 %v1164
      %3523 = vmatprep.subr.bf16.mxu0 0
      %3524 = vmatpush2.bf16.msra.mxu0 0
      %3525 = vmatprep.subr.bf16.mxu0 0
      %3526 = vmatpush2.bf16.msra.mxu0 0
      %3527 = vmatprep.subr.bf16.mxu0 0
      %3528 = vmatpush2.bf16.msra.mxu0 0
      %3529 = vmatprep.subr.bf16.mxu0 0
      %3530 = vmatpush2.bf16.msra.mxu0 0
      %3531 = vmatprep.subr.bf16.mxu0 0
      %3532 = vmatpush2.bf16.msra.mxu0 0
      %3533 = vmatprep.subr.bf16.mxu0 0
      %3534 = vmatpush2.bf16.msra.mxu0 0
      %3535 = vmatprep.subr.bf16.mxu0 0
      %3536 = vmatpush2.bf16.msra.mxu0 0
      %3537 = vmatprep.subr.bf16.mxu0 0
      %3538 = vmatpush2.bf16.msra.mxu0 0
      %3539 = vmatprep.mubr.bf16.mxu0 0
      %3540 = vmatmul.mubr.bf16.gmra.mxu0 %v821
      %v3541 = vpop.f32.mrf.mxu0
      %v3542 = vadd.f32 %v305, %v3541
      %v3543 = vpop.f32.mrf.mxu0
      %v3544 = vadd.f32 %v305, %v3543
      %v3545 = vpop.f32.mrf.mxu0
      %v3546 = vpop.f32.mrf.mxu0
      %3547 = vdwg.mxu0
      %3548 = vmatprep.subr.bf16.mxu0 0
      %3549 = vmatpush1.bf16.msra.mxu0 0
      %3550 = vmatprep.subr.bf16.mxu0 0
      %3551 = vmatpush1.bf16.msra.mxu0 0
      %3552 = vmatprep.subr.bf16.mxu0 0
      %3553 = vmatpush1.bf16.msra.mxu0 0
      %3554 = vmatprep.subr.bf16.mxu0 0
      %3555 = vmatpush1.bf16.msra.mxu0 0
      %3556 = vmatprep.subr.bf16.mxu0 0
      %3557 = vmatpush1.bf16.msra.mxu0 0
      %3558 = vmatprep.subr.bf16.mxu0 0
      %3559 = vmatpush1.bf16.msra.mxu0 0
      %3560 = vmatprep.subr.bf16.mxu0 0
      %3561 = vmatpush1.bf16.msra.mxu0 0
      %3562 = vmatprep.subr.bf16.mxu0 %v1173
      %3563 = vmatpush1.bf16.msra.mxu0 %v1170
      %3564 = vmatprep.subr.bf16.mxu0 0
      %3565 = vmatpush2.bf16.msra.mxu0 0
      %3566 = vmatprep.subr.bf16.mxu0 0
      %3567 = vmatpush2.bf16.msra.mxu0 0
      %3568 = vmatprep.subr.bf16.mxu0 0
      %3569 = vmatpush2.bf16.msra.mxu0 0
      %3570 = vmatprep.subr.bf16.mxu0 0
      %3571 = vmatpush2.bf16.msra.mxu0 0
      %3572 = vmatprep.subr.bf16.mxu0 0
      %3573 = vmatpush2.bf16.msra.mxu0 0
      %3574 = vmatprep.subr.bf16.mxu0 0
      %3575 = vmatpush2.bf16.msra.mxu0 0
      %3576 = vmatprep.subr.bf16.mxu0 0
      %3577 = vmatpush2.bf16.msra.mxu0 0
      %3578 = vmatprep.subr.bf16.mxu0 0
      %3579 = vmatpush2.bf16.msra.mxu0 0
      %3580 = vmatprep.mubr.bf16.mxu0 0
      %3581 = vmatmul.mubr.bf16.gmra.mxu0 %v821
      %v3582 = vpop.f32.mrf.mxu0
      %v3583 = vadd.f32 %v305, %v3582
      %v3584 = vpop.f32.mrf.mxu0
      %v3585 = vadd.f32 %v305, %v3584
      %v3586 = vpop.f32.mrf.mxu0
      %v3587 = vpop.f32.mrf.mxu0
      %3588 = vdwg.mxu0
      %3589 = vmatprep.subr.bf16.mxu0 0
      %3590 = vmatpush1.bf16.msra.mxu0 0
      %3591 = vmatprep.subr.bf16.mxu0 0
      %3592 = vmatpush1.bf16.msra.mxu0 0
      %3593 = vmatprep.subr.bf16.mxu0 0
      %3594 = vmatpush1.bf16.msra.mxu0 0
      %3595 = vmatprep.subr.bf16.mxu0 0
      %3596 = vmatpush1.bf16.msra.mxu0 0
      %3597 = vmatprep.subr.bf16.mxu0 0
      %3598 = vmatpush1.bf16.msra.mxu0 0
      %3599 = vmatprep.subr.bf16.mxu0 0
      %3600 = vmatpush1.bf16.msra.mxu0 0
      %3601 = vmatprep.subr.bf16.mxu0 0
      %3602 = vmatpush1.bf16.msra.mxu0 0
      %3603 = vmatprep.subr.bf16.mxu0 %v1179
      %3604 = vmatpush1.bf16.msra.mxu0 %v1176
      %3605 = vmatprep.subr.bf16.mxu0 0
      %3606 = vmatpush2.bf16.msra.mxu0 0
      %3607 = vmatprep.subr.bf16.mxu0 0
      %3608 = vmatpush2.bf16.msra.mxu0 0
      %3609 = vmatprep.subr.bf16.mxu0 0
      %3610 = vmatpush2.bf16.msra.mxu0 0
      %3611 = vmatprep.subr.bf16.mxu0 0
      %3612 = vmatpush2.bf16.msra.mxu0 0
      %3613 = vmatprep.subr.bf16.mxu0 0
      %3614 = vmatpush2.bf16.msra.mxu0 0
      %3615 = vmatprep.subr.bf16.mxu0 0
      %3616 = vmatpush2.bf16.msra.mxu0 0
      %3617 = vmatprep.subr.bf16.mxu0 0
      %3618 = vmatpush2.bf16.msra.mxu0 0
      %3619 = vmatprep.subr.bf16.mxu0 0
      %3620 = vmatpush2.bf16.msra.mxu0 0
      %3621 = vmatprep.mubr.bf16.mxu0 0
      %3622 = vmatmul.mubr.bf16.gmra.mxu0 %v821
      %v3623 = vpop.f32.mrf.mxu0
      %v3624 = vadd.f32 %v305, %v3623
      %v3625 = vpop.f32.mrf.mxu0
      %v3626 = vadd.f32 %v305, %v3625
      %v3627 = vpop.f32.mrf.mxu0
      %v3628 = vpop.f32.mrf.mxu0
      %3629 = vdwg.mxu0
      %3630 = vmatprep.subr.bf16.mxu0 0
      %3631 = vmatpush1.bf16.msra.mxu0 0
      %3632 = vmatprep.subr.bf16.mxu0 0
      %3633 = vmatpush1.bf16.msra.mxu0 0
      %3634 = vmatprep.subr.bf16.mxu0 0
      %3635 = vmatpush1.bf16.msra.mxu0 0
      %3636 = vmatprep.subr.bf16.mxu0 0
      %3637 = vmatpush1.bf16.msra.mxu0 0
      %3638 = vmatprep.subr.bf16.mxu0 0
      %3639 = vmatpush1.bf16.msra.mxu0 0
      %3640 = vmatprep.subr.bf16.mxu0 0
      %3641 = vmatpush1.bf16.msra.mxu0 0
      %3642 = vmatprep.subr.bf16.mxu0 0
      %3643 = vmatpush1.bf16.msra.mxu0 0
      %3644 = vmatprep.subr.bf16.mxu0 %v1185
      %3645 = vmatpush1.bf16.msra.mxu0 %v1182
      %3646 = vmatprep.subr.bf16.mxu0 0
      %3647 = vmatpush2.bf16.msra.mxu0 0
      %3648 = vmatprep.subr.bf16.mxu0 0
      %3649 = vmatpush2.bf16.msra.mxu0 0
      %3650 = vmatprep.subr.bf16.mxu0 0
      %3651 = vmatpush2.bf16.msra.mxu0 0
      %3652 = vmatprep.subr.bf16.mxu0 0
      %3653 = vmatpush2.bf16.msra.mxu0 0
      %3654 = vmatprep.subr.bf16.mxu0 0
      %3655 = vmatpush2.bf16.msra.mxu0 0
      %3656 = vmatprep.subr.bf16.mxu0 0
      %3657 = vmatpush2.bf16.msra.mxu0 0
      %3658 = vmatprep.subr.bf16.mxu0 0
      %3659 = vmatpush2.bf16.msra.mxu0 0
      %3660 = vmatprep.subr.bf16.mxu0 0
      %3661 = vmatpush2.bf16.msra.mxu0 0
      %3662 = vmatprep.mubr.bf16.mxu0 0
      %3663 = vmatmul.mubr.bf16.gmra.mxu0 %v821
      %v3664 = vpop.f32.mrf.mxu0
      %v3665 = vadd.f32 %v305, %v3664
      %v3666 = vpop.f32.mrf.mxu0
      %v3667 = vadd.f32 %v305, %v3666
      %v3668 = vpop.f32.mrf.mxu0
      %v3669 = vpop.f32.mrf.mxu0
      %3670 = vdwg.mxu0
      %3671 = vmatprep.subr.bf16.mxu0 0
      %3672 = vmatpush1.bf16.msra.mxu0 0
      %3673 = vmatprep.subr.bf16.mxu0 0
      %3674 = vmatpush1.bf16.msra.mxu0 0
      %3675 = vmatprep.subr.bf16.mxu0 0
      %3676 = vmatpush1.bf16.msra.mxu0 0
      %3677 = vmatprep.subr.bf16.mxu0 0
      %3678 = vmatpush1.bf16.msra.mxu0 0
      %3679 = vmatprep.subr.bf16.mxu0 0
      %3680 = vmatpush1.bf16.msra.mxu0 0
      %3681 = vmatprep.subr.bf16.mxu0 0
      %3682 = vmatpush1.bf16.msra.mxu0 0
      %3683 = vmatprep.subr.bf16.mxu0 0
      %3684 = vmatpush1.bf16.msra.mxu0 0
      %3685 = vmatprep.subr.bf16.mxu0 %v1191
      %3686 = vmatpush1.bf16.msra.mxu0 %v1188
      %3687 = vmatprep.subr.bf16.mxu0 0
      %3688 = vmatpush2.bf16.msra.mxu0 0
      %3689 = vmatprep.subr.bf16.mxu0 0
      %3690 = vmatpush2.bf16.msra.mxu0 0
      %3691 = vmatprep.subr.bf16.mxu0 0
      %3692 = vmatpush2.bf16.msra.mxu0 0
      %3693 = vmatprep.subr.bf16.mxu0 0
      %3694 = vmatpush2.bf16.msra.mxu0 0
      %3695 = vmatprep.subr.bf16.mxu0 0
      %3696 = vmatpush2.bf16.msra.mxu0 0
      %3697 = vmatprep.subr.bf16.mxu0 0
      %3698 = vmatpush2.bf16.msra.mxu0 0
      %3699 = vmatprep.subr.bf16.mxu0 0
      %3700 = vmatpush2.bf16.msra.mxu0 0
      %3701 = vmatprep.subr.bf16.mxu0 0
      %3702 = vmatpush2.bf16.msra.mxu0 0
      %3703 = vmatprep.mubr.bf16.mxu0 0
      %3704 = vmatmul.mubr.bf16.gmra.mxu0 %v821
      %v3705 = vpop.f32.mrf.mxu0
      %v3706 = vadd.f32 %v305, %v3705
      %v3707 = vpop.f32.mrf.mxu0
      %v3708 = vadd.f32 %v305, %v3707
      %v3709 = vpop.f32.mrf.mxu0
      %v3710 = vpop.f32.mrf.mxu0
      %3711 = vdwg.mxu0
      %3712 = vmatprep.subr.bf16.mxu0 0
      %3713 = vmatpush1.bf16.msra.mxu0 0
      %3714 = vmatprep.subr.bf16.mxu0 0
      %3715 = vmatpush1.bf16.msra.mxu0 0
      %3716 = vmatprep.subr.bf16.mxu0 0
      %3717 = vmatpush1.bf16.msra.mxu0 0
      %3718 = vmatprep.subr.bf16.mxu0 0
      %3719 = vmatpush1.bf16.msra.mxu0 0
      %3720 = vmatprep.subr.bf16.mxu0 0
      %3721 = vmatpush1.bf16.msra.mxu0 0
      %3722 = vmatprep.subr.bf16.mxu0 0
      %3723 = vmatpush1.bf16.msra.mxu0 0
      %3724 = vmatprep.subr.bf16.mxu0 0
      %3725 = vmatpush1.bf16.msra.mxu0 0
      %3726 = vmatprep.subr.bf16.mxu0 %v1197
      %3727 = vmatpush1.bf16.msra.mxu0 %v1194
      %3728 = vmatprep.subr.bf16.mxu0 0
      %3729 = vmatpush2.bf16.msra.mxu0 0
      %3730 = vmatprep.subr.bf16.mxu0 0
      %3731 = vmatpush2.bf16.msra.mxu0 0
      %3732 = vmatprep.subr.bf16.mxu0 0
      %3733 = vmatpush2.bf16.msra.mxu0 0
      %3734 = vmatprep.subr.bf16.mxu0 0
      %3735 = vmatpush2.bf16.msra.mxu0 0
      %3736 = vmatprep.subr.bf16.mxu0 0
      %3737 = vmatpush2.bf16.msra.mxu0 0
      %3738 = vmatprep.subr.bf16.mxu0 0
      %3739 = vmatpush2.bf16.msra.mxu0 0
      %3740 = vmatprep.subr.bf16.mxu0 0
      %3741 = vmatpush2.bf16.msra.mxu0 0
      %3742 = vmatprep.subr.bf16.mxu0 0
      %3743 = vmatpush2.bf16.msra.mxu0 0
      %3744 = vmatprep.mubr.bf16.mxu0 0
      %3745 = vmatmul.mubr.bf16.gmra.mxu0 %v821
      %v3746 = vpop.f32.mrf.mxu0
      %v3747 = vadd.f32 %v305, %v3746
      %v3748 = vpop.f32.mrf.mxu0
      %v3749 = vadd.f32 %v305, %v3748
      %v3750 = vpop.f32.mrf.mxu0
      %v3751 = vpop.f32.mrf.mxu0
      %3752 = vdwg.mxu0
      %3753 = vmatprep.subr.bf16.mxu0 0
      %3754 = vmatpush1.bf16.msra.mxu0 0
      %3755 = vmatprep.subr.bf16.mxu0 0
      %3756 = vmatpush1.bf16.msra.mxu0 0
      %3757 = vmatprep.subr.bf16.mxu0 0
      %3758 = vmatpush1.bf16.msra.mxu0 0
      %3759 = vmatprep.subr.bf16.mxu0 0
      %3760 = vmatpush1.bf16.msra.mxu0 0
      %3761 = vmatprep.subr.bf16.mxu0 0
      %3762 = vmatpush1.bf16.msra.mxu0 0
      %3763 = vmatprep.subr.bf16.mxu0 0
      %3764 = vmatpush1.bf16.msra.mxu0 0
      %3765 = vmatprep.subr.bf16.mxu0 0
      %3766 = vmatpush1.bf16.msra.mxu0 0
      %3767 = vmatprep.subr.bf16.mxu0 %v1203
      %3768 = vmatpush1.bf16.msra.mxu0 %v1200
      %3769 = vmatprep.subr.bf16.mxu0 0
      %3770 = vmatpush2.bf16.msra.mxu0 0
      %3771 = vmatprep.subr.bf16.mxu0 0
      %3772 = vmatpush2.bf16.msra.mxu0 0
      %3773 = vmatprep.subr.bf16.mxu0 0
      %3774 = vmatpush2.bf16.msra.mxu0 0
      %3775 = vmatprep.subr.bf16.mxu0 0
      %3776 = vmatpush2.bf16.msra.mxu0 0
      %3777 = vmatprep.subr.bf16.mxu0 0
      %3778 = vmatpush2.bf16.msra.mxu0 0
      %3779 = vmatprep.subr.bf16.mxu0 0
      %3780 = vmatpush2.bf16.msra.mxu0 0
      %3781 = vmatprep.subr.bf16.mxu0 0
      %3782 = vmatpush2.bf16.msra.mxu0 0
      %3783 = vmatprep.subr.bf16.mxu0 0
      %3784 = vmatpush2.bf16.msra.mxu0 0
      %3785 = vmatprep.mubr.bf16.mxu0 0
      %3786 = vmatmul.mubr.bf16.gmra.mxu0 %v821
      %v3787 = vpop.f32.mrf.mxu0
      %v3788 = vadd.f32 %v305, %v3787
      %v3789 = vpop.f32.mrf.mxu0
      %v3790 = vadd.f32 %v305, %v3789
      %v3791 = vpop.f32.mrf.mxu0
      %v3792 = vpop.f32.mrf.mxu0
      %3793 = vdwg.mxu0
      %3794 = vmatprep.subr.bf16.mxu0 0
      %3795 = vmatpush1.bf16.msra.mxu0 0
      %3796 = vmatprep.subr.bf16.mxu0 0
      %3797 = vmatpush1.bf16.msra.mxu0 0
      %3798 = vmatprep.subr.bf16.mxu0 0
      %3799 = vmatpush1.bf16.msra.mxu0 0
      %3800 = vmatprep.subr.bf16.mxu0 0
      %3801 = vmatpush1.bf16.msra.mxu0 0
      %3802 = vmatprep.subr.bf16.mxu0 0
      %3803 = vmatpush1.bf16.msra.mxu0 0
      %3804 = vmatprep.subr.bf16.mxu0 0
      %3805 = vmatpush1.bf16.msra.mxu0 0
      %3806 = vmatprep.subr.bf16.mxu0 0
      %3807 = vmatpush1.bf16.msra.mxu0 0
      %3808 = vmatprep.subr.bf16.mxu0 %v1209
      %3809 = vmatpush1.bf16.msra.mxu0 %v1206
      %3810 = vmatprep.subr.bf16.mxu0 0
      %3811 = vmatpush2.bf16.msra.mxu0 0
      %3812 = vmatprep.subr.bf16.mxu0 0
      %3813 = vmatpush2.bf16.msra.mxu0 0
      %3814 = vmatprep.subr.bf16.mxu0 0
      %3815 = vmatpush2.bf16.msra.mxu0 0
      %3816 = vmatprep.subr.bf16.mxu0 0
      %3817 = vmatpush2.bf16.msra.mxu0 0
      %3818 = vmatprep.subr.bf16.mxu0 0
      %3819 = vmatpush2.bf16.msra.mxu0 0
      %3820 = vmatprep.subr.bf16.mxu0 0
      %3821 = vmatpush2.bf16.msra.mxu0 0
      %3822 = vmatprep.subr.bf16.mxu0 0
      %3823 = vmatpush2.bf16.msra.mxu0 0
      %3824 = vmatprep.subr.bf16.mxu0 0
      %3825 = vmatpush2.bf16.msra.mxu0 0
      %3826 = vmatprep.mubr.bf16.mxu0 0
      %3827 = vmatmul.mubr.bf16.gmra.mxu0 %v821
      %v3828 = vpop.f32.mrf.mxu0
      %v3829 = vadd.f32 %v305, %v3828
      %v3830 = vpop.f32.mrf.mxu0
      %v3831 = vadd.f32 %v305, %v3830
      %v3832 = vpop.f32.mrf.mxu0
      %v3833 = vpop.f32.mrf.mxu0
      %3834 = vdwg.mxu0
      %v3835 = vmax.f32 %v1246, 0.0
      %v3836 = vmax.f32 %v1248, 0.0
      %v3837 = vmax.f32 %v1287, 0.0
      %v3838 = vmax.f32 %v1289, 0.0
      %v3839 = vmax.f32 %v1328, 0.0
      %v3840 = vmax.f32 %v1330, 0.0
      %v3841 = vmax.f32 %v1369, 0.0
      %v3842 = vmax.f32 %v1371, 0.0
      %v3843 = vmax.f32 %v1410, 0.0
      %v3844 = vmax.f32 %v1412, 0.0
      %v3845 = vmax.f32 %v1451, 0.0
      %v3846 = vmax.f32 %v1453, 0.0
      %v3847 = vmax.f32 %v1492, 0.0
      %v3848 = vmax.f32 %v1494, 0.0
      %v3849 = vmax.f32 %v1533, 0.0
      %v3850 = vmax.f32 %v1535, 0.0
      %v3851 = vmax.f32 %v1574, 0.0
      %v3852 = vmax.f32 %v1576, 0.0
      %v3853 = vmax.f32 %v1615, 0.0
      %v3854 = vmax.f32 %v1617, 0.0
      %v3855 = vmax.f32 %v1656, 0.0
      %v3856 = vmax.f32 %v1658, 0.0
      %v3857 = vmax.f32 %v1697, 0.0
      %v3858 = vmax.f32 %v1699, 0.0
      %v3859 = vmax.f32 %v1738, 0.0
      %v3860 = vmax.f32 %v1740, 0.0
      %v3861 = vmax.f32 %v1779, 0.0
      %v3862 = vmax.f32 %v1781, 0.0
      %v3863 = vmax.f32 %v1820, 0.0
      %v3864 = vmax.f32 %v1822, 0.0
      %v3865 = vmax.f32 %v1861, 0.0
      %v3866 = vmax.f32 %v1863, 0.0
      %v3867 = vmax.f32 %v1902, 0.0
      %v3868 = vmax.f32 %v1904, 0.0
      %v3869 = vmax.f32 %v1943, 0.0
      %v3870 = vmax.f32 %v1945, 0.0
      %v3871 = vmax.f32 %v1984, 0.0
      %v3872 = vmax.f32 %v1986, 0.0
      %v3873 = vmax.f32 %v2025, 0.0
      %v3874 = vmax.f32 %v2027, 0.0
      %v3875 = vmax.f32 %v2066, 0.0
      %v3876 = vmax.f32 %v2068, 0.0
      %v3877 = vmax.f32 %v2107, 0.0
      %v3878 = vmax.f32 %v2109, 0.0
      %v3879 = vmax.f32 %v2148, 0.0
      %v3880 = vmax.f32 %v2150, 0.0
      %v3881 = vmax.f32 %v2189, 0.0
      %v3882 = vmax.f32 %v2191, 0.0
      %v3883 = vmax.f32 %v2230, 0.0
      %v3884 = vmax.f32 %v2232, 0.0
      %v3885 = vmax.f32 %v2271, 0.0
      %v3886 = vmax.f32 %v2273, 0.0
      %v3887 = vmax.f32 %v2312, 0.0
      %v3888 = vmax.f32 %v2314, 0.0
      %v3889 = vmax.f32 %v2353, 0.0
      %v3890 = vmax.f32 %v2355, 0.0
      %v3891 = vmax.f32 %v2394, 0.0
      %v3892 = vmax.f32 %v2396, 0.0
      %v3893 = vmax.f32 %v2435, 0.0
      %v3894 = vmax.f32 %v2437, 0.0
      %v3895 = vmax.f32 %v2476, 0.0
      %v3896 = vmax.f32 %v2478, 0.0
      %v3897 = vmax.f32 %v2517, 0.0
      %v3898 = vmax.f32 %v2519, 0.0
      %v3899 = vmax.f32 %v2558, 0.0
      %v3900 = vmax.f32 %v2560, 0.0
      %v3901 = vmax.f32 %v2599, 0.0
      %v3902 = vmax.f32 %v2601, 0.0
      %v3903 = vmax.f32 %v2640, 0.0
      %v3904 = vmax.f32 %v2642, 0.0
      %v3905 = vmax.f32 %v2681, 0.0
      %v3906 = vmax.f32 %v2683, 0.0
      %v3907 = vmax.f32 %v2722, 0.0
      %v3908 = vmax.f32 %v2724, 0.0
      %v3909 = vmax.f32 %v2763, 0.0
      %v3910 = vmax.f32 %v2765, 0.0
      %v3911 = vmax.f32 %v2804, 0.0
      %v3912 = vmax.f32 %v2806, 0.0
      %v3913 = vmax.f32 %v2845, 0.0
      %v3914 = vmax.f32 %v2847, 0.0
      %v3915 = vmax.f32 %v2886, 0.0
      %v3916 = vmax.f32 %v2888, 0.0
      %v3917 = vmax.f32 %v2927, 0.0
      %v3918 = vmax.f32 %v2929, 0.0
      %v3919 = vmax.f32 %v2968, 0.0
      %v3920 = vmax.f32 %v2970, 0.0
      %v3921 = vmax.f32 %v3009, 0.0
      %v3922 = vmax.f32 %v3011, 0.0
      %v3923 = vmax.f32 %v3050, 0.0
      %v3924 = vmax.f32 %v3052, 0.0
      %v3925 = vmax.f32 %v3091, 0.0
      %v3926 = vmax.f32 %v3093, 0.0
      %v3927 = vmax.f32 %v3132, 0.0
      %v3928 = vmax.f32 %v3134, 0.0
      %v3929 = vmax.f32 %v3173, 0.0
      %v3930 = vmax.f32 %v3175, 0.0
      %v3931 = vmax.f32 %v3214, 0.0
      %v3932 = vmax.f32 %v3216, 0.0
      %v3933 = vmax.f32 %v3255, 0.0
      %v3934 = vmax.f32 %v3257, 0.0
      %v3935 = vmax.f32 %v3296, 0.0
      %v3936 = vmax.f32 %v3298, 0.0
      %v3937 = vmax.f32 %v3337, 0.0
      %v3938 = vmax.f32 %v3339, 0.0
      %v3939 = vmax.f32 %v3378, 0.0
      %v3940 = vmax.f32 %v3380, 0.0
      %v3941 = vmax.f32 %v3419, 0.0
      %v3942 = vmax.f32 %v3421, 0.0
      %v3943 = vmax.f32 %v3460, 0.0
      %v3944 = vmax.f32 %v3462, 0.0
      %v3945 = vmax.f32 %v3501, 0.0
      %v3946 = vmax.f32 %v3503, 0.0
      %v3947 = vmax.f32 %v3542, 0.0
      %v3948 = vmax.f32 %v3544, 0.0
      %v3949 = vmax.f32 %v3583, 0.0
      %v3950 = vmax.f32 %v3585, 0.0
      %v3951 = vmax.f32 %v3624, 0.0
      %v3952 = vmax.f32 %v3626, 0.0
      %v3953 = vmax.f32 %v3665, 0.0
      %v3954 = vmax.f32 %v3667, 0.0
      %v3955 = vmax.f32 %v3706, 0.0
      %v3956 = vmax.f32 %v3708, 0.0
      %v3957 = vmax.f32 %v3747, 0.0
      %v3958 = vmax.f32 %v3749, 0.0
      %v3959 = vmax.f32 %v3788, 0.0
      %v3960 = vmax.f32 %v3790, 0.0
      %v3961 = vmax.f32 %v3829, 0.0
      %v3962 = vmax.f32 %v3831, 0.0
      %v3963 = vpack.c.bf16 %v3835, %v3835
      %v3964 = vpack.c.bf16 %v3836, %v3836
      %v3965 = vpack.c.bf16 %v3837, %v3837
      %v3966 = vpack.c.bf16 %v3838, %v3838
      %v3967 = vpack.c.bf16 %v3839, %v3839
      %v3968 = vpack.c.bf16 %v3840, %v3840
      %v3969 = vpack.c.bf16 %v3841, %v3841
      %v3970 = vpack.c.bf16 %v3842, %v3842
      %v3971 = vpack.c.bf16 %v3843, %v3843
      %v3972 = vpack.c.bf16 %v3844, %v3844
      %v3973 = vpack.c.bf16 %v3845, %v3845
      %v3974 = vpack.c.bf16 %v3846, %v3846
      %v3975 = vpack.c.bf16 %v3847, %v3847
      %v3976 = vpack.c.bf16 %v3848, %v3848
      %v3977 = vpack.c.bf16 %v3849, %v3849
      %v3978 = vpack.c.bf16 %v3850, %v3850
      %v3979 = vpack.c.bf16 %v3851, %v3851
      %v3980 = vpack.c.bf16 %v3852, %v3852
      %v3981 = vpack.c.bf16 %v3853, %v3853
      %v3982 = vpack.c.bf16 %v3854, %v3854
      %v3983 = vpack.c.bf16 %v3855, %v3855
      %v3984 = vpack.c.bf16 %v3856, %v3856
      %v3985 = vpack.c.bf16 %v3857, %v3857
      %v3986 = vpack.c.bf16 %v3858, %v3858
      %v3987 = vpack.c.bf16 %v3859, %v3859
      %v3988 = vpack.c.bf16 %v3860, %v3860
      %v3989 = vpack.c.bf16 %v3861, %v3861
      %v3990 = vpack.c.bf16 %v3862, %v3862
      %v3991 = vpack.c.bf16 %v3863, %v3863
      %v3992 = vpack.c.bf16 %v3864, %v3864
      %v3993 = vpack.c.bf16 %v3865, %v3865
      %v3994 = vpack.c.bf16 %v3866, %v3866
      %v3995 = vpack.c.bf16 %v3867, %v3867
      %v3996 = vpack.c.bf16 %v3868, %v3868
      %v3997 = vpack.c.bf16 %v3869, %v3869
      %v3998 = vpack.c.bf16 %v3870, %v3870
      %v3999 = vpack.c.bf16 %v3871, %v3871
      %v4000 = vpack.c.bf16 %v3872, %v3872
      %v4001 = vpack.c.bf16 %v3873, %v3873
      %v4002 = vpack.c.bf16 %v3874, %v3874
      %v4003 = vpack.c.bf16 %v3875, %v3875
      %v4004 = vpack.c.bf16 %v3876, %v3876
      %v4005 = vpack.c.bf16 %v3877, %v3877
      %v4006 = vpack.c.bf16 %v3878, %v3878
      %v4007 = vpack.c.bf16 %v3879, %v3879
      %v4008 = vpack.c.bf16 %v3880, %v3880
      %v4009 = vpack.c.bf16 %v3881, %v3881
      %v4010 = vpack.c.bf16 %v3882, %v3882
      %v4011 = vpack.c.bf16 %v3883, %v3883
      %v4012 = vpack.c.bf16 %v3884, %v3884
      %v4013 = vpack.c.bf16 %v3885, %v3885
      %v4014 = vpack.c.bf16 %v3886, %v3886
      %v4015 = vpack.c.bf16 %v3887, %v3887
      %v4016 = vpack.c.bf16 %v3888, %v3888
      %v4017 = vpack.c.bf16 %v3889, %v3889
      %v4018 = vpack.c.bf16 %v3890, %v3890
      %v4019 = vpack.c.bf16 %v3891, %v3891
      %v4020 = vpack.c.bf16 %v3892, %v3892
      %v4021 = vpack.c.bf16 %v3893, %v3893
      %v4022 = vpack.c.bf16 %v3894, %v3894
      %v4023 = vpack.c.bf16 %v3895, %v3895
      %v4024 = vpack.c.bf16 %v3896, %v3896
      %v4025 = vpack.c.bf16 %v3897, %v3897
      %v4026 = vpack.c.bf16 %v3898, %v3898
      %v4027 = vpack.c.bf16 %v3899, %v3899
      %v4028 = vpack.c.bf16 %v3900, %v3900
      %v4029 = vpack.c.bf16 %v3901, %v3901
      %v4030 = vpack.c.bf16 %v3902, %v3902
      %v4031 = vpack.c.bf16 %v3903, %v3903
      %v4032 = vpack.c.bf16 %v3904, %v3904
      %v4033 = vpack.c.bf16 %v3905, %v3905
      %v4034 = vpack.c.bf16 %v3906, %v3906
      %v4035 = vpack.c.bf16 %v3907, %v3907
      %v4036 = vpack.c.bf16 %v3908, %v3908
      %v4037 = vpack.c.bf16 %v3909, %v3909
      %v4038 = vpack.c.bf16 %v3910, %v3910
      %v4039 = vpack.c.bf16 %v3911, %v3911
      %v4040 = vpack.c.bf16 %v3912, %v3912
      %v4041 = vpack.c.bf16 %v3913, %v3913
      %v4042 = vpack.c.bf16 %v3914, %v3914
      %v4043 = vpack.c.bf16 %v3915, %v3915
      %v4044 = vpack.c.bf16 %v3916, %v3916
      %v4045 = vpack.c.bf16 %v3917, %v3917
      %v4046 = vpack.c.bf16 %v3918, %v3918
      %v4047 = vpack.c.bf16 %v3919, %v3919
      %v4048 = vpack.c.bf16 %v3920, %v3920
      %v4049 = vpack.c.bf16 %v3921, %v3921
      %v4050 = vpack.c.bf16 %v3922, %v3922
      %v4051 = vpack.c.bf16 %v3923, %v3923
      %v4052 = vpack.c.bf16 %v3924, %v3924
      %v4053 = vpack.c.bf16 %v3925, %v3925
      %v4054 = vpack.c.bf16 %v3926, %v3926
      %v4055 = vpack.c.bf16 %v3927, %v3927
      %v4056 = vpack.c.bf16 %v3928, %v3928
      %v4057 = vpack.c.bf16 %v3929, %v3929
      %v4058 = vpack.c.bf16 %v3930, %v3930
      %v4059 = vpack.c.bf16 %v3931, %v3931
      %v4060 = vpack.c.bf16 %v3932, %v3932
      %v4061 = vpack.c.bf16 %v3933, %v3933
      %v4062 = vpack.c.bf16 %v3934, %v3934
      %v4063 = vpack.c.bf16 %v3935, %v3935
      %v4064 = vpack.c.bf16 %v3936, %v3936
      %v4065 = vpack.c.bf16 %v3937, %v3937
      %v4066 = vpack.c.bf16 %v3938, %v3938
      %v4067 = vpack.c.bf16 %v3939, %v3939
      %v4068 = vpack.c.bf16 %v3940, %v3940
      %v4069 = vpack.c.bf16 %v3941, %v3941
      %v4070 = vpack.c.bf16 %v3942, %v3942
      %v4071 = vpack.c.bf16 %v3943, %v3943
      %v4072 = vpack.c.bf16 %v3944, %v3944
      %v4073 = vpack.c.bf16 %v3945, %v3945
      %v4074 = vpack.c.bf16 %v3946, %v3946
      %v4075 = vpack.c.bf16 %v3947, %v3947
      %v4076 = vpack.c.bf16 %v3948, %v3948
      %v4077 = vpack.c.bf16 %v3949, %v3949
      %v4078 = vpack.c.bf16 %v3950, %v3950
      %v4079 = vpack.c.bf16 %v3951, %v3951
      %v4080 = vpack.c.bf16 %v3952, %v3952
      %v4081 = vpack.c.bf16 %v3953, %v3953
      %v4082 = vpack.c.bf16 %v3954, %v3954
      %v4083 = vpack.c.bf16 %v3955, %v3955
      %v4084 = vpack.c.bf16 %v3956, %v3956
      %v4085 = vpack.c.bf16 %v3957, %v3957
      %v4086 = vpack.c.bf16 %v3958, %v3958
      %v4087 = vpack.c.bf16 %v3959, %v3959
      %v4088 = vpack.c.bf16 %v3960, %v3960
      %v4089 = vpack.c.bf16 %v3961, %v3961
      %v4090 = vpack.c.bf16 %v3962, %v3962
      %v4123 = vunpack.c.l.b16 %v3963
      %v4124 = vunpack.c.l.b16 %v3964
      %v4125 = vunpack.c.l.b16 %v3965
      %v4126 = vunpack.c.l.b16 %v3966
      %v4127 = vunpack.c.l.b16 %v3967
      %v4128 = vunpack.c.l.b16 %v3968
      %v4129 = vunpack.c.l.b16 %v3969
      %v4130 = vunpack.c.l.b16 %v3970
      %v4131 = vunpack.c.l.b16 %v3971
      %v4132 = vunpack.c.l.b16 %v3972
      %v4133 = vunpack.c.l.b16 %v3973
      %v4134 = vunpack.c.l.b16 %v3974
      %v4135 = vunpack.c.l.b16 %v3975
      %v4136 = vunpack.c.l.b16 %v3976
      %v4137 = vunpack.c.l.b16 %v3977
      %v4138 = vunpack.c.l.b16 %v3978
      %v4139 = vunpack.c.l.b16 %v3979
      %v4140 = vunpack.c.l.b16 %v3980
      %v4141 = vunpack.c.l.b16 %v3981
      %v4142 = vunpack.c.l.b16 %v3982
      %v4143 = vunpack.c.l.b16 %v3983
      %v4144 = vunpack.c.l.b16 %v3984
      %v4145 = vunpack.c.l.b16 %v3985
      %v4146 = vunpack.c.l.b16 %v3986
      %v4147 = vunpack.c.l.b16 %v3987
      %v4148 = vunpack.c.l.b16 %v3988
      %v4149 = vunpack.c.l.b16 %v3989
      %v4150 = vunpack.c.l.b16 %v3990
      %v4151 = vunpack.c.l.b16 %v3991
      %v4152 = vunpack.c.l.b16 %v3992
      %v4153 = vunpack.c.l.b16 %v3993
      %v4154 = vunpack.c.l.b16 %v3994
      %v4155 = vpack.c.b16 %v4124, %v4123
      %v4156 = vpack.c.b16 %v4126, %v4125
      %v4157 = vpack.c.b16 %v4128, %v4127
      %v4158 = vpack.c.b16 %v4130, %v4129
      %v4159 = vpack.c.b16 %v4132, %v4131
      %v4160 = vpack.c.b16 %v4134, %v4133
      %v4161 = vpack.c.b16 %v4136, %v4135
      %v4162 = vpack.c.b16 %v4138, %v4137
      %v4163 = vpack.c.b16 %v4140, %v4139
      %v4164 = vpack.c.b16 %v4142, %v4141
      %v4165 = vpack.c.b16 %v4144, %v4143
      %v4166 = vpack.c.b16 %v4146, %v4145
      %v4167 = vpack.c.b16 %v4148, %v4147
      %v4168 = vpack.c.b16 %v4150, %v4149
      %v4169 = vpack.c.b16 %v4152, %v4151
      %v4170 = vpack.c.b16 %v4154, %v4153
      %4187 = vst [vmem:[%s170] sm:$0xff] %v4155
      %4188 = vst [vmem:[%s170 + $0x8] sm:$0xff] %v4156
      %4189 = vst [vmem:[%s170 + $0x10] sm:$0xff] %v4157
      %4190 = vst [vmem:[%s170 + $0x18] sm:$0xff] %v4158
      %4191 = vst [vmem:[%s170 + $0x20] sm:$0xff] %v4159
      %4192 = vst [vmem:[%s170 + $0x28] sm:$0xff] %v4160
      %4193 = vst [vmem:[%s170 + $0x30] sm:$0xff] %v4161
      %4194 = vst [vmem:[%s170 + $0x38] sm:$0xff] %v4162
      %4195 = vst [vmem:[%s170 + $0x40] sm:$0xff] %v4163
      %4196 = vst [vmem:[%s170 + $0x48] sm:$0xff] %v4164
      %4197 = vst [vmem:[%s170 + $0x50] sm:$0xff] %v4165
      %4198 = vst [vmem:[%s170 + $0x58] sm:$0xff] %v4166
      %4199 = vst [vmem:[%s170 + $0x60] sm:$0xff] %v4167
      %4200 = vst [vmem:[%s170 + $0x68] sm:$0xff] %v4168
      %4201 = vst [vmem:[%s170 + $0x70] sm:$0xff] %v4169
      %4202 = vst [vmem:[%s170 + $0x78] sm:$0xff] %v4170
      %v4235 = vunpack.c.l.b16 %v3995
      %v4236 = vunpack.c.l.b16 %v3996
      %v4237 = vunpack.c.l.b16 %v3997
      %v4238 = vunpack.c.l.b16 %v3998
      %v4239 = vunpack.c.l.b16 %v3999
      %v4240 = vunpack.c.l.b16 %v4000
      %v4241 = vunpack.c.l.b16 %v4001
      %v4242 = vunpack.c.l.b16 %v4002
      %v4243 = vunpack.c.l.b16 %v4003
      %v4244 = vunpack.c.l.b16 %v4004
      %v4245 = vunpack.c.l.b16 %v4005
      %v4246 = vunpack.c.l.b16 %v4006
      %v4247 = vunpack.c.l.b16 %v4007
      %v4248 = vunpack.c.l.b16 %v4008
      %v4249 = vunpack.c.l.b16 %v4009
      %v4250 = vunpack.c.l.b16 %v4010
      %v4251 = vunpack.c.l.b16 %v4011
      %v4252 = vunpack.c.l.b16 %v4012
      %v4253 = vunpack.c.l.b16 %v4013
      %v4254 = vunpack.c.l.b16 %v4014
      %v4255 = vunpack.c.l.b16 %v4015
      %v4256 = vunpack.c.l.b16 %v4016
      %v4257 = vunpack.c.l.b16 %v4017
      %v4258 = vunpack.c.l.b16 %v4018
      %v4259 = vunpack.c.l.b16 %v4019
      %v4260 = vunpack.c.l.b16 %v4020
      %v4261 = vunpack.c.l.b16 %v4021
      %v4262 = vunpack.c.l.b16 %v4022
      %v4263 = vunpack.c.l.b16 %v4023
      %v4264 = vunpack.c.l.b16 %v4024
      %v4265 = vunpack.c.l.b16 %v4025
      %v4266 = vunpack.c.l.b16 %v4026
      %v4267 = vpack.c.b16 %v4236, %v4235
      %v4268 = vpack.c.b16 %v4238, %v4237
      %v4269 = vpack.c.b16 %v4240, %v4239
      %v4270 = vpack.c.b16 %v4242, %v4241
      %v4271 = vpack.c.b16 %v4244, %v4243
      %v4272 = vpack.c.b16 %v4246, %v4245
      %v4273 = vpack.c.b16 %v4248, %v4247
      %v4274 = vpack.c.b16 %v4250, %v4249
      %v4275 = vpack.c.b16 %v4252, %v4251
      %v4276 = vpack.c.b16 %v4254, %v4253
      %v4277 = vpack.c.b16 %v4256, %v4255
      %v4278 = vpack.c.b16 %v4258, %v4257
      %v4279 = vpack.c.b16 %v4260, %v4259
      %v4280 = vpack.c.b16 %v4262, %v4261
      %v4281 = vpack.c.b16 %v4264, %v4263
      %v4282 = vpack.c.b16 %v4266, %v4265
      %s4299 = scalar_lea.vmem %s170, 128
      %4300 = vst [vmem:[%s4299] sm:$0xff] %v4267
      %4301 = vst [vmem:[%s4299 + $0x8] sm:$0xff] %v4268
      %4302 = vst [vmem:[%s4299 + $0x10] sm:$0xff] %v4269
      %4303 = vst [vmem:[%s4299 + $0x18] sm:$0xff] %v4270
      %4304 = vst [vmem:[%s4299 + $0x20] sm:$0xff] %v4271
      %4305 = vst [vmem:[%s4299 + $0x28] sm:$0xff] %v4272
      %4306 = vst [vmem:[%s4299 + $0x30] sm:$0xff] %v4273
      %4307 = vst [vmem:[%s4299 + $0x38] sm:$0xff] %v4274
      %4308 = vst [vmem:[%s4299 + $0x40] sm:$0xff] %v4275
      %4309 = vst [vmem:[%s4299 + $0x48] sm:$0xff] %v4276
      %4310 = vst [vmem:[%s4299 + $0x50] sm:$0xff] %v4277
      %4311 = vst [vmem:[%s4299 + $0x58] sm:$0xff] %v4278
      %4312 = vst [vmem:[%s4299 + $0x60] sm:$0xff] %v4279
      %4313 = vst [vmem:[%s4299 + $0x68] sm:$0xff] %v4280
      %4314 = vst [vmem:[%s4299 + $0x70] sm:$0xff] %v4281
      %4315 = vst [vmem:[%s4299 + $0x78] sm:$0xff] %v4282
      %v4348 = vunpack.c.l.b16 %v4027
      %v4349 = vunpack.c.l.b16 %v4028
      %v4350 = vunpack.c.l.b16 %v4029
      %v4351 = vunpack.c.l.b16 %v4030
      %v4352 = vunpack.c.l.b16 %v4031
      %v4353 = vunpack.c.l.b16 %v4032
      %v4354 = vunpack.c.l.b16 %v4033
      %v4355 = vunpack.c.l.b16 %v4034
      %v4356 = vunpack.c.l.b16 %v4035
      %v4357 = vunpack.c.l.b16 %v4036
      %v4358 = vunpack.c.l.b16 %v4037
      %v4359 = vunpack.c.l.b16 %v4038
      %v4360 = vunpack.c.l.b16 %v4039
      %v4361 = vunpack.c.l.b16 %v4040
      %v4362 = vunpack.c.l.b16 %v4041
      %v4363 = vunpack.c.l.b16 %v4042
      %v4364 = vunpack.c.l.b16 %v4043
      %v4365 = vunpack.c.l.b16 %v4044
      %v4366 = vunpack.c.l.b16 %v4045
      %v4367 = vunpack.c.l.b16 %v4046
      %v4368 = vunpack.c.l.b16 %v4047
      %v4369 = vunpack.c.l.b16 %v4048
      %v4370 = vunpack.c.l.b16 %v4049
      %v4371 = vunpack.c.l.b16 %v4050
      %v4372 = vunpack.c.l.b16 %v4051
      %v4373 = vunpack.c.l.b16 %v4052
      %v4374 = vunpack.c.l.b16 %v4053
      %v4375 = vunpack.c.l.b16 %v4054
      %v4376 = vunpack.c.l.b16 %v4055
      %v4377 = vunpack.c.l.b16 %v4056
      %v4378 = vunpack.c.l.b16 %v4057
      %v4379 = vunpack.c.l.b16 %v4058
      %v4380 = vpack.c.b16 %v4349, %v4348
      %v4381 = vpack.c.b16 %v4351, %v4350
      %v4382 = vpack.c.b16 %v4353, %v4352
      %v4383 = vpack.c.b16 %v4355, %v4354
      %v4384 = vpack.c.b16 %v4357, %v4356
      %v4385 = vpack.c.b16 %v4359, %v4358
      %v4386 = vpack.c.b16 %v4361, %v4360
      %v4387 = vpack.c.b16 %v4363, %v4362
      %v4388 = vpack.c.b16 %v4365, %v4364
      %v4389 = vpack.c.b16 %v4367, %v4366
      %v4390 = vpack.c.b16 %v4369, %v4368
      %v4391 = vpack.c.b16 %v4371, %v4370
      %v4392 = vpack.c.b16 %v4373, %v4372
      %v4393 = vpack.c.b16 %v4375, %v4374
      %v4394 = vpack.c.b16 %v4377, %v4376
      %v4395 = vpack.c.b16 %v4379, %v4378
      %s4412 = scalar_lea.vmem %s170, 256
      %4413 = vst [vmem:[%s4412] sm:$0xff] %v4380
      %4414 = vst [vmem:[%s4412 + $0x8] sm:$0xff] %v4381
      %4415 = vst [vmem:[%s4412 + $0x10] sm:$0xff] %v4382
      %4416 = vst [vmem:[%s4412 + $0x18] sm:$0xff] %v4383
      %4417 = vst [vmem:[%s4412 + $0x20] sm:$0xff] %v4384
      %4418 = vst [vmem:[%s4412 + $0x28] sm:$0xff] %v4385
      %4419 = vst [vmem:[%s4412 + $0x30] sm:$0xff] %v4386
      %4420 = vst [vmem:[%s4412 + $0x38] sm:$0xff] %v4387
      %4421 = vst [vmem:[%s4412 + $0x40] sm:$0xff] %v4388
      %4422 = vst [vmem:[%s4412 + $0x48] sm:$0xff] %v4389
      %4423 = vst [vmem:[%s4412 + $0x50] sm:$0xff] %v4390
      %4424 = vst [vmem:[%s4412 + $0x58] sm:$0xff] %v4391
      %4425 = vst [vmem:[%s4412 + $0x60] sm:$0xff] %v4392
      %4426 = vst [vmem:[%s4412 + $0x68] sm:$0xff] %v4393
      %4427 = vst [vmem:[%s4412 + $0x70] sm:$0xff] %v4394
      %4428 = vst [vmem:[%s4412 + $0x78] sm:$0xff] %v4395
      %v4461 = vunpack.c.l.b16 %v4059
      %v4462 = vunpack.c.l.b16 %v4060
      %v4463 = vunpack.c.l.b16 %v4061
      %v4464 = vunpack.c.l.b16 %v4062
      %v4465 = vunpack.c.l.b16 %v4063
      %v4466 = vunpack.c.l.b16 %v4064
      %v4467 = vunpack.c.l.b16 %v4065
      %v4468 = vunpack.c.l.b16 %v4066
      %v4469 = vunpack.c.l.b16 %v4067
      %v4470 = vunpack.c.l.b16 %v4068
      %v4471 = vunpack.c.l.b16 %v4069
      %v4472 = vunpack.c.l.b16 %v4070
      %v4473 = vunpack.c.l.b16 %v4071
      %v4474 = vunpack.c.l.b16 %v4072
      %v4475 = vunpack.c.l.b16 %v4073
      %v4476 = vunpack.c.l.b16 %v4074
      %v4477 = vunpack.c.l.b16 %v4075
      %v4478 = vunpack.c.l.b16 %v4076
      %v4479 = vunpack.c.l.b16 %v4077
      %v4480 = vunpack.c.l.b16 %v4078
      %v4481 = vunpack.c.l.b16 %v4079
      %v4482 = vunpack.c.l.b16 %v4080
      %v4483 = vunpack.c.l.b16 %v4081
      %v4484 = vunpack.c.l.b16 %v4082
      %v4485 = vunpack.c.l.b16 %v4083
      %v4486 = vunpack.c.l.b16 %v4084
      %v4487 = vunpack.c.l.b16 %v4085
      %v4488 = vunpack.c.l.b16 %v4086
      %v4489 = vunpack.c.l.b16 %v4087
      %v4490 = vunpack.c.l.b16 %v4088
      %v4491 = vunpack.c.l.b16 %v4089
      %v4492 = vunpack.c.l.b16 %v4090
      %v4493 = vpack.c.b16 %v4462, %v4461
      %v4494 = vpack.c.b16 %v4464, %v4463
      %v4495 = vpack.c.b16 %v4466, %v4465
      %v4496 = vpack.c.b16 %v4468, %v4467
      %v4497 = vpack.c.b16 %v4470, %v4469
      %v4498 = vpack.c.b16 %v4472, %v4471
      %v4499 = vpack.c.b16 %v4474, %v4473
      %v4500 = vpack.c.b16 %v4476, %v4475
      %v4501 = vpack.c.b16 %v4478, %v4477
      %v4502 = vpack.c.b16 %v4480, %v4479
      %v4503 = vpack.c.b16 %v4482, %v4481
      %v4504 = vpack.c.b16 %v4484, %v4483
      %v4505 = vpack.c.b16 %v4486, %v4485
      %v4506 = vpack.c.b16 %v4488, %v4487
      %v4507 = vpack.c.b16 %v4490, %v4489
      %v4508 = vpack.c.b16 %v4492, %v4491
      %s4525 = scalar_lea.vmem %s170, 384
      %4526 = vst [vmem:[%s4525] sm:$0xff] %v4493
      %4527 = vst [vmem:[%s4525 + $0x8] sm:$0xff] %v4494
      %4528 = vst [vmem:[%s4525 + $0x10] sm:$0xff] %v4495
      %4529 = vst [vmem:[%s4525 + $0x18] sm:$0xff] %v4496
      %4530 = vst [vmem:[%s4525 + $0x20] sm:$0xff] %v4497
      %4531 = vst [vmem:[%s4525 + $0x28] sm:$0xff] %v4498
      %4532 = vst [vmem:[%s4525 + $0x30] sm:$0xff] %v4499
      %4533 = vst [vmem:[%s4525 + $0x38] sm:$0xff] %v4500
      %4534 = vst [vmem:[%s4525 + $0x40] sm:$0xff] %v4501
      %4535 = vst [vmem:[%s4525 + $0x48] sm:$0xff] %v4502
      %4536 = vst [vmem:[%s4525 + $0x50] sm:$0xff] %v4503
      %4537 = vst [vmem:[%s4525 + $0x58] sm:$0xff] %v4504
      %4538 = vst [vmem:[%s4525 + $0x60] sm:$0xff] %v4505
      %4539 = vst [vmem:[%s4525 + $0x68] sm:$0xff] %v4506
      %4540 = vst [vmem:[%s4525 + $0x70] sm:$0xff] %v4507
      %4541 = vst [vmem:[%s4525 + $0x78] sm:$0xff] %v4508
      %p4542 = scmp.lt.s32.totalorder %s14, 3
      %s4543 = scalar_select %p4542, %s14, 3
      %s4544 = smul.addr %s4543, 128
      %s4545 = smul.addr %s4544, 4
      %s4546 = scalar_lea.vmem %s3, %s4545
      // Predicated region
      $region33: #{simple_cnn_forward.5} parent=31 // pred_check
        %p4547 = pneg %p100
      $region34: #{simple_cnn_forward.5} parent=31 // pred_check_branch
        %4549 = sbr.rel (%p4547) target = $region36
      $region35: #{simple_cnn_forward.5} parent=31 // pred_region
        _
      $region36: #{simple_cnn_forward.5} parent=31 // pred_fallthru
        _
    $region32: #{simple_cnn_forward.5} parent=5 // pred_fallthru
      _
    %p4550 = scmp.le.s32.totalorder 2, %s9
    // Predicated region
    $region37: #{simple_cnn_forward.5} parent=5 // pred_check
      %p4551 = pneg %p4550
    $region38: #{simple_cnn_forward.5} parent=5 // pred_check_branch
      %4553 = sbr.rel (%p4551) target = $region40
    $region39: #{simple_cnn_forward.5} parent=5 // pred_region
      %s4554 = ssub.s32 %s9, 2
      // Predicated region
      $region41: #{simple_cnn_forward.5} parent=39 // pred_check
        %p4555 = pneg %p106
      $region42: #{simple_cnn_forward.5} parent=39 // pred_check_branch
        %4557 = sbr.rel (%p4555) target = $region44
      $region43: #{simple_cnn_forward.5} parent=39 // pred_region
        %p4558 = scmp.lt.s32.totalorder %s15, 3
        %s4559 = scalar_select %p4558, %s15, 3
        %s4560 = smul.addr %s4559, 128
        %s4561 = smul.addr %s4560, 4
        %s4562 = scalar_lea.vmem %s3, %s4561
      $region44: #{simple_cnn_forward.5} parent=39 // pred_fallthru
        _
    $region40: #{simple_cnn_forward.5} parent=5 // pred_fallthru
      _
  $region6: #{simple_cnn_forward.5} parent=0 // loop_footer
    %s13 = sadd.s32 1, %s9
  $region7: #{simple_cnn_forward.5} parent=0 // loop_footer_branch
    %8 = sbr.rel target = $region3
  $region8: #{simple_cnn_forward.5} parent=0 // loop_exit
    _

// kernel: simple_cnn_forward.6
$region0: #{simple_cnn_forward.6}
  #allocation0 [shape = 'u32[]', space=smem, size = 0x4, offset = 0x4, fixed_abs, tag = 'smem constant byte address 0x4 - core index']
  #allocation1 [shape = 'u32[144,128]{1,0:T(1,128)}', space=vmem, size = 0x12000, scoped, tag = 'internal scratch']
  %s0 = inlined_call_operand.vmem [shape: bf16[4,72,4096], index: 0, kind: input, shape index: {}]
  %s1 = inlined_call_operand.vmem [shape: bf16[8,72], index: 1, kind: input, shape index: {}]
  %s2 = inlined_call_operand.vmem [shape: f32[8,1], index: 2, kind: input, shape index: {}]
  %s3 = inlined_call_operand.vmem [shape: bf16[4,4,8,1024], index: 3, kind: output, shape index: {}]
  %s4 = sld [smem:[#allocation0]]
  $region45: #{simple_cnn_forward.6} parent=0
    _
  %s6 = ssub.s32 1, %s4
  %s7 = scalar_select 0, %s6, %s4
  loop: start=0, step=1, limit=6
  $region2: #{simple_cnn_forward.6} parent=0 // loop_pre_header
    _
  $region3: #{simple_cnn_forward.6} parent=0 // loop_header
    %s9 = sphi 0, %s13
    %p10 = scmp.ge.s32.totalorder %s9, 6
    %s19 = sphi 0, %s21
    %s22 = sphi 0, %s19
    %s23 = sphi 0, %s22
    %s39 = sphi 0, %s23
    %s43 = sphi 0, %s43
    %s45 = sphi 0, %s43
    %s46 = sphi 0, %s45
    %s60 = sphi 0, %s46
    %s64 = sphi 0, %s64
    %s66 = sphi 0, %s64
    %s67 = sphi 0, %s66
    %s81 = sphi 0, %s67
    %s87 = sphi 0, %s89
    %s90 = sphi 0, %s87
    %s91 = sphi 0, %s90
    %s107 = sphi 0, %s91
  $region4: #{simple_cnn_forward.6} parent=0 // loop_header_branch
    %12 = sbr.rel (%p10) target = $region8
  $region5: #{simple_cnn_forward.6} parent=0 // loop_body
    %s14 = ssub.s32 %s9, 1
    %s15 = ssub.s32 %s9, 2
    %s16 = sadd.s32 %s9, 1
    %s17 = ssub.s32 %s9, %s16
    %p18 = scmp.eq.s32.totalorder %s17, 0
    %s20 = sadd.s32 %s19, 1
    %s21 = scalar_select %p18, %s19, %s20
    %p24 = pneg %p18
    %p25 = scmp.eq.s32.totalorder %s9, 3
    %p26 = por %p24, %p25
    %p27 = scmp.ne.s32.totalorder %s19, %s22
    %p28 = scmp.eq.s32.totalorder %s9, 0
    %p29 = por %p27, %p28
    %p30 = scmp.ne.s32.totalorder %s19, %s22
    %p31 = scmp.eq.s32.totalorder %s14, 3
    %p32 = por %p30, %p31
    %p33 = scmp.ne.s32.totalorder %s22, %s23
    %p34 = scmp.eq.s32.totalorder %s14, 0
    %p35 = por %p33, %p34
    %p36 = scmp.ne.s32.totalorder %s22, %s23
    %p37 = scmp.eq.s32.totalorder %s15, 3
    %p38 = por %p36, %p37
    %p40 = scmp.ne.s32.totalorder %s23, %s39
    %p41 = scmp.eq.s32.totalorder %s15, 0
    %p42 = por %p40, %p41
    %s44 = sadd.s32 %s43, 1
    %p47 = scmp.eq.s32.totalorder %s9, 3
    %p48 = scmp.ne.s32.totalorder %s43, %s45
    %p49 = scmp.eq.s32.totalorder %s9, 0
    %p50 = por %p48, %p49
    %p51 = scmp.ne.s32.totalorder %s43, %s45
    %p52 = scmp.eq.s32.totalorder %s14, 3
    %p53 = por %p51, %p52
    %p54 = scmp.ne.s32.totalorder %s45, %s46
    %p55 = scmp.eq.s32.totalorder %s14, 0
    %p56 = por %p54, %p55
    %p57 = scmp.ne.s32.totalorder %s45, %s46
    %p58 = scmp.eq.s32.totalorder %s15, 3
    %p59 = por %p57, %p58
    %p61 = scmp.ne.s32.totalorder %s46, %s60
    %p62 = scmp.eq.s32.totalorder %s15, 0
    %p63 = por %p61, %p62
    %s65 = sadd.s32 %s64, 1
    %p68 = scmp.eq.s32.totalorder %s9, 3
    %p69 = scmp.ne.s32.totalorder %s64, %s66
    %p70 = scmp.eq.s32.totalorder %s9, 0
    %p71 = por %p69, %p70
    %p72 = scmp.ne.s32.totalorder %s64, %s66
    %p73 = scmp.eq.s32.totalorder %s14, 3
    %p74 = por %p72, %p73
    %p75 = scmp.ne.s32.totalorder %s66, %s67
    %p76 = scmp.eq.s32.totalorder %s14, 0
    %p77 = por %p75, %p76
    %p78 = scmp.ne.s32.totalorder %s66, %s67
    %p79 = scmp.eq.s32.totalorder %s15, 3
    %p80 = por %p78, %p79
    %p82 = scmp.ne.s32.totalorder %s67, %s81
    %p83 = scmp.eq.s32.totalorder %s15, 0
    %p84 = por %p82, %p83
    %s85 = ssub.s32 %s9, %s16
    %p86 = scmp.eq.s32.totalorder %s85, 0
    %s88 = sadd.s32 %s87, 1
    %s89 = scalar_select %p86, %s87, %s88
    %p92 = pneg %p86
    %p93 = scmp.eq.s32.totalorder %s9, 3
    %p94 = por %p92, %p93
    %p95 = scmp.ne.s32.totalorder %s87, %s90
    %p96 = scmp.eq.s32.totalorder %s9, 0
    %p97 = por %p95, %p96
    %p98 = scmp.ne.s32.totalorder %s87, %s90
    %p99 = scmp.eq.s32.totalorder %s14, 3
    %p100 = por %p98, %p99
    %p101 = scmp.ne.s32.totalorder %s90, %s91
    %p102 = scmp.eq.s32.totalorder %s14, 0
    %p103 = por %p101, %p102
    %p104 = scmp.ne.s32.totalorder %s90, %s91
    %p105 = scmp.eq.s32.totalorder %s15, 3
    %p106 = por %p104, %p105
    %p108 = scmp.ne.s32.totalorder %s91, %s107
    %p109 = scmp.eq.s32.totalorder %s15, 0
    %p110 = por %p108, %p109
    %p111 = scmp.le.s32.totalorder 1, %s9
    %p112 = scmp.lt.s32.totalorder %s9, 5
    %p113 = pnand %p111, %p112
    %p114 = pneg %p113
    // Predicated region
    $region9: #{simple_cnn_forward.6} parent=5 // pred_check
      _
    $region10: #{simple_cnn_forward.6} parent=5 // pred_check_branch
      %116 = sbr.rel (%p113) target = $region12
    $region11: #{simple_cnn_forward.6} parent=5 // pred_region
      %s117 = ssub.s32 %s9, 1
      // Predicated region
      $region13: #{simple_cnn_forward.6} parent=11 // pred_check
        %p118 = pneg %p56
      $region14: #{simple_cnn_forward.6} parent=11 // pred_check_branch
        %120 = sbr.rel (%p118) target = $region16
      $region15: #{simple_cnn_forward.6} parent=11 // pred_region
        _
      $region16: #{simple_cnn_forward.6} parent=11 // pred_fallthru
        _
      // Predicated region
      $region17: #{simple_cnn_forward.6} parent=11 // pred_check
        %p121 = pneg %p77
      $region18: #{simple_cnn_forward.6} parent=11 // pred_check_branch
        %123 = sbr.rel (%p121) target = $region20
      $region19: #{simple_cnn_forward.6} parent=11 // pred_region
        _
      $region20: #{simple_cnn_forward.6} parent=11 // pred_fallthru
        _
    $region12: #{simple_cnn_forward.6} parent=5 // pred_fallthru
      _
    %p124 = scmp.lt.s32.totalorder %s9, 4
    // Predicated region
    $region21: #{simple_cnn_forward.6} parent=5 // pred_check
      %p125 = pneg %p124
    $region22: #{simple_cnn_forward.6} parent=5 // pred_check_branch
      %127 = sbr.rel (%p125) target = $region24
    $region23: #{simple_cnn_forward.6} parent=5 // pred_region
      // Predicated region
      $region25: #{simple_cnn_forward.6} parent=23 // pred_check
        %p128 = pneg %p29
      $region26: #{simple_cnn_forward.6} parent=23 // pred_check_branch
        %130 = sbr.rel (%p128) target = $region28
      $region27: #{simple_cnn_forward.6} parent=23 // pred_region
        %p131 = scmp.lt.s32.totalorder %s9, 3
        %s132 = scalar_select %p131, %s9, 3
        %s133 = smul.addr %s132, 288
        %s134 = smul.addr %s133, 4
        %s135 = scalar_lea.vmem %s0, %s134
      $region28: #{simple_cnn_forward.6} parent=23 // pred_fallthru
        _
    $region24: #{simple_cnn_forward.6} parent=5 // pred_fallthru
      _
    %p136 = scmp.le.s32.totalorder 1, %s9
    %p137 = scmp.lt.s32.totalorder %s9, 5
    %p138 = pnand %p136, %p137
    %p139 = pneg %p138
    // Predicated region
    $region29: #{simple_cnn_forward.6} parent=5 // pred_check
      _
    $region30: #{simple_cnn_forward.6} parent=5 // pred_check_branch
      %141 = sbr.rel (%p138) target = $region32
    $region31: #{simple_cnn_forward.6} parent=5 // pred_region
      %s142 = ssub.s32 %s9, 1
      %p143 = scmp.lt.s32.totalorder %s14, 3
      %s144 = scalar_select %p143, %s14, 3
      %s145 = smul.addr %s144, 288
      %s146 = smul.addr %s145, 4
      %s147 = scalar_lea.vmem %s0, %s146
      %p148 = pneg %p35
      %p149 = pneg %p32
      %p150 = pneg %p56
      %p151 = pneg %p53
      %p152 = pneg %p77
      %p153 = pneg %p74
      %p154 = pneg %p103
      %p155 = pneg %p100
      %p156 = scmp.lt.s32.totalorder %s14, 3
      %s157 = scalar_select %p156, %s14, 3
      %s158 = smul.addr %s157, 32
      %s159 = smul.addr %s158, 4
      %s160 = scalar_lea.vmem %s3, %s159
      %p161 = scmp.lt.s32.totalorder %s14, 3
      %s162 = scalar_select %p161, %s14, 3
      %s163 = smul.addr %s162, 288
      %s164 = smul.addr %s163, 4
      %s165 = scalar_lea.vmem %s0, %s164
      %p166 = scmp.lt.s32.totalorder %s14, 3
      %s167 = scalar_select %p166, %s14, 3
      %s168 = smul.addr %s167, 32
      %s169 = smul.addr %s168, 4
      %s170 = scalar_lea.vmem %s3, %s169
      %v172 = vld [vmem:[%s1] sm:$0xf]
      %v173 = vld [vmem:[%s165] sm:$0xff]
      %v174 = vld [vmem:[%s165 + $0x8] sm:$0xff]
      %v175 = vld [vmem:[%s165 + $0x10] sm:$0xff]
      %v176 = vld [vmem:[%s165 + $0x18] sm:$0xff]
      %v177 = vld [vmem:[%s165 + $0x20] sm:$0xff]
      %v178 = vld [vmem:[%s165 + $0x28] sm:$0xff]
      %v179 = vld [vmem:[%s165 + $0x30] sm:$0xff]
      %v180 = vld [vmem:[%s165 + $0x38] sm:$0xff]
      %v181 = vld [vmem:[%s165 + $0x40] sm:$0xff]
      %v182 = vld [vmem:[%s165 + $0x48] sm:$0xff]
      %v183 = vld [vmem:[%s165 + $0x50] sm:$0xff]
      %v184 = vld [vmem:[%s165 + $0x58] sm:$0xff]
      %v185 = vld [vmem:[%s165 + $0x60] sm:$0xff]
      %v186 = vld [vmem:[%s165 + $0x68] sm:$0xff]
      %v187 = vld [vmem:[%s165 + $0x70] sm:$0xff]
      %v188 = vld [vmem:[%s165 + $0x78] sm:$0xff]
      %v189 = vld [vmem:[%s165 + $0x80] sm:$0xff]
      %v190 = vld [vmem:[%s165 + $0x88] sm:$0xff]
      %v191 = vld [vmem:[%s165 + $0x90] sm:$0xff]
      %v192 = vld [vmem:[%s165 + $0x98] sm:$0xff]
      %v193 = vld [vmem:[%s165 + $0xa0] sm:$0xff]
      %v194 = vld [vmem:[%s165 + $0xa8] sm:$0xff]
      %v195 = vld [vmem:[%s165 + $0xb0] sm:$0xff]
      %v196 = vld [vmem:[%s165 + $0xb8] sm:$0xff]
      %v197 = vld [vmem:[%s165 + $0xc0] sm:$0xff]
      %v198 = vld [vmem:[%s165 + $0xc8] sm:$0xff]
      %v199 = vld [vmem:[%s165 + $0xd0] sm:$0xff]
      %v200 = vld [vmem:[%s165 + $0xd8] sm:$0xff]
      %v201 = vld [vmem:[%s165 + $0xe0] sm:$0xff]
      %v202 = vld [vmem:[%s165 + $0xe8] sm:$0xff]
      %v203 = vld [vmem:[%s165 + $0xf0] sm:$0xff]
      %v204 = vld [vmem:[%s165 + $0xf8] sm:$0xff]
      %v205 = vld [vmem:[%s165 + $0x100] sm:$0xff]
      %v206 = vld [vmem:[%s165 + $0x108] sm:$0xff]
      %v207 = vld [vmem:[%s165 + $0x110] sm:$0xff]
      %v208 = vld [vmem:[%s165 + $0x118] sm:$0xff]
      %v209 = vld [vmem:[%s165 + $0x120] sm:$0xff]
      %v210 = vld [vmem:[%s165 + $0x128] sm:$0xff]
      %v211 = vld [vmem:[%s165 + $0x130] sm:$0xff]
      %v212 = vld [vmem:[%s165 + $0x138] sm:$0xff]
      %v213 = vld [vmem:[%s165 + $0x140] sm:$0xff]
      %v214 = vld [vmem:[%s165 + $0x148] sm:$0xff]
      %v215 = vld [vmem:[%s165 + $0x150] sm:$0xff]
      %v216 = vld [vmem:[%s165 + $0x158] sm:$0xff]
      %v217 = vld [vmem:[%s165 + $0x160] sm:$0xff]
      %v218 = vld [vmem:[%s165 + $0x168] sm:$0xff]
      %v219 = vld [vmem:[%s165 + $0x170] sm:$0xff]
      %v220 = vld [vmem:[%s165 + $0x178] sm:$0xff]
      %v221 = vld [vmem:[%s165 + $0x180] sm:$0xff]
      %v222 = vld [vmem:[%s165 + $0x188] sm:$0xff]
      %v223 = vld [vmem:[%s165 + $0x190] sm:$0xff]
      %v224 = vld [vmem:[%s165 + $0x198] sm:$0xff]
      %v225 = vld [vmem:[%s165 + $0x1a0] sm:$0xff]
      %v226 = vld [vmem:[%s165 + $0x1a8] sm:$0xff]
      %v227 = vld [vmem:[%s165 + $0x1b0] sm:$0xff]
      %v228 = vld [vmem:[%s165 + $0x1b8] sm:$0xff]
      %v229 = vld [vmem:[%s165 + $0x1c0] sm:$0xff]
      %v230 = vld [vmem:[%s165 + $0x1c8] sm:$0xff]
      %v231 = vld [vmem:[%s165 + $0x1d0] sm:$0xff]
      %v232 = vld [vmem:[%s165 + $0x1d8] sm:$0xff]
      %v233 = vld [vmem:[%s165 + $0x1e0] sm:$0xff]
      %v234 = vld [vmem:[%s165 + $0x1e8] sm:$0xff]
      %v235 = vld [vmem:[%s165 + $0x1f0] sm:$0xff]
      %v236 = vld [vmem:[%s165 + $0x1f8] sm:$0xff]
      %v237 = vld [vmem:[%s165 + $0x200] sm:$0xff]
      %v238 = vld [vmem:[%s165 + $0x208] sm:$0xff]
      %v239 = vld [vmem:[%s165 + $0x210] sm:$0xff]
      %v240 = vld [vmem:[%s165 + $0x218] sm:$0xff]
      %v241 = vld [vmem:[%s165 + $0x220] sm:$0xff]
      %v242 = vld [vmem:[%s165 + $0x228] sm:$0xff]
      %v243 = vld [vmem:[%s165 + $0x230] sm:$0xff]
      %v244 = vld [vmem:[%s165 + $0x238] sm:$0xff]
      %v245 = vld [vmem:[%s165 + $0x240] sm:$0xff]
      %v246 = vld [vmem:[%s165 + $0x248] sm:$0xff]
      %v247 = vld [vmem:[%s165 + $0x250] sm:$0xff]
      %v248 = vld [vmem:[%s165 + $0x258] sm:$0xff]
      %v249 = vld [vmem:[%s165 + $0x260] sm:$0xff]
      %v250 = vld [vmem:[%s165 + $0x268] sm:$0xff]
      %v251 = vld [vmem:[%s165 + $0x270] sm:$0xff]
      %v252 = vld [vmem:[%s165 + $0x278] sm:$0xff]
      %v253 = vld [vmem:[%s165 + $0x280] sm:$0xff]
      %v254 = vld [vmem:[%s165 + $0x288] sm:$0xff]
      %v255 = vld [vmem:[%s165 + $0x290] sm:$0xff]
      %v256 = vld [vmem:[%s165 + $0x298] sm:$0xff]
      %v257 = vld [vmem:[%s165 + $0x2a0] sm:$0xff]
      %v258 = vld [vmem:[%s165 + $0x2a8] sm:$0xff]
      %v259 = vld [vmem:[%s165 + $0x2b0] sm:$0xff]
      %v260 = vld [vmem:[%s165 + $0x2b8] sm:$0xff]
      %v261 = vld [vmem:[%s165 + $0x2c0] sm:$0xff]
      %v262 = vld [vmem:[%s165 + $0x2c8] sm:$0xff]
      %v263 = vld [vmem:[%s165 + $0x2d0] sm:$0xff]
      %v264 = vld [vmem:[%s165 + $0x2d8] sm:$0xff]
      %v265 = vld [vmem:[%s165 + $0x2e0] sm:$0xff]
      %v266 = vld [vmem:[%s165 + $0x2e8] sm:$0xff]
      %v267 = vld [vmem:[%s165 + $0x2f0] sm:$0xff]
      %v268 = vld [vmem:[%s165 + $0x2f8] sm:$0xff]
      %v269 = vld [vmem:[%s165 + $0x300] sm:$0xff]
      %v270 = vld [vmem:[%s165 + $0x308] sm:$0xff]
      %v271 = vld [vmem:[%s165 + $0x310] sm:$0xff]
      %v272 = vld [vmem:[%s165 + $0x318] sm:$0xff]
      %v273 = vld [vmem:[%s165 + $0x320] sm:$0xff]
      %v274 = vld [vmem:[%s165 + $0x328] sm:$0xff]
      %v275 = vld [vmem:[%s165 + $0x330] sm:$0xff]
      %v276 = vld [vmem:[%s165 + $0x338] sm:$0xff]
      %v277 = vld [vmem:[%s165 + $0x340] sm:$0xff]
      %v278 = vld [vmem:[%s165 + $0x348] sm:$0xff]
      %v279 = vld [vmem:[%s165 + $0x350] sm:$0xff]
      %v280 = vld [vmem:[%s165 + $0x358] sm:$0xff]
      %v281 = vld [vmem:[%s165 + $0x360] sm:$0xff]
      %v282 = vld [vmem:[%s165 + $0x368] sm:$0xff]
      %v283 = vld [vmem:[%s165 + $0x370] sm:$0xff]
      %v284 = vld [vmem:[%s165 + $0x378] sm:$0xff]
      %v285 = vld [vmem:[%s165 + $0x380] sm:$0xff]
      %v286 = vld [vmem:[%s165 + $0x388] sm:$0xff]
      %v287 = vld [vmem:[%s165 + $0x390] sm:$0xff]
      %v288 = vld [vmem:[%s165 + $0x398] sm:$0xff]
      %v289 = vld [vmem:[%s165 + $0x3a0] sm:$0xff]
      %v290 = vld [vmem:[%s165 + $0x3a8] sm:$0xff]
      %v291 = vld [vmem:[%s165 + $0x3b0] sm:$0xff]
      %v292 = vld [vmem:[%s165 + $0x3b8] sm:$0xff]
      %v293 = vld [vmem:[%s165 + $0x3c0] sm:$0xff]
      %v294 = vld [vmem:[%s165 + $0x3c8] sm:$0xff]
      %v295 = vld [vmem:[%s165 + $0x3d0] sm:$0xff]
      %v296 = vld [vmem:[%s165 + $0x3d8] sm:$0xff]
      %v297 = vld [vmem:[%s165 + $0x3e0] sm:$0xff]
      %v298 = vld [vmem:[%s165 + $0x3e8] sm:$0xff]
      %v299 = vld [vmem:[%s165 + $0x3f0] sm:$0xff]
      %v300 = vld [vmem:[%s165 + $0x3f8] sm:$0xff]
      %v301 = vld [vmem:[%s165 + $0x400] sm:$0xff]
      %v302 = vld [vmem:[%s165 + $0x408] sm:$0xff]
      %v303 = vld [vmem:[%s165 + $0x410] sm:$0xff]
      %v304 = vld [vmem:[%s165 + $0x418] sm:$0xff]
      %v305 = vld [vmem:[%s165 + $0x420] sm:$0xff]
      %v306 = vld [vmem:[%s165 + $0x428] sm:$0xff]
      %v307 = vld [vmem:[%s165 + $0x430] sm:$0xff]
      %v308 = vld [vmem:[%s165 + $0x438] sm:$0xff]
      %v309 = vld [vmem:[%s165 + $0x440] sm:$0xff]
      %v310 = vld [vmem:[%s165 + $0x448] sm:$0xff]
      %v311 = vld [vmem:[%s165 + $0x450] sm:$0xff]
      %v312 = vld [vmem:[%s165 + $0x458] sm:$0xff]
      %v313 = vld [vmem:[%s165 + $0x460] sm:$0xff]
      %v314 = vld [vmem:[%s165 + $0x468] sm:$0xff]
      %v315 = vld [vmem:[%s165 + $0x470] sm:$0xff]
      %v316 = vld [vmem:[%s165 + $0x478] sm:$0xff]
      %v317 = vld [vmem:[%s2] sm:$0xff]
      %319 = vset.pattern.permute.xlu0 0
      %320 = vperm.xlu0 %319, %v317
      %v321 = vpop.permute.xlu0 %320
      %v467 = vunpack.c.l.b16 %v173
      %v468 = vunpack.c.h.b16 %v173
      %v469 = vunpack.c.l.b16 %v174
      %v470 = vunpack.c.h.b16 %v174
      %v471 = vunpack.c.l.b16 %v175
      %v472 = vunpack.c.h.b16 %v175
      %v473 = vunpack.c.l.b16 %v176
      %v474 = vunpack.c.h.b16 %v176
      %v475 = vunpack.c.l.b16 %v177
      %v476 = vunpack.c.h.b16 %v177
      %v477 = vunpack.c.l.b16 %v178
      %v478 = vunpack.c.h.b16 %v178
      %v479 = vunpack.c.l.b16 %v179
      %v480 = vunpack.c.h.b16 %v179
      %v481 = vunpack.c.l.b16 %v180
      %v482 = vunpack.c.h.b16 %v180
      %v483 = vunpack.c.l.b16 %v181
      %v484 = vunpack.c.h.b16 %v181
      %v485 = vunpack.c.l.b16 %v182
      %v486 = vunpack.c.h.b16 %v182
      %v487 = vunpack.c.l.b16 %v183
      %v488 = vunpack.c.h.b16 %v183
      %v489 = vunpack.c.l.b16 %v184
      %v490 = vunpack.c.h.b16 %v184
      %v491 = vunpack.c.l.b16 %v185
      %v492 = vunpack.c.h.b16 %v185
      %v493 = vunpack.c.l.b16 %v186
      %v494 = vunpack.c.h.b16 %v186
      %v495 = vunpack.c.l.b16 %v187
      %v496 = vunpack.c.h.b16 %v187
      %v497 = vunpack.c.l.b16 %v188
      %v498 = vunpack.c.h.b16 %v188
      %v499 = vunpack.c.l.b16 %v189
      %v500 = vunpack.c.h.b16 %v189
      %v501 = vunpack.c.l.b16 %v190
      %v502 = vunpack.c.h.b16 %v190
      %v503 = vunpack.c.l.b16 %v191
      %v504 = vunpack.c.h.b16 %v191
      %v505 = vunpack.c.l.b16 %v192
      %v506 = vunpack.c.h.b16 %v192
      %v507 = vunpack.c.l.b16 %v193
      %v508 = vunpack.c.h.b16 %v193
      %v509 = vunpack.c.l.b16 %v194
      %v510 = vunpack.c.h.b16 %v194
      %v511 = vunpack.c.l.b16 %v195
      %v512 = vunpack.c.h.b16 %v195
      %v513 = vunpack.c.l.b16 %v196
      %v514 = vunpack.c.h.b16 %v196
      %v515 = vunpack.c.l.b16 %v197
      %v516 = vunpack.c.h.b16 %v197
      %v517 = vunpack.c.l.b16 %v198
      %v518 = vunpack.c.h.b16 %v198
      %v519 = vunpack.c.l.b16 %v199
      %v520 = vunpack.c.h.b16 %v199
      %v521 = vunpack.c.l.b16 %v200
      %v522 = vunpack.c.h.b16 %v200
      %v523 = vunpack.c.l.b16 %v201
      %v524 = vunpack.c.h.b16 %v201
      %v525 = vunpack.c.l.b16 %v202
      %v526 = vunpack.c.h.b16 %v202
      %v527 = vunpack.c.l.b16 %v203
      %v528 = vunpack.c.h.b16 %v203
      %v529 = vunpack.c.l.b16 %v204
      %v530 = vunpack.c.h.b16 %v204
      %v531 = vunpack.c.l.b16 %v205
      %v532 = vunpack.c.h.b16 %v205
      %v533 = vunpack.c.l.b16 %v206
      %v534 = vunpack.c.h.b16 %v206
      %v535 = vunpack.c.l.b16 %v207
      %v536 = vunpack.c.h.b16 %v207
      %v537 = vunpack.c.l.b16 %v208
      %v538 = vunpack.c.h.b16 %v208
      %v539 = vunpack.c.l.b16 %v209
      %v540 = vunpack.c.h.b16 %v209
      %v541 = vunpack.c.l.b16 %v210
      %v542 = vunpack.c.h.b16 %v210
      %v543 = vunpack.c.l.b16 %v211
      %v544 = vunpack.c.h.b16 %v211
      %v545 = vunpack.c.l.b16 %v212
      %v546 = vunpack.c.h.b16 %v212
      %v547 = vunpack.c.l.b16 %v213
      %v548 = vunpack.c.h.b16 %v213
      %v549 = vunpack.c.l.b16 %v214
      %v550 = vunpack.c.h.b16 %v214
      %v551 = vunpack.c.l.b16 %v215
      %v552 = vunpack.c.h.b16 %v215
      %v553 = vunpack.c.l.b16 %v216
      %v554 = vunpack.c.h.b16 %v216
      %v555 = vunpack.c.l.b16 %v217
      %v556 = vunpack.c.h.b16 %v217
      %v557 = vunpack.c.l.b16 %v218
      %v558 = vunpack.c.h.b16 %v218
      %v559 = vunpack.c.l.b16 %v219
      %v560 = vunpack.c.h.b16 %v219
      %v561 = vunpack.c.l.b16 %v220
      %v562 = vunpack.c.h.b16 %v220
      %v563 = vunpack.c.l.b16 %v221
      %v564 = vunpack.c.h.b16 %v221
      %v565 = vunpack.c.l.b16 %v222
      %v566 = vunpack.c.h.b16 %v222
      %v567 = vunpack.c.l.b16 %v223
      %v568 = vunpack.c.h.b16 %v223
      %v569 = vunpack.c.l.b16 %v224
      %v570 = vunpack.c.h.b16 %v224
      %v571 = vunpack.c.l.b16 %v225
      %v572 = vunpack.c.h.b16 %v225
      %v573 = vunpack.c.l.b16 %v226
      %v574 = vunpack.c.h.b16 %v226
      %v575 = vunpack.c.l.b16 %v227
      %v576 = vunpack.c.h.b16 %v227
      %v577 = vunpack.c.l.b16 %v228
      %v578 = vunpack.c.h.b16 %v228
      %v579 = vunpack.c.l.b16 %v229
      %v580 = vunpack.c.h.b16 %v229
      %v581 = vunpack.c.l.b16 %v230
      %v582 = vunpack.c.h.b16 %v230
      %v583 = vunpack.c.l.b16 %v231
      %v584 = vunpack.c.h.b16 %v231
      %v585 = vunpack.c.l.b16 %v232
      %v586 = vunpack.c.h.b16 %v232
      %v587 = vunpack.c.l.b16 %v233
      %v588 = vunpack.c.h.b16 %v233
      %v589 = vunpack.c.l.b16 %v234
      %v590 = vunpack.c.h.b16 %v234
      %v591 = vunpack.c.l.b16 %v235
      %v592 = vunpack.c.h.b16 %v235
      %v593 = vunpack.c.l.b16 %v236
      %v594 = vunpack.c.h.b16 %v236
      %v595 = vunpack.c.l.b16 %v237
      %v596 = vunpack.c.h.b16 %v237
      %v597 = vunpack.c.l.b16 %v238
      %v598 = vunpack.c.h.b16 %v238
      %v599 = vunpack.c.l.b16 %v239
      %v600 = vunpack.c.h.b16 %v239
      %v601 = vunpack.c.l.b16 %v240
      %v602 = vunpack.c.h.b16 %v240
      %v603 = vunpack.c.l.b16 %v241
      %v604 = vunpack.c.h.b16 %v241
      %v605 = vunpack.c.l.b16 %v242
      %v606 = vunpack.c.h.b16 %v242
      %v607 = vunpack.c.l.b16 %v243
      %v608 = vunpack.c.h.b16 %v243
      %v609 = vunpack.c.l.b16 %v244
      %v610 = vunpack.c.h.b16 %v244
      %v611 = vunpack.c.l.b16 %v245
      %v612 = vunpack.c.h.b16 %v245
      %v613 = vunpack.c.l.b16 %v246
      %v614 = vunpack.c.h.b16 %v246
      %v615 = vunpack.c.l.b16 %v247
      %v616 = vunpack.c.h.b16 %v247
      %v617 = vunpack.c.l.b16 %v248
      %v618 = vunpack.c.h.b16 %v248
      %v619 = vunpack.c.l.b16 %v249
      %v620 = vunpack.c.h.b16 %v249
      %v621 = vunpack.c.l.b16 %v250
      %v622 = vunpack.c.h.b16 %v250
      %v623 = vunpack.c.l.b16 %v251
      %v624 = vunpack.c.h.b16 %v251
      %v625 = vunpack.c.l.b16 %v252
      %v626 = vunpack.c.h.b16 %v252
      %v627 = vunpack.c.l.b16 %v253
      %v628 = vunpack.c.h.b16 %v253
      %v629 = vunpack.c.l.b16 %v254
      %v630 = vunpack.c.h.b16 %v254
      %v631 = vunpack.c.l.b16 %v255
      %v632 = vunpack.c.h.b16 %v255
      %v633 = vunpack.c.l.b16 %v256
      %v634 = vunpack.c.h.b16 %v256
      %v635 = vunpack.c.l.b16 %v257
      %v636 = vunpack.c.h.b16 %v257
      %v637 = vunpack.c.l.b16 %v258
      %v638 = vunpack.c.h.b16 %v258
      %v639 = vunpack.c.l.b16 %v259
      %v640 = vunpack.c.h.b16 %v259
      %v641 = vunpack.c.l.b16 %v260
      %v642 = vunpack.c.h.b16 %v260
      %v643 = vunpack.c.l.b16 %v261
      %v644 = vunpack.c.h.b16 %v261
      %v645 = vunpack.c.l.b16 %v262
      %v646 = vunpack.c.h.b16 %v262
      %v647 = vunpack.c.l.b16 %v263
      %v648 = vunpack.c.h.b16 %v263
      %v649 = vunpack.c.l.b16 %v264
      %v650 = vunpack.c.h.b16 %v264
      %v651 = vunpack.c.l.b16 %v265
      %v652 = vunpack.c.h.b16 %v265
      %v653 = vunpack.c.l.b16 %v266
      %v654 = vunpack.c.h.b16 %v266
      %v655 = vunpack.c.l.b16 %v267
      %v656 = vunpack.c.h.b16 %v267
      %v657 = vunpack.c.l.b16 %v268
      %v658 = vunpack.c.h.b16 %v268
      %v659 = vunpack.c.l.b16 %v269
      %v660 = vunpack.c.h.b16 %v269
      %v661 = vunpack.c.l.b16 %v270
      %v662 = vunpack.c.h.b16 %v270
      %v663 = vunpack.c.l.b16 %v271
      %v664 = vunpack.c.h.b16 %v271
      %v665 = vunpack.c.l.b16 %v272
      %v666 = vunpack.c.h.b16 %v272
      %v667 = vunpack.c.l.b16 %v273
      %v668 = vunpack.c.h.b16 %v273
      %v669 = vunpack.c.l.b16 %v274
      %v670 = vunpack.c.h.b16 %v274
      %v671 = vunpack.c.l.b16 %v275
      %v672 = vunpack.c.h.b16 %v275
      %v673 = vunpack.c.l.b16 %v276
      %v674 = vunpack.c.h.b16 %v276
      %v675 = vunpack.c.l.b16 %v277
      %v676 = vunpack.c.h.b16 %v277
      %v677 = vunpack.c.l.b16 %v278
      %v678 = vunpack.c.h.b16 %v278
      %v679 = vunpack.c.l.b16 %v279
      %v680 = vunpack.c.h.b16 %v279
      %v681 = vunpack.c.l.b16 %v280
      %v682 = vunpack.c.h.b16 %v280
      %v683 = vunpack.c.l.b16 %v281
      %v684 = vunpack.c.h.b16 %v281
      %v685 = vunpack.c.l.b16 %v282
      %v686 = vunpack.c.h.b16 %v282
      %v687 = vunpack.c.l.b16 %v283
      %v688 = vunpack.c.h.b16 %v283
      %v689 = vunpack.c.l.b16 %v284
      %v690 = vunpack.c.h.b16 %v284
      %v691 = vunpack.c.l.b16 %v285
      %v692 = vunpack.c.h.b16 %v285
      %v693 = vunpack.c.l.b16 %v286
      %v694 = vunpack.c.h.b16 %v286
      %v695 = vunpack.c.l.b16 %v287
      %v696 = vunpack.c.h.b16 %v287
      %v697 = vunpack.c.l.b16 %v288
      %v698 = vunpack.c.h.b16 %v288
      %v699 = vunpack.c.l.b16 %v289
      %v700 = vunpack.c.h.b16 %v289
      %v701 = vunpack.c.l.b16 %v290
      %v702 = vunpack.c.h.b16 %v290
      %v703 = vunpack.c.l.b16 %v291
      %v704 = vunpack.c.h.b16 %v291
      %v705 = vunpack.c.l.b16 %v292
      %v706 = vunpack.c.h.b16 %v292
      %v707 = vunpack.c.l.b16 %v293
      %v708 = vunpack.c.h.b16 %v293
      %v709 = vunpack.c.l.b16 %v294
      %v710 = vunpack.c.h.b16 %v294
      %v711 = vunpack.c.l.b16 %v295
      %v712 = vunpack.c.h.b16 %v295
      %v713 = vunpack.c.l.b16 %v296
      %v714 = vunpack.c.h.b16 %v296
      %v715 = vunpack.c.l.b16 %v297
      %v716 = vunpack.c.h.b16 %v297
      %v717 = vunpack.c.l.b16 %v298
      %v718 = vunpack.c.h.b16 %v298
      %v719 = vunpack.c.l.b16 %v299
      %v720 = vunpack.c.h.b16 %v299
      %v721 = vunpack.c.l.b16 %v300
      %v722 = vunpack.c.h.b16 %v300
      %v723 = vunpack.c.l.b16 %v301
      %v724 = vunpack.c.h.b16 %v301
      %v725 = vunpack.c.l.b16 %v302
      %v726 = vunpack.c.h.b16 %v302
      %v727 = vunpack.c.l.b16 %v303
      %v728 = vunpack.c.h.b16 %v303
      %v729 = vunpack.c.l.b16 %v304
      %v730 = vunpack.c.h.b16 %v304
      %v731 = vunpack.c.l.b16 %v305
      %v732 = vunpack.c.h.b16 %v305
      %v733 = vunpack.c.l.b16 %v306
      %v734 = vunpack.c.h.b16 %v306
      %v735 = vunpack.c.l.b16 %v307
      %v736 = vunpack.c.h.b16 %v307
      %v737 = vunpack.c.l.b16 %v308
      %v738 = vunpack.c.h.b16 %v308
      %v739 = vunpack.c.l.b16 %v309
      %v740 = vunpack.c.h.b16 %v309
      %v741 = vunpack.c.l.b16 %v310
      %v742 = vunpack.c.h.b16 %v310
      %v743 = vunpack.c.l.b16 %v311
      %v744 = vunpack.c.h.b16 %v311
      %v745 = vunpack.c.l.b16 %v312
      %v746 = vunpack.c.h.b16 %v312
      %v747 = vunpack.c.l.b16 %v313
      %v748 = vunpack.c.h.b16 %v313
      %v749 = vunpack.c.l.b16 %v314
      %v750 = vunpack.c.h.b16 %v314
      %v751 = vunpack.c.l.b16 %v315
      %v752 = vunpack.c.h.b16 %v315
      %v753 = vunpack.c.l.b16 %v316
      %v754 = vunpack.c.h.b16 %v316
      %v755 = vpack.c.b16 %v499, %v467
      %v756 = vpack.c.b16 %v500, %v468
      %v757 = vpack.c.b16 %v501, %v469
      %v758 = vpack.c.b16 %v502, %v470
      %v759 = vpack.c.b16 %v503, %v471
      %v760 = vpack.c.b16 %v504, %v472
      %v761 = vpack.c.b16 %v505, %v473
      %v762 = vpack.c.b16 %v506, %v474
      %v763 = vpack.c.b16 %v507, %v475
      %v764 = vpack.c.b16 %v508, %v476
      %v765 = vpack.c.b16 %v509, %v477
      %v766 = vpack.c.b16 %v510, %v478
      %v767 = vpack.c.b16 %v511, %v479
      %v768 = vpack.c.b16 %v512, %v480
      %v769 = vpack.c.b16 %v513, %v481
      %v770 = vpack.c.b16 %v514, %v482
      %v771 = vpack.c.b16 %v515, %v483
      %v772 = vpack.c.b16 %v516, %v484
      %v773 = vpack.c.b16 %v517, %v485
      %v774 = vpack.c.b16 %v518, %v486
      %v775 = vpack.c.b16 %v519, %v487
      %v776 = vpack.c.b16 %v520, %v488
      %v777 = vpack.c.b16 %v521, %v489
      %v778 = vpack.c.b16 %v522, %v490
      %v779 = vpack.c.b16 %v523, %v491
      %v780 = vpack.c.b16 %v524, %v492
      %v781 = vpack.c.b16 %v525, %v493
      %v782 = vpack.c.b16 %v526, %v494
      %v783 = vpack.c.b16 %v527, %v495
      %v784 = vpack.c.b16 %v528, %v496
      %v785 = vpack.c.b16 %v529, %v497
      %v786 = vpack.c.b16 %v530, %v498
      %v787 = vpack.c.b16 %v563, %v531
      %v788 = vpack.c.b16 %v564, %v532
      %v789 = vpack.c.b16 %v565, %v533
      %v790 = vpack.c.b16 %v566, %v534
      %v791 = vpack.c.b16 %v567, %v535
      %v792 = vpack.c.b16 %v568, %v536
      %v793 = vpack.c.b16 %v569, %v537
      %v794 = vpack.c.b16 %v570, %v538
      %v795 = vpack.c.b16 %v571, %v539
      %v796 = vpack.c.b16 %v572, %v540
      %v797 = vpack.c.b16 %v573, %v541
      %v798 = vpack.c.b16 %v574, %v542
      %v799 = vpack.c.b16 %v575, %v543
      %v800 = vpack.c.b16 %v576, %v544
      %v801 = vpack.c.b16 %v577, %v545
      %v802 = vpack.c.b16 %v578, %v546
      %v803 = vpack.c.b16 %v579, %v547
      %v804 = vpack.c.b16 %v580, %v548
      %v805 = vpack.c.b16 %v581, %v549
      %v806 = vpack.c.b16 %v582, %v550
      %v807 = vpack.c.b16 %v583, %v551
      %v808 = vpack.c.b16 %v584, %v552
      %v809 = vpack.c.b16 %v585, %v553
      %v810 = vpack.c.b16 %v586, %v554
      %v811 = vpack.c.b16 %v587, %v555
      %v812 = vpack.c.b16 %v588, %v556
      %v813 = vpack.c.b16 %v589, %v557
      %v814 = vpack.c.b16 %v590, %v558
      %v815 = vpack.c.b16 %v591, %v559
      %v816 = vpack.c.b16 %v592, %v560
      %v817 = vpack.c.b16 %v593, %v561
      %v818 = vpack.c.b16 %v594, %v562
      %v819 = vpack.c.b16 %v627, %v595
      %v820 = vpack.c.b16 %v628, %v596
      %v821 = vpack.c.b16 %v629, %v597
      %v822 = vpack.c.b16 %v630, %v598
      %v823 = vpack.c.b16 %v631, %v599
      %v824 = vpack.c.b16 %v632, %v600
      %v825 = vpack.c.b16 %v633, %v601
      %v826 = vpack.c.b16 %v634, %v602
      %v827 = vpack.c.b16 %v635, %v603
      %v828 = vpack.c.b16 %v636, %v604
      %v829 = vpack.c.b16 %v637, %v605
      %v830 = vpack.c.b16 %v638, %v606
      %v831 = vpack.c.b16 %v639, %v607
      %v832 = vpack.c.b16 %v640, %v608
      %v833 = vpack.c.b16 %v641, %v609
      %v834 = vpack.c.b16 %v642, %v610
      %v835 = vpack.c.b16 %v643, %v611
      %v836 = vpack.c.b16 %v644, %v612
      %v837 = vpack.c.b16 %v645, %v613
      %v838 = vpack.c.b16 %v646, %v614
      %v839 = vpack.c.b16 %v647, %v615
      %v840 = vpack.c.b16 %v648, %v616
      %v841 = vpack.c.b16 %v649, %v617
      %v842 = vpack.c.b16 %v650, %v618
      %v843 = vpack.c.b16 %v651, %v619
      %v844 = vpack.c.b16 %v652, %v620
      %v845 = vpack.c.b16 %v653, %v621
      %v846 = vpack.c.b16 %v654, %v622
      %v847 = vpack.c.b16 %v655, %v623
      %v848 = vpack.c.b16 %v656, %v624
      %v849 = vpack.c.b16 %v657, %v625
      %v850 = vpack.c.b16 %v658, %v626
      %v851 = vpack.c.b16 %v691, %v659
      %v852 = vpack.c.b16 %v692, %v660
      %v853 = vpack.c.b16 %v693, %v661
      %v854 = vpack.c.b16 %v694, %v662
      %v855 = vpack.c.b16 %v695, %v663
      %v856 = vpack.c.b16 %v696, %v664
      %v857 = vpack.c.b16 %v697, %v665
      %v858 = vpack.c.b16 %v698, %v666
      %v859 = vpack.c.b16 %v699, %v667
      %v860 = vpack.c.b16 %v700, %v668
      %v861 = vpack.c.b16 %v701, %v669
      %v862 = vpack.c.b16 %v702, %v670
      %v863 = vpack.c.b16 %v703, %v671
      %v864 = vpack.c.b16 %v704, %v672
      %v865 = vpack.c.b16 %v705, %v673
      %v866 = vpack.c.b16 %v706, %v674
      %v867 = vpack.c.b16 %v707, %v675
      %v868 = vpack.c.b16 %v708, %v676
      %v869 = vpack.c.b16 %v709, %v677
      %v870 = vpack.c.b16 %v710, %v678
      %v871 = vpack.c.b16 %v711, %v679
      %v872 = vpack.c.b16 %v712, %v680
      %v873 = vpack.c.b16 %v713, %v681
      %v874 = vpack.c.b16 %v714, %v682
      %v875 = vpack.c.b16 %v715, %v683
      %v876 = vpack.c.b16 %v716, %v684
      %v877 = vpack.c.b16 %v717, %v685
      %v878 = vpack.c.b16 %v718, %v686
      %v879 = vpack.c.b16 %v719, %v687
      %v880 = vpack.c.b16 %v720, %v688
      %v881 = vpack.c.b16 %v721, %v689
      %v882 = vpack.c.b16 %v722, %v690
      %v883 = vpack.c.b16 %v723, %v723
      %v884 = vpack.c.b16 %v724, %v724
      %v885 = vpack.c.b16 %v725, %v725
      %v886 = vpack.c.b16 %v726, %v726
      %v887 = vpack.c.b16 %v727, %v727
      %v888 = vpack.c.b16 %v728, %v728
      %v889 = vpack.c.b16 %v729, %v729
      %v890 = vpack.c.b16 %v730, %v730
      %v891 = vpack.c.b16 %v731, %v731
      %v892 = vpack.c.b16 %v732, %v732
      %v893 = vpack.c.b16 %v733, %v733
      %v894 = vpack.c.b16 %v734, %v734
      %v895 = vpack.c.b16 %v735, %v735
      %v896 = vpack.c.b16 %v736, %v736
      %v897 = vpack.c.b16 %v737, %v737
      %v898 = vpack.c.b16 %v738, %v738
      %v899 = vpack.c.b16 %v739, %v739
      %v900 = vpack.c.b16 %v740, %v740
      %v901 = vpack.c.b16 %v741, %v741
      %v902 = vpack.c.b16 %v742, %v742
      %v903 = vpack.c.b16 %v743, %v743
      %v904 = vpack.c.b16 %v744, %v744
      %v905 = vpack.c.b16 %v745, %v745
      %v906 = vpack.c.b16 %v746, %v746
      %v907 = vpack.c.b16 %v747, %v747
      %v908 = vpack.c.b16 %v748, %v748
      %v909 = vpack.c.b16 %v749, %v749
      %v910 = vpack.c.b16 %v750, %v750
      %v911 = vpack.c.b16 %v751, %v751
      %v912 = vpack.c.b16 %v752, %v752
      %v913 = vpack.c.b16 %v753, %v753
      %v914 = vpack.c.b16 %v754, %v754
      %vm1043 = vcmask 588800
      %v1045 = vsel %vm1043, %v172, 0
      %vm1047 = vcmask 1043456
      %v1049 = vsel %vm1047, %v883, 0
      %v1052 = vsel %vm1047, %v884, 0
      %v1055 = vsel %vm1047, %v885, 0
      %v1058 = vsel %vm1047, %v886, 0
      %v1061 = vsel %vm1047, %v887, 0
      %v1064 = vsel %vm1047, %v888, 0
      %v1067 = vsel %vm1047, %v889, 0
      %v1070 = vsel %vm1047, %v890, 0
      %v1073 = vsel %vm1047, %v891, 0
      %v1076 = vsel %vm1047, %v892, 0
      %v1079 = vsel %vm1047, %v893, 0
      %v1082 = vsel %vm1047, %v894, 0
      %v1085 = vsel %vm1047, %v895, 0
      %v1088 = vsel %vm1047, %v896, 0
      %v1091 = vsel %vm1047, %v897, 0
      %v1094 = vsel %vm1047, %v898, 0
      %v1097 = vsel %vm1047, %v899, 0
      %v1100 = vsel %vm1047, %v900, 0
      %v1103 = vsel %vm1047, %v901, 0
      %v1106 = vsel %vm1047, %v902, 0
      %v1109 = vsel %vm1047, %v903, 0
      %v1112 = vsel %vm1047, %v904, 0
      %v1115 = vsel %vm1047, %v905, 0
      %v1118 = vsel %vm1047, %v906, 0
      %v1121 = vsel %vm1047, %v907, 0
      %v1124 = vsel %vm1047, %v908, 0
      %v1127 = vsel %vm1047, %v909, 0
      %v1130 = vsel %vm1047, %v910, 0
      %v1133 = vsel %vm1047, %v911, 0
      %v1136 = vsel %vm1047, %v912, 0
      %v1139 = vsel %vm1047, %v913, 0
      %v1142 = vsel %vm1047, %v914, 0
      %1144 = vmatprep.subr.bf16.mxu0 0
      %1145 = vmatpush1.bf16.msra.mxu0 0
      %1146 = vmatprep.subr.bf16.mxu0 0
      %1147 = vmatpush1.bf16.msra.mxu0 0
      %1148 = vmatprep.subr.bf16.mxu0 0
      %1149 = vmatpush1.bf16.msra.mxu0 0
      %1150 = vmatprep.subr.bf16.mxu0 %v1052
      %1151 = vmatpush1.bf16.msra.mxu0 %v1049
      %1152 = vmatprep.subr.bf16.mxu0 %v852
      %1153 = vmatpush1.bf16.msra.mxu0 %v851
      %1154 = vmatprep.subr.bf16.mxu0 %v820
      %1155 = vmatpush1.bf16.msra.mxu0 %v819
      %1156 = vmatprep.subr.bf16.mxu0 %v788
      %1157 = vmatpush1.bf16.msra.mxu0 %v787
      %1158 = vmatprep.subr.bf16.mxu0 %v756
      %1159 = vmatpush1.bf16.msra.mxu0 %v755
      %1160 = vmatprep.subr.bf16.mxu0 0
      %1161 = vmatpush2.bf16.msra.mxu0 0
      %1162 = vmatprep.subr.bf16.mxu0 0
      %1163 = vmatpush2.bf16.msra.mxu0 0
      %1164 = vmatprep.subr.bf16.mxu0 0
      %1165 = vmatpush2.bf16.msra.mxu0 0
      %1166 = vmatprep.subr.bf16.mxu0 0
      %1167 = vmatpush2.bf16.msra.mxu0 0
      %1168 = vmatprep.subr.bf16.mxu0 0
      %1169 = vmatpush2.bf16.msra.mxu0 0
      %1170 = vmatprep.subr.bf16.mxu0 0
      %1171 = vmatpush2.bf16.msra.mxu0 0
      %1172 = vmatprep.subr.bf16.mxu0 0
      %1173 = vmatpush2.bf16.msra.mxu0 0
      %1174 = vmatprep.subr.bf16.mxu0 0
      %1175 = vmatpush2.bf16.msra.mxu0 0
      %1176 = vmatprep.mubr.bf16.mxu0 0
      %1177 = vmatmul.mubr.bf16.gmra.mxu0 %v1045
      %v1178 = vpop.f32.mrf.mxu0
      %v1179 = vadd.f32 %v321, %v1178
      %v1180 = vpop.f32.mrf.mxu0
      %v1181 = vadd.f32 %v321, %v1180
      %v1182 = vpop.f32.mrf.mxu0
      %v1183 = vpop.f32.mrf.mxu0
      %1184 = vdwg.mxu0
      %1185 = vmatprep.subr.bf16.mxu0 0
      %1186 = vmatpush1.bf16.msra.mxu0 0
      %1187 = vmatprep.subr.bf16.mxu0 0
      %1188 = vmatpush1.bf16.msra.mxu0 0
      %1189 = vmatprep.subr.bf16.mxu0 0
      %1190 = vmatpush1.bf16.msra.mxu0 0
      %1191 = vmatprep.subr.bf16.mxu0 %v1058
      %1192 = vmatpush1.bf16.msra.mxu0 %v1055
      %1193 = vmatprep.subr.bf16.mxu0 %v854
      %1194 = vmatpush1.bf16.msra.mxu0 %v853
      %1195 = vmatprep.subr.bf16.mxu0 %v822
      %1196 = vmatpush1.bf16.msra.mxu0 %v821
      %1197 = vmatprep.subr.bf16.mxu0 %v790
      %1198 = vmatpush1.bf16.msra.mxu0 %v789
      %1199 = vmatprep.subr.bf16.mxu0 %v758
      %1200 = vmatpush1.bf16.msra.mxu0 %v757
      %1201 = vmatprep.subr.bf16.mxu0 0
      %1202 = vmatpush2.bf16.msra.mxu0 0
      %1203 = vmatprep.subr.bf16.mxu0 0
      %1204 = vmatpush2.bf16.msra.mxu0 0
      %1205 = vmatprep.subr.bf16.mxu0 0
      %1206 = vmatpush2.bf16.msra.mxu0 0
      %1207 = vmatprep.subr.bf16.mxu0 0
      %1208 = vmatpush2.bf16.msra.mxu0 0
      %1209 = vmatprep.subr.bf16.mxu0 0
      %1210 = vmatpush2.bf16.msra.mxu0 0
      %1211 = vmatprep.subr.bf16.mxu0 0
      %1212 = vmatpush2.bf16.msra.mxu0 0
      %1213 = vmatprep.subr.bf16.mxu0 0
      %1214 = vmatpush2.bf16.msra.mxu0 0
      %1215 = vmatprep.subr.bf16.mxu0 0
      %1216 = vmatpush2.bf16.msra.mxu0 0
      %1217 = vmatprep.mubr.bf16.mxu0 0
      %1218 = vmatmul.mubr.bf16.gmra.mxu0 %v1045
      %v1219 = vpop.f32.mrf.mxu0
      %v1220 = vadd.f32 %v321, %v1219
      %v1221 = vpop.f32.mrf.mxu0
      %v1222 = vadd.f32 %v321, %v1221
      %v1223 = vpop.f32.mrf.mxu0
      %v1224 = vpop.f32.mrf.mxu0
      %1225 = vdwg.mxu0
      %1226 = vmatprep.subr.bf16.mxu0 0
      %1227 = vmatpush1.bf16.msra.mxu0 0
      %1228 = vmatprep.subr.bf16.mxu0 0
      %1229 = vmatpush1.bf16.msra.mxu0 0
      %1230 = vmatprep.subr.bf16.mxu0 0
      %1231 = vmatpush1.bf16.msra.mxu0 0
      %1232 = vmatprep.subr.bf16.mxu0 %v1064
      %1233 = vmatpush1.bf16.msra.mxu0 %v1061
      %1234 = vmatprep.subr.bf16.mxu0 %v856
      %1235 = vmatpush1.bf16.msra.mxu0 %v855
      %1236 = vmatprep.subr.bf16.mxu0 %v824
      %1237 = vmatpush1.bf16.msra.mxu0 %v823
      %1238 = vmatprep.subr.bf16.mxu0 %v792
      %1239 = vmatpush1.bf16.msra.mxu0 %v791
      %1240 = vmatprep.subr.bf16.mxu0 %v760
      %1241 = vmatpush1.bf16.msra.mxu0 %v759
      %1242 = vmatprep.subr.bf16.mxu0 0
      %1243 = vmatpush2.bf16.msra.mxu0 0
      %1244 = vmatprep.subr.bf16.mxu0 0
      %1245 = vmatpush2.bf16.msra.mxu0 0
      %1246 = vmatprep.subr.bf16.mxu0 0
      %1247 = vmatpush2.bf16.msra.mxu0 0
      %1248 = vmatprep.subr.bf16.mxu0 0
      %1249 = vmatpush2.bf16.msra.mxu0 0
      %1250 = vmatprep.subr.bf16.mxu0 0
      %1251 = vmatpush2.bf16.msra.mxu0 0
      %1252 = vmatprep.subr.bf16.mxu0 0
      %1253 = vmatpush2.bf16.msra.mxu0 0
      %1254 = vmatprep.subr.bf16.mxu0 0
      %1255 = vmatpush2.bf16.msra.mxu0 0
      %1256 = vmatprep.subr.bf16.mxu0 0
      %1257 = vmatpush2.bf16.msra.mxu0 0
      %1258 = vmatprep.mubr.bf16.mxu0 0
      %1259 = vmatmul.mubr.bf16.gmra.mxu0 %v1045
      %v1260 = vpop.f32.mrf.mxu0
      %v1261 = vadd.f32 %v321, %v1260
      %v1262 = vpop.f32.mrf.mxu0
      %v1263 = vadd.f32 %v321, %v1262
      %v1264 = vpop.f32.mrf.mxu0
      %v1265 = vpop.f32.mrf.mxu0
      %1266 = vdwg.mxu0
      %1267 = vmatprep.subr.bf16.mxu0 0
      %1268 = vmatpush1.bf16.msra.mxu0 0
      %1269 = vmatprep.subr.bf16.mxu0 0
      %1270 = vmatpush1.bf16.msra.mxu0 0
      %1271 = vmatprep.subr.bf16.mxu0 0
      %1272 = vmatpush1.bf16.msra.mxu0 0
      %1273 = vmatprep.subr.bf16.mxu0 %v1070
      %1274 = vmatpush1.bf16.msra.mxu0 %v1067
      %1275 = vmatprep.subr.bf16.mxu0 %v858
      %1276 = vmatpush1.bf16.msra.mxu0 %v857
      %1277 = vmatprep.subr.bf16.mxu0 %v826
      %1278 = vmatpush1.bf16.msra.mxu0 %v825
      %1279 = vmatprep.subr.bf16.mxu0 %v794
      %1280 = vmatpush1.bf16.msra.mxu0 %v793
      %1281 = vmatprep.subr.bf16.mxu0 %v762
      %1282 = vmatpush1.bf16.msra.mxu0 %v761
      %1283 = vmatprep.subr.bf16.mxu0 0
      %1284 = vmatpush2.bf16.msra.mxu0 0
      %1285 = vmatprep.subr.bf16.mxu0 0
      %1286 = vmatpush2.bf16.msra.mxu0 0
      %1287 = vmatprep.subr.bf16.mxu0 0
      %1288 = vmatpush2.bf16.msra.mxu0 0
      %1289 = vmatprep.subr.bf16.mxu0 0
      %1290 = vmatpush2.bf16.msra.mxu0 0
      %1291 = vmatprep.subr.bf16.mxu0 0
      %1292 = vmatpush2.bf16.msra.mxu0 0
      %1293 = vmatprep.subr.bf16.mxu0 0
      %1294 = vmatpush2.bf16.msra.mxu0 0
      %1295 = vmatprep.subr.bf16.mxu0 0
      %1296 = vmatpush2.bf16.msra.mxu0 0
      %1297 = vmatprep.subr.bf16.mxu0 0
      %1298 = vmatpush2.bf16.msra.mxu0 0
      %1299 = vmatprep.mubr.bf16.mxu0 0
      %1300 = vmatmul.mubr.bf16.gmra.mxu0 %v1045
      %v1301 = vpop.f32.mrf.mxu0
      %v1302 = vadd.f32 %v321, %v1301
      %v1303 = vpop.f32.mrf.mxu0
      %v1304 = vadd.f32 %v321, %v1303
      %v1305 = vpop.f32.mrf.mxu0
      %v1306 = vpop.f32.mrf.mxu0
      %1307 = vdwg.mxu0
      %1308 = vmatprep.subr.bf16.mxu0 0
      %1309 = vmatpush1.bf16.msra.mxu0 0
      %1310 = vmatprep.subr.bf16.mxu0 0
      %1311 = vmatpush1.bf16.msra.mxu0 0
      %1312 = vmatprep.subr.bf16.mxu0 0
      %1313 = vmatpush1.bf16.msra.mxu0 0
      %1314 = vmatprep.subr.bf16.mxu0 %v1076
      %1315 = vmatpush1.bf16.msra.mxu0 %v1073
      %1316 = vmatprep.subr.bf16.mxu0 %v860
      %1317 = vmatpush1.bf16.msra.mxu0 %v859
      %1318 = vmatprep.subr.bf16.mxu0 %v828
      %1319 = vmatpush1.bf16.msra.mxu0 %v827
      %1320 = vmatprep.subr.bf16.mxu0 %v796
      %1321 = vmatpush1.bf16.msra.mxu0 %v795
      %1322 = vmatprep.subr.bf16.mxu0 %v764
      %1323 = vmatpush1.bf16.msra.mxu0 %v763
      %1324 = vmatprep.subr.bf16.mxu0 0
      %1325 = vmatpush2.bf16.msra.mxu0 0
      %1326 = vmatprep.subr.bf16.mxu0 0
      %1327 = vmatpush2.bf16.msra.mxu0 0
      %1328 = vmatprep.subr.bf16.mxu0 0
      %1329 = vmatpush2.bf16.msra.mxu0 0
      %1330 = vmatprep.subr.bf16.mxu0 0
      %1331 = vmatpush2.bf16.msra.mxu0 0
      %1332 = vmatprep.subr.bf16.mxu0 0
      %1333 = vmatpush2.bf16.msra.mxu0 0
      %1334 = vmatprep.subr.bf16.mxu0 0
      %1335 = vmatpush2.bf16.msra.mxu0 0
      %1336 = vmatprep.subr.bf16.mxu0 0
      %1337 = vmatpush2.bf16.msra.mxu0 0
      %1338 = vmatprep.subr.bf16.mxu0 0
      %1339 = vmatpush2.bf16.msra.mxu0 0
      %1340 = vmatprep.mubr.bf16.mxu0 0
      %1341 = vmatmul.mubr.bf16.gmra.mxu0 %v1045
      %v1342 = vpop.f32.mrf.mxu0
      %v1343 = vadd.f32 %v321, %v1342
      %v1344 = vpop.f32.mrf.mxu0
      %v1345 = vadd.f32 %v321, %v1344
      %v1346 = vpop.f32.mrf.mxu0
      %v1347 = vpop.f32.mrf.mxu0
      %1348 = vdwg.mxu0
      %1349 = vmatprep.subr.bf16.mxu0 0
      %1350 = vmatpush1.bf16.msra.mxu0 0
      %1351 = vmatprep.subr.bf16.mxu0 0
      %1352 = vmatpush1.bf16.msra.mxu0 0
      %1353 = vmatprep.subr.bf16.mxu0 0
      %1354 = vmatpush1.bf16.msra.mxu0 0
      %1355 = vmatprep.subr.bf16.mxu0 %v1082
      %1356 = vmatpush1.bf16.msra.mxu0 %v1079
      %1357 = vmatprep.subr.bf16.mxu0 %v862
      %1358 = vmatpush1.bf16.msra.mxu0 %v861
      %1359 = vmatprep.subr.bf16.mxu0 %v830
      %1360 = vmatpush1.bf16.msra.mxu0 %v829
      %1361 = vmatprep.subr.bf16.mxu0 %v798
      %1362 = vmatpush1.bf16.msra.mxu0 %v797
      %1363 = vmatprep.subr.bf16.mxu0 %v766
      %1364 = vmatpush1.bf16.msra.mxu0 %v765
      %1365 = vmatprep.subr.bf16.mxu0 0
      %1366 = vmatpush2.bf16.msra.mxu0 0
      %1367 = vmatprep.subr.bf16.mxu0 0
      %1368 = vmatpush2.bf16.msra.mxu0 0
      %1369 = vmatprep.subr.bf16.mxu0 0
      %1370 = vmatpush2.bf16.msra.mxu0 0
      %1371 = vmatprep.subr.bf16.mxu0 0
      %1372 = vmatpush2.bf16.msra.mxu0 0
      %1373 = vmatprep.subr.bf16.mxu0 0
      %1374 = vmatpush2.bf16.msra.mxu0 0
      %1375 = vmatprep.subr.bf16.mxu0 0
      %1376 = vmatpush2.bf16.msra.mxu0 0
      %1377 = vmatprep.subr.bf16.mxu0 0
      %1378 = vmatpush2.bf16.msra.mxu0 0
      %1379 = vmatprep.subr.bf16.mxu0 0
      %1380 = vmatpush2.bf16.msra.mxu0 0
      %1381 = vmatprep.mubr.bf16.mxu0 0
      %1382 = vmatmul.mubr.bf16.gmra.mxu0 %v1045
      %v1383 = vpop.f32.mrf.mxu0
      %v1384 = vadd.f32 %v321, %v1383
      %v1385 = vpop.f32.mrf.mxu0
      %v1386 = vadd.f32 %v321, %v1385
      %v1387 = vpop.f32.mrf.mxu0
      %v1388 = vpop.f32.mrf.mxu0
      %1389 = vdwg.mxu0
      %1390 = vmatprep.subr.bf16.mxu0 0
      %1391 = vmatpush1.bf16.msra.mxu0 0
      %1392 = vmatprep.subr.bf16.mxu0 0
      %1393 = vmatpush1.bf16.msra.mxu0 0
      %1394 = vmatprep.subr.bf16.mxu0 0
      %1395 = vmatpush1.bf16.msra.mxu0 0
      %1396 = vmatprep.subr.bf16.mxu0 %v1088
      %1397 = vmatpush1.bf16.msra.mxu0 %v1085
      %1398 = vmatprep.subr.bf16.mxu0 %v864
      %1399 = vmatpush1.bf16.msra.mxu0 %v863
      %1400 = vmatprep.subr.bf16.mxu0 %v832
      %1401 = vmatpush1.bf16.msra.mxu0 %v831
      %1402 = vmatprep.subr.bf16.mxu0 %v800
      %1403 = vmatpush1.bf16.msra.mxu0 %v799
      %1404 = vmatprep.subr.bf16.mxu0 %v768
      %1405 = vmatpush1.bf16.msra.mxu0 %v767
      %1406 = vmatprep.subr.bf16.mxu0 0
      %1407 = vmatpush2.bf16.msra.mxu0 0
      %1408 = vmatprep.subr.bf16.mxu0 0
      %1409 = vmatpush2.bf16.msra.mxu0 0
      %1410 = vmatprep.subr.bf16.mxu0 0
      %1411 = vmatpush2.bf16.msra.mxu0 0
      %1412 = vmatprep.subr.bf16.mxu0 0
      %1413 = vmatpush2.bf16.msra.mxu0 0
      %1414 = vmatprep.subr.bf16.mxu0 0
      %1415 = vmatpush2.bf16.msra.mxu0 0
      %1416 = vmatprep.subr.bf16.mxu0 0
      %1417 = vmatpush2.bf16.msra.mxu0 0
      %1418 = vmatprep.subr.bf16.mxu0 0
      %1419 = vmatpush2.bf16.msra.mxu0 0
      %1420 = vmatprep.subr.bf16.mxu0 0
      %1421 = vmatpush2.bf16.msra.mxu0 0
      %1422 = vmatprep.mubr.bf16.mxu0 0
      %1423 = vmatmul.mubr.bf16.gmra.mxu0 %v1045
      %v1424 = vpop.f32.mrf.mxu0
      %v1425 = vadd.f32 %v321, %v1424
      %v1426 = vpop.f32.mrf.mxu0
      %v1427 = vadd.f32 %v321, %v1426
      %v1428 = vpop.f32.mrf.mxu0
      %v1429 = vpop.f32.mrf.mxu0
      %1430 = vdwg.mxu0
      %1431 = vmatprep.subr.bf16.mxu0 0
      %1432 = vmatpush1.bf16.msra.mxu0 0
      %1433 = vmatprep.subr.bf16.mxu0 0
      %1434 = vmatpush1.bf16.msra.mxu0 0
      %1435 = vmatprep.subr.bf16.mxu0 0
      %1436 = vmatpush1.bf16.msra.mxu0 0
      %1437 = vmatprep.subr.bf16.mxu0 %v1094
      %1438 = vmatpush1.bf16.msra.mxu0 %v1091
      %1439 = vmatprep.subr.bf16.mxu0 %v866
      %1440 = vmatpush1.bf16.msra.mxu0 %v865
      %1441 = vmatprep.subr.bf16.mxu0 %v834
      %1442 = vmatpush1.bf16.msra.mxu0 %v833
      %1443 = vmatprep.subr.bf16.mxu0 %v802
      %1444 = vmatpush1.bf16.msra.mxu0 %v801
      %1445 = vmatprep.subr.bf16.mxu0 %v770
      %1446 = vmatpush1.bf16.msra.mxu0 %v769
      %1447 = vmatprep.subr.bf16.mxu0 0
      %1448 = vmatpush2.bf16.msra.mxu0 0
      %1449 = vmatprep.subr.bf16.mxu0 0
      %1450 = vmatpush2.bf16.msra.mxu0 0
      %1451 = vmatprep.subr.bf16.mxu0 0
      %1452 = vmatpush2.bf16.msra.mxu0 0
      %1453 = vmatprep.subr.bf16.mxu0 0
      %1454 = vmatpush2.bf16.msra.mxu0 0
      %1455 = vmatprep.subr.bf16.mxu0 0
      %1456 = vmatpush2.bf16.msra.mxu0 0
      %1457 = vmatprep.subr.bf16.mxu0 0
      %1458 = vmatpush2.bf16.msra.mxu0 0
      %1459 = vmatprep.subr.bf16.mxu0 0
      %1460 = vmatpush2.bf16.msra.mxu0 0
      %1461 = vmatprep.subr.bf16.mxu0 0
      %1462 = vmatpush2.bf16.msra.mxu0 0
      %1463 = vmatprep.mubr.bf16.mxu0 0
      %1464 = vmatmul.mubr.bf16.gmra.mxu0 %v1045
      %v1465 = vpop.f32.mrf.mxu0
      %v1466 = vadd.f32 %v321, %v1465
      %v1467 = vpop.f32.mrf.mxu0
      %v1468 = vadd.f32 %v321, %v1467
      %v1469 = vpop.f32.mrf.mxu0
      %v1470 = vpop.f32.mrf.mxu0
      %1471 = vdwg.mxu0
      %1472 = vmatprep.subr.bf16.mxu0 0
      %1473 = vmatpush1.bf16.msra.mxu0 0
      %1474 = vmatprep.subr.bf16.mxu0 0
      %1475 = vmatpush1.bf16.msra.mxu0 0
      %1476 = vmatprep.subr.bf16.mxu0 0
      %1477 = vmatpush1.bf16.msra.mxu0 0
      %1478 = vmatprep.subr.bf16.mxu0 %v1100
      %1479 = vmatpush1.bf16.msra.mxu0 %v1097
      %1480 = vmatprep.subr.bf16.mxu0 %v868
      %1481 = vmatpush1.bf16.msra.mxu0 %v867
      %1482 = vmatprep.subr.bf16.mxu0 %v836
      %1483 = vmatpush1.bf16.msra.mxu0 %v835
      %1484 = vmatprep.subr.bf16.mxu0 %v804
      %1485 = vmatpush1.bf16.msra.mxu0 %v803
      %1486 = vmatprep.subr.bf16.mxu0 %v772
      %1487 = vmatpush1.bf16.msra.mxu0 %v771
      %1488 = vmatprep.subr.bf16.mxu0 0
      %1489 = vmatpush2.bf16.msra.mxu0 0
      %1490 = vmatprep.subr.bf16.mxu0 0
      %1491 = vmatpush2.bf16.msra.mxu0 0
      %1492 = vmatprep.subr.bf16.mxu0 0
      %1493 = vmatpush2.bf16.msra.mxu0 0
      %1494 = vmatprep.subr.bf16.mxu0 0
      %1495 = vmatpush2.bf16.msra.mxu0 0
      %1496 = vmatprep.subr.bf16.mxu0 0
      %1497 = vmatpush2.bf16.msra.mxu0 0
      %1498 = vmatprep.subr.bf16.mxu0 0
      %1499 = vmatpush2.bf16.msra.mxu0 0
      %1500 = vmatprep.subr.bf16.mxu0 0
      %1501 = vmatpush2.bf16.msra.mxu0 0
      %1502 = vmatprep.subr.bf16.mxu0 0
      %1503 = vmatpush2.bf16.msra.mxu0 0
      %1504 = vmatprep.mubr.bf16.mxu0 0
      %1505 = vmatmul.mubr.bf16.gmra.mxu0 %v1045
      %v1506 = vpop.f32.mrf.mxu0
      %v1507 = vadd.f32 %v321, %v1506
      %v1508 = vpop.f32.mrf.mxu0
      %v1509 = vadd.f32 %v321, %v1508
      %v1510 = vpop.f32.mrf.mxu0
      %v1511 = vpop.f32.mrf.mxu0
      %1512 = vdwg.mxu0
      %1513 = vmatprep.subr.bf16.mxu0 0
      %1514 = vmatpush1.bf16.msra.mxu0 0
      %1515 = vmatprep.subr.bf16.mxu0 0
      %1516 = vmatpush1.bf16.msra.mxu0 0
      %1517 = vmatprep.subr.bf16.mxu0 0
      %1518 = vmatpush1.bf16.msra.mxu0 0
      %1519 = vmatprep.subr.bf16.mxu0 %v1106
      %1520 = vmatpush1.bf16.msra.mxu0 %v1103
      %1521 = vmatprep.subr.bf16.mxu0 %v870
      %1522 = vmatpush1.bf16.msra.mxu0 %v869
      %1523 = vmatprep.subr.bf16.mxu0 %v838
      %1524 = vmatpush1.bf16.msra.mxu0 %v837
      %1525 = vmatprep.subr.bf16.mxu0 %v806
      %1526 = vmatpush1.bf16.msra.mxu0 %v805
      %1527 = vmatprep.subr.bf16.mxu0 %v774
      %1528 = vmatpush1.bf16.msra.mxu0 %v773
      %1529 = vmatprep.subr.bf16.mxu0 0
      %1530 = vmatpush2.bf16.msra.mxu0 0
      %1531 = vmatprep.subr.bf16.mxu0 0
      %1532 = vmatpush2.bf16.msra.mxu0 0
      %1533 = vmatprep.subr.bf16.mxu0 0
      %1534 = vmatpush2.bf16.msra.mxu0 0
      %1535 = vmatprep.subr.bf16.mxu0 0
      %1536 = vmatpush2.bf16.msra.mxu0 0
      %1537 = vmatprep.subr.bf16.mxu0 0
      %1538 = vmatpush2.bf16.msra.mxu0 0
      %1539 = vmatprep.subr.bf16.mxu0 0
      %1540 = vmatpush2.bf16.msra.mxu0 0
      %1541 = vmatprep.subr.bf16.mxu0 0
      %1542 = vmatpush2.bf16.msra.mxu0 0
      %1543 = vmatprep.subr.bf16.mxu0 0
      %1544 = vmatpush2.bf16.msra.mxu0 0
      %1545 = vmatprep.mubr.bf16.mxu0 0
      %1546 = vmatmul.mubr.bf16.gmra.mxu0 %v1045
      %v1547 = vpop.f32.mrf.mxu0
      %v1548 = vadd.f32 %v321, %v1547
      %v1549 = vpop.f32.mrf.mxu0
      %v1550 = vadd.f32 %v321, %v1549
      %v1551 = vpop.f32.mrf.mxu0
      %v1552 = vpop.f32.mrf.mxu0
      %1553 = vdwg.mxu0
      %1554 = vmatprep.subr.bf16.mxu0 0
      %1555 = vmatpush1.bf16.msra.mxu0 0
      %1556 = vmatprep.subr.bf16.mxu0 0
      %1557 = vmatpush1.bf16.msra.mxu0 0
      %1558 = vmatprep.subr.bf16.mxu0 0
      %1559 = vmatpush1.bf16.msra.mxu0 0
      %1560 = vmatprep.subr.bf16.mxu0 %v1112
      %1561 = vmatpush1.bf16.msra.mxu0 %v1109
      %1562 = vmatprep.subr.bf16.mxu0 %v872
      %1563 = vmatpush1.bf16.msra.mxu0 %v871
      %1564 = vmatprep.subr.bf16.mxu0 %v840
      %1565 = vmatpush1.bf16.msra.mxu0 %v839
      %1566 = vmatprep.subr.bf16.mxu0 %v808
      %1567 = vmatpush1.bf16.msra.mxu0 %v807
      %1568 = vmatprep.subr.bf16.mxu0 %v776
      %1569 = vmatpush1.bf16.msra.mxu0 %v775
      %1570 = vmatprep.subr.bf16.mxu0 0
      %1571 = vmatpush2.bf16.msra.mxu0 0
      %1572 = vmatprep.subr.bf16.mxu0 0
      %1573 = vmatpush2.bf16.msra.mxu0 0
      %1574 = vmatprep.subr.bf16.mxu0 0
      %1575 = vmatpush2.bf16.msra.mxu0 0
      %1576 = vmatprep.subr.bf16.mxu0 0
      %1577 = vmatpush2.bf16.msra.mxu0 0
      %1578 = vmatprep.subr.bf16.mxu0 0
      %1579 = vmatpush2.bf16.msra.mxu0 0
      %1580 = vmatprep.subr.bf16.mxu0 0
      %1581 = vmatpush2.bf16.msra.mxu0 0
      %1582 = vmatprep.subr.bf16.mxu0 0
      %1583 = vmatpush2.bf16.msra.mxu0 0
      %1584 = vmatprep.subr.bf16.mxu0 0
      %1585 = vmatpush2.bf16.msra.mxu0 0
      %1586 = vmatprep.mubr.bf16.mxu0 0
      %1587 = vmatmul.mubr.bf16.gmra.mxu0 %v1045
      %v1588 = vpop.f32.mrf.mxu0
      %v1589 = vadd.f32 %v321, %v1588
      %v1590 = vpop.f32.mrf.mxu0
      %v1591 = vadd.f32 %v321, %v1590
      %v1592 = vpop.f32.mrf.mxu0
      %v1593 = vpop.f32.mrf.mxu0
      %1594 = vdwg.mxu0
      %1595 = vmatprep.subr.bf16.mxu0 0
      %1596 = vmatpush1.bf16.msra.mxu0 0
      %1597 = vmatprep.subr.bf16.mxu0 0
      %1598 = vmatpush1.bf16.msra.mxu0 0
      %1599 = vmatprep.subr.bf16.mxu0 0
      %1600 = vmatpush1.bf16.msra.mxu0 0
      %1601 = vmatprep.subr.bf16.mxu0 %v1118
      %1602 = vmatpush1.bf16.msra.mxu0 %v1115
      %1603 = vmatprep.subr.bf16.mxu0 %v874
      %1604 = vmatpush1.bf16.msra.mxu0 %v873
      %1605 = vmatprep.subr.bf16.mxu0 %v842
      %1606 = vmatpush1.bf16.msra.mxu0 %v841
      %1607 = vmatprep.subr.bf16.mxu0 %v810
      %1608 = vmatpush1.bf16.msra.mxu0 %v809
      %1609 = vmatprep.subr.bf16.mxu0 %v778
      %1610 = vmatpush1.bf16.msra.mxu0 %v777
      %1611 = vmatprep.subr.bf16.mxu0 0
      %1612 = vmatpush2.bf16.msra.mxu0 0
      %1613 = vmatprep.subr.bf16.mxu0 0
      %1614 = vmatpush2.bf16.msra.mxu0 0
      %1615 = vmatprep.subr.bf16.mxu0 0
      %1616 = vmatpush2.bf16.msra.mxu0 0
      %1617 = vmatprep.subr.bf16.mxu0 0
      %1618 = vmatpush2.bf16.msra.mxu0 0
      %1619 = vmatprep.subr.bf16.mxu0 0
      %1620 = vmatpush2.bf16.msra.mxu0 0
      %1621 = vmatprep.subr.bf16.mxu0 0
      %1622 = vmatpush2.bf16.msra.mxu0 0
      %1623 = vmatprep.subr.bf16.mxu0 0
      %1624 = vmatpush2.bf16.msra.mxu0 0
      %1625 = vmatprep.subr.bf16.mxu0 0
      %1626 = vmatpush2.bf16.msra.mxu0 0
      %1627 = vmatprep.mubr.bf16.mxu0 0
      %1628 = vmatmul.mubr.bf16.gmra.mxu0 %v1045
      %v1629 = vpop.f32.mrf.mxu0
      %v1630 = vadd.f32 %v321, %v1629
      %v1631 = vpop.f32.mrf.mxu0
      %v1632 = vadd.f32 %v321, %v1631
      %v1633 = vpop.f32.mrf.mxu0
      %v1634 = vpop.f32.mrf.mxu0
      %1635 = vdwg.mxu0
      %1636 = vmatprep.subr.bf16.mxu0 0
      %1637 = vmatpush1.bf16.msra.mxu0 0
      %1638 = vmatprep.subr.bf16.mxu0 0
      %1639 = vmatpush1.bf16.msra.mxu0 0
      %1640 = vmatprep.subr.bf16.mxu0 0
      %1641 = vmatpush1.bf16.msra.mxu0 0
      %1642 = vmatprep.subr.bf16.mxu0 %v1124
      %1643 = vmatpush1.bf16.msra.mxu0 %v1121
      %1644 = vmatprep.subr.bf16.mxu0 %v876
      %1645 = vmatpush1.bf16.msra.mxu0 %v875
      %1646 = vmatprep.subr.bf16.mxu0 %v844
      %1647 = vmatpush1.bf16.msra.mxu0 %v843
      %1648 = vmatprep.subr.bf16.mxu0 %v812
      %1649 = vmatpush1.bf16.msra.mxu0 %v811
      %1650 = vmatprep.subr.bf16.mxu0 %v780
      %1651 = vmatpush1.bf16.msra.mxu0 %v779
      %1652 = vmatprep.subr.bf16.mxu0 0
      %1653 = vmatpush2.bf16.msra.mxu0 0
      %1654 = vmatprep.subr.bf16.mxu0 0
      %1655 = vmatpush2.bf16.msra.mxu0 0
      %1656 = vmatprep.subr.bf16.mxu0 0
      %1657 = vmatpush2.bf16.msra.mxu0 0
      %1658 = vmatprep.subr.bf16.mxu0 0
      %1659 = vmatpush2.bf16.msra.mxu0 0
      %1660 = vmatprep.subr.bf16.mxu0 0
      %1661 = vmatpush2.bf16.msra.mxu0 0
      %1662 = vmatprep.subr.bf16.mxu0 0
      %1663 = vmatpush2.bf16.msra.mxu0 0
      %1664 = vmatprep.subr.bf16.mxu0 0
      %1665 = vmatpush2.bf16.msra.mxu0 0
      %1666 = vmatprep.subr.bf16.mxu0 0
      %1667 = vmatpush2.bf16.msra.mxu0 0
      %1668 = vmatprep.mubr.bf16.mxu0 0
      %1669 = vmatmul.mubr.bf16.gmra.mxu0 %v1045
      %v1670 = vpop.f32.mrf.mxu0
      %v1671 = vadd.f32 %v321, %v1670
      %v1672 = vpop.f32.mrf.mxu0
      %v1673 = vadd.f32 %v321, %v1672
      %v1674 = vpop.f32.mrf.mxu0
      %v1675 = vpop.f32.mrf.mxu0
      %1676 = vdwg.mxu0
      %1677 = vmatprep.subr.bf16.mxu0 0
      %1678 = vmatpush1.bf16.msra.mxu0 0
      %1679 = vmatprep.subr.bf16.mxu0 0
      %1680 = vmatpush1.bf16.msra.mxu0 0
      %1681 = vmatprep.subr.bf16.mxu0 0
      %1682 = vmatpush1.bf16.msra.mxu0 0
      %1683 = vmatprep.subr.bf16.mxu0 %v1130
      %1684 = vmatpush1.bf16.msra.mxu0 %v1127
      %1685 = vmatprep.subr.bf16.mxu0 %v878
      %1686 = vmatpush1.bf16.msra.mxu0 %v877
      %1687 = vmatprep.subr.bf16.mxu0 %v846
      %1688 = vmatpush1.bf16.msra.mxu0 %v845
      %1689 = vmatprep.subr.bf16.mxu0 %v814
      %1690 = vmatpush1.bf16.msra.mxu0 %v813
      %1691 = vmatprep.subr.bf16.mxu0 %v782
      %1692 = vmatpush1.bf16.msra.mxu0 %v781
      %1693 = vmatprep.subr.bf16.mxu0 0
      %1694 = vmatpush2.bf16.msra.mxu0 0
      %1695 = vmatprep.subr.bf16.mxu0 0
      %1696 = vmatpush2.bf16.msra.mxu0 0
      %1697 = vmatprep.subr.bf16.mxu0 0
      %1698 = vmatpush2.bf16.msra.mxu0 0
      %1699 = vmatprep.subr.bf16.mxu0 0
      %1700 = vmatpush2.bf16.msra.mxu0 0
      %1701 = vmatprep.subr.bf16.mxu0 0
      %1702 = vmatpush2.bf16.msra.mxu0 0
      %1703 = vmatprep.subr.bf16.mxu0 0
      %1704 = vmatpush2.bf16.msra.mxu0 0
      %1705 = vmatprep.subr.bf16.mxu0 0
      %1706 = vmatpush2.bf16.msra.mxu0 0
      %1707 = vmatprep.subr.bf16.mxu0 0
      %1708 = vmatpush2.bf16.msra.mxu0 0
      %1709 = vmatprep.mubr.bf16.mxu0 0
      %1710 = vmatmul.mubr.bf16.gmra.mxu0 %v1045
      %v1711 = vpop.f32.mrf.mxu0
      %v1712 = vadd.f32 %v321, %v1711
      %v1713 = vpop.f32.mrf.mxu0
      %v1714 = vadd.f32 %v321, %v1713
      %v1715 = vpop.f32.mrf.mxu0
      %v1716 = vpop.f32.mrf.mxu0
      %1717 = vdwg.mxu0
      %1718 = vmatprep.subr.bf16.mxu0 0
      %1719 = vmatpush1.bf16.msra.mxu0 0
      %1720 = vmatprep.subr.bf16.mxu0 0
      %1721 = vmatpush1.bf16.msra.mxu0 0
      %1722 = vmatprep.subr.bf16.mxu0 0
      %1723 = vmatpush1.bf16.msra.mxu0 0
      %1724 = vmatprep.subr.bf16.mxu0 %v1136
      %1725 = vmatpush1.bf16.msra.mxu0 %v1133
      %1726 = vmatprep.subr.bf16.mxu0 %v880
      %1727 = vmatpush1.bf16.msra.mxu0 %v879
      %1728 = vmatprep.subr.bf16.mxu0 %v848
      %1729 = vmatpush1.bf16.msra.mxu0 %v847
      %1730 = vmatprep.subr.bf16.mxu0 %v816
      %1731 = vmatpush1.bf16.msra.mxu0 %v815
      %1732 = vmatprep.subr.bf16.mxu0 %v784
      %1733 = vmatpush1.bf16.msra.mxu0 %v783
      %1734 = vmatprep.subr.bf16.mxu0 0
      %1735 = vmatpush2.bf16.msra.mxu0 0
      %1736 = vmatprep.subr.bf16.mxu0 0
      %1737 = vmatpush2.bf16.msra.mxu0 0
      %1738 = vmatprep.subr.bf16.mxu0 0
      %1739 = vmatpush2.bf16.msra.mxu0 0
      %1740 = vmatprep.subr.bf16.mxu0 0
      %1741 = vmatpush2.bf16.msra.mxu0 0
      %1742 = vmatprep.subr.bf16.mxu0 0
      %1743 = vmatpush2.bf16.msra.mxu0 0
      %1744 = vmatprep.subr.bf16.mxu0 0
      %1745 = vmatpush2.bf16.msra.mxu0 0
      %1746 = vmatprep.subr.bf16.mxu0 0
      %1747 = vmatpush2.bf16.msra.mxu0 0
      %1748 = vmatprep.subr.bf16.mxu0 0
      %1749 = vmatpush2.bf16.msra.mxu0 0
      %1750 = vmatprep.mubr.bf16.mxu0 0
      %1751 = vmatmul.mubr.bf16.gmra.mxu0 %v1045
      %v1752 = vpop.f32.mrf.mxu0
      %v1753 = vadd.f32 %v321, %v1752
      %v1754 = vpop.f32.mrf.mxu0
      %v1755 = vadd.f32 %v321, %v1754
      %v1756 = vpop.f32.mrf.mxu0
      %v1757 = vpop.f32.mrf.mxu0
      %1758 = vdwg.mxu0
      %1759 = vmatprep.subr.bf16.mxu0 0
      %1760 = vmatpush1.bf16.msra.mxu0 0
      %1761 = vmatprep.subr.bf16.mxu0 0
      %1762 = vmatpush1.bf16.msra.mxu0 0
      %1763 = vmatprep.subr.bf16.mxu0 0
      %1764 = vmatpush1.bf16.msra.mxu0 0
      %1765 = vmatprep.subr.bf16.mxu0 %v1142
      %1766 = vmatpush1.bf16.msra.mxu0 %v1139
      %1767 = vmatprep.subr.bf16.mxu0 %v882
      %1768 = vmatpush1.bf16.msra.mxu0 %v881
      %1769 = vmatprep.subr.bf16.mxu0 %v850
      %1770 = vmatpush1.bf16.msra.mxu0 %v849
      %1771 = vmatprep.subr.bf16.mxu0 %v818
      %1772 = vmatpush1.bf16.msra.mxu0 %v817
      %1773 = vmatprep.subr.bf16.mxu0 %v786
      %1774 = vmatpush1.bf16.msra.mxu0 %v785
      %1775 = vmatprep.subr.bf16.mxu0 0
      %1776 = vmatpush2.bf16.msra.mxu0 0
      %1777 = vmatprep.subr.bf16.mxu0 0
      %1778 = vmatpush2.bf16.msra.mxu0 0
      %1779 = vmatprep.subr.bf16.mxu0 0
      %1780 = vmatpush2.bf16.msra.mxu0 0
      %1781 = vmatprep.subr.bf16.mxu0 0
      %1782 = vmatpush2.bf16.msra.mxu0 0
      %1783 = vmatprep.subr.bf16.mxu0 0
      %1784 = vmatpush2.bf16.msra.mxu0 0
      %1785 = vmatprep.subr.bf16.mxu0 0
      %1786 = vmatpush2.bf16.msra.mxu0 0
      %1787 = vmatprep.subr.bf16.mxu0 0
      %1788 = vmatpush2.bf16.msra.mxu0 0
      %1789 = vmatprep.subr.bf16.mxu0 0
      %1790 = vmatpush2.bf16.msra.mxu0 0
      %1791 = vmatprep.mubr.bf16.mxu0 0
      %1792 = vmatmul.mubr.bf16.gmra.mxu0 %v1045
      %v1793 = vpop.f32.mrf.mxu0
      %v1794 = vadd.f32 %v321, %v1793
      %v1795 = vpop.f32.mrf.mxu0
      %v1796 = vadd.f32 %v321, %v1795
      %v1797 = vpop.f32.mrf.mxu0
      %v1798 = vpop.f32.mrf.mxu0
      %1799 = vdwg.mxu0
      %v1800 = vmax.f32 %v1179, 0.0
      %v1801 = vmax.f32 %v1181, 0.0
      %v1802 = vmax.f32 %v1220, 0.0
      %v1803 = vmax.f32 %v1222, 0.0
      %v1804 = vmax.f32 %v1261, 0.0
      %v1805 = vmax.f32 %v1263, 0.0
      %v1806 = vmax.f32 %v1302, 0.0
      %v1807 = vmax.f32 %v1304, 0.0
      %v1808 = vmax.f32 %v1343, 0.0
      %v1809 = vmax.f32 %v1345, 0.0
      %v1810 = vmax.f32 %v1384, 0.0
      %v1811 = vmax.f32 %v1386, 0.0
      %v1812 = vmax.f32 %v1425, 0.0
      %v1813 = vmax.f32 %v1427, 0.0
      %v1814 = vmax.f32 %v1466, 0.0
      %v1815 = vmax.f32 %v1468, 0.0
      %v1816 = vmax.f32 %v1507, 0.0
      %v1817 = vmax.f32 %v1509, 0.0
      %v1818 = vmax.f32 %v1548, 0.0
      %v1819 = vmax.f32 %v1550, 0.0
      %v1820 = vmax.f32 %v1589, 0.0
      %v1821 = vmax.f32 %v1591, 0.0
      %v1822 = vmax.f32 %v1630, 0.0
      %v1823 = vmax.f32 %v1632, 0.0
      %v1824 = vmax.f32 %v1671, 0.0
      %v1825 = vmax.f32 %v1673, 0.0
      %v1826 = vmax.f32 %v1712, 0.0
      %v1827 = vmax.f32 %v1714, 0.0
      %v1828 = vmax.f32 %v1753, 0.0
      %v1829 = vmax.f32 %v1755, 0.0
      %v1830 = vmax.f32 %v1794, 0.0
      %v1831 = vmax.f32 %v1796, 0.0
      %v1832 = vpack.c.bf16 %v1800, %v1800
      %v1833 = vpack.c.bf16 %v1801, %v1801
      %v1834 = vpack.c.bf16 %v1802, %v1802
      %v1835 = vpack.c.bf16 %v1803, %v1803
      %v1836 = vpack.c.bf16 %v1804, %v1804
      %v1837 = vpack.c.bf16 %v1805, %v1805
      %v1838 = vpack.c.bf16 %v1806, %v1806
      %v1839 = vpack.c.bf16 %v1807, %v1807
      %v1840 = vpack.c.bf16 %v1808, %v1808
      %v1841 = vpack.c.bf16 %v1809, %v1809
      %v1842 = vpack.c.bf16 %v1810, %v1810
      %v1843 = vpack.c.bf16 %v1811, %v1811
      %v1844 = vpack.c.bf16 %v1812, %v1812
      %v1845 = vpack.c.bf16 %v1813, %v1813
      %v1846 = vpack.c.bf16 %v1814, %v1814
      %v1847 = vpack.c.bf16 %v1815, %v1815
      %v1848 = vpack.c.bf16 %v1816, %v1816
      %v1849 = vpack.c.bf16 %v1817, %v1817
      %v1850 = vpack.c.bf16 %v1818, %v1818
      %v1851 = vpack.c.bf16 %v1819, %v1819
      %v1852 = vpack.c.bf16 %v1820, %v1820
      %v1853 = vpack.c.bf16 %v1821, %v1821
      %v1854 = vpack.c.bf16 %v1822, %v1822
      %v1855 = vpack.c.bf16 %v1823, %v1823
      %v1856 = vpack.c.bf16 %v1824, %v1824
      %v1857 = vpack.c.bf16 %v1825, %v1825
      %v1858 = vpack.c.bf16 %v1826, %v1826
      %v1859 = vpack.c.bf16 %v1827, %v1827
      %v1860 = vpack.c.bf16 %v1828, %v1828
      %v1861 = vpack.c.bf16 %v1829, %v1829
      %v1862 = vpack.c.bf16 %v1830, %v1830
      %v1863 = vpack.c.bf16 %v1831, %v1831
      %v1872 = vunpack.c.l.b16 %v1832
      %v1873 = vunpack.c.l.b16 %v1833
      %v1874 = vunpack.c.l.b16 %v1834
      %v1875 = vunpack.c.l.b16 %v1835
      %v1876 = vunpack.c.l.b16 %v1836
      %v1877 = vunpack.c.l.b16 %v1837
      %v1878 = vunpack.c.l.b16 %v1838
      %v1879 = vunpack.c.l.b16 %v1839
      %v1880 = vpack.c.b16 %v1873, %v1872
      %v1881 = vpack.c.b16 %v1875, %v1874
      %v1882 = vpack.c.b16 %v1877, %v1876
      %v1883 = vpack.c.b16 %v1879, %v1878
      %1888 = vst [vmem:[%s170] sm:$0xff] %v1880
      %1889 = vst [vmem:[%s170 + $0x8] sm:$0xff] %v1881
      %1890 = vst [vmem:[%s170 + $0x10] sm:$0xff] %v1882
      %1891 = vst [vmem:[%s170 + $0x18] sm:$0xff] %v1883
      %v1900 = vunpack.c.l.b16 %v1840
      %v1901 = vunpack.c.l.b16 %v1841
      %v1902 = vunpack.c.l.b16 %v1842
      %v1903 = vunpack.c.l.b16 %v1843
      %v1904 = vunpack.c.l.b16 %v1844
      %v1905 = vunpack.c.l.b16 %v1845
      %v1906 = vunpack.c.l.b16 %v1846
      %v1907 = vunpack.c.l.b16 %v1847
      %v1908 = vpack.c.b16 %v1901, %v1900
      %v1909 = vpack.c.b16 %v1903, %v1902
      %v1910 = vpack.c.b16 %v1905, %v1904
      %v1911 = vpack.c.b16 %v1907, %v1906
      %s1916 = scalar_lea.vmem %s170, 32
      %1917 = vst [vmem:[%s1916] sm:$0xff] %v1908
      %1918 = vst [vmem:[%s1916 + $0x8] sm:$0xff] %v1909
      %1919 = vst [vmem:[%s1916 + $0x10] sm:$0xff] %v1910
      %1920 = vst [vmem:[%s1916 + $0x18] sm:$0xff] %v1911
      %v1929 = vunpack.c.l.b16 %v1848
      %v1930 = vunpack.c.l.b16 %v1849
      %v1931 = vunpack.c.l.b16 %v1850
      %v1932 = vunpack.c.l.b16 %v1851
      %v1933 = vunpack.c.l.b16 %v1852
      %v1934 = vunpack.c.l.b16 %v1853
      %v1935 = vunpack.c.l.b16 %v1854
      %v1936 = vunpack.c.l.b16 %v1855
      %v1937 = vpack.c.b16 %v1930, %v1929
      %v1938 = vpack.c.b16 %v1932, %v1931
      %v1939 = vpack.c.b16 %v1934, %v1933
      %v1940 = vpack.c.b16 %v1936, %v1935
      %s1945 = scalar_lea.vmem %s170, 64
      %1946 = vst [vmem:[%s1945] sm:$0xff] %v1937
      %1947 = vst [vmem:[%s1945 + $0x8] sm:$0xff] %v1938
      %1948 = vst [vmem:[%s1945 + $0x10] sm:$0xff] %v1939
      %1949 = vst [vmem:[%s1945 + $0x18] sm:$0xff] %v1940
      %v1958 = vunpack.c.l.b16 %v1856
      %v1959 = vunpack.c.l.b16 %v1857
      %v1960 = vunpack.c.l.b16 %v1858
      %v1961 = vunpack.c.l.b16 %v1859
      %v1962 = vunpack.c.l.b16 %v1860
      %v1963 = vunpack.c.l.b16 %v1861
      %v1964 = vunpack.c.l.b16 %v1862
      %v1965 = vunpack.c.l.b16 %v1863
      %v1966 = vpack.c.b16 %v1959, %v1958
      %v1967 = vpack.c.b16 %v1961, %v1960
      %v1968 = vpack.c.b16 %v1963, %v1962
      %v1969 = vpack.c.b16 %v1965, %v1964
      %s1974 = scalar_lea.vmem %s170, 96
      %1975 = vst [vmem:[%s1974] sm:$0xff] %v1966
      %1976 = vst [vmem:[%s1974 + $0x8] sm:$0xff] %v1967
      %1977 = vst [vmem:[%s1974 + $0x10] sm:$0xff] %v1968
      %1978 = vst [vmem:[%s1974 + $0x18] sm:$0xff] %v1969
      %p1979 = scmp.lt.s32.totalorder %s14, 3
      %s1980 = scalar_select %p1979, %s14, 3
      %s1981 = smul.addr %s1980, 32
      %s1982 = smul.addr %s1981, 4
      %s1983 = scalar_lea.vmem %s3, %s1982
      // Predicated region
      $region33: #{simple_cnn_forward.6} parent=31 // pred_check
        %p1984 = pneg %p100
      $region34: #{simple_cnn_forward.6} parent=31 // pred_check_branch
        %1986 = sbr.rel (%p1984) target = $region36
      $region35: #{simple_cnn_forward.6} parent=31 // pred_region
        _
      $region36: #{simple_cnn_forward.6} parent=31 // pred_fallthru
        _
    $region32: #{simple_cnn_forward.6} parent=5 // pred_fallthru
      _
    %p1987 = scmp.le.s32.totalorder 2, %s9
    // Predicated region
    $region37: #{simple_cnn_forward.6} parent=5 // pred_check
      %p1988 = pneg %p1987
    $region38: #{simple_cnn_forward.6} parent=5 // pred_check_branch
      %1990 = sbr.rel (%p1988) target = $region40
    $region39: #{simple_cnn_forward.6} parent=5 // pred_region
      %s1991 = ssub.s32 %s9, 2
      // Predicated region
      $region41: #{simple_cnn_forward.6} parent=39 // pred_check
        %p1992 = pneg %p106
      $region42: #{simple_cnn_forward.6} parent=39 // pred_check_branch
        %1994 = sbr.rel (%p1992) target = $region44
      $region43: #{simple_cnn_forward.6} parent=39 // pred_region
        %p1995 = scmp.lt.s32.totalorder %s15, 3
        %s1996 = scalar_select %p1995, %s15, 3
        %s1997 = smul.addr %s1996, 32
        %s1998 = smul.addr %s1997, 4
        %s1999 = scalar_lea.vmem %s3, %s1998
      $region44: #{simple_cnn_forward.6} parent=39 // pred_fallthru
        _
    $region40: #{simple_cnn_forward.6} parent=5 // pred_fallthru
      _
  $region6: #{simple_cnn_forward.6} parent=0 // loop_footer
    %s13 = sadd.s32 1, %s9
  $region7: #{simple_cnn_forward.6} parent=0 // loop_footer_branch
    %8 = sbr.rel target = $region3
  $region8: #{simple_cnn_forward.6} parent=0 // loop_exit
    _

// kernel: simple_cnn_forward.7
$region0: #{simple_cnn_forward.7}
  #allocation0 [shape = 'u32[]', space=smem, size = 0x4, offset = 0x4, fixed_abs, tag = 'smem constant byte address 0x4 - core index']
  #allocation1 [shape = 'u32[144,128]{1,0:T(1,128)}', space=vmem, size = 0x12000, scoped, tag = 'internal scratch']
  %s0 = inlined_call_operand.vmem [shape: bf16[4,72,1024], index: 0, kind: input, shape index: {}]
  %s1 = inlined_call_operand.vmem [shape: bf16[8,72], index: 1, kind: input, shape index: {}]
  %s2 = inlined_call_operand.vmem [shape: f32[8,1], index: 2, kind: input, shape index: {}]
  %s3 = inlined_call_operand.vmem [shape: bf16[4,4,8,256], index: 3, kind: output, shape index: {}]
  %s4 = sld [smem:[#allocation0]]
  $region45: #{simple_cnn_forward.7} parent=0
    _
  %s6 = ssub.s32 1, %s4
  %s7 = scalar_select 0, %s6, %s4
  loop: start=0, step=1, limit=6
  $region2: #{simple_cnn_forward.7} parent=0 // loop_pre_header
    _
  $region3: #{simple_cnn_forward.7} parent=0 // loop_header
    %s9 = sphi 0, %s13
    %p10 = scmp.ge.s32.totalorder %s9, 6
    %s19 = sphi 0, %s21
    %s22 = sphi 0, %s19
    %s23 = sphi 0, %s22
    %s39 = sphi 0, %s23
    %s43 = sphi 0, %s43
    %s45 = sphi 0, %s43
    %s46 = sphi 0, %s45
    %s60 = sphi 0, %s46
    %s64 = sphi 0, %s64
    %s66 = sphi 0, %s64
    %s67 = sphi 0, %s66
    %s81 = sphi 0, %s67
    %s87 = sphi 0, %s89
    %s90 = sphi 0, %s87
    %s91 = sphi 0, %s90
    %s107 = sphi 0, %s91
  $region4: #{simple_cnn_forward.7} parent=0 // loop_header_branch
    %12 = sbr.rel (%p10) target = $region8
  $region5: #{simple_cnn_forward.7} parent=0 // loop_body
    %s14 = ssub.s32 %s9, 1
    %s15 = ssub.s32 %s9, 2
    %s16 = sadd.s32 %s9, 1
    %s17 = ssub.s32 %s9, %s16
    %p18 = scmp.eq.s32.totalorder %s17, 0
    %s20 = sadd.s32 %s19, 1
    %s21 = scalar_select %p18, %s19, %s20
    %p24 = pneg %p18
    %p25 = scmp.eq.s32.totalorder %s9, 3
    %p26 = por %p24, %p25
    %p27 = scmp.ne.s32.totalorder %s19, %s22
    %p28 = scmp.eq.s32.totalorder %s9, 0
    %p29 = por %p27, %p28
    %p30 = scmp.ne.s32.totalorder %s19, %s22
    %p31 = scmp.eq.s32.totalorder %s14, 3
    %p32 = por %p30, %p31
    %p33 = scmp.ne.s32.totalorder %s22, %s23
    %p34 = scmp.eq.s32.totalorder %s14, 0
    %p35 = por %p33, %p34
    %p36 = scmp.ne.s32.totalorder %s22, %s23
    %p37 = scmp.eq.s32.totalorder %s15, 3
    %p38 = por %p36, %p37
    %p40 = scmp.ne.s32.totalorder %s23, %s39
    %p41 = scmp.eq.s32.totalorder %s15, 0
    %p42 = por %p40, %p41
    %s44 = sadd.s32 %s43, 1
    %p47 = scmp.eq.s32.totalorder %s9, 3
    %p48 = scmp.ne.s32.totalorder %s43, %s45
    %p49 = scmp.eq.s32.totalorder %s9, 0
    %p50 = por %p48, %p49
    %p51 = scmp.ne.s32.totalorder %s43, %s45
    %p52 = scmp.eq.s32.totalorder %s14, 3
    %p53 = por %p51, %p52
    %p54 = scmp.ne.s32.totalorder %s45, %s46
    %p55 = scmp.eq.s32.totalorder %s14, 0
    %p56 = por %p54, %p55
    %p57 = scmp.ne.s32.totalorder %s45, %s46
    %p58 = scmp.eq.s32.totalorder %s15, 3
    %p59 = por %p57, %p58
    %p61 = scmp.ne.s32.totalorder %s46, %s60
    %p62 = scmp.eq.s32.totalorder %s15, 0
    %p63 = por %p61, %p62
    %s65 = sadd.s32 %s64, 1
    %p68 = scmp.eq.s32.totalorder %s9, 3
    %p69 = scmp.ne.s32.totalorder %s64, %s66
    %p70 = scmp.eq.s32.totalorder %s9, 0
    %p71 = por %p69, %p70
    %p72 = scmp.ne.s32.totalorder %s64, %s66
    %p73 = scmp.eq.s32.totalorder %s14, 3
    %p74 = por %p72, %p73
    %p75 = scmp.ne.s32.totalorder %s66, %s67
    %p76 = scmp.eq.s32.totalorder %s14, 0
    %p77 = por %p75, %p76
    %p78 = scmp.ne.s32.totalorder %s66, %s67
    %p79 = scmp.eq.s32.totalorder %s15, 3
    %p80 = por %p78, %p79
    %p82 = scmp.ne.s32.totalorder %s67, %s81
    %p83 = scmp.eq.s32.totalorder %s15, 0
    %p84 = por %p82, %p83
    %s85 = ssub.s32 %s9, %s16
    %p86 = scmp.eq.s32.totalorder %s85, 0
    %s88 = sadd.s32 %s87, 1
    %s89 = scalar_select %p86, %s87, %s88
    %p92 = pneg %p86
    %p93 = scmp.eq.s32.totalorder %s9, 3
    %p94 = por %p92, %p93
    %p95 = scmp.ne.s32.totalorder %s87, %s90
    %p96 = scmp.eq.s32.totalorder %s9, 0
    %p97 = por %p95, %p96
    %p98 = scmp.ne.s32.totalorder %s87, %s90
    %p99 = scmp.eq.s32.totalorder %s14, 3
    %p100 = por %p98, %p99
    %p101 = scmp.ne.s32.totalorder %s90, %s91
    %p102 = scmp.eq.s32.totalorder %s14, 0
    %p103 = por %p101, %p102
    %p104 = scmp.ne.s32.totalorder %s90, %s91
    %p105 = scmp.eq.s32.totalorder %s15, 3
    %p106 = por %p104, %p105
    %p108 = scmp.ne.s32.totalorder %s91, %s107
    %p109 = scmp.eq.s32.totalorder %s15, 0
    %p110 = por %p108, %p109
    %p111 = scmp.le.s32.totalorder 1, %s9
    %p112 = scmp.lt.s32.totalorder %s9, 5
    %p113 = pnand %p111, %p112
    %p114 = pneg %p113
    // Predicated region
    $region9: #{simple_cnn_forward.7} parent=5 // pred_check
      _
    $region10: #{simple_cnn_forward.7} parent=5 // pred_check_branch
      %116 = sbr.rel (%p113) target = $region12
    $region11: #{simple_cnn_forward.7} parent=5 // pred_region
      %s117 = ssub.s32 %s9, 1
      // Predicated region
      $region13: #{simple_cnn_forward.7} parent=11 // pred_check
        %p118 = pneg %p56
      $region14: #{simple_cnn_forward.7} parent=11 // pred_check_branch
        %120 = sbr.rel (%p118) target = $region16
      $region15: #{simple_cnn_forward.7} parent=11 // pred_region
        _
      $region16: #{simple_cnn_forward.7} parent=11 // pred_fallthru
        _
      // Predicated region
      $region17: #{simple_cnn_forward.7} parent=11 // pred_check
        %p121 = pneg %p77
      $region18: #{simple_cnn_forward.7} parent=11 // pred_check_branch
        %123 = sbr.rel (%p121) target = $region20
      $region19: #{simple_cnn_forward.7} parent=11 // pred_region
        _
      $region20: #{simple_cnn_forward.7} parent=11 // pred_fallthru
        _
    $region12: #{simple_cnn_forward.7} parent=5 // pred_fallthru
      _
    %p124 = scmp.lt.s32.totalorder %s9, 4
    // Predicated region
    $region21: #{simple_cnn_forward.7} parent=5 // pred_check
      %p125 = pneg %p124
    $region22: #{simple_cnn_forward.7} parent=5 // pred_check_branch
      %127 = sbr.rel (%p125) target = $region24
    $region23: #{simple_cnn_forward.7} parent=5 // pred_region
      // Predicated region
      $region25: #{simple_cnn_forward.7} parent=23 // pred_check
        %p128 = pneg %p29
      $region26: #{simple_cnn_forward.7} parent=23 // pred_check_branch
        %130 = sbr.rel (%p128) target = $region28
      $region27: #{simple_cnn_forward.7} parent=23 // pred_region
        %p131 = scmp.lt.s32.totalorder %s9, 3
        %s132 = scalar_select %p131, %s9, 3
        %s133 = smul.addr %s132, 72
        %s134 = smul.addr %s133, 4
        %s135 = scalar_lea.vmem %s0, %s134
      $region28: #{simple_cnn_forward.7} parent=23 // pred_fallthru
        _
    $region24: #{simple_cnn_forward.7} parent=5 // pred_fallthru
      _
    %p136 = scmp.le.s32.totalorder 1, %s9
    %p137 = scmp.lt.s32.totalorder %s9, 5
    %p138 = pnand %p136, %p137
    %p139 = pneg %p138
    // Predicated region
    $region29: #{simple_cnn_forward.7} parent=5 // pred_check
      _
    $region30: #{simple_cnn_forward.7} parent=5 // pred_check_branch
      %141 = sbr.rel (%p138) target = $region32
    $region31: #{simple_cnn_forward.7} parent=5 // pred_region
      %s142 = ssub.s32 %s9, 1
      %p143 = scmp.lt.s32.totalorder %s14, 3
      %s144 = scalar_select %p143, %s14, 3
      %s145 = smul.addr %s144, 72
      %s146 = smul.addr %s145, 4
      %s147 = scalar_lea.vmem %s0, %s146
      %p148 = pneg %p35
      %p149 = pneg %p32
      %p150 = pneg %p56
      %p151 = pneg %p53
      %p152 = pneg %p77
      %p153 = pneg %p74
      %p154 = pneg %p103
      %p155 = pneg %p100
      %p156 = scmp.lt.s32.totalorder %s14, 3
      %s157 = scalar_select %p156, %s14, 3
      %s158 = smul.addr %s157, 8
      %s159 = smul.addr %s158, 4
      %s160 = scalar_lea.vmem %s3, %s159
      %p161 = scmp.lt.s32.totalorder %s14, 3
      %s162 = scalar_select %p161, %s14, 3
      %s163 = smul.addr %s162, 72
      %s164 = smul.addr %s163, 4
      %s165 = scalar_lea.vmem %s0, %s164
      %p166 = scmp.lt.s32.totalorder %s14, 3
      %s167 = scalar_select %p166, %s14, 3
      %s168 = smul.addr %s167, 8
      %s169 = smul.addr %s168, 4
      %s170 = scalar_lea.vmem %s3, %s169
      %v172 = vld [vmem:[%s1] sm:$0xf]
      %v173 = vld [vmem:[%s165] sm:$0xff]
      %v174 = vld [vmem:[%s165 + $0x8] sm:$0xff]
      %v175 = vld [vmem:[%s165 + $0x10] sm:$0xff]
      %v176 = vld [vmem:[%s165 + $0x18] sm:$0xff]
      %v177 = vld [vmem:[%s165 + $0x20] sm:$0xff]
      %v178 = vld [vmem:[%s165 + $0x28] sm:$0xff]
      %v179 = vld [vmem:[%s165 + $0x30] sm:$0xff]
      %v180 = vld [vmem:[%s165 + $0x38] sm:$0xff]
      %v181 = vld [vmem:[%s165 + $0x40] sm:$0xff]
      %v182 = vld [vmem:[%s165 + $0x48] sm:$0xff]
      %v183 = vld [vmem:[%s165 + $0x50] sm:$0xff]
      %v184 = vld [vmem:[%s165 + $0x58] sm:$0xff]
      %v185 = vld [vmem:[%s165 + $0x60] sm:$0xff]
      %v186 = vld [vmem:[%s165 + $0x68] sm:$0xff]
      %v187 = vld [vmem:[%s165 + $0x70] sm:$0xff]
      %v188 = vld [vmem:[%s165 + $0x78] sm:$0xff]
      %v189 = vld [vmem:[%s165 + $0x80] sm:$0xff]
      %v190 = vld [vmem:[%s165 + $0x88] sm:$0xff]
      %v191 = vld [vmem:[%s165 + $0x90] sm:$0xff]
      %v192 = vld [vmem:[%s165 + $0x98] sm:$0xff]
      %v193 = vld [vmem:[%s165 + $0xa0] sm:$0xff]
      %v194 = vld [vmem:[%s165 + $0xa8] sm:$0xff]
      %v195 = vld [vmem:[%s165 + $0xb0] sm:$0xff]
      %v196 = vld [vmem:[%s165 + $0xb8] sm:$0xff]
      %v197 = vld [vmem:[%s165 + $0xc0] sm:$0xff]
      %v198 = vld [vmem:[%s165 + $0xc8] sm:$0xff]
      %v199 = vld [vmem:[%s165 + $0xd0] sm:$0xff]
      %v200 = vld [vmem:[%s165 + $0xd8] sm:$0xff]
      %v201 = vld [vmem:[%s165 + $0xe0] sm:$0xff]
      %v202 = vld [vmem:[%s165 + $0xe8] sm:$0xff]
      %v203 = vld [vmem:[%s165 + $0xf0] sm:$0xff]
      %v204 = vld [vmem:[%s165 + $0xf8] sm:$0xff]
      %v205 = vld [vmem:[%s165 + $0x100] sm:$0xff]
      %v206 = vld [vmem:[%s165 + $0x108] sm:$0xff]
      %v207 = vld [vmem:[%s165 + $0x110] sm:$0xff]
      %v208 = vld [vmem:[%s165 + $0x118] sm:$0xff]
      %v209 = vld [vmem:[%s2] sm:$0xff]
      %211 = vset.pattern.permute.xlu0 0
      %212 = vperm.xlu0 %211, %v209
      %v213 = vpop.permute.xlu0 %212
      %v251 = vunpack.c.l.b16 %v173
      %v252 = vunpack.c.h.b16 %v173
      %v253 = vunpack.c.l.b16 %v174
      %v254 = vunpack.c.h.b16 %v174
      %v255 = vunpack.c.l.b16 %v175
      %v256 = vunpack.c.h.b16 %v175
      %v257 = vunpack.c.l.b16 %v176
      %v258 = vunpack.c.h.b16 %v176
      %v259 = vunpack.c.l.b16 %v177
      %v260 = vunpack.c.h.b16 %v177
      %v261 = vunpack.c.l.b16 %v178
      %v262 = vunpack.c.h.b16 %v178
      %v263 = vunpack.c.l.b16 %v179
      %v264 = vunpack.c.h.b16 %v179
      %v265 = vunpack.c.l.b16 %v180
      %v266 = vunpack.c.h.b16 %v180
      %v267 = vunpack.c.l.b16 %v181
      %v268 = vunpack.c.h.b16 %v181
      %v269 = vunpack.c.l.b16 %v182
      %v270 = vunpack.c.h.b16 %v182
      %v271 = vunpack.c.l.b16 %v183
      %v272 = vunpack.c.h.b16 %v183
      %v273 = vunpack.c.l.b16 %v184
      %v274 = vunpack.c.h.b16 %v184
      %v275 = vunpack.c.l.b16 %v185
      %v276 = vunpack.c.h.b16 %v185
      %v277 = vunpack.c.l.b16 %v186
      %v278 = vunpack.c.h.b16 %v186
      %v279 = vunpack.c.l.b16 %v187
      %v280 = vunpack.c.h.b16 %v187
      %v281 = vunpack.c.l.b16 %v188
      %v282 = vunpack.c.h.b16 %v188
      %v283 = vunpack.c.l.b16 %v189
      %v284 = vunpack.c.h.b16 %v189
      %v285 = vunpack.c.l.b16 %v190
      %v286 = vunpack.c.h.b16 %v190
      %v287 = vunpack.c.l.b16 %v191
      %v288 = vunpack.c.h.b16 %v191
      %v289 = vunpack.c.l.b16 %v192
      %v290 = vunpack.c.h.b16 %v192
      %v291 = vunpack.c.l.b16 %v193
      %v292 = vunpack.c.h.b16 %v193
      %v293 = vunpack.c.l.b16 %v194
      %v294 = vunpack.c.h.b16 %v194
      %v295 = vunpack.c.l.b16 %v195
      %v296 = vunpack.c.h.b16 %v195
      %v297 = vunpack.c.l.b16 %v196
      %v298 = vunpack.c.h.b16 %v196
      %v299 = vunpack.c.l.b16 %v197
      %v300 = vunpack.c.h.b16 %v197
      %v301 = vunpack.c.l.b16 %v198
      %v302 = vunpack.c.h.b16 %v198
      %v303 = vunpack.c.l.b16 %v199
      %v304 = vunpack.c.h.b16 %v199
      %v305 = vunpack.c.l.b16 %v200
      %v306 = vunpack.c.h.b16 %v200
      %v307 = vunpack.c.l.b16 %v201
      %v308 = vunpack.c.h.b16 %v201
      %v309 = vunpack.c.l.b16 %v202
      %v310 = vunpack.c.h.b16 %v202
      %v311 = vunpack.c.l.b16 %v203
      %v312 = vunpack.c.h.b16 %v203
      %v313 = vunpack.c.l.b16 %v204
      %v314 = vunpack.c.h.b16 %v204
      %v315 = vunpack.c.l.b16 %v205
      %v316 = vunpack.c.h.b16 %v205
      %v317 = vunpack.c.l.b16 %v206
      %v318 = vunpack.c.h.b16 %v206
      %v319 = vunpack.c.l.b16 %v207
      %v320 = vunpack.c.h.b16 %v207
      %v321 = vunpack.c.l.b16 %v208
      %v322 = vunpack.c.h.b16 %v208
      %v323 = vpack.c.b16 %v259, %v251
      %v324 = vpack.c.b16 %v260, %v252
      %v325 = vpack.c.b16 %v261, %v253
      %v326 = vpack.c.b16 %v262, %v254
      %v327 = vpack.c.b16 %v263, %v255
      %v328 = vpack.c.b16 %v264, %v256
      %v329 = vpack.c.b16 %v265, %v257
      %v330 = vpack.c.b16 %v266, %v258
      %v331 = vpack.c.b16 %v275, %v267
      %v332 = vpack.c.b16 %v276, %v268
      %v333 = vpack.c.b16 %v277, %v269
      %v334 = vpack.c.b16 %v278, %v270
      %v335 = vpack.c.b16 %v279, %v271
      %v336 = vpack.c.b16 %v280, %v272
      %v337 = vpack.c.b16 %v281, %v273
      %v338 = vpack.c.b16 %v282, %v274
      %v339 = vpack.c.b16 %v291, %v283
      %v340 = vpack.c.b16 %v292, %v284
      %v341 = vpack.c.b16 %v293, %v285
      %v342 = vpack.c.b16 %v294, %v286
      %v343 = vpack.c.b16 %v295, %v287
      %v344 = vpack.c.b16 %v296, %v288
      %v345 = vpack.c.b16 %v297, %v289
      %v346 = vpack.c.b16 %v298, %v290
      %v347 = vpack.c.b16 %v307, %v299
      %v348 = vpack.c.b16 %v308, %v300
      %v349 = vpack.c.b16 %v309, %v301
      %v350 = vpack.c.b16 %v310, %v302
      %v351 = vpack.c.b16 %v311, %v303
      %v352 = vpack.c.b16 %v312, %v304
      %v353 = vpack.c.b16 %v313, %v305
      %v354 = vpack.c.b16 %v314, %v306
      %v355 = vpack.c.b16 %v315, %v315
      %v356 = vpack.c.b16 %v316, %v316
      %v357 = vpack.c.b16 %v317, %v317
      %v358 = vpack.c.b16 %v318, %v318
      %v359 = vpack.c.b16 %v319, %v319
      %v360 = vpack.c.b16 %v320, %v320
      %v361 = vpack.c.b16 %v321, %v321
      %v362 = vpack.c.b16 %v322, %v322
      %vm395 = vcmask 588800
      %v397 = vsel %vm395, %v172, 0
      %vm399 = vcmask 1043456
      %v401 = vsel %vm399, %v355, 0
      %v404 = vsel %vm399, %v356, 0
      %v407 = vsel %vm399, %v357, 0
      %v410 = vsel %vm399, %v358, 0
      %v413 = vsel %vm399, %v359, 0
      %v416 = vsel %vm399, %v360, 0
      %v419 = vsel %vm399, %v361, 0
      %v422 = vsel %vm399, %v362, 0
      %424 = vmatprep.subr.bf16.mxu0 0
      %425 = vmatpush1.bf16.msra.mxu0 0
      %426 = vmatprep.subr.bf16.mxu0 0
      %427 = vmatpush1.bf16.msra.mxu0 0
      %428 = vmatprep.subr.bf16.mxu0 0
      %429 = vmatpush1.bf16.msra.mxu0 0
      %430 = vmatprep.subr.bf16.mxu0 %v404
      %431 = vmatpush1.bf16.msra.mxu0 %v401
      %432 = vmatprep.subr.bf16.mxu0 %v348
      %433 = vmatpush1.bf16.msra.mxu0 %v347
      %434 = vmatprep.subr.bf16.mxu0 %v340
      %435 = vmatpush1.bf16.msra.mxu0 %v339
      %436 = vmatprep.subr.bf16.mxu0 %v332
      %437 = vmatpush1.bf16.msra.mxu0 %v331
      %438 = vmatprep.subr.bf16.mxu0 %v324
      %439 = vmatpush1.bf16.msra.mxu0 %v323
      %440 = vmatprep.subr.bf16.mxu0 0
      %441 = vmatpush2.bf16.msra.mxu0 0
      %442 = vmatprep.subr.bf16.mxu0 0
      %443 = vmatpush2.bf16.msra.mxu0 0
      %444 = vmatprep.subr.bf16.mxu0 0
      %445 = vmatpush2.bf16.msra.mxu0 0
      %446 = vmatprep.subr.bf16.mxu0 0
      %447 = vmatpush2.bf16.msra.mxu0 0
      %448 = vmatprep.subr.bf16.mxu0 0
      %449 = vmatpush2.bf16.msra.mxu0 0
      %450 = vmatprep.subr.bf16.mxu0 0
      %451 = vmatpush2.bf16.msra.mxu0 0
      %452 = vmatprep.subr.bf16.mxu0 0
      %453 = vmatpush2.bf16.msra.mxu0 0
      %454 = vmatprep.subr.bf16.mxu0 0
      %455 = vmatpush2.bf16.msra.mxu0 0
      %456 = vmatprep.mubr.bf16.mxu0 0
      %457 = vmatmul.mubr.bf16.gmra.mxu0 %v397
      %v458 = vpop.f32.mrf.mxu0
      %v459 = vadd.f32 %v213, %v458
      %v460 = vpop.f32.mrf.mxu0
      %v461 = vadd.f32 %v213, %v460
      %v462 = vpop.f32.mrf.mxu0
      %v463 = vpop.f32.mrf.mxu0
      %464 = vdwg.mxu0
      %465 = vmatprep.subr.bf16.mxu0 0
      %466 = vmatpush1.bf16.msra.mxu0 0
      %467 = vmatprep.subr.bf16.mxu0 0
      %468 = vmatpush1.bf16.msra.mxu0 0
      %469 = vmatprep.subr.bf16.mxu0 0
      %470 = vmatpush1.bf16.msra.mxu0 0
      %471 = vmatprep.subr.bf16.mxu0 %v410
      %472 = vmatpush1.bf16.msra.mxu0 %v407
      %473 = vmatprep.subr.bf16.mxu0 %v350
      %474 = vmatpush1.bf16.msra.mxu0 %v349
      %475 = vmatprep.subr.bf16.mxu0 %v342
      %476 = vmatpush1.bf16.msra.mxu0 %v341
      %477 = vmatprep.subr.bf16.mxu0 %v334
      %478 = vmatpush1.bf16.msra.mxu0 %v333
      %479 = vmatprep.subr.bf16.mxu0 %v326
      %480 = vmatpush1.bf16.msra.mxu0 %v325
      %481 = vmatprep.subr.bf16.mxu0 0
      %482 = vmatpush2.bf16.msra.mxu0 0
      %483 = vmatprep.subr.bf16.mxu0 0
      %484 = vmatpush2.bf16.msra.mxu0 0
      %485 = vmatprep.subr.bf16.mxu0 0
      %486 = vmatpush2.bf16.msra.mxu0 0
      %487 = vmatprep.subr.bf16.mxu0 0
      %488 = vmatpush2.bf16.msra.mxu0 0
      %489 = vmatprep.subr.bf16.mxu0 0
      %490 = vmatpush2.bf16.msra.mxu0 0
      %491 = vmatprep.subr.bf16.mxu0 0
      %492 = vmatpush2.bf16.msra.mxu0 0
      %493 = vmatprep.subr.bf16.mxu0 0
      %494 = vmatpush2.bf16.msra.mxu0 0
      %495 = vmatprep.subr.bf16.mxu0 0
      %496 = vmatpush2.bf16.msra.mxu0 0
      %497 = vmatprep.mubr.bf16.mxu0 0
      %498 = vmatmul.mubr.bf16.gmra.mxu0 %v397
      %v499 = vpop.f32.mrf.mxu0
      %v500 = vadd.f32 %v213, %v499
      %v501 = vpop.f32.mrf.mxu0
      %v502 = vadd.f32 %v213, %v501
      %v503 = vpop.f32.mrf.mxu0
      %v504 = vpop.f32.mrf.mxu0
      %505 = vdwg.mxu0
      %506 = vmatprep.subr.bf16.mxu0 0
      %507 = vmatpush1.bf16.msra.mxu0 0
      %508 = vmatprep.subr.bf16.mxu0 0
      %509 = vmatpush1.bf16.msra.mxu0 0
      %510 = vmatprep.subr.bf16.mxu0 0
      %511 = vmatpush1.bf16.msra.mxu0 0
      %512 = vmatprep.subr.bf16.mxu0 %v416
      %513 = vmatpush1.bf16.msra.mxu0 %v413
      %514 = vmatprep.subr.bf16.mxu0 %v352
      %515 = vmatpush1.bf16.msra.mxu0 %v351
      %516 = vmatprep.subr.bf16.mxu0 %v344
      %517 = vmatpush1.bf16.msra.mxu0 %v343
      %518 = vmatprep.subr.bf16.mxu0 %v336
      %519 = vmatpush1.bf16.msra.mxu0 %v335
      %520 = vmatprep.subr.bf16.mxu0 %v328
      %521 = vmatpush1.bf16.msra.mxu0 %v327
      %522 = vmatprep.subr.bf16.mxu0 0
      %523 = vmatpush2.bf16.msra.mxu0 0
      %524 = vmatprep.subr.bf16.mxu0 0
      %525 = vmatpush2.bf16.msra.mxu0 0
      %526 = vmatprep.subr.bf16.mxu0 0
      %527 = vmatpush2.bf16.msra.mxu0 0
      %528 = vmatprep.subr.bf16.mxu0 0
      %529 = vmatpush2.bf16.msra.mxu0 0
      %530 = vmatprep.subr.bf16.mxu0 0
      %531 = vmatpush2.bf16.msra.mxu0 0
      %532 = vmatprep.subr.bf16.mxu0 0
      %533 = vmatpush2.bf16.msra.mxu0 0
      %534 = vmatprep.subr.bf16.mxu0 0
      %535 = vmatpush2.bf16.msra.mxu0 0
      %536 = vmatprep.subr.bf16.mxu0 0
      %537 = vmatpush2.bf16.msra.mxu0 0
      %538 = vmatprep.mubr.bf16.mxu0 0
      %539 = vmatmul.mubr.bf16.gmra.mxu0 %v397
      %v540 = vpop.f32.mrf.mxu0
      %v541 = vadd.f32 %v213, %v540
      %v542 = vpop.f32.mrf.mxu0
      %v543 = vadd.f32 %v213, %v542
      %v544 = vpop.f32.mrf.mxu0
      %v545 = vpop.f32.mrf.mxu0
      %546 = vdwg.mxu0
      %547 = vmatprep.subr.bf16.mxu0 0
      %548 = vmatpush1.bf16.msra.mxu0 0
      %549 = vmatprep.subr.bf16.mxu0 0
      %550 = vmatpush1.bf16.msra.mxu0 0
      %551 = vmatprep.subr.bf16.mxu0 0
      %552 = vmatpush1.bf16.msra.mxu0 0
      %553 = vmatprep.subr.bf16.mxu0 %v422
      %554 = vmatpush1.bf16.msra.mxu0 %v419
      %555 = vmatprep.subr.bf16.mxu0 %v354
      %556 = vmatpush1.bf16.msra.mxu0 %v353
      %557 = vmatprep.subr.bf16.mxu0 %v346
      %558 = vmatpush1.bf16.msra.mxu0 %v345
      %559 = vmatprep.subr.bf16.mxu0 %v338
      %560 = vmatpush1.bf16.msra.mxu0 %v337
      %561 = vmatprep.subr.bf16.mxu0 %v330
      %562 = vmatpush1.bf16.msra.mxu0 %v329
      %563 = vmatprep.subr.bf16.mxu0 0
      %564 = vmatpush2.bf16.msra.mxu0 0
      %565 = vmatprep.subr.bf16.mxu0 0
      %566 = vmatpush2.bf16.msra.mxu0 0
      %567 = vmatprep.subr.bf16.mxu0 0
      %568 = vmatpush2.bf16.msra.mxu0 0
      %569 = vmatprep.subr.bf16.mxu0 0
      %570 = vmatpush2.bf16.msra.mxu0 0
      %571 = vmatprep.subr.bf16.mxu0 0
      %572 = vmatpush2.bf16.msra.mxu0 0
      %573 = vmatprep.subr.bf16.mxu0 0
      %574 = vmatpush2.bf16.msra.mxu0 0
      %575 = vmatprep.subr.bf16.mxu0 0
      %576 = vmatpush2.bf16.msra.mxu0 0
      %577 = vmatprep.subr.bf16.mxu0 0
      %578 = vmatpush2.bf16.msra.mxu0 0
      %579 = vmatprep.mubr.bf16.mxu0 0
      %580 = vmatmul.mubr.bf16.gmra.mxu0 %v397
      %v581 = vpop.f32.mrf.mxu0
      %v582 = vadd.f32 %v213, %v581
      %v583 = vpop.f32.mrf.mxu0
      %v584 = vadd.f32 %v213, %v583
      %v585 = vpop.f32.mrf.mxu0
      %v586 = vpop.f32.mrf.mxu0
      %587 = vdwg.mxu0
      %v588 = vmax.f32 %v459, 0.0
      %v589 = vmax.f32 %v461, 0.0
      %v590 = vmax.f32 %v500, 0.0
      %v591 = vmax.f32 %v502, 0.0
      %v592 = vmax.f32 %v541, 0.0
      %v593 = vmax.f32 %v543, 0.0
      %v594 = vmax.f32 %v582, 0.0
      %v595 = vmax.f32 %v584, 0.0
      %v596 = vpack.c.bf16 %v588, %v588
      %v597 = vpack.c.bf16 %v589, %v589
      %v598 = vpack.c.bf16 %v590, %v590
      %v599 = vpack.c.bf16 %v591, %v591
      %v600 = vpack.c.bf16 %v592, %v592
      %v601 = vpack.c.bf16 %v593, %v593
      %v602 = vpack.c.bf16 %v594, %v594
      %v603 = vpack.c.bf16 %v595, %v595
      %v606 = vunpack.c.l.b16 %v596
      %v607 = vunpack.c.l.b16 %v597
      %v608 = vpack.c.b16 %v607, %v606
      %610 = vst [vmem:[%s170] sm:$0xff] %v608
      %v613 = vunpack.c.l.b16 %v598
      %v614 = vunpack.c.l.b16 %v599
      %v615 = vpack.c.b16 %v614, %v613
      %s617 = scalar_lea.vmem %s170, 8
      %618 = vst [vmem:[%s617] sm:$0xff] %v615
      %v621 = vunpack.c.l.b16 %v600
      %v622 = vunpack.c.l.b16 %v601
      %v623 = vpack.c.b16 %v622, %v621
      %s625 = scalar_lea.vmem %s170, 16
      %626 = vst [vmem:[%s625] sm:$0xff] %v623
      %v629 = vunpack.c.l.b16 %v602
      %v630 = vunpack.c.l.b16 %v603
      %v631 = vpack.c.b16 %v630, %v629
      %s633 = scalar_lea.vmem %s170, 24
      %634 = vst [vmem:[%s633] sm:$0xff] %v631
      %p635 = scmp.lt.s32.totalorder %s14, 3
      %s636 = scalar_select %p635, %s14, 3
      %s637 = smul.addr %s636, 8
      %s638 = smul.addr %s637, 4
      %s639 = scalar_lea.vmem %s3, %s638
      // Predicated region
      $region33: #{simple_cnn_forward.7} parent=31 // pred_check
        %p640 = pneg %p100
      $region34: #{simple_cnn_forward.7} parent=31 // pred_check_branch
        %642 = sbr.rel (%p640) target = $region36
      $region35: #{simple_cnn_forward.7} parent=31 // pred_region
        _
      $region36: #{simple_cnn_forward.7} parent=31 // pred_fallthru
        _
    $region32: #{simple_cnn_forward.7} parent=5 // pred_fallthru
      _
    %p643 = scmp.le.s32.totalorder 2, %s9
    // Predicated region
    $region37: #{simple_cnn_forward.7} parent=5 // pred_check
      %p644 = pneg %p643
    $region38: #{simple_cnn_forward.7} parent=5 // pred_check_branch
      %646 = sbr.rel (%p644) target = $region40
    $region39: #{simple_cnn_forward.7} parent=5 // pred_region
      %s647 = ssub.s32 %s9, 2
      // Predicated region
      $region41: #{simple_cnn_forward.7} parent=39 // pred_check
        %p648 = pneg %p106
      $region42: #{simple_cnn_forward.7} parent=39 // pred_check_branch
        %650 = sbr.rel (%p648) target = $region44
      $region43: #{simple_cnn_forward.7} parent=39 // pred_region
        %p651 = scmp.lt.s32.totalorder %s15, 3
        %s652 = scalar_select %p651, %s15, 3
        %s653 = smul.addr %s652, 8
        %s654 = smul.addr %s653, 4
        %s655 = scalar_lea.vmem %s3, %s654
      $region44: #{simple_cnn_forward.7} parent=39 // pred_fallthru
        _
    $region40: #{simple_cnn_forward.7} parent=5 // pred_fallthru
      _
  $region6: #{simple_cnn_forward.7} parent=0 // loop_footer
    %s13 = sadd.s32 1, %s9
  $region7: #{simple_cnn_forward.7} parent=0 // loop_footer_branch
    %8 = sbr.rel target = $region3
  $region8: #{simple_cnn_forward.7} parent=0 // loop_exit
    _

// kernel: simple_cnn_forward.9
$region0: #{simple_cnn_forward.9}
  #allocation0 [shape = 'u32[]', space=smem, size = 0x4, offset = 0x4, fixed_abs, tag = 'smem constant byte address 0x4 - core index']
  #allocation1 [shape = 'u32[144,128]{1,0:T(1,128)}', space=vmem, size = 0x12000, scoped, tag = 'internal scratch']
  %s0 = inlined_call_operand.vmem [shape: bf16[2,10816], index: 0, kind: input, shape index: {}]
  %s1 = inlined_call_operand.vmem [shape: bf16[56,10816], index: 1, kind: input, shape index: {}]
  %s2 = inlined_call_operand.vmem [shape: f32[1,56], index: 2, kind: input, shape index: {}]
  %s3 = inlined_call_operand.vmem [shape: f32[28,56], index: 3, kind: input, shape index: {}]
  %s4 = inlined_call_operand.vmem [shape: f32[1,28], index: 4, kind: input, shape index: {}]
  %s5 = inlined_call_operand.vmem [shape: f32[28,28], index: 5, kind: input, shape index: {}]
  %s6 = inlined_call_operand.vmem [shape: f32[1,28], index: 6, kind: input, shape index: {}]
  %s7 = inlined_call_operand.vmem [shape: f32[38,28], index: 7, kind: input, shape index: {}]
  %s8 = inlined_call_operand.vmem [shape: f32[1,38], index: 8, kind: input, shape index: {}]
  %s9 = inlined_call_operand.vmem [shape: f32[2,38], index: 9, kind: output, shape index: {}]
  %s10 = sld [smem:[#allocation0]]
  $region46: #{simple_cnn_forward.9} parent=0
    _
  %s12 = ssub.s32 1, %s10
  %s13 = scalar_select 0, %s12, %s10
  // Predicated region
  $region2: #{simple_cnn_forward.9} parent=0 // pred_check
    _
  $region3: #{simple_cnn_forward.9} parent=0 // pred_check_branch
    %15 = sbr.rel (0) target = $region5
  $region4: #{simple_cnn_forward.9} parent=0 // pred_region
    _
  $region5: #{simple_cnn_forward.9} parent=0 // pred_fallthru
    _
  // Predicated region
  $region6: #{simple_cnn_forward.9} parent=0 // pred_check
    _
  $region7: #{simple_cnn_forward.9} parent=0 // pred_check_branch
    %17 = sbr.rel (0) target = $region9
  $region8: #{simple_cnn_forward.9} parent=0 // pred_region
    _
  $region9: #{simple_cnn_forward.9} parent=0 // pred_fallthru
    _
  // Predicated region
  $region10: #{simple_cnn_forward.9} parent=0 // pred_check
    _
  $region11: #{simple_cnn_forward.9} parent=0 // pred_check_branch
    %19 = sbr.rel (0) target = $region13
  $region12: #{simple_cnn_forward.9} parent=0 // pred_region
    _
  $region13: #{simple_cnn_forward.9} parent=0 // pred_fallthru
    _
  // Predicated region
  $region14: #{simple_cnn_forward.9} parent=0 // pred_check
    _
  $region15: #{simple_cnn_forward.9} parent=0 // pred_check_branch
    %21 = sbr.rel (0) target = $region17
  $region16: #{simple_cnn_forward.9} parent=0 // pred_region
    _
  $region17: #{simple_cnn_forward.9} parent=0 // pred_fallthru
    _
  // Predicated region
  $region18: #{simple_cnn_forward.9} parent=0 // pred_check
    _
  $region19: #{simple_cnn_forward.9} parent=0 // pred_check_branch
    %23 = sbr.rel (0) target = $region21
  $region20: #{simple_cnn_forward.9} parent=0 // pred_region
    _
  $region21: #{simple_cnn_forward.9} parent=0 // pred_fallthru
    _
  // Predicated region
  $region22: #{simple_cnn_forward.9} parent=0 // pred_check
    _
  $region23: #{simple_cnn_forward.9} parent=0 // pred_check_branch
    %25 = sbr.rel (0) target = $region25
  $region24: #{simple_cnn_forward.9} parent=0 // pred_region
    _
  $region25: #{simple_cnn_forward.9} parent=0 // pred_fallthru
    _
  // Predicated region
  $region26: #{simple_cnn_forward.9} parent=0 // pred_check
    _
  $region27: #{simple_cnn_forward.9} parent=0 // pred_check_branch
    %27 = sbr.rel (0) target = $region29
  $region28: #{simple_cnn_forward.9} parent=0 // pred_region
    _
  $region29: #{simple_cnn_forward.9} parent=0 // pred_fallthru
    _
  // Predicated region
  $region30: #{simple_cnn_forward.9} parent=0 // pred_check
    _
  $region31: #{simple_cnn_forward.9} parent=0 // pred_check_branch
    %29 = sbr.rel (0) target = $region33
  $region32: #{simple_cnn_forward.9} parent=0 // pred_region
    _
  $region33: #{simple_cnn_forward.9} parent=0 // pred_fallthru
    _
  // Predicated region
  $region34: #{simple_cnn_forward.9} parent=0 // pred_check
    _
  $region35: #{simple_cnn_forward.9} parent=0 // pred_check_branch
    %31 = sbr.rel (0) target = $region37
  $region36: #{simple_cnn_forward.9} parent=0 // pred_region
    _
  $region37: #{simple_cnn_forward.9} parent=0 // pred_fallthru
    _
  %v33 = vld [vmem:[%s0] sm:$0xff]
  %v34 = vld [vmem:[%s0 + $0x8] sm:$0xff]
  %v35 = vld [vmem:[%s0 + $0x10] sm:$0xff]
  %v36 = vld [vmem:[%s0 + $0x18] sm:$0xff]
  %v37 = vld [vmem:[%s0 + $0x20] sm:$0xff]
  %v38 = vld [vmem:[%s0 + $0x28] sm:$0xff]
  %v39 = vld [vmem:[%s0 + $0x30] sm:$0xff]
  %v40 = vld [vmem:[%s0 + $0x38] sm:$0xff]
  %v41 = vld [vmem:[%s0 + $0x40] sm:$0xff]
  %v42 = vld [vmem:[%s0 + $0x48] sm:$0xff]
  %v43 = vld [vmem:[%s0 + $0x50] sm:$0x1f]
  %v44 = vld [vmem:[%s1] sm:$0xff]
  %v45 = vld [vmem:[%s1 + $0x8] sm:$0xff]
  %v46 = vld [vmem:[%s1 + $0x10] sm:$0xff]
  %v47 = vld [vmem:[%s1 + $0x18] sm:$0xff]
  %v48 = vld [vmem:[%s1 + $0x20] sm:$0xff]
  %v49 = vld [vmem:[%s1 + $0x28] sm:$0xff]
  %v50 = vld [vmem:[%s1 + $0x30] sm:$0xff]
  %v51 = vld [vmem:[%s1 + $0x38] sm:$0xff]
  %v52 = vld [vmem:[%s1 + $0x40] sm:$0xff]
  %v53 = vld [vmem:[%s1 + $0x48] sm:$0xff]
  %v54 = vld [vmem:[%s1 + $0x50] sm:$0xff]
  %v55 = vld [vmem:[%s1 + $0x58] sm:$0xff]
  %v56 = vld [vmem:[%s1 + $0x60] sm:$0xff]
  %v57 = vld [vmem:[%s1 + $0x68] sm:$0xff]
  %v58 = vld [vmem:[%s1 + $0x70] sm:$0xff]
  %v59 = vld [vmem:[%s1 + $0x78] sm:$0xff]
  %v60 = vld [vmem:[%s1 + $0x80] sm:$0xff]
  %v61 = vld [vmem:[%s1 + $0x88] sm:$0xff]
  %v62 = vld [vmem:[%s1 + $0x90] sm:$0xff]
  %v63 = vld [vmem:[%s1 + $0x98] sm:$0xff]
  %v64 = vld [vmem:[%s1 + $0xa0] sm:$0xff]
  %v65 = vld [vmem:[%s1 + $0xa8] sm:$0xff]
  %v66 = vld [vmem:[%s1 + $0xb0] sm:$0xff]
  %v67 = vld [vmem:[%s1 + $0xb8] sm:$0xff]
  %v68 = vld [vmem:[%s1 + $0xc0] sm:$0xff]
  %v69 = vld [vmem:[%s1 + $0xc8] sm:$0xff]
  %v70 = vld [vmem:[%s1 + $0xd0] sm:$0xff]
  %v71 = vld [vmem:[%s1 + $0xd8] sm:$0xff]
  %v72 = vld [vmem:[%s1 + $0xe0] sm:$0xff]
  %v73 = vld [vmem:[%s1 + $0xe8] sm:$0xff]
  %v74 = vld [vmem:[%s1 + $0xf0] sm:$0xff]
  %v75 = vld [vmem:[%s1 + $0xf8] sm:$0xff]
  %v76 = vld [vmem:[%s1 + $0x100] sm:$0xff]
  %v77 = vld [vmem:[%s1 + $0x108] sm:$0xff]
  %v78 = vld [vmem:[%s1 + $0x110] sm:$0xff]
  %v79 = vld [vmem:[%s1 + $0x118] sm:$0xff]
  %v80 = vld [vmem:[%s1 + $0x120] sm:$0xff]
  %v81 = vld [vmem:[%s1 + $0x128] sm:$0xff]
  %v82 = vld [vmem:[%s1 + $0x130] sm:$0xff]
  %v83 = vld [vmem:[%s1 + $0x138] sm:$0xff]
  %v84 = vld [vmem:[%s1 + $0x140] sm:$0xff]
  %v85 = vld [vmem:[%s1 + $0x148] sm:$0xff]
  %v86 = vld [vmem:[%s1 + $0x150] sm:$0xf]
  %v87 = vld [vmem:[%s1 + $0x154] sm:$0xff]
  %v88 = vld [vmem:[%s1 + $0x15c] sm:$0xff]
  %v89 = vld [vmem:[%s1 + $0x164] sm:$0xff]
  %v90 = vld [vmem:[%s1 + $0x16c] sm:$0xff]
  %v91 = vld [vmem:[%s1 + $0x174] sm:$0xff]
  %v92 = vld [vmem:[%s1 + $0x17c] sm:$0xff]
  %v93 = vld [vmem:[%s1 + $0x184] sm:$0xff]
  %v94 = vld [vmem:[%s1 + $0x18c] sm:$0xff]
  %v95 = vld [vmem:[%s1 + $0x194] sm:$0xff]
  %v96 = vld [vmem:[%s1 + $0x19c] sm:$0xff]
  %v97 = vld [vmem:[%s1 + $0x1a4] sm:$0xff]
  %v98 = vld [vmem:[%s1 + $0x1ac] sm:$0xff]
  %v99 = vld [vmem:[%s1 + $0x1b4] sm:$0xff]
  %v100 = vld [vmem:[%s1 + $0x1bc] sm:$0xff]
  %v101 = vld [vmem:[%s1 + $0x1c4] sm:$0xff]
  %v102 = vld [vmem:[%s1 + $0x1cc] sm:$0xff]
  %v103 = vld [vmem:[%s1 + $0x1d4] sm:$0xff]
  %v104 = vld [vmem:[%s1 + $0x1dc] sm:$0xff]
  %v105 = vld [vmem:[%s1 + $0x1e4] sm:$0xff]
  %v106 = vld [vmem:[%s1 + $0x1ec] sm:$0xff]
  %v107 = vld [vmem:[%s1 + $0x1f4] sm:$0xff]
  %v108 = vld [vmem:[%s1 + $0x1fc] sm:$0xff]
  %v109 = vld [vmem:[%s1 + $0x204] sm:$0xff]
  %v110 = vld [vmem:[%s1 + $0x20c] sm:$0xff]
  %v111 = vld [vmem:[%s1 + $0x214] sm:$0xff]
  %v112 = vld [vmem:[%s1 + $0x21c] sm:$0xff]
  %v113 = vld [vmem:[%s1 + $0x224] sm:$0xff]
  %v114 = vld [vmem:[%s1 + $0x22c] sm:$0xff]
  %v115 = vld [vmem:[%s1 + $0x234] sm:$0xff]
  %v116 = vld [vmem:[%s1 + $0x23c] sm:$0xff]
  %v117 = vld [vmem:[%s1 + $0x244] sm:$0xff]
  %v118 = vld [vmem:[%s1 + $0x24c] sm:$0xff]
  %v119 = vld [vmem:[%s1 + $0x254] sm:$0xff]
  %v120 = vld [vmem:[%s1 + $0x25c] sm:$0xff]
  %v121 = vld [vmem:[%s1 + $0x264] sm:$0xff]
  %v122 = vld [vmem:[%s1 + $0x26c] sm:$0xff]
  %v123 = vld [vmem:[%s1 + $0x274] sm:$0xff]
  %v124 = vld [vmem:[%s1 + $0x27c] sm:$0xff]
  %v125 = vld [vmem:[%s1 + $0x284] sm:$0xff]
  %v126 = vld [vmem:[%s1 + $0x28c] sm:$0xff]
  %v127 = vld [vmem:[%s1 + $0x294] sm:$0xff]
  %v128 = vld [vmem:[%s1 + $0x29c] sm:$0xff]
  %v129 = vld [vmem:[%s1 + $0x2a4] sm:$0xf]
  %v130 = vld [vmem:[%s1 + $0x2a8] sm:$0xff]
  %v131 = vld [vmem:[%s1 + $0x2b0] sm:$0xff]
  %v132 = vld [vmem:[%s1 + $0x2b8] sm:$0xff]
  %v133 = vld [vmem:[%s1 + $0x2c0] sm:$0xff]
  %v134 = vld [vmem:[%s1 + $0x2c8] sm:$0xff]
  %v135 = vld [vmem:[%s1 + $0x2d0] sm:$0xff]
  %v136 = vld [vmem:[%s1 + $0x2d8] sm:$0xff]
  %v137 = vld [vmem:[%s1 + $0x2e0] sm:$0xff]
  %v138 = vld [vmem:[%s1 + $0x2e8] sm:$0xff]
  %v139 = vld [vmem:[%s1 + $0x2f0] sm:$0xff]
  %v140 = vld [vmem:[%s1 + $0x2f8] sm:$0xff]
  %v141 = vld [vmem:[%s1 + $0x300] sm:$0xff]
  %v142 = vld [vmem:[%s1 + $0x308] sm:$0xff]
  %v143 = vld [vmem:[%s1 + $0x310] sm:$0xff]
  %v144 = vld [vmem:[%s1 + $0x318] sm:$0xff]
  %v145 = vld [vmem:[%s1 + $0x320] sm:$0xff]
  %v146 = vld [vmem:[%s1 + $0x328] sm:$0xff]
  %v147 = vld [vmem:[%s1 + $0x330] sm:$0xff]
  %v148 = vld [vmem:[%s1 + $0x338] sm:$0xff]
  %v149 = vld [vmem:[%s1 + $0x340] sm:$0xff]
  %v150 = vld [vmem:[%s1 + $0x348] sm:$0xff]
  %v151 = vld [vmem:[%s1 + $0x350] sm:$0xff]
  %v152 = vld [vmem:[%s1 + $0x358] sm:$0xff]
  %v153 = vld [vmem:[%s1 + $0x360] sm:$0xff]
  %v154 = vld [vmem:[%s1 + $0x368] sm:$0xff]
  %v155 = vld [vmem:[%s1 + $0x370] sm:$0xff]
  %v156 = vld [vmem:[%s1 + $0x378] sm:$0xff]
  %v157 = vld [vmem:[%s1 + $0x380] sm:$0xff]
  %v158 = vld [vmem:[%s1 + $0x388] sm:$0xff]
  %v159 = vld [vmem:[%s1 + $0x390] sm:$0xff]
  %v160 = vld [vmem:[%s1 + $0x398] sm:$0xff]
  %v161 = vld [vmem:[%s1 + $0x3a0] sm:$0xff]
  %v162 = vld [vmem:[%s1 + $0x3a8] sm:$0xff]
  %v163 = vld [vmem:[%s1 + $0x3b0] sm:$0xff]
  %v164 = vld [vmem:[%s1 + $0x3b8] sm:$0xff]
  %v165 = vld [vmem:[%s1 + $0x3c0] sm:$0xff]
  %v166 = vld [vmem:[%s1 + $0x3c8] sm:$0xff]
  %v167 = vld [vmem:[%s1 + $0x3d0] sm:$0xff]
  %v168 = vld [vmem:[%s1 + $0x3d8] sm:$0xff]
  %v169 = vld [vmem:[%s1 + $0x3e0] sm:$0xff]
  %v170 = vld [vmem:[%s1 + $0x3e8] sm:$0xff]
  %v171 = vld [vmem:[%s1 + $0x3f0] sm:$0xff]
  %v172 = vld [vmem:[%s1 + $0x3f8] sm:$0xf]
  %v173 = vld [vmem:[%s1 + $0x3fc] sm:$0xff]
  %v174 = vld [vmem:[%s1 + $0x404] sm:$0xff]
  %v175 = vld [vmem:[%s1 + $0x40c] sm:$0xff]
  %v176 = vld [vmem:[%s1 + $0x414] sm:$0xff]
  %v177 = vld [vmem:[%s1 + $0x41c] sm:$0xff]
  %v178 = vld [vmem:[%s1 + $0x424] sm:$0xff]
  %v179 = vld [vmem:[%s1 + $0x42c] sm:$0xff]
  %v180 = vld [vmem:[%s1 + $0x434] sm:$0xff]
  %v181 = vld [vmem:[%s1 + $0x43c] sm:$0xff]
  %v182 = vld [vmem:[%s1 + $0x444] sm:$0xff]
  %v183 = vld [vmem:[%s1 + $0x44c] sm:$0xff]
  %v184 = vld [vmem:[%s1 + $0x454] sm:$0xff]
  %v185 = vld [vmem:[%s1 + $0x45c] sm:$0xff]
  %v186 = vld [vmem:[%s1 + $0x464] sm:$0xff]
  %v187 = vld [vmem:[%s1 + $0x46c] sm:$0xff]
  %v188 = vld [vmem:[%s1 + $0x474] sm:$0xff]
  %v189 = vld [vmem:[%s1 + $0x47c] sm:$0xff]
  %v190 = vld [vmem:[%s1 + $0x484] sm:$0xff]
  %v191 = vld [vmem:[%s1 + $0x48c] sm:$0xff]
  %v192 = vld [vmem:[%s1 + $0x494] sm:$0xff]
  %v193 = vld [vmem:[%s1 + $0x49c] sm:$0xff]
  %v194 = vld [vmem:[%s1 + $0x4a4] sm:$0xff]
  %v195 = vld [vmem:[%s1 + $0x4ac] sm:$0xff]
  %v196 = vld [vmem:[%s1 + $0x4b4] sm:$0xff]
  %v197 = vld [vmem:[%s1 + $0x4bc] sm:$0xff]
  %v198 = vld [vmem:[%s1 + $0x4c4] sm:$0xff]
  %v199 = vld [vmem:[%s1 + $0x4cc] sm:$0xff]
  %v200 = vld [vmem:[%s1 + $0x4d4] sm:$0xff]
  %v201 = vld [vmem:[%s1 + $0x4dc] sm:$0xff]
  %v202 = vld [vmem:[%s1 + $0x4e4] sm:$0xff]
  %v203 = vld [vmem:[%s1 + $0x4ec] sm:$0xff]
  %v204 = vld [vmem:[%s1 + $0x4f4] sm:$0xff]
  %v205 = vld [vmem:[%s1 + $0x4fc] sm:$0xff]
  %v206 = vld [vmem:[%s1 + $0x504] sm:$0xff]
  %v207 = vld [vmem:[%s1 + $0x50c] sm:$0xff]
  %v208 = vld [vmem:[%s1 + $0x514] sm:$0xff]
  %v209 = vld [vmem:[%s1 + $0x51c] sm:$0xff]
  %v210 = vld [vmem:[%s1 + $0x524] sm:$0xff]
  %v211 = vld [vmem:[%s1 + $0x52c] sm:$0xff]
  %v212 = vld [vmem:[%s1 + $0x534] sm:$0xff]
  %v213 = vld [vmem:[%s1 + $0x53c] sm:$0xff]
  %v214 = vld [vmem:[%s1 + $0x544] sm:$0xff]
  %v215 = vld [vmem:[%s1 + $0x54c] sm:$0xf]
  %v216 = vld [vmem:[%s1 + $0x550] sm:$0xff]
  %v217 = vld [vmem:[%s1 + $0x558] sm:$0xff]
  %v218 = vld [vmem:[%s1 + $0x560] sm:$0xff]
  %v219 = vld [vmem:[%s1 + $0x568] sm:$0xff]
  %v220 = vld [vmem:[%s1 + $0x570] sm:$0xff]
  %v221 = vld [vmem:[%s1 + $0x578] sm:$0xff]
  %v222 = vld [vmem:[%s1 + $0x580] sm:$0xff]
  %v223 = vld [vmem:[%s1 + $0x588] sm:$0xff]
  %v224 = vld [vmem:[%s1 + $0x590] sm:$0xff]
  %v225 = vld [vmem:[%s1 + $0x598] sm:$0xff]
  %v226 = vld [vmem:[%s1 + $0x5a0] sm:$0xff]
  %v227 = vld [vmem:[%s1 + $0x5a8] sm:$0xff]
  %v228 = vld [vmem:[%s1 + $0x5b0] sm:$0xff]
  %v229 = vld [vmem:[%s1 + $0x5b8] sm:$0xff]
  %v230 = vld [vmem:[%s1 + $0x5c0] sm:$0xff]
  %v231 = vld [vmem:[%s1 + $0x5c8] sm:$0xff]
  %v232 = vld [vmem:[%s1 + $0x5d0] sm:$0xff]
  %v233 = vld [vmem:[%s1 + $0x5d8] sm:$0xff]
  %v234 = vld [vmem:[%s1 + $0x5e0] sm:$0xff]
  %v235 = vld [vmem:[%s1 + $0x5e8] sm:$0xff]
  %v236 = vld [vmem:[%s1 + $0x5f0] sm:$0xff]
  %v237 = vld [vmem:[%s1 + $0x5f8] sm:$0xff]
  %v238 = vld [vmem:[%s1 + $0x600] sm:$0xff]
  %v239 = vld [vmem:[%s1 + $0x608] sm:$0xff]
  %v240 = vld [vmem:[%s1 + $0x610] sm:$0xff]
  %v241 = vld [vmem:[%s1 + $0x618] sm:$0xff]
  %v242 = vld [vmem:[%s1 + $0x620] sm:$0xff]
  %v243 = vld [vmem:[%s1 + $0x628] sm:$0xff]
  %v244 = vld [vmem:[%s1 + $0x630] sm:$0xff]
  %v245 = vld [vmem:[%s1 + $0x638] sm:$0xff]
  %v246 = vld [vmem:[%s1 + $0x640] sm:$0xff]
  %v247 = vld [vmem:[%s1 + $0x648] sm:$0xff]
  %v248 = vld [vmem:[%s1 + $0x650] sm:$0xff]
  %v249 = vld [vmem:[%s1 + $0x658] sm:$0xff]
  %v250 = vld [vmem:[%s1 + $0x660] sm:$0xff]
  %v251 = vld [vmem:[%s1 + $0x668] sm:$0xff]
  %v252 = vld [vmem:[%s1 + $0x670] sm:$0xff]
  %v253 = vld [vmem:[%s1 + $0x678] sm:$0xff]
  %v254 = vld [vmem:[%s1 + $0x680] sm:$0xff]
  %v255 = vld [vmem:[%s1 + $0x688] sm:$0xff]
  %v256 = vld [vmem:[%s1 + $0x690] sm:$0xff]
  %v257 = vld [vmem:[%s1 + $0x698] sm:$0xff]
  %v258 = vld [vmem:[%s1 + $0x6a0] sm:$0xf]
  %v259 = vld [vmem:[%s1 + $0x6a4] sm:$0xff]
  %v260 = vld [vmem:[%s1 + $0x6ac] sm:$0xff]
  %v261 = vld [vmem:[%s1 + $0x6b4] sm:$0xff]
  %v262 = vld [vmem:[%s1 + $0x6bc] sm:$0xff]
  %v263 = vld [vmem:[%s1 + $0x6c4] sm:$0xff]
  %v264 = vld [vmem:[%s1 + $0x6cc] sm:$0xff]
  %v265 = vld [vmem:[%s1 + $0x6d4] sm:$0xff]
  %v266 = vld [vmem:[%s1 + $0x6dc] sm:$0xff]
  %v267 = vld [vmem:[%s1 + $0x6e4] sm:$0xff]
  %v268 = vld [vmem:[%s1 + $0x6ec] sm:$0xff]
  %v269 = vld [vmem:[%s1 + $0x6f4] sm:$0xff]
  %v270 = vld [vmem:[%s1 + $0x6fc] sm:$0xff]
  %v271 = vld [vmem:[%s1 + $0x704] sm:$0xff]
  %v272 = vld [vmem:[%s1 + $0x70c] sm:$0xff]
  %v273 = vld [vmem:[%s1 + $0x714] sm:$0xff]
  %v274 = vld [vmem:[%s1 + $0x71c] sm:$0xff]
  %v275 = vld [vmem:[%s1 + $0x724] sm:$0xff]
  %v276 = vld [vmem:[%s1 + $0x72c] sm:$0xff]
  %v277 = vld [vmem:[%s1 + $0x734] sm:$0xff]
  %v278 = vld [vmem:[%s1 + $0x73c] sm:$0xff]
  %v279 = vld [vmem:[%s1 + $0x744] sm:$0xff]
  %v280 = vld [vmem:[%s1 + $0x74c] sm:$0xff]
  %v281 = vld [vmem:[%s1 + $0x754] sm:$0xff]
  %v282 = vld [vmem:[%s1 + $0x75c] sm:$0xff]
  %v283 = vld [vmem:[%s1 + $0x764] sm:$0xff]
  %v284 = vld [vmem:[%s1 + $0x76c] sm:$0xff]
  %v285 = vld [vmem:[%s1 + $0x774] sm:$0xff]
  %v286 = vld [vmem:[%s1 + $0x77c] sm:$0xff]
  %v287 = vld [vmem:[%s1 + $0x784] sm:$0xff]
  %v288 = vld [vmem:[%s1 + $0x78c] sm:$0xff]
  %v289 = vld [vmem:[%s1 + $0x794] sm:$0xff]
  %v290 = vld [vmem:[%s1 + $0x79c] sm:$0xff]
  %v291 = vld [vmem:[%s1 + $0x7a4] sm:$0xff]
  %v292 = vld [vmem:[%s1 + $0x7ac] sm:$0xff]
  %v293 = vld [vmem:[%s1 + $0x7b4] sm:$0xff]
  %v294 = vld [vmem:[%s1 + $0x7bc] sm:$0xff]
  %v295 = vld [vmem:[%s1 + $0x7c4] sm:$0xff]
  %v296 = vld [vmem:[%s1 + $0x7cc] sm:$0xff]
  %v297 = vld [vmem:[%s1 + $0x7d4] sm:$0xff]
  %v298 = vld [vmem:[%s1 + $0x7dc] sm:$0xff]
  %v299 = vld [vmem:[%s1 + $0x7e4] sm:$0xff]
  %v300 = vld [vmem:[%s1 + $0x7ec] sm:$0xff]
  %v301 = vld [vmem:[%s1 + $0x7f4] sm:$0xf]
  %v302 = vld [vmem:[%s1 + $0x7f8] sm:$0xff]
  %v303 = vld [vmem:[%s1 + $0x800] sm:$0xff]
  %v304 = vld [vmem:[%s1 + $0x808] sm:$0xff]
  %v305 = vld [vmem:[%s1 + $0x810] sm:$0xff]
  %v306 = vld [vmem:[%s1 + $0x818] sm:$0xff]
  %v307 = vld [vmem:[%s1 + $0x820] sm:$0xff]
  %v308 = vld [vmem:[%s1 + $0x828] sm:$0xff]
  %v309 = vld [vmem:[%s1 + $0x830] sm:$0xff]
  %v310 = vld [vmem:[%s1 + $0x838] sm:$0xff]
  %v311 = vld [vmem:[%s1 + $0x840] sm:$0xff]
  %v312 = vld [vmem:[%s1 + $0x848] sm:$0xff]
  %v313 = vld [vmem:[%s1 + $0x850] sm:$0xff]
  %v314 = vld [vmem:[%s1 + $0x858] sm:$0xff]
  %v315 = vld [vmem:[%s1 + $0x860] sm:$0xff]
  %v316 = vld [vmem:[%s1 + $0x868] sm:$0xff]
  %v317 = vld [vmem:[%s1 + $0x870] sm:$0xff]
  %v318 = vld [vmem:[%s1 + $0x878] sm:$0xff]
  %v319 = vld [vmem:[%s1 + $0x880] sm:$0xff]
  %v320 = vld [vmem:[%s1 + $0x888] sm:$0xff]
  %v321 = vld [vmem:[%s1 + $0x890] sm:$0xff]
  %v322 = vld [vmem:[%s1 + $0x898] sm:$0xff]
  %v323 = vld [vmem:[%s1 + $0x8a0] sm:$0xff]
  %v324 = vld [vmem:[%s1 + $0x8a8] sm:$0xff]
  %v325 = vld [vmem:[%s1 + $0x8b0] sm:$0xff]
  %v326 = vld [vmem:[%s1 + $0x8b8] sm:$0xff]
  %v327 = vld [vmem:[%s1 + $0x8c0] sm:$0xff]
  %v328 = vld [vmem:[%s1 + $0x8c8] sm:$0xff]
  %v329 = vld [vmem:[%s1 + $0x8d0] sm:$0xff]
  %v330 = vld [vmem:[%s1 + $0x8d8] sm:$0xff]
  %v331 = vld [vmem:[%s1 + $0x8e0] sm:$0xff]
  %v332 = vld [vmem:[%s1 + $0x8e8] sm:$0xff]
  %v333 = vld [vmem:[%s1 + $0x8f0] sm:$0xff]
  %v334 = vld [vmem:[%s1 + $0x8f8] sm:$0xff]
  %v335 = vld [vmem:[%s1 + $0x900] sm:$0xff]
  %v336 = vld [vmem:[%s1 + $0x908] sm:$0xff]
  %v337 = vld [vmem:[%s1 + $0x910] sm:$0xff]
  %v338 = vld [vmem:[%s1 + $0x918] sm:$0xff]
  %v339 = vld [vmem:[%s1 + $0x920] sm:$0xff]
  %v340 = vld [vmem:[%s1 + $0x928] sm:$0xff]
  %v341 = vld [vmem:[%s1 + $0x930] sm:$0xff]
  %v342 = vld [vmem:[%s1 + $0x938] sm:$0xff]
  %v343 = vld [vmem:[%s1 + $0x940] sm:$0xff]
  %v344 = vld [vmem:[%s1 + $0x948] sm:$0xf]
  %v345 = vld [vmem:[%s2] sm:$0x1]
  %v347 = vlaneseq
  %v348 = vshrl.u32 %v347, 7
  %v349 = vsub.s32 0, %v348
  %v350 = vrot.slane %v345, %v349
  %v363 = vcombine.high %v33, %v33
  %v365 = vunpack.c.l.s4 1966171168
  %v366 = vunpack.c.0.s8 %v365
  %v367 = vlaneseq
  %v368 = vshrl.u32 %v367, 7
  %v369 = vsub.s32 %v366, %v368
  %v370 = vrot.slane %v33, %v369
  %v372 = vunpack.c.l.s4 1966171168
  %v373 = vunpack.c.0.s8 %v372
  %v374 = vlaneseq
  %v375 = vshrl.u32 %v374, 7
  %v376 = vsub.s32 %v373, %v375
  %v377 = vrot.slane %v363, %v376
  %v378 = vcombine.high %v370, %v370
  %v379 = vcombine.high %v377, %v377
  %v381 = vunpack.c.l.s4 1966171168
  %v382 = vunpack.c.0.s8 %v381
  %v383 = vlaneseq
  %v384 = vshrl.u32 %v383, 7
  %v385 = vsub.s32 %v382, %v384
  %v386 = vrot.slane %v370, %v385
  %v388 = vunpack.c.l.s4 1966171168
  %v389 = vunpack.c.0.s8 %v388
  %v390 = vlaneseq
  %v391 = vshrl.u32 %v390, 7
  %v392 = vsub.s32 %v389, %v391
  %v393 = vrot.slane %v377, %v392
  %v395 = vunpack.c.l.s4 1966171168
  %v396 = vunpack.c.0.s8 %v395
  %v397 = vlaneseq
  %v398 = vshrl.u32 %v397, 7
  %v399 = vsub.s32 %v396, %v398
  %v400 = vrot.slane %v378, %v399
  %v402 = vunpack.c.l.s4 1966171168
  %v403 = vunpack.c.0.s8 %v402
  %v404 = vlaneseq
  %v405 = vshrl.u32 %v404, 7
  %v406 = vsub.s32 %v403, %v405
  %v407 = vrot.slane %v379, %v406
  %v408 = vcombine.high %v386, %v386
  %v409 = vcombine.high %v393, %v393
  %v410 = vcombine.high %v400, %v400
  %v411 = vcombine.high %v407, %v407
  %v412 = vcombine.high %v34, %v34
  %v414 = vunpack.c.l.s4 1966171168
  %v415 = vunpack.c.0.s8 %v414
  %v416 = vlaneseq
  %v417 = vshrl.u32 %v416, 7
  %v418 = vsub.s32 %v415, %v417
  %v419 = vrot.slane %v34, %v418
  %v421 = vunpack.c.l.s4 1966171168
  %v422 = vunpack.c.0.s8 %v421
  %v423 = vlaneseq
  %v424 = vshrl.u32 %v423, 7
  %v425 = vsub.s32 %v422, %v424
  %v426 = vrot.slane %v412, %v425
  %v427 = vcombine.high %v419, %v419
  %v428 = vcombine.high %v426, %v426
  %v430 = vunpack.c.l.s4 1966171168
  %v431 = vunpack.c.0.s8 %v430
  %v432 = vlaneseq
  %v433 = vshrl.u32 %v432, 7
  %v434 = vsub.s32 %v431, %v433
  %v435 = vrot.slane %v419, %v434
  %v437 = vunpack.c.l.s4 1966171168
  %v438 = vunpack.c.0.s8 %v437
  %v439 = vlaneseq
  %v440 = vshrl.u32 %v439, 7
  %v441 = vsub.s32 %v438, %v440
  %v442 = vrot.slane %v426, %v441
  %v444 = vunpack.c.l.s4 1966171168
  %v445 = vunpack.c.0.s8 %v444
  %v446 = vlaneseq
  %v447 = vshrl.u32 %v446, 7
  %v448 = vsub.s32 %v445, %v447
  %v449 = vrot.slane %v427, %v448
  %v451 = vunpack.c.l.s4 1966171168
  %v452 = vunpack.c.0.s8 %v451
  %v453 = vlaneseq
  %v454 = vshrl.u32 %v453, 7
  %v455 = vsub.s32 %v452, %v454
  %v456 = vrot.slane %v428, %v455
  %v457 = vcombine.high %v435, %v435
  %v458 = vcombine.high %v442, %v442
  %v459 = vcombine.high %v449, %v449
  %v460 = vcombine.high %v456, %v456
  %v461 = vcombine.high %v35, %v35
  %v463 = vunpack.c.l.s4 1966171168
  %v464 = vunpack.c.0.s8 %v463
  %v465 = vlaneseq
  %v466 = vshrl.u32 %v465, 7
  %v467 = vsub.s32 %v464, %v466
  %v468 = vrot.slane %v35, %v467
  %v470 = vunpack.c.l.s4 1966171168
  %v471 = vunpack.c.0.s8 %v470
  %v472 = vlaneseq
  %v473 = vshrl.u32 %v472, 7
  %v474 = vsub.s32 %v471, %v473
  %v475 = vrot.slane %v461, %v474
  %v476 = vcombine.high %v468, %v468
  %v477 = vcombine.high %v475, %v475
  %v479 = vunpack.c.l.s4 1966171168
  %v480 = vunpack.c.0.s8 %v479
  %v481 = vlaneseq
  %v482 = vshrl.u32 %v481, 7
  %v483 = vsub.s32 %v480, %v482
  %v484 = vrot.slane %v468, %v483
  %v486 = vunpack.c.l.s4 1966171168
  %v487 = vunpack.c.0.s8 %v486
  %v488 = vlaneseq
  %v489 = vshrl.u32 %v488, 7
  %v490 = vsub.s32 %v487, %v489
  %v491 = vrot.slane %v475, %v490
  %v493 = vunpack.c.l.s4 1966171168
  %v494 = vunpack.c.0.s8 %v493
  %v495 = vlaneseq
  %v496 = vshrl.u32 %v495, 7
  %v497 = vsub.s32 %v494, %v496
  %v498 = vrot.slane %v476, %v497
  %v500 = vunpack.c.l.s4 1966171168
  %v501 = vunpack.c.0.s8 %v500
  %v502 = vlaneseq
  %v503 = vshrl.u32 %v502, 7
  %v504 = vsub.s32 %v501, %v503
  %v505 = vrot.slane %v477, %v504
  %v506 = vcombine.high %v484, %v484
  %v507 = vcombine.high %v491, %v491
  %v508 = vcombine.high %v498, %v498
  %v509 = vcombine.high %v505, %v505
  %v510 = vcombine.high %v36, %v36
  %v512 = vunpack.c.l.s4 1966171168
  %v513 = vunpack.c.0.s8 %v512
  %v514 = vlaneseq
  %v515 = vshrl.u32 %v514, 7
  %v516 = vsub.s32 %v513, %v515
  %v517 = vrot.slane %v36, %v516
  %v519 = vunpack.c.l.s4 1966171168
  %v520 = vunpack.c.0.s8 %v519
  %v521 = vlaneseq
  %v522 = vshrl.u32 %v521, 7
  %v523 = vsub.s32 %v520, %v522
  %v524 = vrot.slane %v510, %v523
  %v525 = vcombine.high %v517, %v517
  %v526 = vcombine.high %v524, %v524
  %v528 = vunpack.c.l.s4 1966171168
  %v529 = vunpack.c.0.s8 %v528
  %v530 = vlaneseq
  %v531 = vshrl.u32 %v530, 7
  %v532 = vsub.s32 %v529, %v531
  %v533 = vrot.slane %v517, %v532
  %v535 = vunpack.c.l.s4 1966171168
  %v536 = vunpack.c.0.s8 %v535
  %v537 = vlaneseq
  %v538 = vshrl.u32 %v537, 7
  %v539 = vsub.s32 %v536, %v538
  %v540 = vrot.slane %v524, %v539
  %v542 = vunpack.c.l.s4 1966171168
  %v543 = vunpack.c.0.s8 %v542
  %v544 = vlaneseq
  %v545 = vshrl.u32 %v544, 7
  %v546 = vsub.s32 %v543, %v545
  %v547 = vrot.slane %v525, %v546
  %v549 = vunpack.c.l.s4 1966171168
  %v550 = vunpack.c.0.s8 %v549
  %v551 = vlaneseq
  %v552 = vshrl.u32 %v551, 7
  %v553 = vsub.s32 %v550, %v552
  %v554 = vrot.slane %v526, %v553
  %v555 = vcombine.high %v533, %v533
  %v556 = vcombine.high %v540, %v540
  %v557 = vcombine.high %v547, %v547
  %v558 = vcombine.high %v554, %v554
  %v559 = vcombine.high %v37, %v37
  %v561 = vunpack.c.l.s4 1966171168
  %v562 = vunpack.c.0.s8 %v561
  %v563 = vlaneseq
  %v564 = vshrl.u32 %v563, 7
  %v565 = vsub.s32 %v562, %v564
  %v566 = vrot.slane %v37, %v565
  %v568 = vunpack.c.l.s4 1966171168
  %v569 = vunpack.c.0.s8 %v568
  %v570 = vlaneseq
  %v571 = vshrl.u32 %v570, 7
  %v572 = vsub.s32 %v569, %v571
  %v573 = vrot.slane %v559, %v572
  %v574 = vcombine.high %v566, %v566
  %v575 = vcombine.high %v573, %v573
  %v577 = vunpack.c.l.s4 1966171168
  %v578 = vunpack.c.0.s8 %v577
  %v579 = vlaneseq
  %v580 = vshrl.u32 %v579, 7
  %v581 = vsub.s32 %v578, %v580
  %v582 = vrot.slane %v566, %v581
  %v584 = vunpack.c.l.s4 1966171168
  %v585 = vunpack.c.0.s8 %v584
  %v586 = vlaneseq
  %v587 = vshrl.u32 %v586, 7
  %v588 = vsub.s32 %v585, %v587
  %v589 = vrot.slane %v573, %v588
  %v591 = vunpack.c.l.s4 1966171168
  %v592 = vunpack.c.0.s8 %v591
  %v593 = vlaneseq
  %v594 = vshrl.u32 %v593, 7
  %v595 = vsub.s32 %v592, %v594
  %v596 = vrot.slane %v574, %v595
  %v598 = vunpack.c.l.s4 1966171168
  %v599 = vunpack.c.0.s8 %v598
  %v600 = vlaneseq
  %v601 = vshrl.u32 %v600, 7
  %v602 = vsub.s32 %v599, %v601
  %v603 = vrot.slane %v575, %v602
  %v604 = vcombine.high %v582, %v582
  %v605 = vcombine.high %v589, %v589
  %v606 = vcombine.high %v596, %v596
  %v607 = vcombine.high %v603, %v603
  %v608 = vcombine.high %v38, %v38
  %v610 = vunpack.c.l.s4 1966171168
  %v611 = vunpack.c.0.s8 %v610
  %v612 = vlaneseq
  %v613 = vshrl.u32 %v612, 7
  %v614 = vsub.s32 %v611, %v613
  %v615 = vrot.slane %v38, %v614
  %v617 = vunpack.c.l.s4 1966171168
  %v618 = vunpack.c.0.s8 %v617
  %v619 = vlaneseq
  %v620 = vshrl.u32 %v619, 7
  %v621 = vsub.s32 %v618, %v620
  %v622 = vrot.slane %v608, %v621
  %v623 = vcombine.high %v615, %v615
  %v624 = vcombine.high %v622, %v622
  %v626 = vunpack.c.l.s4 1966171168
  %v627 = vunpack.c.0.s8 %v626
  %v628 = vlaneseq
  %v629 = vshrl.u32 %v628, 7
  %v630 = vsub.s32 %v627, %v629
  %v631 = vrot.slane %v615, %v630
  %v633 = vunpack.c.l.s4 1966171168
  %v634 = vunpack.c.0.s8 %v633
  %v635 = vlaneseq
  %v636 = vshrl.u32 %v635, 7
  %v637 = vsub.s32 %v634, %v636
  %v638 = vrot.slane %v622, %v637
  %v640 = vunpack.c.l.s4 1966171168
  %v641 = vunpack.c.0.s8 %v640
  %v642 = vlaneseq
  %v643 = vshrl.u32 %v642, 7
  %v644 = vsub.s32 %v641, %v643
  %v645 = vrot.slane %v623, %v644
  %v647 = vunpack.c.l.s4 1966171168
  %v648 = vunpack.c.0.s8 %v647
  %v649 = vlaneseq
  %v650 = vshrl.u32 %v649, 7
  %v651 = vsub.s32 %v648, %v650
  %v652 = vrot.slane %v624, %v651
  %v653 = vcombine.high %v631, %v631
  %v654 = vcombine.high %v638, %v638
  %v655 = vcombine.high %v645, %v645
  %v656 = vcombine.high %v652, %v652
  %v657 = vcombine.high %v39, %v39
  %v659 = vunpack.c.l.s4 1966171168
  %v660 = vunpack.c.0.s8 %v659
  %v661 = vlaneseq
  %v662 = vshrl.u32 %v661, 7
  %v663 = vsub.s32 %v660, %v662
  %v664 = vrot.slane %v39, %v663
  %v666 = vunpack.c.l.s4 1966171168
  %v667 = vunpack.c.0.s8 %v666
  %v668 = vlaneseq
  %v669 = vshrl.u32 %v668, 7
  %v670 = vsub.s32 %v667, %v669
  %v671 = vrot.slane %v657, %v670
  %v672 = vcombine.high %v664, %v664
  %v673 = vcombine.high %v671, %v671
  %v675 = vunpack.c.l.s4 1966171168
  %v676 = vunpack.c.0.s8 %v675
  %v677 = vlaneseq
  %v678 = vshrl.u32 %v677, 7
  %v679 = vsub.s32 %v676, %v678
  %v680 = vrot.slane %v664, %v679
  %v682 = vunpack.c.l.s4 1966171168
  %v683 = vunpack.c.0.s8 %v682
  %v684 = vlaneseq
  %v685 = vshrl.u32 %v684, 7
  %v686 = vsub.s32 %v683, %v685
  %v687 = vrot.slane %v671, %v686
  %v689 = vunpack.c.l.s4 1966171168
  %v690 = vunpack.c.0.s8 %v689
  %v691 = vlaneseq
  %v692 = vshrl.u32 %v691, 7
  %v693 = vsub.s32 %v690, %v692
  %v694 = vrot.slane %v672, %v693
  %v696 = vunpack.c.l.s4 1966171168
  %v697 = vunpack.c.0.s8 %v696
  %v698 = vlaneseq
  %v699 = vshrl.u32 %v698, 7
  %v700 = vsub.s32 %v697, %v699
  %v701 = vrot.slane %v673, %v700
  %v702 = vcombine.high %v680, %v680
  %v703 = vcombine.high %v687, %v687
  %v704 = vcombine.high %v694, %v694
  %v705 = vcombine.high %v701, %v701
  %v706 = vcombine.high %v40, %v40
  %v708 = vunpack.c.l.s4 1966171168
  %v709 = vunpack.c.0.s8 %v708
  %v710 = vlaneseq
  %v711 = vshrl.u32 %v710, 7
  %v712 = vsub.s32 %v709, %v711
  %v713 = vrot.slane %v40, %v712
  %v715 = vunpack.c.l.s4 1966171168
  %v716 = vunpack.c.0.s8 %v715
  %v717 = vlaneseq
  %v718 = vshrl.u32 %v717, 7
  %v719 = vsub.s32 %v716, %v718
  %v720 = vrot.slane %v706, %v719
  %v721 = vcombine.high %v713, %v713
  %v722 = vcombine.high %v720, %v720
  %v724 = vunpack.c.l.s4 1966171168
  %v725 = vunpack.c.0.s8 %v724
  %v726 = vlaneseq
  %v727 = vshrl.u32 %v726, 7
  %v728 = vsub.s32 %v725, %v727
  %v729 = vrot.slane %v713, %v728
  %v731 = vunpack.c.l.s4 1966171168
  %v732 = vunpack.c.0.s8 %v731
  %v733 = vlaneseq
  %v734 = vshrl.u32 %v733, 7
  %v735 = vsub.s32 %v732, %v734
  %v736 = vrot.slane %v720, %v735
  %v738 = vunpack.c.l.s4 1966171168
  %v739 = vunpack.c.0.s8 %v738
  %v740 = vlaneseq
  %v741 = vshrl.u32 %v740, 7
  %v742 = vsub.s32 %v739, %v741
  %v743 = vrot.slane %v721, %v742
  %v745 = vunpack.c.l.s4 1966171168
  %v746 = vunpack.c.0.s8 %v745
  %v747 = vlaneseq
  %v748 = vshrl.u32 %v747, 7
  %v749 = vsub.s32 %v746, %v748
  %v750 = vrot.slane %v722, %v749
  %v751 = vcombine.high %v729, %v729
  %v752 = vcombine.high %v736, %v736
  %v753 = vcombine.high %v743, %v743
  %v754 = vcombine.high %v750, %v750
  %v755 = vcombine.high %v41, %v41
  %v757 = vunpack.c.l.s4 1966171168
  %v758 = vunpack.c.0.s8 %v757
  %v759 = vlaneseq
  %v760 = vshrl.u32 %v759, 7
  %v761 = vsub.s32 %v758, %v760
  %v762 = vrot.slane %v41, %v761
  %v764 = vunpack.c.l.s4 1966171168
  %v765 = vunpack.c.0.s8 %v764
  %v766 = vlaneseq
  %v767 = vshrl.u32 %v766, 7
  %v768 = vsub.s32 %v765, %v767
  %v769 = vrot.slane %v755, %v768
  %v770 = vcombine.high %v762, %v762
  %v771 = vcombine.high %v769, %v769
  %v773 = vunpack.c.l.s4 1966171168
  %v774 = vunpack.c.0.s8 %v773
  %v775 = vlaneseq
  %v776 = vshrl.u32 %v775, 7
  %v777 = vsub.s32 %v774, %v776
  %v778 = vrot.slane %v762, %v777
  %v780 = vunpack.c.l.s4 1966171168
  %v781 = vunpack.c.0.s8 %v780
  %v782 = vlaneseq
  %v783 = vshrl.u32 %v782, 7
  %v784 = vsub.s32 %v781, %v783
  %v785 = vrot.slane %v769, %v784
  %v787 = vunpack.c.l.s4 1966171168
  %v788 = vunpack.c.0.s8 %v787
  %v789 = vlaneseq
  %v790 = vshrl.u32 %v789, 7
  %v791 = vsub.s32 %v788, %v790
  %v792 = vrot.slane %v770, %v791
  %v794 = vunpack.c.l.s4 1966171168
  %v795 = vunpack.c.0.s8 %v794
  %v796 = vlaneseq
  %v797 = vshrl.u32 %v796, 7
  %v798 = vsub.s32 %v795, %v797
  %v799 = vrot.slane %v771, %v798
  %v800 = vcombine.high %v778, %v778
  %v801 = vcombine.high %v785, %v785
  %v802 = vcombine.high %v792, %v792
  %v803 = vcombine.high %v799, %v799
  %v804 = vcombine.high %v42, %v42
  %v806 = vunpack.c.l.s4 1966171168
  %v807 = vunpack.c.0.s8 %v806
  %v808 = vlaneseq
  %v809 = vshrl.u32 %v808, 7
  %v810 = vsub.s32 %v807, %v809
  %v811 = vrot.slane %v42, %v810
  %v813 = vunpack.c.l.s4 1966171168
  %v814 = vunpack.c.0.s8 %v813
  %v815 = vlaneseq
  %v816 = vshrl.u32 %v815, 7
  %v817 = vsub.s32 %v814, %v816
  %v818 = vrot.slane %v804, %v817
  %v819 = vcombine.high %v811, %v811
  %v820 = vcombine.high %v818, %v818
  %v822 = vunpack.c.l.s4 1966171168
  %v823 = vunpack.c.0.s8 %v822
  %v824 = vlaneseq
  %v825 = vshrl.u32 %v824, 7
  %v826 = vsub.s32 %v823, %v825
  %v827 = vrot.slane %v811, %v826
  %v829 = vunpack.c.l.s4 1966171168
  %v830 = vunpack.c.0.s8 %v829
  %v831 = vlaneseq
  %v832 = vshrl.u32 %v831, 7
  %v833 = vsub.s32 %v830, %v832
  %v834 = vrot.slane %v818, %v833
  %v836 = vunpack.c.l.s4 1966171168
  %v837 = vunpack.c.0.s8 %v836
  %v838 = vlaneseq
  %v839 = vshrl.u32 %v838, 7
  %v840 = vsub.s32 %v837, %v839
  %v841 = vrot.slane %v819, %v840
  %v843 = vunpack.c.l.s4 1966171168
  %v844 = vunpack.c.0.s8 %v843
  %v845 = vlaneseq
  %v846 = vshrl.u32 %v845, 7
  %v847 = vsub.s32 %v844, %v846
  %v848 = vrot.slane %v820, %v847
  %v849 = vcombine.high %v827, %v827
  %v850 = vcombine.high %v834, %v834
  %v851 = vcombine.high %v841, %v841
  %v852 = vcombine.high %v848, %v848
  %v853 = vcombine.high %v43, %v43
  %v855 = vunpack.c.l.s4 1966171168
  %v856 = vunpack.c.0.s8 %v855
  %v857 = vlaneseq
  %v858 = vshrl.u32 %v857, 7
  %v859 = vsub.s32 %v856, %v858
  %v860 = vrot.slane %v43, %v859
  %v862 = vunpack.c.l.s4 1966171168
  %v863 = vunpack.c.0.s8 %v862
  %v864 = vlaneseq
  %v865 = vshrl.u32 %v864, 7
  %v866 = vsub.s32 %v863, %v865
  %v867 = vrot.slane %v853, %v866
  %v868 = vcombine.high %v860, %v860
  %v870 = vunpack.c.l.s4 1966171168
  %v871 = vunpack.c.0.s8 %v870
  %v872 = vlaneseq
  %v873 = vshrl.u32 %v872, 7
  %v874 = vsub.s32 %v871, %v873
  %v875 = vrot.slane %v860, %v874
  %v877 = vunpack.c.l.s4 1966171168
  %v878 = vunpack.c.0.s8 %v877
  %v879 = vlaneseq
  %v880 = vshrl.u32 %v879, 7
  %v881 = vsub.s32 %v878, %v880
  %v882 = vrot.slane %v867, %v881
  %v884 = vunpack.c.l.s4 1966171168
  %v885 = vunpack.c.0.s8 %v884
  %v886 = vlaneseq
  %v887 = vshrl.u32 %v886, 7
  %v888 = vsub.s32 %v885, %v887
  %v889 = vrot.slane %v868, %v888
  %v890 = vcombine.high %v875, %v875
  %v891 = vcombine.high %v889, %v889
  %v1277 = vunpack.c.l.b16 %v44
  %v1278 = vunpack.c.h.b16 %v44
  %v1279 = vunpack.c.l.b16 %v45
  %v1280 = vunpack.c.h.b16 %v45
  %v1281 = vunpack.c.l.b16 %v46
  %v1282 = vunpack.c.h.b16 %v46
  %v1283 = vunpack.c.l.b16 %v47
  %v1284 = vunpack.c.h.b16 %v47
  %v1285 = vunpack.c.l.b16 %v48
  %v1286 = vunpack.c.h.b16 %v48
  %v1287 = vunpack.c.l.b16 %v49
  %v1288 = vunpack.c.h.b16 %v49
  %v1289 = vunpack.c.l.b16 %v50
  %v1290 = vunpack.c.h.b16 %v50
  %v1291 = vunpack.c.l.b16 %v51
  %v1292 = vunpack.c.h.b16 %v51
  %v1293 = vunpack.c.l.b16 %v52
  %v1294 = vunpack.c.h.b16 %v52
  %v1295 = vunpack.c.l.b16 %v53
  %v1296 = vunpack.c.h.b16 %v53
  %v1297 = vunpack.c.l.b16 %v54
  %v1298 = vunpack.c.h.b16 %v54
  %v1299 = vunpack.c.l.b16 %v55
  %v1300 = vunpack.c.h.b16 %v55
  %v1301 = vunpack.c.l.b16 %v56
  %v1302 = vunpack.c.h.b16 %v56
  %v1303 = vunpack.c.l.b16 %v57
  %v1304 = vunpack.c.h.b16 %v57
  %v1305 = vunpack.c.l.b16 %v58
  %v1306 = vunpack.c.h.b16 %v58
  %v1307 = vunpack.c.l.b16 %v59
  %v1308 = vunpack.c.h.b16 %v59
  %v1309 = vunpack.c.l.b16 %v60
  %v1310 = vunpack.c.h.b16 %v60
  %v1311 = vunpack.c.l.b16 %v61
  %v1312 = vunpack.c.h.b16 %v61
  %v1313 = vunpack.c.l.b16 %v62
  %v1314 = vunpack.c.h.b16 %v62
  %v1315 = vunpack.c.l.b16 %v63
  %v1316 = vunpack.c.h.b16 %v63
  %v1317 = vunpack.c.l.b16 %v64
  %v1318 = vunpack.c.h.b16 %v64
  %v1319 = vunpack.c.l.b16 %v65
  %v1320 = vunpack.c.h.b16 %v65
  %v1321 = vunpack.c.l.b16 %v66
  %v1322 = vunpack.c.h.b16 %v66
  %v1323 = vunpack.c.l.b16 %v67
  %v1324 = vunpack.c.h.b16 %v67
  %v1325 = vunpack.c.l.b16 %v68
  %v1326 = vunpack.c.h.b16 %v68
  %v1327 = vunpack.c.l.b16 %v69
  %v1328 = vunpack.c.h.b16 %v69
  %v1329 = vunpack.c.l.b16 %v70
  %v1330 = vunpack.c.h.b16 %v70
  %v1331 = vunpack.c.l.b16 %v71
  %v1332 = vunpack.c.h.b16 %v71
  %v1333 = vunpack.c.l.b16 %v72
  %v1334 = vunpack.c.h.b16 %v72
  %v1335 = vunpack.c.l.b16 %v73
  %v1336 = vunpack.c.h.b16 %v73
  %v1337 = vunpack.c.l.b16 %v74
  %v1338 = vunpack.c.h.b16 %v74
  %v1339 = vunpack.c.l.b16 %v75
  %v1340 = vunpack.c.h.b16 %v75
  %v1341 = vunpack.c.l.b16 %v76
  %v1342 = vunpack.c.h.b16 %v76
  %v1343 = vunpack.c.l.b16 %v77
  %v1344 = vunpack.c.h.b16 %v77
  %v1345 = vunpack.c.l.b16 %v78
  %v1346 = vunpack.c.h.b16 %v78
  %v1347 = vunpack.c.l.b16 %v79
  %v1348 = vunpack.c.h.b16 %v79
  %v1349 = vunpack.c.l.b16 %v80
  %v1350 = vunpack.c.h.b16 %v80
  %v1351 = vunpack.c.l.b16 %v81
  %v1352 = vunpack.c.h.b16 %v81
  %v1353 = vunpack.c.l.b16 %v82
  %v1354 = vunpack.c.h.b16 %v82
  %v1355 = vunpack.c.l.b16 %v83
  %v1356 = vunpack.c.h.b16 %v83
  %v1357 = vunpack.c.l.b16 %v84
  %v1358 = vunpack.c.h.b16 %v84
  %v1359 = vunpack.c.l.b16 %v85
  %v1360 = vunpack.c.h.b16 %v85
  %v1361 = vunpack.c.l.b16 %v86
  %v1362 = vunpack.c.l.b16 %v87
  %v1363 = vunpack.c.h.b16 %v87
  %v1364 = vunpack.c.l.b16 %v88
  %v1365 = vunpack.c.h.b16 %v88
  %v1366 = vunpack.c.l.b16 %v89
  %v1367 = vunpack.c.h.b16 %v89
  %v1368 = vunpack.c.l.b16 %v90
  %v1369 = vunpack.c.h.b16 %v90
  %v1370 = vunpack.c.l.b16 %v91
  %v1371 = vunpack.c.h.b16 %v91
  %v1372 = vunpack.c.l.b16 %v92
  %v1373 = vunpack.c.h.b16 %v92
  %v1374 = vunpack.c.l.b16 %v93
  %v1375 = vunpack.c.h.b16 %v93
  %v1376 = vunpack.c.l.b16 %v94
  %v1377 = vunpack.c.h.b16 %v94
  %v1378 = vunpack.c.l.b16 %v95
  %v1379 = vunpack.c.h.b16 %v95
  %v1380 = vunpack.c.l.b16 %v96
  %v1381 = vunpack.c.h.b16 %v96
  %v1382 = vunpack.c.l.b16 %v97
  %v1383 = vunpack.c.h.b16 %v97
  %v1384 = vunpack.c.l.b16 %v98
  %v1385 = vunpack.c.h.b16 %v98
  %v1386 = vunpack.c.l.b16 %v99
  %v1387 = vunpack.c.h.b16 %v99
  %v1388 = vunpack.c.l.b16 %v100
  %v1389 = vunpack.c.h.b16 %v100
  %v1390 = vunpack.c.l.b16 %v101
  %v1391 = vunpack.c.h.b16 %v101
  %v1392 = vunpack.c.l.b16 %v102
  %v1393 = vunpack.c.h.b16 %v102
  %v1394 = vunpack.c.l.b16 %v103
  %v1395 = vunpack.c.h.b16 %v103
  %v1396 = vunpack.c.l.b16 %v104
  %v1397 = vunpack.c.h.b16 %v104
  %v1398 = vunpack.c.l.b16 %v105
  %v1399 = vunpack.c.h.b16 %v105
  %v1400 = vunpack.c.l.b16 %v106
  %v1401 = vunpack.c.h.b16 %v106
  %v1402 = vunpack.c.l.b16 %v107
  %v1403 = vunpack.c.h.b16 %v107
  %v1404 = vunpack.c.l.b16 %v108
  %v1405 = vunpack.c.h.b16 %v108
  %v1406 = vunpack.c.l.b16 %v109
  %v1407 = vunpack.c.h.b16 %v109
  %v1408 = vunpack.c.l.b16 %v110
  %v1409 = vunpack.c.h.b16 %v110
  %v1410 = vunpack.c.l.b16 %v111
  %v1411 = vunpack.c.h.b16 %v111
  %v1412 = vunpack.c.l.b16 %v112
  %v1413 = vunpack.c.h.b16 %v112
  %v1414 = vunpack.c.l.b16 %v113
  %v1415 = vunpack.c.h.b16 %v113
  %v1416 = vunpack.c.l.b16 %v114
  %v1417 = vunpack.c.h.b16 %v114
  %v1418 = vunpack.c.l.b16 %v115
  %v1419 = vunpack.c.h.b16 %v115
  %v1420 = vunpack.c.l.b16 %v116
  %v1421 = vunpack.c.h.b16 %v116
  %v1422 = vunpack.c.l.b16 %v117
  %v1423 = vunpack.c.h.b16 %v117
  %v1424 = vunpack.c.l.b16 %v118
  %v1425 = vunpack.c.h.b16 %v118
  %v1426 = vunpack.c.l.b16 %v119
  %v1427 = vunpack.c.h.b16 %v119
  %v1428 = vunpack.c.l.b16 %v120
  %v1429 = vunpack.c.h.b16 %v120
  %v1430 = vunpack.c.l.b16 %v121
  %v1431 = vunpack.c.h.b16 %v121
  %v1432 = vunpack.c.l.b16 %v122
  %v1433 = vunpack.c.h.b16 %v122
  %v1434 = vunpack.c.l.b16 %v123
  %v1435 = vunpack.c.h.b16 %v123
  %v1436 = vunpack.c.l.b16 %v124
  %v1437 = vunpack.c.h.b16 %v124
  %v1438 = vunpack.c.l.b16 %v125
  %v1439 = vunpack.c.h.b16 %v125
  %v1440 = vunpack.c.l.b16 %v126
  %v1441 = vunpack.c.h.b16 %v126
  %v1442 = vunpack.c.l.b16 %v127
  %v1443 = vunpack.c.h.b16 %v127
  %v1444 = vunpack.c.l.b16 %v128
  %v1445 = vunpack.c.h.b16 %v128
  %v1446 = vunpack.c.l.b16 %v129
  %v1447 = vunpack.c.l.b16 %v130
  %v1448 = vunpack.c.h.b16 %v130
  %v1449 = vunpack.c.l.b16 %v131
  %v1450 = vunpack.c.h.b16 %v131
  %v1451 = vunpack.c.l.b16 %v132
  %v1452 = vunpack.c.h.b16 %v132
  %v1453 = vunpack.c.l.b16 %v133
  %v1454 = vunpack.c.h.b16 %v133
  %v1455 = vunpack.c.l.b16 %v134
  %v1456 = vunpack.c.h.b16 %v134
  %v1457 = vunpack.c.l.b16 %v135
  %v1458 = vunpack.c.h.b16 %v135
  %v1459 = vunpack.c.l.b16 %v136
  %v1460 = vunpack.c.h.b16 %v136
  %v1461 = vunpack.c.l.b16 %v137
  %v1462 = vunpack.c.h.b16 %v137
  %v1463 = vunpack.c.l.b16 %v138
  %v1464 = vunpack.c.h.b16 %v138
  %v1465 = vunpack.c.l.b16 %v139
  %v1466 = vunpack.c.h.b16 %v139
  %v1467 = vunpack.c.l.b16 %v140
  %v1468 = vunpack.c.h.b16 %v140
  %v1469 = vunpack.c.l.b16 %v141
  %v1470 = vunpack.c.h.b16 %v141
  %v1471 = vunpack.c.l.b16 %v142
  %v1472 = vunpack.c.h.b16 %v142
  %v1473 = vunpack.c.l.b16 %v143
  %v1474 = vunpack.c.h.b16 %v143
  %v1475 = vunpack.c.l.b16 %v144
  %v1476 = vunpack.c.h.b16 %v144
  %v1477 = vunpack.c.l.b16 %v145
  %v1478 = vunpack.c.h.b16 %v145
  %v1479 = vunpack.c.l.b16 %v146
  %v1480 = vunpack.c.h.b16 %v146
  %v1481 = vunpack.c.l.b16 %v147
  %v1482 = vunpack.c.h.b16 %v147
  %v1483 = vunpack.c.l.b16 %v148
  %v1484 = vunpack.c.h.b16 %v148
  %v1485 = vunpack.c.l.b16 %v149
  %v1486 = vunpack.c.h.b16 %v149
  %v1487 = vunpack.c.l.b16 %v150
  %v1488 = vunpack.c.h.b16 %v150
  %v1489 = vunpack.c.l.b16 %v151
  %v1490 = vunpack.c.h.b16 %v151
  %v1491 = vunpack.c.l.b16 %v152
  %v1492 = vunpack.c.h.b16 %v152
  %v1493 = vunpack.c.l.b16 %v153
  %v1494 = vunpack.c.h.b16 %v153
  %v1495 = vunpack.c.l.b16 %v154
  %v1496 = vunpack.c.h.b16 %v154
  %v1497 = vunpack.c.l.b16 %v155
  %v1498 = vunpack.c.h.b16 %v155
  %v1499 = vunpack.c.l.b16 %v156
  %v1500 = vunpack.c.h.b16 %v156
  %v1501 = vunpack.c.l.b16 %v157
  %v1502 = vunpack.c.h.b16 %v157
  %v1503 = vunpack.c.l.b16 %v158
  %v1504 = vunpack.c.h.b16 %v158
  %v1505 = vunpack.c.l.b16 %v159
  %v1506 = vunpack.c.h.b16 %v159
  %v1507 = vunpack.c.l.b16 %v160
  %v1508 = vunpack.c.h.b16 %v160
  %v1509 = vunpack.c.l.b16 %v161
  %v1510 = vunpack.c.h.b16 %v161
  %v1511 = vunpack.c.l.b16 %v162
  %v1512 = vunpack.c.h.b16 %v162
  %v1513 = vunpack.c.l.b16 %v163
  %v1514 = vunpack.c.h.b16 %v163
  %v1515 = vunpack.c.l.b16 %v164
  %v1516 = vunpack.c.h.b16 %v164
  %v1517 = vunpack.c.l.b16 %v165
  %v1518 = vunpack.c.h.b16 %v165
  %v1519 = vunpack.c.l.b16 %v166
  %v1520 = vunpack.c.h.b16 %v166
  %v1521 = vunpack.c.l.b16 %v167
  %v1522 = vunpack.c.h.b16 %v167
  %v1523 = vunpack.c.l.b16 %v168
  %v1524 = vunpack.c.h.b16 %v168
  %v1525 = vunpack.c.l.b16 %v169
  %v1526 = vunpack.c.h.b16 %v169
  %v1527 = vunpack.c.l.b16 %v170
  %v1528 = vunpack.c.h.b16 %v170
  %v1529 = vunpack.c.l.b16 %v171
  %v1530 = vunpack.c.h.b16 %v171
  %v1531 = vunpack.c.l.b16 %v172
  %v1532 = vunpack.c.l.b16 %v173
  %v1533 = vunpack.c.h.b16 %v173
  %v1534 = vunpack.c.l.b16 %v174
  %v1535 = vunpack.c.h.b16 %v174
  %v1536 = vunpack.c.l.b16 %v175
  %v1537 = vunpack.c.h.b16 %v175
  %v1538 = vunpack.c.l.b16 %v176
  %v1539 = vunpack.c.h.b16 %v176
  %v1540 = vunpack.c.l.b16 %v177
  %v1541 = vunpack.c.h.b16 %v177
  %v1542 = vunpack.c.l.b16 %v178
  %v1543 = vunpack.c.h.b16 %v178
  %v1544 = vunpack.c.l.b16 %v179
  %v1545 = vunpack.c.h.b16 %v179
  %v1546 = vunpack.c.l.b16 %v180
  %v1547 = vunpack.c.h.b16 %v180
  %v1548 = vunpack.c.l.b16 %v181
  %v1549 = vunpack.c.h.b16 %v181
  %v1550 = vunpack.c.l.b16 %v182
  %v1551 = vunpack.c.h.b16 %v182
  %v1552 = vunpack.c.l.b16 %v183
  %v1553 = vunpack.c.h.b16 %v183
  %v1554 = vunpack.c.l.b16 %v184
  %v1555 = vunpack.c.h.b16 %v184
  %v1556 = vunpack.c.l.b16 %v185
  %v1557 = vunpack.c.h.b16 %v185
  %v1558 = vunpack.c.l.b16 %v186
  %v1559 = vunpack.c.h.b16 %v186
  %v1560 = vunpack.c.l.b16 %v187
  %v1561 = vunpack.c.h.b16 %v187
  %v1562 = vunpack.c.l.b16 %v188
  %v1563 = vunpack.c.h.b16 %v188
  %v1564 = vunpack.c.l.b16 %v189
  %v1565 = vunpack.c.h.b16 %v189
  %v1566 = vunpack.c.l.b16 %v190
  %v1567 = vunpack.c.h.b16 %v190
  %v1568 = vunpack.c.l.b16 %v191
  %v1569 = vunpack.c.h.b16 %v191
  %v1570 = vunpack.c.l.b16 %v192
  %v1571 = vunpack.c.h.b16 %v192
  %v1572 = vunpack.c.l.b16 %v193
  %v1573 = vunpack.c.h.b16 %v193
  %v1574 = vunpack.c.l.b16 %v194
  %v1575 = vunpack.c.h.b16 %v194
  %v1576 = vunpack.c.l.b16 %v195
  %v1577 = vunpack.c.h.b16 %v195
  %v1578 = vunpack.c.l.b16 %v196
  %v1579 = vunpack.c.h.b16 %v196
  %v1580 = vunpack.c.l.b16 %v197
  %v1581 = vunpack.c.h.b16 %v197
  %v1582 = vunpack.c.l.b16 %v198
  %v1583 = vunpack.c.h.b16 %v198
  %v1584 = vunpack.c.l.b16 %v199
  %v1585 = vunpack.c.h.b16 %v199
  %v1586 = vunpack.c.l.b16 %v200
  %v1587 = vunpack.c.h.b16 %v200
  %v1588 = vunpack.c.l.b16 %v201
  %v1589 = vunpack.c.h.b16 %v201
  %v1590 = vunpack.c.l.b16 %v202
  %v1591 = vunpack.c.h.b16 %v202
  %v1592 = vunpack.c.l.b16 %v203
  %v1593 = vunpack.c.h.b16 %v203
  %v1594 = vunpack.c.l.b16 %v204
  %v1595 = vunpack.c.h.b16 %v204
  %v1596 = vunpack.c.l.b16 %v205
  %v1597 = vunpack.c.h.b16 %v205
  %v1598 = vunpack.c.l.b16 %v206
  %v1599 = vunpack.c.h.b16 %v206
  %v1600 = vunpack.c.l.b16 %v207
  %v1601 = vunpack.c.h.b16 %v207
  %v1602 = vunpack.c.l.b16 %v208
  %v1603 = vunpack.c.h.b16 %v208
  %v1604 = vunpack.c.l.b16 %v209
  %v1605 = vunpack.c.h.b16 %v209
  %v1606 = vunpack.c.l.b16 %v210
  %v1607 = vunpack.c.h.b16 %v210
  %v1608 = vunpack.c.l.b16 %v211
  %v1609 = vunpack.c.h.b16 %v211
  %v1610 = vunpack.c.l.b16 %v212
  %v1611 = vunpack.c.h.b16 %v212
  %v1612 = vunpack.c.l.b16 %v213
  %v1613 = vunpack.c.h.b16 %v213
  %v1614 = vunpack.c.l.b16 %v214
  %v1615 = vunpack.c.h.b16 %v214
  %v1616 = vunpack.c.l.b16 %v215
  %v1617 = vunpack.c.l.b16 %v216
  %v1618 = vunpack.c.h.b16 %v216
  %v1619 = vunpack.c.l.b16 %v217
  %v1620 = vunpack.c.h.b16 %v217
  %v1621 = vunpack.c.l.b16 %v218
  %v1622 = vunpack.c.h.b16 %v218
  %v1623 = vunpack.c.l.b16 %v219
  %v1624 = vunpack.c.h.b16 %v219
  %v1625 = vunpack.c.l.b16 %v220
  %v1626 = vunpack.c.h.b16 %v220
  %v1627 = vunpack.c.l.b16 %v221
  %v1628 = vunpack.c.h.b16 %v221
  %v1629 = vunpack.c.l.b16 %v222
  %v1630 = vunpack.c.h.b16 %v222
  %v1631 = vunpack.c.l.b16 %v223
  %v1632 = vunpack.c.h.b16 %v223
  %v1633 = vunpack.c.l.b16 %v224
  %v1634 = vunpack.c.h.b16 %v224
  %v1635 = vunpack.c.l.b16 %v225
  %v1636 = vunpack.c.h.b16 %v225
  %v1637 = vunpack.c.l.b16 %v226
  %v1638 = vunpack.c.h.b16 %v226
  %v1639 = vunpack.c.l.b16 %v227
  %v1640 = vunpack.c.h.b16 %v227
  %v1641 = vunpack.c.l.b16 %v228
  %v1642 = vunpack.c.h.b16 %v228
  %v1643 = vunpack.c.l.b16 %v229
  %v1644 = vunpack.c.h.b16 %v229
  %v1645 = vunpack.c.l.b16 %v230
  %v1646 = vunpack.c.h.b16 %v230
  %v1647 = vunpack.c.l.b16 %v231
  %v1648 = vunpack.c.h.b16 %v231
  %v1649 = vunpack.c.l.b16 %v232
  %v1650 = vunpack.c.h.b16 %v232
  %v1651 = vunpack.c.l.b16 %v233
  %v1652 = vunpack.c.h.b16 %v233
  %v1653 = vunpack.c.l.b16 %v234
  %v1654 = vunpack.c.h.b16 %v234
  %v1655 = vunpack.c.l.b16 %v235
  %v1656 = vunpack.c.h.b16 %v235
  %v1657 = vunpack.c.l.b16 %v236
  %v1658 = vunpack.c.h.b16 %v236
  %v1659 = vunpack.c.l.b16 %v237
  %v1660 = vunpack.c.h.b16 %v237
  %v1661 = vunpack.c.l.b16 %v238
  %v1662 = vunpack.c.h.b16 %v238
  %v1663 = vunpack.c.l.b16 %v239
  %v1664 = vunpack.c.h.b16 %v239
  %v1665 = vunpack.c.l.b16 %v240
  %v1666 = vunpack.c.h.b16 %v240
  %v1667 = vunpack.c.l.b16 %v241
  %v1668 = vunpack.c.h.b16 %v241
  %v1669 = vunpack.c.l.b16 %v242
  %v1670 = vunpack.c.h.b16 %v242
  %v1671 = vunpack.c.l.b16 %v243
  %v1672 = vunpack.c.h.b16 %v243
  %v1673 = vunpack.c.l.b16 %v244
  %v1674 = vunpack.c.h.b16 %v244
  %v1675 = vunpack.c.l.b16 %v245
  %v1676 = vunpack.c.h.b16 %v245
  %v1677 = vunpack.c.l.b16 %v246
  %v1678 = vunpack.c.h.b16 %v246
  %v1679 = vunpack.c.l.b16 %v247
  %v1680 = vunpack.c.h.b16 %v247
  %v1681 = vunpack.c.l.b16 %v248
  %v1682 = vunpack.c.h.b16 %v248
  %v1683 = vunpack.c.l.b16 %v249
  %v1684 = vunpack.c.h.b16 %v249
  %v1685 = vunpack.c.l.b16 %v250
  %v1686 = vunpack.c.h.b16 %v250
  %v1687 = vunpack.c.l.b16 %v251
  %v1688 = vunpack.c.h.b16 %v251
  %v1689 = vunpack.c.l.b16 %v252
  %v1690 = vunpack.c.h.b16 %v252
  %v1691 = vunpack.c.l.b16 %v253
  %v1692 = vunpack.c.h.b16 %v253
  %v1693 = vunpack.c.l.b16 %v254
  %v1694 = vunpack.c.h.b16 %v254
  %v1695 = vunpack.c.l.b16 %v255
  %v1696 = vunpack.c.h.b16 %v255
  %v1697 = vunpack.c.l.b16 %v256
  %v1698 = vunpack.c.h.b16 %v256
  %v1699 = vunpack.c.l.b16 %v257
  %v1700 = vunpack.c.h.b16 %v257
  %v1701 = vunpack.c.l.b16 %v258
  %v1702 = vunpack.c.l.b16 %v259
  %v1703 = vunpack.c.h.b16 %v259
  %v1704 = vunpack.c.l.b16 %v260
  %v1705 = vunpack.c.h.b16 %v260
  %v1706 = vunpack.c.l.b16 %v261
  %v1707 = vunpack.c.h.b16 %v261
  %v1708 = vunpack.c.l.b16 %v262
  %v1709 = vunpack.c.h.b16 %v262
  %v1710 = vunpack.c.l.b16 %v263
  %v1711 = vunpack.c.h.b16 %v263
  %v1712 = vunpack.c.l.b16 %v264
  %v1713 = vunpack.c.h.b16 %v264
  %v1714 = vunpack.c.l.b16 %v265
  %v1715 = vunpack.c.h.b16 %v265
  %v1716 = vunpack.c.l.b16 %v266
  %v1717 = vunpack.c.h.b16 %v266
  %v1718 = vunpack.c.l.b16 %v267
  %v1719 = vunpack.c.h.b16 %v267
  %v1720 = vunpack.c.l.b16 %v268
  %v1721 = vunpack.c.h.b16 %v268
  %v1722 = vunpack.c.l.b16 %v269
  %v1723 = vunpack.c.h.b16 %v269
  %v1724 = vunpack.c.l.b16 %v270
  %v1725 = vunpack.c.h.b16 %v270
  %v1726 = vunpack.c.l.b16 %v271
  %v1727 = vunpack.c.h.b16 %v271
  %v1728 = vunpack.c.l.b16 %v272
  %v1729 = vunpack.c.h.b16 %v272
  %v1730 = vunpack.c.l.b16 %v273
  %v1731 = vunpack.c.h.b16 %v273
  %v1732 = vunpack.c.l.b16 %v274
  %v1733 = vunpack.c.h.b16 %v274
  %v1734 = vunpack.c.l.b16 %v275
  %v1735 = vunpack.c.h.b16 %v275
  %v1736 = vunpack.c.l.b16 %v276
  %v1737 = vunpack.c.h.b16 %v276
  %v1738 = vunpack.c.l.b16 %v277
  %v1739 = vunpack.c.h.b16 %v277
  %v1740 = vunpack.c.l.b16 %v278
  %v1741 = vunpack.c.h.b16 %v278
  %v1742 = vunpack.c.l.b16 %v279
  %v1743 = vunpack.c.h.b16 %v279
  %v1744 = vunpack.c.l.b16 %v280
  %v1745 = vunpack.c.h.b16 %v280
  %v1746 = vunpack.c.l.b16 %v281
  %v1747 = vunpack.c.h.b16 %v281
  %v1748 = vunpack.c.l.b16 %v282
  %v1749 = vunpack.c.h.b16 %v282
  %v1750 = vunpack.c.l.b16 %v283
  %v1751 = vunpack.c.h.b16 %v283
  %v1752 = vunpack.c.l.b16 %v284
  %v1753 = vunpack.c.h.b16 %v284
  %v1754 = vunpack.c.l.b16 %v285
  %v1755 = vunpack.c.h.b16 %v285
  %v1756 = vunpack.c.l.b16 %v286
  %v1757 = vunpack.c.h.b16 %v286
  %v1758 = vunpack.c.l.b16 %v287
  %v1759 = vunpack.c.h.b16 %v287
  %v1760 = vunpack.c.l.b16 %v288
  %v1761 = vunpack.c.h.b16 %v288
  %v1762 = vunpack.c.l.b16 %v289
  %v1763 = vunpack.c.h.b16 %v289
  %v1764 = vunpack.c.l.b16 %v290
  %v1765 = vunpack.c.h.b16 %v290
  %v1766 = vunpack.c.l.b16 %v291
  %v1767 = vunpack.c.h.b16 %v291
  %v1768 = vunpack.c.l.b16 %v292
  %v1769 = vunpack.c.h.b16 %v292
  %v1770 = vunpack.c.l.b16 %v293
  %v1771 = vunpack.c.h.b16 %v293
  %v1772 = vunpack.c.l.b16 %v294
  %v1773 = vunpack.c.h.b16 %v294
  %v1774 = vunpack.c.l.b16 %v295
  %v1775 = vunpack.c.h.b16 %v295
  %v1776 = vunpack.c.l.b16 %v296
  %v1777 = vunpack.c.h.b16 %v296
  %v1778 = vunpack.c.l.b16 %v297
  %v1779 = vunpack.c.h.b16 %v297
  %v1780 = vunpack.c.l.b16 %v298
  %v1781 = vunpack.c.h.b16 %v298
  %v1782 = vunpack.c.l.b16 %v299
  %v1783 = vunpack.c.h.b16 %v299
  %v1784 = vunpack.c.l.b16 %v300
  %v1785 = vunpack.c.h.b16 %v300
  %v1786 = vunpack.c.l.b16 %v301
  %v1787 = vunpack.c.l.b16 %v302
  %v1788 = vunpack.c.h.b16 %v302
  %v1789 = vunpack.c.l.b16 %v303
  %v1790 = vunpack.c.h.b16 %v303
  %v1791 = vunpack.c.l.b16 %v304
  %v1792 = vunpack.c.h.b16 %v304
  %v1793 = vunpack.c.l.b16 %v305
  %v1794 = vunpack.c.h.b16 %v305
  %v1795 = vunpack.c.l.b16 %v306
  %v1796 = vunpack.c.h.b16 %v306
  %v1797 = vunpack.c.l.b16 %v307
  %v1798 = vunpack.c.h.b16 %v307
  %v1799 = vunpack.c.l.b16 %v308
  %v1800 = vunpack.c.h.b16 %v308
  %v1801 = vunpack.c.l.b16 %v309
  %v1802 = vunpack.c.h.b16 %v309
  %v1803 = vunpack.c.l.b16 %v310
  %v1804 = vunpack.c.h.b16 %v310
  %v1805 = vunpack.c.l.b16 %v311
  %v1806 = vunpack.c.h.b16 %v311
  %v1807 = vunpack.c.l.b16 %v312
  %v1808 = vunpack.c.h.b16 %v312
  %v1809 = vunpack.c.l.b16 %v313
  %v1810 = vunpack.c.h.b16 %v313
  %v1811 = vunpack.c.l.b16 %v314
  %v1812 = vunpack.c.h.b16 %v314
  %v1813 = vunpack.c.l.b16 %v315
  %v1814 = vunpack.c.h.b16 %v315
  %v1815 = vunpack.c.l.b16 %v316
  %v1816 = vunpack.c.h.b16 %v316
  %v1817 = vunpack.c.l.b16 %v317
  %v1818 = vunpack.c.h.b16 %v317
  %v1819 = vunpack.c.l.b16 %v318
  %v1820 = vunpack.c.h.b16 %v318
  %v1821 = vunpack.c.l.b16 %v319
  %v1822 = vunpack.c.h.b16 %v319
  %v1823 = vunpack.c.l.b16 %v320
  %v1824 = vunpack.c.h.b16 %v320
  %v1825 = vunpack.c.l.b16 %v321
  %v1826 = vunpack.c.h.b16 %v321
  %v1827 = vunpack.c.l.b16 %v322
  %v1828 = vunpack.c.h.b16 %v322
  %v1829 = vunpack.c.l.b16 %v323
  %v1830 = vunpack.c.h.b16 %v323
  %v1831 = vunpack.c.l.b16 %v324
  %v1832 = vunpack.c.h.b16 %v324
  %v1833 = vunpack.c.l.b16 %v325
  %v1834 = vunpack.c.h.b16 %v325
  %v1835 = vunpack.c.l.b16 %v326
  %v1836 = vunpack.c.h.b16 %v326
  %v1837 = vunpack.c.l.b16 %v327
  %v1838 = vunpack.c.h.b16 %v327
  %v1839 = vunpack.c.l.b16 %v328
  %v1840 = vunpack.c.h.b16 %v328
  %v1841 = vunpack.c.l.b16 %v329
  %v1842 = vunpack.c.h.b16 %v329
  %v1843 = vunpack.c.l.b16 %v330
  %v1844 = vunpack.c.h.b16 %v330
  %v1845 = vunpack.c.l.b16 %v331
  %v1846 = vunpack.c.h.b16 %v331
  %v1847 = vunpack.c.l.b16 %v332
  %v1848 = vunpack.c.h.b16 %v332
  %v1849 = vunpack.c.l.b16 %v333
  %v1850 = vunpack.c.h.b16 %v333
  %v1851 = vunpack.c.l.b16 %v334
  %v1852 = vunpack.c.h.b16 %v334
  %v1853 = vunpack.c.l.b16 %v335
  %v1854 = vunpack.c.h.b16 %v335
  %v1855 = vunpack.c.l.b16 %v336
  %v1856 = vunpack.c.h.b16 %v336
  %v1857 = vunpack.c.l.b16 %v337
  %v1858 = vunpack.c.h.b16 %v337
  %v1859 = vunpack.c.l.b16 %v338
  %v1860 = vunpack.c.h.b16 %v338
  %v1861 = vunpack.c.l.b16 %v339
  %v1862 = vunpack.c.h.b16 %v339
  %v1863 = vunpack.c.l.b16 %v340
  %v1864 = vunpack.c.h.b16 %v340
  %v1865 = vunpack.c.l.b16 %v341
  %v1866 = vunpack.c.h.b16 %v341
  %v1867 = vunpack.c.l.b16 %v342
  %v1868 = vunpack.c.h.b16 %v342
  %v1869 = vunpack.c.l.b16 %v343
  %v1870 = vunpack.c.h.b16 %v343
  %v1871 = vunpack.c.l.b16 %v344
  %v1872 = vpack.c.b16 %v1362, %v1277
  %v1873 = vpack.c.b16 %v1363, %v1278
  %v1874 = vpack.c.b16 %v1364, %v1279
  %v1875 = vpack.c.b16 %v1365, %v1280
  %v1876 = vpack.c.b16 %v1366, %v1281
  %v1877 = vpack.c.b16 %v1367, %v1282
  %v1878 = vpack.c.b16 %v1368, %v1283
  %v1879 = vpack.c.b16 %v1369, %v1284
  %v1880 = vpack.c.b16 %v1370, %v1285
  %v1881 = vpack.c.b16 %v1371, %v1286
  %v1882 = vpack.c.b16 %v1372, %v1287
  %v1883 = vpack.c.b16 %v1373, %v1288
  %v1884 = vpack.c.b16 %v1374, %v1289
  %v1885 = vpack.c.b16 %v1375, %v1290
  %v1886 = vpack.c.b16 %v1376, %v1291
  %v1887 = vpack.c.b16 %v1377, %v1292
  %v1888 = vpack.c.b16 %v1378, %v1293
  %v1889 = vpack.c.b16 %v1379, %v1294
  %v1890 = vpack.c.b16 %v1380, %v1295
  %v1891 = vpack.c.b16 %v1381, %v1296
  %v1892 = vpack.c.b16 %v1382, %v1297
  %v1893 = vpack.c.b16 %v1383, %v1298
  %v1894 = vpack.c.b16 %v1384, %v1299
  %v1895 = vpack.c.b16 %v1385, %v1300
  %v1896 = vpack.c.b16 %v1386, %v1301
  %v1897 = vpack.c.b16 %v1387, %v1302
  %v1898 = vpack.c.b16 %v1388, %v1303
  %v1899 = vpack.c.b16 %v1389, %v1304
  %v1900 = vpack.c.b16 %v1390, %v1305
  %v1901 = vpack.c.b16 %v1391, %v1306
  %v1902 = vpack.c.b16 %v1392, %v1307
  %v1903 = vpack.c.b16 %v1393, %v1308
  %v1904 = vpack.c.b16 %v1394, %v1309
  %v1905 = vpack.c.b16 %v1395, %v1310
  %v1906 = vpack.c.b16 %v1396, %v1311
  %v1907 = vpack.c.b16 %v1397, %v1312
  %v1908 = vpack.c.b16 %v1398, %v1313
  %v1909 = vpack.c.b16 %v1399, %v1314
  %v1910 = vpack.c.b16 %v1400, %v1315
  %v1911 = vpack.c.b16 %v1401, %v1316
  %v1912 = vpack.c.b16 %v1402, %v1317
  %v1913 = vpack.c.b16 %v1403, %v1318
  %v1914 = vpack.c.b16 %v1404, %v1319
  %v1915 = vpack.c.b16 %v1405, %v1320
  %v1916 = vpack.c.b16 %v1406, %v1321
  %v1917 = vpack.c.b16 %v1407, %v1322
  %v1918 = vpack.c.b16 %v1408, %v1323
  %v1919 = vpack.c.b16 %v1409, %v1324
  %v1920 = vpack.c.b16 %v1410, %v1325
  %v1921 = vpack.c.b16 %v1411, %v1326
  %v1922 = vpack.c.b16 %v1412, %v1327
  %v1923 = vpack.c.b16 %v1413, %v1328
  %v1924 = vpack.c.b16 %v1414, %v1329
  %v1925 = vpack.c.b16 %v1415, %v1330
  %v1926 = vpack.c.b16 %v1416, %v1331
  %v1927 = vpack.c.b16 %v1417, %v1332
  %v1928 = vpack.c.b16 %v1418, %v1333
  %v1929 = vpack.c.b16 %v1419, %v1334
  %v1930 = vpack.c.b16 %v1420, %v1335
  %v1931 = vpack.c.b16 %v1421, %v1336
  %v1932 = vpack.c.b16 %v1422, %v1337
  %v1933 = vpack.c.b16 %v1423, %v1338
  %v1934 = vpack.c.b16 %v1424, %v1339
  %v1935 = vpack.c.b16 %v1425, %v1340
  %v1936 = vpack.c.b16 %v1426, %v1341
  %v1937 = vpack.c.b16 %v1427, %v1342
  %v1938 = vpack.c.b16 %v1428, %v1343
  %v1939 = vpack.c.b16 %v1429, %v1344
  %v1940 = vpack.c.b16 %v1430, %v1345
  %v1941 = vpack.c.b16 %v1431, %v1346
  %v1942 = vpack.c.b16 %v1432, %v1347
  %v1943 = vpack.c.b16 %v1433, %v1348
  %v1944 = vpack.c.b16 %v1434, %v1349
  %v1945 = vpack.c.b16 %v1435, %v1350
  %v1946 = vpack.c.b16 %v1436, %v1351
  %v1947 = vpack.c.b16 %v1437, %v1352
  %v1948 = vpack.c.b16 %v1438, %v1353
  %v1949 = vpack.c.b16 %v1439, %v1354
  %v1950 = vpack.c.b16 %v1440, %v1355
  %v1951 = vpack.c.b16 %v1441, %v1356
  %v1952 = vpack.c.b16 %v1442, %v1357
  %v1953 = vpack.c.b16 %v1443, %v1358
  %v1954 = vpack.c.b16 %v1444, %v1359
  %v1955 = vpack.c.b16 %v1445, %v1360
  %v1956 = vpack.c.b16 %v1446, %v1361
  %v1957 = vpack.c.b16 %v1532, %v1447
  %v1958 = vpack.c.b16 %v1533, %v1448
  %v1959 = vpack.c.b16 %v1534, %v1449
  %v1960 = vpack.c.b16 %v1535, %v1450
  %v1961 = vpack.c.b16 %v1536, %v1451
  %v1962 = vpack.c.b16 %v1537, %v1452
  %v1963 = vpack.c.b16 %v1538, %v1453
  %v1964 = vpack.c.b16 %v1539, %v1454
  %v1965 = vpack.c.b16 %v1540, %v1455
  %v1966 = vpack.c.b16 %v1541, %v1456
  %v1967 = vpack.c.b16 %v1542, %v1457
  %v1968 = vpack.c.b16 %v1543, %v1458
  %v1969 = vpack.c.b16 %v1544, %v1459
  %v1970 = vpack.c.b16 %v1545, %v1460
  %v1971 = vpack.c.b16 %v1546, %v1461
  %v1972 = vpack.c.b16 %v1547, %v1462
  %v1973 = vpack.c.b16 %v1548, %v1463
  %v1974 = vpack.c.b16 %v1549, %v1464
  %v1975 = vpack.c.b16 %v1550, %v1465
  %v1976 = vpack.c.b16 %v1551, %v1466
  %v1977 = vpack.c.b16 %v1552, %v1467
  %v1978 = vpack.c.b16 %v1553, %v1468
  %v1979 = vpack.c.b16 %v1554, %v1469
  %v1980 = vpack.c.b16 %v1555, %v1470
  %v1981 = vpack.c.b16 %v1556, %v1471
  %v1982 = vpack.c.b16 %v1557, %v1472
  %v1983 = vpack.c.b16 %v1558, %v1473
  %v1984 = vpack.c.b16 %v1559, %v1474
  %v1985 = vpack.c.b16 %v1560, %v1475
  %v1986 = vpack.c.b16 %v1561, %v1476
  %v1987 = vpack.c.b16 %v1562, %v1477
  %v1988 = vpack.c.b16 %v1563, %v1478
  %v1989 = vpack.c.b16 %v1564, %v1479
  %v1990 = vpack.c.b16 %v1565, %v1480
  %v1991 = vpack.c.b16 %v1566, %v1481
  %v1992 = vpack.c.b16 %v1567, %v1482
  %v1993 = vpack.c.b16 %v1568, %v1483
  %v1994 = vpack.c.b16 %v1569, %v1484
  %v1995 = vpack.c.b16 %v1570, %v1485
  %v1996 = vpack.c.b16 %v1571, %v1486
  %v1997 = vpack.c.b16 %v1572, %v1487
  %v1998 = vpack.c.b16 %v1573, %v1488
  %v1999 = vpack.c.b16 %v1574, %v1489
  %v2000 = vpack.c.b16 %v1575, %v1490
  %v2001 = vpack.c.b16 %v1576, %v1491
  %v2002 = vpack.c.b16 %v1577, %v1492
  %v2003 = vpack.c.b16 %v1578, %v1493
  %v2004 = vpack.c.b16 %v1579, %v1494
  %v2005 = vpack.c.b16 %v1580, %v1495
  %v2006 = vpack.c.b16 %v1581, %v1496
  %v2007 = vpack.c.b16 %v1582, %v1497
  %v2008 = vpack.c.b16 %v1583, %v1498
  %v2009 = vpack.c.b16 %v1584, %v1499
  %v2010 = vpack.c.b16 %v1585, %v1500
  %v2011 = vpack.c.b16 %v1586, %v1501
  %v2012 = vpack.c.b16 %v1587, %v1502
  %v2013 = vpack.c.b16 %v1588, %v1503
  %v2014 = vpack.c.b16 %v1589, %v1504
  %v2015 = vpack.c.b16 %v1590, %v1505
  %v2016 = vpack.c.b16 %v1591, %v1506
  %v2017 = vpack.c.b16 %v1592, %v1507
  %v2018 = vpack.c.b16 %v1593, %v1508
  %v2019 = vpack.c.b16 %v1594, %v1509
  %v2020 = vpack.c.b16 %v1595, %v1510
  %v2021 = vpack.c.b16 %v1596, %v1511
  %v2022 = vpack.c.b16 %v1597, %v1512
  %v2023 = vpack.c.b16 %v1598, %v1513
  %v2024 = vpack.c.b16 %v1599, %v1514
  %v2025 = vpack.c.b16 %v1600, %v1515
  %v2026 = vpack.c.b16 %v1601, %v1516
  %v2027 = vpack.c.b16 %v1602, %v1517
  %v2028 = vpack.c.b16 %v1603, %v1518
  %v2029 = vpack.c.b16 %v1604, %v1519
  %v2030 = vpack.c.b16 %v1605, %v1520
  %v2031 = vpack.c.b16 %v1606, %v1521
  %v2032 = vpack.c.b16 %v1607, %v1522
  %v2033 = vpack.c.b16 %v1608, %v1523
  %v2034 = vpack.c.b16 %v1609, %v1524
  %v2035 = vpack.c.b16 %v1610, %v1525
  %v2036 = vpack.c.b16 %v1611, %v1526
  %v2037 = vpack.c.b16 %v1612, %v1527
  %v2038 = vpack.c.b16 %v1613, %v1528
  %v2039 = vpack.c.b16 %v1614, %v1529
  %v2040 = vpack.c.b16 %v1615, %v1530
  %v2041 = vpack.c.b16 %v1616, %v1531
  %v2042 = vpack.c.b16 %v1702, %v1617
  %v2043 = vpack.c.b16 %v1703, %v1618
  %v2044 = vpack.c.b16 %v1704, %v1619
  %v2045 = vpack.c.b16 %v1705, %v1620
  %v2046 = vpack.c.b16 %v1706, %v1621
  %v2047 = vpack.c.b16 %v1707, %v1622
  %v2048 = vpack.c.b16 %v1708, %v1623
  %v2049 = vpack.c.b16 %v1709, %v1624
  %v2050 = vpack.c.b16 %v1710, %v1625
  %v2051 = vpack.c.b16 %v1711, %v1626
  %v2052 = vpack.c.b16 %v1712, %v1627
  %v2053 = vpack.c.b16 %v1713, %v1628
  %v2054 = vpack.c.b16 %v1714, %v1629
  %v2055 = vpack.c.b16 %v1715, %v1630
  %v2056 = vpack.c.b16 %v1716, %v1631
  %v2057 = vpack.c.b16 %v1717, %v1632
  %v2058 = vpack.c.b16 %v1718, %v1633
  %v2059 = vpack.c.b16 %v1719, %v1634
  %v2060 = vpack.c.b16 %v1720, %v1635
  %v2061 = vpack.c.b16 %v1721, %v1636
  %v2062 = vpack.c.b16 %v1722, %v1637
  %v2063 = vpack.c.b16 %v1723, %v1638
  %v2064 = vpack.c.b16 %v1724, %v1639
  %v2065 = vpack.c.b16 %v1725, %v1640
  %v2066 = vpack.c.b16 %v1726, %v1641
  %v2067 = vpack.c.b16 %v1727, %v1642
  %v2068 = vpack.c.b16 %v1728, %v1643
  %v2069 = vpack.c.b16 %v1729, %v1644
  %v2070 = vpack.c.b16 %v1730, %v1645
  %v2071 = vpack.c.b16 %v1731, %v1646
  %v2072 = vpack.c.b16 %v1732, %v1647
  %v2073 = vpack.c.b16 %v1733, %v1648
  %v2074 = vpack.c.b16 %v1734, %v1649
  %v2075 = vpack.c.b16 %v1735, %v1650
  %v2076 = vpack.c.b16 %v1736, %v1651
  %v2077 = vpack.c.b16 %v1737, %v1652
  %v2078 = vpack.c.b16 %v1738, %v1653
  %v2079 = vpack.c.b16 %v1739, %v1654
  %v2080 = vpack.c.b16 %v1740, %v1655
  %v2081 = vpack.c.b16 %v1741, %v1656
  %v2082 = vpack.c.b16 %v1742, %v1657
  %v2083 = vpack.c.b16 %v1743, %v1658
  %v2084 = vpack.c.b16 %v1744, %v1659
  %v2085 = vpack.c.b16 %v1745, %v1660
  %v2086 = vpack.c.b16 %v1746, %v1661
  %v2087 = vpack.c.b16 %v1747, %v1662
  %v2088 = vpack.c.b16 %v1748, %v1663
  %v2089 = vpack.c.b16 %v1749, %v1664
  %v2090 = vpack.c.b16 %v1750, %v1665
  %v2091 = vpack.c.b16 %v1751, %v1666
  %v2092 = vpack.c.b16 %v1752, %v1667
  %v2093 = vpack.c.b16 %v1753, %v1668
  %v2094 = vpack.c.b16 %v1754, %v1669
  %v2095 = vpack.c.b16 %v1755, %v1670
  %v2096 = vpack.c.b16 %v1756, %v1671
  %v2097 = vpack.c.b16 %v1757, %v1672
  %v2098 = vpack.c.b16 %v1758, %v1673
  %v2099 = vpack.c.b16 %v1759, %v1674
  %v2100 = vpack.c.b16 %v1760, %v1675
  %v2101 = vpack.c.b16 %v1761, %v1676
  %v2102 = vpack.c.b16 %v1762, %v1677
  %v2103 = vpack.c.b16 %v1763, %v1678
  %v2104 = vpack.c.b16 %v1764, %v1679
  %v2105 = vpack.c.b16 %v1765, %v1680
  %v2106 = vpack.c.b16 %v1766, %v1681
  %v2107 = vpack.c.b16 %v1767, %v1682
  %v2108 = vpack.c.b16 %v1768, %v1683
  %v2109 = vpack.c.b16 %v1769, %v1684
  %v2110 = vpack.c.b16 %v1770, %v1685
  %v2111 = vpack.c.b16 %v1771, %v1686
  %v2112 = vpack.c.b16 %v1772, %v1687
  %v2113 = vpack.c.b16 %v1773, %v1688
  %v2114 = vpack.c.b16 %v1774, %v1689
  %v2115 = vpack.c.b16 %v1775, %v1690
  %v2116 = vpack.c.b16 %v1776, %v1691
  %v2117 = vpack.c.b16 %v1777, %v1692
  %v2118 = vpack.c.b16 %v1778, %v1693
  %v2119 = vpack.c.b16 %v1779, %v1694
  %v2120 = vpack.c.b16 %v1780, %v1695
  %v2121 = vpack.c.b16 %v1781, %v1696
  %v2122 = vpack.c.b16 %v1782, %v1697
  %v2123 = vpack.c.b16 %v1783, %v1698
  %v2124 = vpack.c.b16 %v1784, %v1699
  %v2125 = vpack.c.b16 %v1785, %v1700
  %v2126 = vpack.c.b16 %v1786, %v1701
  %v2127 = vpack.c.b16 %v1787, %v1787
  %v2128 = vpack.c.b16 %v1788, %v1788
  %v2129 = vpack.c.b16 %v1789, %v1789
  %v2130 = vpack.c.b16 %v1790, %v1790
  %v2131 = vpack.c.b16 %v1791, %v1791
  %v2132 = vpack.c.b16 %v1792, %v1792
  %v2133 = vpack.c.b16 %v1793, %v1793
  %v2134 = vpack.c.b16 %v1794, %v1794
  %v2135 = vpack.c.b16 %v1795, %v1795
  %v2136 = vpack.c.b16 %v1796, %v1796
  %v2137 = vpack.c.b16 %v1797, %v1797
  %v2138 = vpack.c.b16 %v1798, %v1798
  %v2139 = vpack.c.b16 %v1799, %v1799
  %v2140 = vpack.c.b16 %v1800, %v1800
  %v2141 = vpack.c.b16 %v1801, %v1801
  %v2142 = vpack.c.b16 %v1802, %v1802
  %v2143 = vpack.c.b16 %v1803, %v1803
  %v2144 = vpack.c.b16 %v1804, %v1804
  %v2145 = vpack.c.b16 %v1805, %v1805
  %v2146 = vpack.c.b16 %v1806, %v1806
  %v2147 = vpack.c.b16 %v1807, %v1807
  %v2148 = vpack.c.b16 %v1808, %v1808
  %v2149 = vpack.c.b16 %v1809, %v1809
  %v2150 = vpack.c.b16 %v1810, %v1810
  %v2151 = vpack.c.b16 %v1811, %v1811
  %v2152 = vpack.c.b16 %v1812, %v1812
  %v2153 = vpack.c.b16 %v1813, %v1813
  %v2154 = vpack.c.b16 %v1814, %v1814
  %v2155 = vpack.c.b16 %v1815, %v1815
  %v2156 = vpack.c.b16 %v1816, %v1816
  %v2157 = vpack.c.b16 %v1817, %v1817
  %v2158 = vpack.c.b16 %v1818, %v1818
  %v2159 = vpack.c.b16 %v1819, %v1819
  %v2160 = vpack.c.b16 %v1820, %v1820
  %v2161 = vpack.c.b16 %v1821, %v1821
  %v2162 = vpack.c.b16 %v1822, %v1822
  %v2163 = vpack.c.b16 %v1823, %v1823
  %v2164 = vpack.c.b16 %v1824, %v1824
  %v2165 = vpack.c.b16 %v1825, %v1825
  %v2166 = vpack.c.b16 %v1826, %v1826
  %v2167 = vpack.c.b16 %v1827, %v1827
  %v2168 = vpack.c.b16 %v1828, %v1828
  %v2169 = vpack.c.b16 %v1829, %v1829
  %v2170 = vpack.c.b16 %v1830, %v1830
  %v2171 = vpack.c.b16 %v1831, %v1831
  %v2172 = vpack.c.b16 %v1832, %v1832
  %v2173 = vpack.c.b16 %v1833, %v1833
  %v2174 = vpack.c.b16 %v1834, %v1834
  %v2175 = vpack.c.b16 %v1835, %v1835
  %v2176 = vpack.c.b16 %v1836, %v1836
  %v2177 = vpack.c.b16 %v1837, %v1837
  %v2178 = vpack.c.b16 %v1838, %v1838
  %v2179 = vpack.c.b16 %v1839, %v1839
  %v2180 = vpack.c.b16 %v1840, %v1840
  %v2181 = vpack.c.b16 %v1841, %v1841
  %v2182 = vpack.c.b16 %v1842, %v1842
  %v2183 = vpack.c.b16 %v1843, %v1843
  %v2184 = vpack.c.b16 %v1844, %v1844
  %v2185 = vpack.c.b16 %v1845, %v1845
  %v2186 = vpack.c.b16 %v1846, %v1846
  %v2187 = vpack.c.b16 %v1847, %v1847
  %v2188 = vpack.c.b16 %v1848, %v1848
  %v2189 = vpack.c.b16 %v1849, %v1849
  %v2190 = vpack.c.b16 %v1850, %v1850
  %v2191 = vpack.c.b16 %v1851, %v1851
  %v2192 = vpack.c.b16 %v1852, %v1852
  %v2193 = vpack.c.b16 %v1853, %v1853
  %v2194 = vpack.c.b16 %v1854, %v1854
  %v2195 = vpack.c.b16 %v1855, %v1855
  %v2196 = vpack.c.b16 %v1856, %v1856
  %v2197 = vpack.c.b16 %v1857, %v1857
  %v2198 = vpack.c.b16 %v1858, %v1858
  %v2199 = vpack.c.b16 %v1859, %v1859
  %v2200 = vpack.c.b16 %v1860, %v1860
  %v2201 = vpack.c.b16 %v1861, %v1861
  %v2202 = vpack.c.b16 %v1862, %v1862
  %v2203 = vpack.c.b16 %v1863, %v1863
  %v2204 = vpack.c.b16 %v1864, %v1864
  %v2205 = vpack.c.b16 %v1865, %v1865
  %v2206 = vpack.c.b16 %v1866, %v1866
  %v2207 = vpack.c.b16 %v1867, %v1867
  %v2208 = vpack.c.b16 %v1868, %v1868
  %v2209 = vpack.c.b16 %v1869, %v1869
  %v2210 = vpack.c.b16 %v1870, %v1870
  %v2211 = vpack.c.b16 %v1871, %v1871
  %vm2548 = vcmask 523264
  %v2550 = vsel %vm2548, %v882, 0
  %v2553 = vsel %vm2548, %v1956, 0
  %v2556 = vsel %vm2548, %v2041, 0
  %v2559 = vsel %vm2548, %v2126, 0
  %v2562 = vsel %vm2548, %v2211, 0
  %2564 = vmatprep.subr.bf16.mxu0 0
  %2565 = vmatpush1.bf16.xpose.msra.mxu0 0
  %2566 = vmatprep.subr.bf16.mxu0 0
  %2567 = vmatpush1.bf16.xpose.msra.mxu0 0
  %2568 = vmatprep.subr.bf16.mxu0 0
  %2569 = vmatpush1.bf16.xpose.msra.mxu0 0
  %2570 = vmatprep.subr.bf16.mxu0 0
  %2571 = vmatpush1.bf16.xpose.msra.mxu0 0
  %2572 = vmatprep.subr.bf16.mxu0 %v2128
  %2573 = vmatpush1.bf16.xpose.msra.mxu0 %v2127
  %2574 = vmatprep.subr.bf16.mxu0 %v2043
  %2575 = vmatpush1.bf16.xpose.msra.mxu0 %v2042
  %2576 = vmatprep.subr.bf16.mxu0 %v1958
  %2577 = vmatpush1.bf16.xpose.msra.mxu0 %v1957
  %2578 = vmatprep.subr.bf16.mxu0 %v1873
  %2579 = vmatpush1.bf16.xpose.msra.mxu0 %v1872
  %2580 = vmatprep.subr.bf16.mxu0 0
  %2581 = vmatpush2.bf16.xpose.msra.mxu0 0
  %2582 = vmatprep.subr.bf16.mxu0 0
  %2583 = vmatpush2.bf16.xpose.msra.mxu0 0
  %2584 = vmatprep.subr.bf16.mxu0 0
  %2585 = vmatpush2.bf16.xpose.msra.mxu0 0
  %2586 = vmatprep.subr.bf16.mxu0 0
  %2587 = vmatpush2.bf16.xpose.msra.mxu0 0
  %2588 = vmatprep.subr.bf16.mxu0 0
  %2589 = vmatpush2.bf16.xpose.msra.mxu0 0
  %2590 = vmatprep.subr.bf16.mxu0 0
  %2591 = vmatpush2.bf16.xpose.msra.mxu0 0
  %2592 = vmatprep.subr.bf16.mxu0 0
  %2593 = vmatpush2.bf16.xpose.msra.mxu0 0
  %2594 = vmatprep.subr.bf16.mxu0 0
  %2595 = vmatpush2.bf16.xpose.msra.mxu0 0
  %2596 = vmatprep.mubr.bf16.mxu0 %v400
  %2597 = vmatmul.mubr.bf16.gmra.mxu0 %v386
  %v2598 = vpop.f32.mrf.mxu0
  %v2599 = vadd.f32 %v350, %v2598
  %v2600 = vpop.f32.mrf.mxu0
  %v2601 = vpop.f32.mrf.mxu0
  %v2602 = vpop.f32.mrf.mxu0
  %2603 = vdwg.mxu0
  %2604 = vmatprep.subr.bf16.mxu0 0
  %2605 = vmatpush1.bf16.xpose.msra.mxu0 0
  %2606 = vmatprep.subr.bf16.mxu0 0
  %2607 = vmatpush1.bf16.xpose.msra.mxu0 0
  %2608 = vmatprep.subr.bf16.mxu0 0
  %2609 = vmatpush1.bf16.xpose.msra.mxu0 0
  %2610 = vmatprep.subr.bf16.mxu0 0
  %2611 = vmatpush1.bf16.xpose.msra.mxu0 0
  %2612 = vmatprep.subr.bf16.mxu0 %v2130
  %2613 = vmatpush1.bf16.xpose.msra.mxu0 %v2129
  %2614 = vmatprep.subr.bf16.mxu0 %v2045
  %2615 = vmatpush1.bf16.xpose.msra.mxu0 %v2044
  %2616 = vmatprep.subr.bf16.mxu0 %v1960
  %2617 = vmatpush1.bf16.xpose.msra.mxu0 %v1959
  %2618 = vmatprep.subr.bf16.mxu0 %v1875
  %2619 = vmatpush1.bf16.xpose.msra.mxu0 %v1874
  %2620 = vmatprep.subr.bf16.mxu0 0
  %2621 = vmatpush2.bf16.xpose.msra.mxu0 0
  %2622 = vmatprep.subr.bf16.mxu0 0
  %2623 = vmatpush2.bf16.xpose.msra.mxu0 0
  %2624 = vmatprep.subr.bf16.mxu0 0
  %2625 = vmatpush2.bf16.xpose.msra.mxu0 0
  %2626 = vmatprep.subr.bf16.mxu0 0
  %2627 = vmatpush2.bf16.xpose.msra.mxu0 0
  %2628 = vmatprep.subr.bf16.mxu0 0
  %2629 = vmatpush2.bf16.xpose.msra.mxu0 0
  %2630 = vmatprep.subr.bf16.mxu0 0
  %2631 = vmatpush2.bf16.xpose.msra.mxu0 0
  %2632 = vmatprep.subr.bf16.mxu0 0
  %2633 = vmatpush2.bf16.xpose.msra.mxu0 0
  %2634 = vmatprep.subr.bf16.mxu0 0
  %2635 = vmatpush2.bf16.xpose.msra.mxu0 0
  %2636 = vmatprep.mubr.bf16.mxu0 %v410
  %2637 = vmatmul.mubr.bf16.gmra.mxu0 %v408
  %v2638 = vpop.f32.mrf.mxu0
  %v2639 = vadd.f32 %v2599, %v2638
  %v2640 = vpop.f32.mrf.mxu0
  %v2641 = vpop.f32.mrf.mxu0
  %v2642 = vpop.f32.mrf.mxu0
  %2643 = vdwg.mxu0
  %2644 = vmatprep.subr.bf16.mxu0 0
  %2645 = vmatpush1.bf16.xpose.msra.mxu0 0
  %2646 = vmatprep.subr.bf16.mxu0 0
  %2647 = vmatpush1.bf16.xpose.msra.mxu0 0
  %2648 = vmatprep.subr.bf16.mxu0 0
  %2649 = vmatpush1.bf16.xpose.msra.mxu0 0
  %2650 = vmatprep.subr.bf16.mxu0 0
  %2651 = vmatpush1.bf16.xpose.msra.mxu0 0
  %2652 = vmatprep.subr.bf16.mxu0 %v2132
  %2653 = vmatpush1.bf16.xpose.msra.mxu0 %v2131
  %2654 = vmatprep.subr.bf16.mxu0 %v2047
  %2655 = vmatpush1.bf16.xpose.msra.mxu0 %v2046
  %2656 = vmatprep.subr.bf16.mxu0 %v1962
  %2657 = vmatpush1.bf16.xpose.msra.mxu0 %v1961
  %2658 = vmatprep.subr.bf16.mxu0 %v1877
  %2659 = vmatpush1.bf16.xpose.msra.mxu0 %v1876
  %2660 = vmatprep.subr.bf16.mxu0 0
  %2661 = vmatpush2.bf16.xpose.msra.mxu0 0
  %2662 = vmatprep.subr.bf16.mxu0 0
  %2663 = vmatpush2.bf16.xpose.msra.mxu0 0
  %2664 = vmatprep.subr.bf16.mxu0 0
  %2665 = vmatpush2.bf16.xpose.msra.mxu0 0
  %2666 = vmatprep.subr.bf16.mxu0 0
  %2667 = vmatpush2.bf16.xpose.msra.mxu0 0
  %2668 = vmatprep.subr.bf16.mxu0 0
  %2669 = vmatpush2.bf16.xpose.msra.mxu0 0
  %2670 = vmatprep.subr.bf16.mxu0 0
  %2671 = vmatpush2.bf16.xpose.msra.mxu0 0
  %2672 = vmatprep.subr.bf16.mxu0 0
  %2673 = vmatpush2.bf16.xpose.msra.mxu0 0
  %2674 = vmatprep.subr.bf16.mxu0 0
  %2675 = vmatpush2.bf16.xpose.msra.mxu0 0
  %2676 = vmatprep.mubr.bf16.mxu0 %v407
  %2677 = vmatmul.mubr.bf16.gmra.mxu0 %v393
  %v2678 = vpop.f32.mrf.mxu0
  %v2679 = vadd.f32 %v2639, %v2678
  %v2680 = vpop.f32.mrf.mxu0
  %v2681 = vpop.f32.mrf.mxu0
  %v2682 = vpop.f32.mrf.mxu0
  %2683 = vdwg.mxu0
  %2684 = vmatprep.subr.bf16.mxu0 0
  %2685 = vmatpush1.bf16.xpose.msra.mxu0 0
  %2686 = vmatprep.subr.bf16.mxu0 0
  %2687 = vmatpush1.bf16.xpose.msra.mxu0 0
  %2688 = vmatprep.subr.bf16.mxu0 0
  %2689 = vmatpush1.bf16.xpose.msra.mxu0 0
  %2690 = vmatprep.subr.bf16.mxu0 0
  %2691 = vmatpush1.bf16.xpose.msra.mxu0 0
  %2692 = vmatprep.subr.bf16.mxu0 %v2134
  %2693 = vmatpush1.bf16.xpose.msra.mxu0 %v2133
  %2694 = vmatprep.subr.bf16.mxu0 %v2049
  %2695 = vmatpush1.bf16.xpose.msra.mxu0 %v2048
  %2696 = vmatprep.subr.bf16.mxu0 %v1964
  %2697 = vmatpush1.bf16.xpose.msra.mxu0 %v1963
  %2698 = vmatprep.subr.bf16.mxu0 %v1879
  %2699 = vmatpush1.bf16.xpose.msra.mxu0 %v1878
  %2700 = vmatprep.subr.bf16.mxu0 0
  %2701 = vmatpush2.bf16.xpose.msra.mxu0 0
  %2702 = vmatprep.subr.bf16.mxu0 0
  %2703 = vmatpush2.bf16.xpose.msra.mxu0 0
  %2704 = vmatprep.subr.bf16.mxu0 0
  %2705 = vmatpush2.bf16.xpose.msra.mxu0 0
  %2706 = vmatprep.subr.bf16.mxu0 0
  %2707 = vmatpush2.bf16.xpose.msra.mxu0 0
  %2708 = vmatprep.subr.bf16.mxu0 0
  %2709 = vmatpush2.bf16.xpose.msra.mxu0 0
  %2710 = vmatprep.subr.bf16.mxu0 0
  %2711 = vmatpush2.bf16.xpose.msra.mxu0 0
  %2712 = vmatprep.subr.bf16.mxu0 0
  %2713 = vmatpush2.bf16.xpose.msra.mxu0 0
  %2714 = vmatprep.subr.bf16.mxu0 0
  %2715 = vmatpush2.bf16.xpose.msra.mxu0 0
  %2716 = vmatprep.mubr.bf16.mxu0 %v411
  %2717 = vmatmul.mubr.bf16.gmra.mxu0 %v409
  %v2718 = vpop.f32.mrf.mxu0
  %v2719 = vadd.f32 %v2679, %v2718
  %v2720 = vpop.f32.mrf.mxu0
  %v2721 = vpop.f32.mrf.mxu0
  %v2722 = vpop.f32.mrf.mxu0
  %2723 = vdwg.mxu0
  %2724 = vmatprep.subr.bf16.mxu0 0
  %2725 = vmatpush1.bf16.xpose.msra.mxu0 0
  %2726 = vmatprep.subr.bf16.mxu0 0
  %2727 = vmatpush1.bf16.xpose.msra.mxu0 0
  %2728 = vmatprep.subr.bf16.mxu0 0
  %2729 = vmatpush1.bf16.xpose.msra.mxu0 0
  %2730 = vmatprep.subr.bf16.mxu0 0
  %2731 = vmatpush1.bf16.xpose.msra.mxu0 0
  %2732 = vmatprep.subr.bf16.mxu0 %v2136
  %2733 = vmatpush1.bf16.xpose.msra.mxu0 %v2135
  %2734 = vmatprep.subr.bf16.mxu0 %v2051
  %2735 = vmatpush1.bf16.xpose.msra.mxu0 %v2050
  %2736 = vmatprep.subr.bf16.mxu0 %v1966
  %2737 = vmatpush1.bf16.xpose.msra.mxu0 %v1965
  %2738 = vmatprep.subr.bf16.mxu0 %v1881
  %2739 = vmatpush1.bf16.xpose.msra.mxu0 %v1880
  %2740 = vmatprep.subr.bf16.mxu0 0
  %2741 = vmatpush2.bf16.xpose.msra.mxu0 0
  %2742 = vmatprep.subr.bf16.mxu0 0
  %2743 = vmatpush2.bf16.xpose.msra.mxu0 0
  %2744 = vmatprep.subr.bf16.mxu0 0
  %2745 = vmatpush2.bf16.xpose.msra.mxu0 0
  %2746 = vmatprep.subr.bf16.mxu0 0
  %2747 = vmatpush2.bf16.xpose.msra.mxu0 0
  %2748 = vmatprep.subr.bf16.mxu0 0
  %2749 = vmatpush2.bf16.xpose.msra.mxu0 0
  %2750 = vmatprep.subr.bf16.mxu0 0
  %2751 = vmatpush2.bf16.xpose.msra.mxu0 0
  %2752 = vmatprep.subr.bf16.mxu0 0
  %2753 = vmatpush2.bf16.xpose.msra.mxu0 0
  %2754 = vmatprep.subr.bf16.mxu0 0
  %2755 = vmatpush2.bf16.xpose.msra.mxu0 0
  %2756 = vmatprep.mubr.bf16.mxu0 %v449
  %2757 = vmatmul.mubr.bf16.gmra.mxu0 %v435
  %v2758 = vpop.f32.mrf.mxu0
  %v2759 = vadd.f32 %v2719, %v2758
  %v2760 = vpop.f32.mrf.mxu0
  %v2761 = vpop.f32.mrf.mxu0
  %v2762 = vpop.f32.mrf.mxu0
  %2763 = vdwg.mxu0
  %2764 = vmatprep.subr.bf16.mxu0 0
  %2765 = vmatpush1.bf16.xpose.msra.mxu0 0
  %2766 = vmatprep.subr.bf16.mxu0 0
  %2767 = vmatpush1.bf16.xpose.msra.mxu0 0
  %2768 = vmatprep.subr.bf16.mxu0 0
  %2769 = vmatpush1.bf16.xpose.msra.mxu0 0
  %2770 = vmatprep.subr.bf16.mxu0 0
  %2771 = vmatpush1.bf16.xpose.msra.mxu0 0
  %2772 = vmatprep.subr.bf16.mxu0 %v2138
  %2773 = vmatpush1.bf16.xpose.msra.mxu0 %v2137
  %2774 = vmatprep.subr.bf16.mxu0 %v2053
  %2775 = vmatpush1.bf16.xpose.msra.mxu0 %v2052
  %2776 = vmatprep.subr.bf16.mxu0 %v1968
  %2777 = vmatpush1.bf16.xpose.msra.mxu0 %v1967
  %2778 = vmatprep.subr.bf16.mxu0 %v1883
  %2779 = vmatpush1.bf16.xpose.msra.mxu0 %v1882
  %2780 = vmatprep.subr.bf16.mxu0 0
  %2781 = vmatpush2.bf16.xpose.msra.mxu0 0
  %2782 = vmatprep.subr.bf16.mxu0 0
  %2783 = vmatpush2.bf16.xpose.msra.mxu0 0
  %2784 = vmatprep.subr.bf16.mxu0 0
  %2785 = vmatpush2.bf16.xpose.msra.mxu0 0
  %2786 = vmatprep.subr.bf16.mxu0 0
  %2787 = vmatpush2.bf16.xpose.msra.mxu0 0
  %2788 = vmatprep.subr.bf16.mxu0 0
  %2789 = vmatpush2.bf16.xpose.msra.mxu0 0
  %2790 = vmatprep.subr.bf16.mxu0 0
  %2791 = vmatpush2.bf16.xpose.msra.mxu0 0
  %2792 = vmatprep.subr.bf16.mxu0 0
  %2793 = vmatpush2.bf16.xpose.msra.mxu0 0
  %2794 = vmatprep.subr.bf16.mxu0 0
  %2795 = vmatpush2.bf16.xpose.msra.mxu0 0
  %2796 = vmatprep.mubr.bf16.mxu0 %v459
  %2797 = vmatmul.mubr.bf16.gmra.mxu0 %v457
  %v2798 = vpop.f32.mrf.mxu0
  %v2799 = vadd.f32 %v2759, %v2798
  %v2800 = vpop.f32.mrf.mxu0
  %v2801 = vpop.f32.mrf.mxu0
  %v2802 = vpop.f32.mrf.mxu0
  %2803 = vdwg.mxu0
  %2804 = vmatprep.subr.bf16.mxu0 0
  %2805 = vmatpush1.bf16.xpose.msra.mxu0 0
  %2806 = vmatprep.subr.bf16.mxu0 0
  %2807 = vmatpush1.bf16.xpose.msra.mxu0 0
  %2808 = vmatprep.subr.bf16.mxu0 0
  %2809 = vmatpush1.bf16.xpose.msra.mxu0 0
  %2810 = vmatprep.subr.bf16.mxu0 0
  %2811 = vmatpush1.bf16.xpose.msra.mxu0 0
  %2812 = vmatprep.subr.bf16.mxu0 %v2140
  %2813 = vmatpush1.bf16.xpose.msra.mxu0 %v2139
  %2814 = vmatprep.subr.bf16.mxu0 %v2055
  %2815 = vmatpush1.bf16.xpose.msra.mxu0 %v2054
  %2816 = vmatprep.subr.bf16.mxu0 %v1970
  %2817 = vmatpush1.bf16.xpose.msra.mxu0 %v1969
  %2818 = vmatprep.subr.bf16.mxu0 %v1885
  %2819 = vmatpush1.bf16.xpose.msra.mxu0 %v1884
  %2820 = vmatprep.subr.bf16.mxu0 0
  %2821 = vmatpush2.bf16.xpose.msra.mxu0 0
  %2822 = vmatprep.subr.bf16.mxu0 0
  %2823 = vmatpush2.bf16.xpose.msra.mxu0 0
  %2824 = vmatprep.subr.bf16.mxu0 0
  %2825 = vmatpush2.bf16.xpose.msra.mxu0 0
  %2826 = vmatprep.subr.bf16.mxu0 0
  %2827 = vmatpush2.bf16.xpose.msra.mxu0 0
  %2828 = vmatprep.subr.bf16.mxu0 0
  %2829 = vmatpush2.bf16.xpose.msra.mxu0 0
  %2830 = vmatprep.subr.bf16.mxu0 0
  %2831 = vmatpush2.bf16.xpose.msra.mxu0 0
  %2832 = vmatprep.subr.bf16.mxu0 0
  %2833 = vmatpush2.bf16.xpose.msra.mxu0 0
  %2834 = vmatprep.subr.bf16.mxu0 0
  %2835 = vmatpush2.bf16.xpose.msra.mxu0 0
  %2836 = vmatprep.mubr.bf16.mxu0 %v456
  %2837 = vmatmul.mubr.bf16.gmra.mxu0 %v442
  %v2838 = vpop.f32.mrf.mxu0
  %v2839 = vadd.f32 %v2799, %v2838
  %v2840 = vpop.f32.mrf.mxu0
  %v2841 = vpop.f32.mrf.mxu0
  %v2842 = vpop.f32.mrf.mxu0
  %2843 = vdwg.mxu0
  %2844 = vmatprep.subr.bf16.mxu0 0
  %2845 = vmatpush1.bf16.xpose.msra.mxu0 0
  %2846 = vmatprep.subr.bf16.mxu0 0
  %2847 = vmatpush1.bf16.xpose.msra.mxu0 0
  %2848 = vmatprep.subr.bf16.mxu0 0
  %2849 = vmatpush1.bf16.xpose.msra.mxu0 0
  %2850 = vmatprep.subr.bf16.mxu0 0
  %2851 = vmatpush1.bf16.xpose.msra.mxu0 0
  %2852 = vmatprep.subr.bf16.mxu0 %v2142
  %2853 = vmatpush1.bf16.xpose.msra.mxu0 %v2141
  %2854 = vmatprep.subr.bf16.mxu0 %v2057
  %2855 = vmatpush1.bf16.xpose.msra.mxu0 %v2056
  %2856 = vmatprep.subr.bf16.mxu0 %v1972
  %2857 = vmatpush1.bf16.xpose.msra.mxu0 %v1971
  %2858 = vmatprep.subr.bf16.mxu0 %v1887
  %2859 = vmatpush1.bf16.xpose.msra.mxu0 %v1886
  %2860 = vmatprep.subr.bf16.mxu0 0
  %2861 = vmatpush2.bf16.xpose.msra.mxu0 0
  %2862 = vmatprep.subr.bf16.mxu0 0
  %2863 = vmatpush2.bf16.xpose.msra.mxu0 0
  %2864 = vmatprep.subr.bf16.mxu0 0
  %2865 = vmatpush2.bf16.xpose.msra.mxu0 0
  %2866 = vmatprep.subr.bf16.mxu0 0
  %2867 = vmatpush2.bf16.xpose.msra.mxu0 0
  %2868 = vmatprep.subr.bf16.mxu0 0
  %2869 = vmatpush2.bf16.xpose.msra.mxu0 0
  %2870 = vmatprep.subr.bf16.mxu0 0
  %2871 = vmatpush2.bf16.xpose.msra.mxu0 0
  %2872 = vmatprep.subr.bf16.mxu0 0
  %2873 = vmatpush2.bf16.xpose.msra.mxu0 0
  %2874 = vmatprep.subr.bf16.mxu0 0
  %2875 = vmatpush2.bf16.xpose.msra.mxu0 0
  %2876 = vmatprep.mubr.bf16.mxu0 %v460
  %2877 = vmatmul.mubr.bf16.gmra.mxu0 %v458
  %v2878 = vpop.f32.mrf.mxu0
  %v2879 = vadd.f32 %v2839, %v2878
  %v2880 = vpop.f32.mrf.mxu0
  %v2881 = vpop.f32.mrf.mxu0
  %v2882 = vpop.f32.mrf.mxu0
  %2883 = vdwg.mxu0
  %2884 = vmatprep.subr.bf16.mxu0 0
  %2885 = vmatpush1.bf16.xpose.msra.mxu0 0
  %2886 = vmatprep.subr.bf16.mxu0 0
  %2887 = vmatpush1.bf16.xpose.msra.mxu0 0
  %2888 = vmatprep.subr.bf16.mxu0 0
  %2889 = vmatpush1.bf16.xpose.msra.mxu0 0
  %2890 = vmatprep.subr.bf16.mxu0 0
  %2891 = vmatpush1.bf16.xpose.msra.mxu0 0
  %2892 = vmatprep.subr.bf16.mxu0 %v2144
  %2893 = vmatpush1.bf16.xpose.msra.mxu0 %v2143
  %2894 = vmatprep.subr.bf16.mxu0 %v2059
  %2895 = vmatpush1.bf16.xpose.msra.mxu0 %v2058
  %2896 = vmatprep.subr.bf16.mxu0 %v1974
  %2897 = vmatpush1.bf16.xpose.msra.mxu0 %v1973
  %2898 = vmatprep.subr.bf16.mxu0 %v1889
  %2899 = vmatpush1.bf16.xpose.msra.mxu0 %v1888
  %2900 = vmatprep.subr.bf16.mxu0 0
  %2901 = vmatpush2.bf16.xpose.msra.mxu0 0
  %2902 = vmatprep.subr.bf16.mxu0 0
  %2903 = vmatpush2.bf16.xpose.msra.mxu0 0
  %2904 = vmatprep.subr.bf16.mxu0 0
  %2905 = vmatpush2.bf16.xpose.msra.mxu0 0
  %2906 = vmatprep.subr.bf16.mxu0 0
  %2907 = vmatpush2.bf16.xpose.msra.mxu0 0
  %2908 = vmatprep.subr.bf16.mxu0 0
  %2909 = vmatpush2.bf16.xpose.msra.mxu0 0
  %2910 = vmatprep.subr.bf16.mxu0 0
  %2911 = vmatpush2.bf16.xpose.msra.mxu0 0
  %2912 = vmatprep.subr.bf16.mxu0 0
  %2913 = vmatpush2.bf16.xpose.msra.mxu0 0
  %2914 = vmatprep.subr.bf16.mxu0 0
  %2915 = vmatpush2.bf16.xpose.msra.mxu0 0
  %2916 = vmatprep.mubr.bf16.mxu0 %v498
  %2917 = vmatmul.mubr.bf16.gmra.mxu0 %v484
  %v2918 = vpop.f32.mrf.mxu0
  %v2919 = vadd.f32 %v2879, %v2918
  %v2920 = vpop.f32.mrf.mxu0
  %v2921 = vpop.f32.mrf.mxu0
  %v2922 = vpop.f32.mrf.mxu0
  %2923 = vdwg.mxu0
  %2924 = vmatprep.subr.bf16.mxu0 0
  %2925 = vmatpush1.bf16.xpose.msra.mxu0 0
  %2926 = vmatprep.subr.bf16.mxu0 0
  %2927 = vmatpush1.bf16.xpose.msra.mxu0 0
  %2928 = vmatprep.subr.bf16.mxu0 0
  %2929 = vmatpush1.bf16.xpose.msra.mxu0 0
  %2930 = vmatprep.subr.bf16.mxu0 0
  %2931 = vmatpush1.bf16.xpose.msra.mxu0 0
  %2932 = vmatprep.subr.bf16.mxu0 %v2146
  %2933 = vmatpush1.bf16.xpose.msra.mxu0 %v2145
  %2934 = vmatprep.subr.bf16.mxu0 %v2061
  %2935 = vmatpush1.bf16.xpose.msra.mxu0 %v2060
  %2936 = vmatprep.subr.bf16.mxu0 %v1976
  %2937 = vmatpush1.bf16.xpose.msra.mxu0 %v1975
  %2938 = vmatprep.subr.bf16.mxu0 %v1891
  %2939 = vmatpush1.bf16.xpose.msra.mxu0 %v1890
  %2940 = vmatprep.subr.bf16.mxu0 0
  %2941 = vmatpush2.bf16.xpose.msra.mxu0 0
  %2942 = vmatprep.subr.bf16.mxu0 0
  %2943 = vmatpush2.bf16.xpose.msra.mxu0 0
  %2944 = vmatprep.subr.bf16.mxu0 0
  %2945 = vmatpush2.bf16.xpose.msra.mxu0 0
  %2946 = vmatprep.subr.bf16.mxu0 0
  %2947 = vmatpush2.bf16.xpose.msra.mxu0 0
  %2948 = vmatprep.subr.bf16.mxu0 0
  %2949 = vmatpush2.bf16.xpose.msra.mxu0 0
  %2950 = vmatprep.subr.bf16.mxu0 0
  %2951 = vmatpush2.bf16.xpose.msra.mxu0 0
  %2952 = vmatprep.subr.bf16.mxu0 0
  %2953 = vmatpush2.bf16.xpose.msra.mxu0 0
  %2954 = vmatprep.subr.bf16.mxu0 0
  %2955 = vmatpush2.bf16.xpose.msra.mxu0 0
  %2956 = vmatprep.mubr.bf16.mxu0 %v508
  %2957 = vmatmul.mubr.bf16.gmra.mxu0 %v506
  %v2958 = vpop.f32.mrf.mxu0
  %v2959 = vadd.f32 %v2919, %v2958
  %v2960 = vpop.f32.mrf.mxu0
  %v2961 = vpop.f32.mrf.mxu0
  %v2962 = vpop.f32.mrf.mxu0
  %2963 = vdwg.mxu0
  %2964 = vmatprep.subr.bf16.mxu0 0
  %2965 = vmatpush1.bf16.xpose.msra.mxu0 0
  %2966 = vmatprep.subr.bf16.mxu0 0
  %2967 = vmatpush1.bf16.xpose.msra.mxu0 0
  %2968 = vmatprep.subr.bf16.mxu0 0
  %2969 = vmatpush1.bf16.xpose.msra.mxu0 0
  %2970 = vmatprep.subr.bf16.mxu0 0
  %2971 = vmatpush1.bf16.xpose.msra.mxu0 0
  %2972 = vmatprep.subr.bf16.mxu0 %v2148
  %2973 = vmatpush1.bf16.xpose.msra.mxu0 %v2147
  %2974 = vmatprep.subr.bf16.mxu0 %v2063
  %2975 = vmatpush1.bf16.xpose.msra.mxu0 %v2062
  %2976 = vmatprep.subr.bf16.mxu0 %v1978
  %2977 = vmatpush1.bf16.xpose.msra.mxu0 %v1977
  %2978 = vmatprep.subr.bf16.mxu0 %v1893
  %2979 = vmatpush1.bf16.xpose.msra.mxu0 %v1892
  %2980 = vmatprep.subr.bf16.mxu0 0
  %2981 = vmatpush2.bf16.xpose.msra.mxu0 0
  %2982 = vmatprep.subr.bf16.mxu0 0
  %2983 = vmatpush2.bf16.xpose.msra.mxu0 0
  %2984 = vmatprep.subr.bf16.mxu0 0
  %2985 = vmatpush2.bf16.xpose.msra.mxu0 0
  %2986 = vmatprep.subr.bf16.mxu0 0
  %2987 = vmatpush2.bf16.xpose.msra.mxu0 0
  %2988 = vmatprep.subr.bf16.mxu0 0
  %2989 = vmatpush2.bf16.xpose.msra.mxu0 0
  %2990 = vmatprep.subr.bf16.mxu0 0
  %2991 = vmatpush2.bf16.xpose.msra.mxu0 0
  %2992 = vmatprep.subr.bf16.mxu0 0
  %2993 = vmatpush2.bf16.xpose.msra.mxu0 0
  %2994 = vmatprep.subr.bf16.mxu0 0
  %2995 = vmatpush2.bf16.xpose.msra.mxu0 0
  %2996 = vmatprep.mubr.bf16.mxu0 %v505
  %2997 = vmatmul.mubr.bf16.gmra.mxu0 %v491
  %v2998 = vpop.f32.mrf.mxu0
  %v2999 = vadd.f32 %v2959, %v2998
  %v3000 = vpop.f32.mrf.mxu0
  %v3001 = vpop.f32.mrf.mxu0
  %v3002 = vpop.f32.mrf.mxu0
  %3003 = vdwg.mxu0
  %3004 = vmatprep.subr.bf16.mxu0 0
  %3005 = vmatpush1.bf16.xpose.msra.mxu0 0
  %3006 = vmatprep.subr.bf16.mxu0 0
  %3007 = vmatpush1.bf16.xpose.msra.mxu0 0
  %3008 = vmatprep.subr.bf16.mxu0 0
  %3009 = vmatpush1.bf16.xpose.msra.mxu0 0
  %3010 = vmatprep.subr.bf16.mxu0 0
  %3011 = vmatpush1.bf16.xpose.msra.mxu0 0
  %3012 = vmatprep.subr.bf16.mxu0 %v2150
  %3013 = vmatpush1.bf16.xpose.msra.mxu0 %v2149
  %3014 = vmatprep.subr.bf16.mxu0 %v2065
  %3015 = vmatpush1.bf16.xpose.msra.mxu0 %v2064
  %3016 = vmatprep.subr.bf16.mxu0 %v1980
  %3017 = vmatpush1.bf16.xpose.msra.mxu0 %v1979
  %3018 = vmatprep.subr.bf16.mxu0 %v1895
  %3019 = vmatpush1.bf16.xpose.msra.mxu0 %v1894
  %3020 = vmatprep.subr.bf16.mxu0 0
  %3021 = vmatpush2.bf16.xpose.msra.mxu0 0
  %3022 = vmatprep.subr.bf16.mxu0 0
  %3023 = vmatpush2.bf16.xpose.msra.mxu0 0
  %3024 = vmatprep.subr.bf16.mxu0 0
  %3025 = vmatpush2.bf16.xpose.msra.mxu0 0
  %3026 = vmatprep.subr.bf16.mxu0 0
  %3027 = vmatpush2.bf16.xpose.msra.mxu0 0
  %3028 = vmatprep.subr.bf16.mxu0 0
  %3029 = vmatpush2.bf16.xpose.msra.mxu0 0
  %3030 = vmatprep.subr.bf16.mxu0 0
  %3031 = vmatpush2.bf16.xpose.msra.mxu0 0
  %3032 = vmatprep.subr.bf16.mxu0 0
  %3033 = vmatpush2.bf16.xpose.msra.mxu0 0
  %3034 = vmatprep.subr.bf16.mxu0 0
  %3035 = vmatpush2.bf16.xpose.msra.mxu0 0
  %3036 = vmatprep.mubr.bf16.mxu0 %v509
  %3037 = vmatmul.mubr.bf16.gmra.mxu0 %v507
  %v3038 = vpop.f32.mrf.mxu0
  %v3039 = vadd.f32 %v2999, %v3038
  %v3040 = vpop.f32.mrf.mxu0
  %v3041 = vpop.f32.mrf.mxu0
  %v3042 = vpop.f32.mrf.mxu0
  %3043 = vdwg.mxu0
  %3044 = vmatprep.subr.bf16.mxu0 0
  %3045 = vmatpush1.bf16.xpose.msra.mxu0 0
  %3046 = vmatprep.subr.bf16.mxu0 0
  %3047 = vmatpush1.bf16.xpose.msra.mxu0 0
  %3048 = vmatprep.subr.bf16.mxu0 0
  %3049 = vmatpush1.bf16.xpose.msra.mxu0 0
  %3050 = vmatprep.subr.bf16.mxu0 0
  %3051 = vmatpush1.bf16.xpose.msra.mxu0 0
  %3052 = vmatprep.subr.bf16.mxu0 %v2152
  %3053 = vmatpush1.bf16.xpose.msra.mxu0 %v2151
  %3054 = vmatprep.subr.bf16.mxu0 %v2067
  %3055 = vmatpush1.bf16.xpose.msra.mxu0 %v2066
  %3056 = vmatprep.subr.bf16.mxu0 %v1982
  %3057 = vmatpush1.bf16.xpose.msra.mxu0 %v1981
  %3058 = vmatprep.subr.bf16.mxu0 %v1897
  %3059 = vmatpush1.bf16.xpose.msra.mxu0 %v1896
  %3060 = vmatprep.subr.bf16.mxu0 0
  %3061 = vmatpush2.bf16.xpose.msra.mxu0 0
  %3062 = vmatprep.subr.bf16.mxu0 0
  %3063 = vmatpush2.bf16.xpose.msra.mxu0 0
  %3064 = vmatprep.subr.bf16.mxu0 0
  %3065 = vmatpush2.bf16.xpose.msra.mxu0 0
  %3066 = vmatprep.subr.bf16.mxu0 0
  %3067 = vmatpush2.bf16.xpose.msra.mxu0 0
  %3068 = vmatprep.subr.bf16.mxu0 0
  %3069 = vmatpush2.bf16.xpose.msra.mxu0 0
  %3070 = vmatprep.subr.bf16.mxu0 0
  %3071 = vmatpush2.bf16.xpose.msra.mxu0 0
  %3072 = vmatprep.subr.bf16.mxu0 0
  %3073 = vmatpush2.bf16.xpose.msra.mxu0 0
  %3074 = vmatprep.subr.bf16.mxu0 0
  %3075 = vmatpush2.bf16.xpose.msra.mxu0 0
  %3076 = vmatprep.mubr.bf16.mxu0 %v547
  %3077 = vmatmul.mubr.bf16.gmra.mxu0 %v533
  %v3078 = vpop.f32.mrf.mxu0
  %v3079 = vadd.f32 %v3039, %v3078
  %v3080 = vpop.f32.mrf.mxu0
  %v3081 = vpop.f32.mrf.mxu0
  %v3082 = vpop.f32.mrf.mxu0
  %3083 = vdwg.mxu0
  %3084 = vmatprep.subr.bf16.mxu0 0
  %3085 = vmatpush1.bf16.xpose.msra.mxu0 0
  %3086 = vmatprep.subr.bf16.mxu0 0
  %3087 = vmatpush1.bf16.xpose.msra.mxu0 0
  %3088 = vmatprep.subr.bf16.mxu0 0
  %3089 = vmatpush1.bf16.xpose.msra.mxu0 0
  %3090 = vmatprep.subr.bf16.mxu0 0
  %3091 = vmatpush1.bf16.xpose.msra.mxu0 0
  %3092 = vmatprep.subr.bf16.mxu0 %v2154
  %3093 = vmatpush1.bf16.xpose.msra.mxu0 %v2153
  %3094 = vmatprep.subr.bf16.mxu0 %v2069
  %3095 = vmatpush1.bf16.xpose.msra.mxu0 %v2068
  %3096 = vmatprep.subr.bf16.mxu0 %v1984
  %3097 = vmatpush1.bf16.xpose.msra.mxu0 %v1983
  %3098 = vmatprep.subr.bf16.mxu0 %v1899
  %3099 = vmatpush1.bf16.xpose.msra.mxu0 %v1898
  %3100 = vmatprep.subr.bf16.mxu0 0
  %3101 = vmatpush2.bf16.xpose.msra.mxu0 0
  %3102 = vmatprep.subr.bf16.mxu0 0
  %3103 = vmatpush2.bf16.xpose.msra.mxu0 0
  %3104 = vmatprep.subr.bf16.mxu0 0
  %3105 = vmatpush2.bf16.xpose.msra.mxu0 0
  %3106 = vmatprep.subr.bf16.mxu0 0
  %3107 = vmatpush2.bf16.xpose.msra.mxu0 0
  %3108 = vmatprep.subr.bf16.mxu0 0
  %3109 = vmatpush2.bf16.xpose.msra.mxu0 0
  %3110 = vmatprep.subr.bf16.mxu0 0
  %3111 = vmatpush2.bf16.xpose.msra.mxu0 0
  %3112 = vmatprep.subr.bf16.mxu0 0
  %3113 = vmatpush2.bf16.xpose.msra.mxu0 0
  %3114 = vmatprep.subr.bf16.mxu0 0
  %3115 = vmatpush2.bf16.xpose.msra.mxu0 0
  %3116 = vmatprep.mubr.bf16.mxu0 %v557
  %3117 = vmatmul.mubr.bf16.gmra.mxu0 %v555
  %v3118 = vpop.f32.mrf.mxu0
  %v3119 = vadd.f32 %v3079, %v3118
  %v3120 = vpop.f32.mrf.mxu0
  %v3121 = vpop.f32.mrf.mxu0
  %v3122 = vpop.f32.mrf.mxu0
  %3123 = vdwg.mxu0
  %3124 = vmatprep.subr.bf16.mxu0 0
  %3125 = vmatpush1.bf16.xpose.msra.mxu0 0
  %3126 = vmatprep.subr.bf16.mxu0 0
  %3127 = vmatpush1.bf16.xpose.msra.mxu0 0
  %3128 = vmatprep.subr.bf16.mxu0 0
  %3129 = vmatpush1.bf16.xpose.msra.mxu0 0
  %3130 = vmatprep.subr.bf16.mxu0 0
  %3131 = vmatpush1.bf16.xpose.msra.mxu0 0
  %3132 = vmatprep.subr.bf16.mxu0 %v2156
  %3133 = vmatpush1.bf16.xpose.msra.mxu0 %v2155
  %3134 = vmatprep.subr.bf16.mxu0 %v2071
  %3135 = vmatpush1.bf16.xpose.msra.mxu0 %v2070
  %3136 = vmatprep.subr.bf16.mxu0 %v1986
  %3137 = vmatpush1.bf16.xpose.msra.mxu0 %v1985
  %3138 = vmatprep.subr.bf16.mxu0 %v1901
  %3139 = vmatpush1.bf16.xpose.msra.mxu0 %v1900
  %3140 = vmatprep.subr.bf16.mxu0 0
  %3141 = vmatpush2.bf16.xpose.msra.mxu0 0
  %3142 = vmatprep.subr.bf16.mxu0 0
  %3143 = vmatpush2.bf16.xpose.msra.mxu0 0
  %3144 = vmatprep.subr.bf16.mxu0 0
  %3145 = vmatpush2.bf16.xpose.msra.mxu0 0
  %3146 = vmatprep.subr.bf16.mxu0 0
  %3147 = vmatpush2.bf16.xpose.msra.mxu0 0
  %3148 = vmatprep.subr.bf16.mxu0 0
  %3149 = vmatpush2.bf16.xpose.msra.mxu0 0
  %3150 = vmatprep.subr.bf16.mxu0 0
  %3151 = vmatpush2.bf16.xpose.msra.mxu0 0
  %3152 = vmatprep.subr.bf16.mxu0 0
  %3153 = vmatpush2.bf16.xpose.msra.mxu0 0
  %3154 = vmatprep.subr.bf16.mxu0 0
  %3155 = vmatpush2.bf16.xpose.msra.mxu0 0
  %3156 = vmatprep.mubr.bf16.mxu0 %v554
  %3157 = vmatmul.mubr.bf16.gmra.mxu0 %v540
  %v3158 = vpop.f32.mrf.mxu0
  %v3159 = vadd.f32 %v3119, %v3158
  %v3160 = vpop.f32.mrf.mxu0
  %v3161 = vpop.f32.mrf.mxu0
  %v3162 = vpop.f32.mrf.mxu0
  %3163 = vdwg.mxu0
  %3164 = vmatprep.subr.bf16.mxu0 0
  %3165 = vmatpush1.bf16.xpose.msra.mxu0 0
  %3166 = vmatprep.subr.bf16.mxu0 0
  %3167 = vmatpush1.bf16.xpose.msra.mxu0 0
  %3168 = vmatprep.subr.bf16.mxu0 0
  %3169 = vmatpush1.bf16.xpose.msra.mxu0 0
  %3170 = vmatprep.subr.bf16.mxu0 0
  %3171 = vmatpush1.bf16.xpose.msra.mxu0 0
  %3172 = vmatprep.subr.bf16.mxu0 %v2158
  %3173 = vmatpush1.bf16.xpose.msra.mxu0 %v2157
  %3174 = vmatprep.subr.bf16.mxu0 %v2073
  %3175 = vmatpush1.bf16.xpose.msra.mxu0 %v2072
  %3176 = vmatprep.subr.bf16.mxu0 %v1988
  %3177 = vmatpush1.bf16.xpose.msra.mxu0 %v1987
  %3178 = vmatprep.subr.bf16.mxu0 %v1903
  %3179 = vmatpush1.bf16.xpose.msra.mxu0 %v1902
  %3180 = vmatprep.subr.bf16.mxu0 0
  %3181 = vmatpush2.bf16.xpose.msra.mxu0 0
  %3182 = vmatprep.subr.bf16.mxu0 0
  %3183 = vmatpush2.bf16.xpose.msra.mxu0 0
  %3184 = vmatprep.subr.bf16.mxu0 0
  %3185 = vmatpush2.bf16.xpose.msra.mxu0 0
  %3186 = vmatprep.subr.bf16.mxu0 0
  %3187 = vmatpush2.bf16.xpose.msra.mxu0 0
  %3188 = vmatprep.subr.bf16.mxu0 0
  %3189 = vmatpush2.bf16.xpose.msra.mxu0 0
  %3190 = vmatprep.subr.bf16.mxu0 0
  %3191 = vmatpush2.bf16.xpose.msra.mxu0 0
  %3192 = vmatprep.subr.bf16.mxu0 0
  %3193 = vmatpush2.bf16.xpose.msra.mxu0 0
  %3194 = vmatprep.subr.bf16.mxu0 0
  %3195 = vmatpush2.bf16.xpose.msra.mxu0 0
  %3196 = vmatprep.mubr.bf16.mxu0 %v558
  %3197 = vmatmul.mubr.bf16.gmra.mxu0 %v556
  %v3198 = vpop.f32.mrf.mxu0
  %v3199 = vadd.f32 %v3159, %v3198
  %v3200 = vpop.f32.mrf.mxu0
  %v3201 = vpop.f32.mrf.mxu0
  %v3202 = vpop.f32.mrf.mxu0
  %3203 = vdwg.mxu0
  %3204 = vmatprep.subr.bf16.mxu0 0
  %3205 = vmatpush1.bf16.xpose.msra.mxu0 0
  %3206 = vmatprep.subr.bf16.mxu0 0
  %3207 = vmatpush1.bf16.xpose.msra.mxu0 0
  %3208 = vmatprep.subr.bf16.mxu0 0
  %3209 = vmatpush1.bf16.xpose.msra.mxu0 0
  %3210 = vmatprep.subr.bf16.mxu0 0
  %3211 = vmatpush1.bf16.xpose.msra.mxu0 0
  %3212 = vmatprep.subr.bf16.mxu0 %v2160
  %3213 = vmatpush1.bf16.xpose.msra.mxu0 %v2159
  %3214 = vmatprep.subr.bf16.mxu0 %v2075
  %3215 = vmatpush1.bf16.xpose.msra.mxu0 %v2074
  %3216 = vmatprep.subr.bf16.mxu0 %v1990
  %3217 = vmatpush1.bf16.xpose.msra.mxu0 %v1989
  %3218 = vmatprep.subr.bf16.mxu0 %v1905
  %3219 = vmatpush1.bf16.xpose.msra.mxu0 %v1904
  %3220 = vmatprep.subr.bf16.mxu0 0
  %3221 = vmatpush2.bf16.xpose.msra.mxu0 0
  %3222 = vmatprep.subr.bf16.mxu0 0
  %3223 = vmatpush2.bf16.xpose.msra.mxu0 0
  %3224 = vmatprep.subr.bf16.mxu0 0
  %3225 = vmatpush2.bf16.xpose.msra.mxu0 0
  %3226 = vmatprep.subr.bf16.mxu0 0
  %3227 = vmatpush2.bf16.xpose.msra.mxu0 0
  %3228 = vmatprep.subr.bf16.mxu0 0
  %3229 = vmatpush2.bf16.xpose.msra.mxu0 0
  %3230 = vmatprep.subr.bf16.mxu0 0
  %3231 = vmatpush2.bf16.xpose.msra.mxu0 0
  %3232 = vmatprep.subr.bf16.mxu0 0
  %3233 = vmatpush2.bf16.xpose.msra.mxu0 0
  %3234 = vmatprep.subr.bf16.mxu0 0
  %3235 = vmatpush2.bf16.xpose.msra.mxu0 0
  %3236 = vmatprep.mubr.bf16.mxu0 %v596
  %3237 = vmatmul.mubr.bf16.gmra.mxu0 %v582
  %v3238 = vpop.f32.mrf.mxu0
  %v3239 = vadd.f32 %v3199, %v3238
  %v3240 = vpop.f32.mrf.mxu0
  %v3241 = vpop.f32.mrf.mxu0
  %v3242 = vpop.f32.mrf.mxu0
  %3243 = vdwg.mxu0
  %3244 = vmatprep.subr.bf16.mxu0 0
  %3245 = vmatpush1.bf16.xpose.msra.mxu0 0
  %3246 = vmatprep.subr.bf16.mxu0 0
  %3247 = vmatpush1.bf16.xpose.msra.mxu0 0
  %3248 = vmatprep.subr.bf16.mxu0 0
  %3249 = vmatpush1.bf16.xpose.msra.mxu0 0
  %3250 = vmatprep.subr.bf16.mxu0 0
  %3251 = vmatpush1.bf16.xpose.msra.mxu0 0
  %3252 = vmatprep.subr.bf16.mxu0 %v2162
  %3253 = vmatpush1.bf16.xpose.msra.mxu0 %v2161
  %3254 = vmatprep.subr.bf16.mxu0 %v2077
  %3255 = vmatpush1.bf16.xpose.msra.mxu0 %v2076
  %3256 = vmatprep.subr.bf16.mxu0 %v1992
  %3257 = vmatpush1.bf16.xpose.msra.mxu0 %v1991
  %3258 = vmatprep.subr.bf16.mxu0 %v1907
  %3259 = vmatpush1.bf16.xpose.msra.mxu0 %v1906
  %3260 = vmatprep.subr.bf16.mxu0 0
  %3261 = vmatpush2.bf16.xpose.msra.mxu0 0
  %3262 = vmatprep.subr.bf16.mxu0 0
  %3263 = vmatpush2.bf16.xpose.msra.mxu0 0
  %3264 = vmatprep.subr.bf16.mxu0 0
  %3265 = vmatpush2.bf16.xpose.msra.mxu0 0
  %3266 = vmatprep.subr.bf16.mxu0 0
  %3267 = vmatpush2.bf16.xpose.msra.mxu0 0
  %3268 = vmatprep.subr.bf16.mxu0 0
  %3269 = vmatpush2.bf16.xpose.msra.mxu0 0
  %3270 = vmatprep.subr.bf16.mxu0 0
  %3271 = vmatpush2.bf16.xpose.msra.mxu0 0
  %3272 = vmatprep.subr.bf16.mxu0 0
  %3273 = vmatpush2.bf16.xpose.msra.mxu0 0
  %3274 = vmatprep.subr.bf16.mxu0 0
  %3275 = vmatpush2.bf16.xpose.msra.mxu0 0
  %3276 = vmatprep.mubr.bf16.mxu0 %v606
  %3277 = vmatmul.mubr.bf16.gmra.mxu0 %v604
  %v3278 = vpop.f32.mrf.mxu0
  %v3279 = vadd.f32 %v3239, %v3278
  %v3280 = vpop.f32.mrf.mxu0
  %v3281 = vpop.f32.mrf.mxu0
  %v3282 = vpop.f32.mrf.mxu0
  %3283 = vdwg.mxu0
  %3284 = vmatprep.subr.bf16.mxu0 0
  %3285 = vmatpush1.bf16.xpose.msra.mxu0 0
  %3286 = vmatprep.subr.bf16.mxu0 0
  %3287 = vmatpush1.bf16.xpose.msra.mxu0 0
  %3288 = vmatprep.subr.bf16.mxu0 0
  %3289 = vmatpush1.bf16.xpose.msra.mxu0 0
  %3290 = vmatprep.subr.bf16.mxu0 0
  %3291 = vmatpush1.bf16.xpose.msra.mxu0 0
  %3292 = vmatprep.subr.bf16.mxu0 %v2164
  %3293 = vmatpush1.bf16.xpose.msra.mxu0 %v2163
  %3294 = vmatprep.subr.bf16.mxu0 %v2079
  %3295 = vmatpush1.bf16.xpose.msra.mxu0 %v2078
  %3296 = vmatprep.subr.bf16.mxu0 %v1994
  %3297 = vmatpush1.bf16.xpose.msra.mxu0 %v1993
  %3298 = vmatprep.subr.bf16.mxu0 %v1909
  %3299 = vmatpush1.bf16.xpose.msra.mxu0 %v1908
  %3300 = vmatprep.subr.bf16.mxu0 0
  %3301 = vmatpush2.bf16.xpose.msra.mxu0 0
  %3302 = vmatprep.subr.bf16.mxu0 0
  %3303 = vmatpush2.bf16.xpose.msra.mxu0 0
  %3304 = vmatprep.subr.bf16.mxu0 0
  %3305 = vmatpush2.bf16.xpose.msra.mxu0 0
  %3306 = vmatprep.subr.bf16.mxu0 0
  %3307 = vmatpush2.bf16.xpose.msra.mxu0 0
  %3308 = vmatprep.subr.bf16.mxu0 0
  %3309 = vmatpush2.bf16.xpose.msra.mxu0 0
  %3310 = vmatprep.subr.bf16.mxu0 0
  %3311 = vmatpush2.bf16.xpose.msra.mxu0 0
  %3312 = vmatprep.subr.bf16.mxu0 0
  %3313 = vmatpush2.bf16.xpose.msra.mxu0 0
  %3314 = vmatprep.subr.bf16.mxu0 0
  %3315 = vmatpush2.bf16.xpose.msra.mxu0 0
  %3316 = vmatprep.mubr.bf16.mxu0 %v603
  %3317 = vmatmul.mubr.bf16.gmra.mxu0 %v589
  %v3318 = vpop.f32.mrf.mxu0
  %v3319 = vadd.f32 %v3279, %v3318
  %v3320 = vpop.f32.mrf.mxu0
  %v3321 = vpop.f32.mrf.mxu0
  %v3322 = vpop.f32.mrf.mxu0
  %3323 = vdwg.mxu0
  %3324 = vmatprep.subr.bf16.mxu0 0
  %3325 = vmatpush1.bf16.xpose.msra.mxu0 0
  %3326 = vmatprep.subr.bf16.mxu0 0
  %3327 = vmatpush1.bf16.xpose.msra.mxu0 0
  %3328 = vmatprep.subr.bf16.mxu0 0
  %3329 = vmatpush1.bf16.xpose.msra.mxu0 0
  %3330 = vmatprep.subr.bf16.mxu0 0
  %3331 = vmatpush1.bf16.xpose.msra.mxu0 0
  %3332 = vmatprep.subr.bf16.mxu0 %v2166
  %3333 = vmatpush1.bf16.xpose.msra.mxu0 %v2165
  %3334 = vmatprep.subr.bf16.mxu0 %v2081
  %3335 = vmatpush1.bf16.xpose.msra.mxu0 %v2080
  %3336 = vmatprep.subr.bf16.mxu0 %v1996
  %3337 = vmatpush1.bf16.xpose.msra.mxu0 %v1995
  %3338 = vmatprep.subr.bf16.mxu0 %v1911
  %3339 = vmatpush1.bf16.xpose.msra.mxu0 %v1910
  %3340 = vmatprep.subr.bf16.mxu0 0
  %3341 = vmatpush2.bf16.xpose.msra.mxu0 0
  %3342 = vmatprep.subr.bf16.mxu0 0
  %3343 = vmatpush2.bf16.xpose.msra.mxu0 0
  %3344 = vmatprep.subr.bf16.mxu0 0
  %3345 = vmatpush2.bf16.xpose.msra.mxu0 0
  %3346 = vmatprep.subr.bf16.mxu0 0
  %3347 = vmatpush2.bf16.xpose.msra.mxu0 0
  %3348 = vmatprep.subr.bf16.mxu0 0
  %3349 = vmatpush2.bf16.xpose.msra.mxu0 0
  %3350 = vmatprep.subr.bf16.mxu0 0
  %3351 = vmatpush2.bf16.xpose.msra.mxu0 0
  %3352 = vmatprep.subr.bf16.mxu0 0
  %3353 = vmatpush2.bf16.xpose.msra.mxu0 0
  %3354 = vmatprep.subr.bf16.mxu0 0
  %3355 = vmatpush2.bf16.xpose.msra.mxu0 0
  %3356 = vmatprep.mubr.bf16.mxu0 %v607
  %3357 = vmatmul.mubr.bf16.gmra.mxu0 %v605
  %v3358 = vpop.f32.mrf.mxu0
  %v3359 = vadd.f32 %v3319, %v3358
  %v3360 = vpop.f32.mrf.mxu0
  %v3361 = vpop.f32.mrf.mxu0
  %v3362 = vpop.f32.mrf.mxu0
  %3363 = vdwg.mxu0
  %3364 = vmatprep.subr.bf16.mxu0 0
  %3365 = vmatpush1.bf16.xpose.msra.mxu0 0
  %3366 = vmatprep.subr.bf16.mxu0 0
  %3367 = vmatpush1.bf16.xpose.msra.mxu0 0
  %3368 = vmatprep.subr.bf16.mxu0 0
  %3369 = vmatpush1.bf16.xpose.msra.mxu0 0
  %3370 = vmatprep.subr.bf16.mxu0 0
  %3371 = vmatpush1.bf16.xpose.msra.mxu0 0
  %3372 = vmatprep.subr.bf16.mxu0 %v2168
  %3373 = vmatpush1.bf16.xpose.msra.mxu0 %v2167
  %3374 = vmatprep.subr.bf16.mxu0 %v2083
  %3375 = vmatpush1.bf16.xpose.msra.mxu0 %v2082
  %3376 = vmatprep.subr.bf16.mxu0 %v1998
  %3377 = vmatpush1.bf16.xpose.msra.mxu0 %v1997
  %3378 = vmatprep.subr.bf16.mxu0 %v1913
  %3379 = vmatpush1.bf16.xpose.msra.mxu0 %v1912
  %3380 = vmatprep.subr.bf16.mxu0 0
  %3381 = vmatpush2.bf16.xpose.msra.mxu0 0
  %3382 = vmatprep.subr.bf16.mxu0 0
  %3383 = vmatpush2.bf16.xpose.msra.mxu0 0
  %3384 = vmatprep.subr.bf16.mxu0 0
  %3385 = vmatpush2.bf16.xpose.msra.mxu0 0
  %3386 = vmatprep.subr.bf16.mxu0 0
  %3387 = vmatpush2.bf16.xpose.msra.mxu0 0
  %3388 = vmatprep.subr.bf16.mxu0 0
  %3389 = vmatpush2.bf16.xpose.msra.mxu0 0
  %3390 = vmatprep.subr.bf16.mxu0 0
  %3391 = vmatpush2.bf16.xpose.msra.mxu0 0
  %3392 = vmatprep.subr.bf16.mxu0 0
  %3393 = vmatpush2.bf16.xpose.msra.mxu0 0
  %3394 = vmatprep.subr.bf16.mxu0 0
  %3395 = vmatpush2.bf16.xpose.msra.mxu0 0
  %3396 = vmatprep.mubr.bf16.mxu0 %v645
  %3397 = vmatmul.mubr.bf16.gmra.mxu0 %v631
  %v3398 = vpop.f32.mrf.mxu0
  %v3399 = vadd.f32 %v3359, %v3398
  %v3400 = vpop.f32.mrf.mxu0
  %v3401 = vpop.f32.mrf.mxu0
  %v3402 = vpop.f32.mrf.mxu0
  %3403 = vdwg.mxu0
  %3404 = vmatprep.subr.bf16.mxu0 0
  %3405 = vmatpush1.bf16.xpose.msra.mxu0 0
  %3406 = vmatprep.subr.bf16.mxu0 0
  %3407 = vmatpush1.bf16.xpose.msra.mxu0 0
  %3408 = vmatprep.subr.bf16.mxu0 0
  %3409 = vmatpush1.bf16.xpose.msra.mxu0 0
  %3410 = vmatprep.subr.bf16.mxu0 0
  %3411 = vmatpush1.bf16.xpose.msra.mxu0 0
  %3412 = vmatprep.subr.bf16.mxu0 %v2170
  %3413 = vmatpush1.bf16.xpose.msra.mxu0 %v2169
  %3414 = vmatprep.subr.bf16.mxu0 %v2085
  %3415 = vmatpush1.bf16.xpose.msra.mxu0 %v2084
  %3416 = vmatprep.subr.bf16.mxu0 %v2000
  %3417 = vmatpush1.bf16.xpose.msra.mxu0 %v1999
  %3418 = vmatprep.subr.bf16.mxu0 %v1915
  %3419 = vmatpush1.bf16.xpose.msra.mxu0 %v1914
  %3420 = vmatprep.subr.bf16.mxu0 0
  %3421 = vmatpush2.bf16.xpose.msra.mxu0 0
  %3422 = vmatprep.subr.bf16.mxu0 0
  %3423 = vmatpush2.bf16.xpose.msra.mxu0 0
  %3424 = vmatprep.subr.bf16.mxu0 0
  %3425 = vmatpush2.bf16.xpose.msra.mxu0 0
  %3426 = vmatprep.subr.bf16.mxu0 0
  %3427 = vmatpush2.bf16.xpose.msra.mxu0 0
  %3428 = vmatprep.subr.bf16.mxu0 0
  %3429 = vmatpush2.bf16.xpose.msra.mxu0 0
  %3430 = vmatprep.subr.bf16.mxu0 0
  %3431 = vmatpush2.bf16.xpose.msra.mxu0 0
  %3432 = vmatprep.subr.bf16.mxu0 0
  %3433 = vmatpush2.bf16.xpose.msra.mxu0 0
  %3434 = vmatprep.subr.bf16.mxu0 0
  %3435 = vmatpush2.bf16.xpose.msra.mxu0 0
  %3436 = vmatprep.mubr.bf16.mxu0 %v655
  %3437 = vmatmul.mubr.bf16.gmra.mxu0 %v653
  %v3438 = vpop.f32.mrf.mxu0
  %v3439 = vadd.f32 %v3399, %v3438
  %v3440 = vpop.f32.mrf.mxu0
  %v3441 = vpop.f32.mrf.mxu0
  %v3442 = vpop.f32.mrf.mxu0
  %3443 = vdwg.mxu0
  %3444 = vmatprep.subr.bf16.mxu0 0
  %3445 = vmatpush1.bf16.xpose.msra.mxu0 0
  %3446 = vmatprep.subr.bf16.mxu0 0
  %3447 = vmatpush1.bf16.xpose.msra.mxu0 0
  %3448 = vmatprep.subr.bf16.mxu0 0
  %3449 = vmatpush1.bf16.xpose.msra.mxu0 0
  %3450 = vmatprep.subr.bf16.mxu0 0
  %3451 = vmatpush1.bf16.xpose.msra.mxu0 0
  %3452 = vmatprep.subr.bf16.mxu0 %v2172
  %3453 = vmatpush1.bf16.xpose.msra.mxu0 %v2171
  %3454 = vmatprep.subr.bf16.mxu0 %v2087
  %3455 = vmatpush1.bf16.xpose.msra.mxu0 %v2086
  %3456 = vmatprep.subr.bf16.mxu0 %v2002
  %3457 = vmatpush1.bf16.xpose.msra.mxu0 %v2001
  %3458 = vmatprep.subr.bf16.mxu0 %v1917
  %3459 = vmatpush1.bf16.xpose.msra.mxu0 %v1916
  %3460 = vmatprep.subr.bf16.mxu0 0
  %3461 = vmatpush2.bf16.xpose.msra.mxu0 0
  %3462 = vmatprep.subr.bf16.mxu0 0
  %3463 = vmatpush2.bf16.xpose.msra.mxu0 0
  %3464 = vmatprep.subr.bf16.mxu0 0
  %3465 = vmatpush2.bf16.xpose.msra.mxu0 0
  %3466 = vmatprep.subr.bf16.mxu0 0
  %3467 = vmatpush2.bf16.xpose.msra.mxu0 0
  %3468 = vmatprep.subr.bf16.mxu0 0
  %3469 = vmatpush2.bf16.xpose.msra.mxu0 0
  %3470 = vmatprep.subr.bf16.mxu0 0
  %3471 = vmatpush2.bf16.xpose.msra.mxu0 0
  %3472 = vmatprep.subr.bf16.mxu0 0
  %3473 = vmatpush2.bf16.xpose.msra.mxu0 0
  %3474 = vmatprep.subr.bf16.mxu0 0
  %3475 = vmatpush2.bf16.xpose.msra.mxu0 0
  %3476 = vmatprep.mubr.bf16.mxu0 %v652
  %3477 = vmatmul.mubr.bf16.gmra.mxu0 %v638
  %v3478 = vpop.f32.mrf.mxu0
  %v3479 = vadd.f32 %v3439, %v3478
  %v3480 = vpop.f32.mrf.mxu0
  %v3481 = vpop.f32.mrf.mxu0
  %v3482 = vpop.f32.mrf.mxu0
  %3483 = vdwg.mxu0
  %3484 = vmatprep.subr.bf16.mxu0 0
  %3485 = vmatpush1.bf16.xpose.msra.mxu0 0
  %3486 = vmatprep.subr.bf16.mxu0 0
  %3487 = vmatpush1.bf16.xpose.msra.mxu0 0
  %3488 = vmatprep.subr.bf16.mxu0 0
  %3489 = vmatpush1.bf16.xpose.msra.mxu0 0
  %3490 = vmatprep.subr.bf16.mxu0 0
  %3491 = vmatpush1.bf16.xpose.msra.mxu0 0
  %3492 = vmatprep.subr.bf16.mxu0 %v2174
  %3493 = vmatpush1.bf16.xpose.msra.mxu0 %v2173
  %3494 = vmatprep.subr.bf16.mxu0 %v2089
  %3495 = vmatpush1.bf16.xpose.msra.mxu0 %v2088
  %3496 = vmatprep.subr.bf16.mxu0 %v2004
  %3497 = vmatpush1.bf16.xpose.msra.mxu0 %v2003
  %3498 = vmatprep.subr.bf16.mxu0 %v1919
  %3499 = vmatpush1.bf16.xpose.msra.mxu0 %v1918
  %3500 = vmatprep.subr.bf16.mxu0 0
  %3501 = vmatpush2.bf16.xpose.msra.mxu0 0
  %3502 = vmatprep.subr.bf16.mxu0 0
  %3503 = vmatpush2.bf16.xpose.msra.mxu0 0
  %3504 = vmatprep.subr.bf16.mxu0 0
  %3505 = vmatpush2.bf16.xpose.msra.mxu0 0
  %3506 = vmatprep.subr.bf16.mxu0 0
  %3507 = vmatpush2.bf16.xpose.msra.mxu0 0
  %3508 = vmatprep.subr.bf16.mxu0 0
  %3509 = vmatpush2.bf16.xpose.msra.mxu0 0
  %3510 = vmatprep.subr.bf16.mxu0 0
  %3511 = vmatpush2.bf16.xpose.msra.mxu0 0
  %3512 = vmatprep.subr.bf16.mxu0 0
  %3513 = vmatpush2.bf16.xpose.msra.mxu0 0
  %3514 = vmatprep.subr.bf16.mxu0 0
  %3515 = vmatpush2.bf16.xpose.msra.mxu0 0
  %3516 = vmatprep.mubr.bf16.mxu0 %v656
  %3517 = vmatmul.mubr.bf16.gmra.mxu0 %v654
  %v3518 = vpop.f32.mrf.mxu0
  %v3519 = vadd.f32 %v3479, %v3518
  %v3520 = vpop.f32.mrf.mxu0
  %v3521 = vpop.f32.mrf.mxu0
  %v3522 = vpop.f32.mrf.mxu0
  %3523 = vdwg.mxu0
  %3524 = vmatprep.subr.bf16.mxu0 0
  %3525 = vmatpush1.bf16.xpose.msra.mxu0 0
  %3526 = vmatprep.subr.bf16.mxu0 0
  %3527 = vmatpush1.bf16.xpose.msra.mxu0 0
  %3528 = vmatprep.subr.bf16.mxu0 0
  %3529 = vmatpush1.bf16.xpose.msra.mxu0 0
  %3530 = vmatprep.subr.bf16.mxu0 0
  %3531 = vmatpush1.bf16.xpose.msra.mxu0 0
  %3532 = vmatprep.subr.bf16.mxu0 %v2176
  %3533 = vmatpush1.bf16.xpose.msra.mxu0 %v2175
  %3534 = vmatprep.subr.bf16.mxu0 %v2091
  %3535 = vmatpush1.bf16.xpose.msra.mxu0 %v2090
  %3536 = vmatprep.subr.bf16.mxu0 %v2006
  %3537 = vmatpush1.bf16.xpose.msra.mxu0 %v2005
  %3538 = vmatprep.subr.bf16.mxu0 %v1921
  %3539 = vmatpush1.bf16.xpose.msra.mxu0 %v1920
  %3540 = vmatprep.subr.bf16.mxu0 0
  %3541 = vmatpush2.bf16.xpose.msra.mxu0 0
  %3542 = vmatprep.subr.bf16.mxu0 0
  %3543 = vmatpush2.bf16.xpose.msra.mxu0 0
  %3544 = vmatprep.subr.bf16.mxu0 0
  %3545 = vmatpush2.bf16.xpose.msra.mxu0 0
  %3546 = vmatprep.subr.bf16.mxu0 0
  %3547 = vmatpush2.bf16.xpose.msra.mxu0 0
  %3548 = vmatprep.subr.bf16.mxu0 0
  %3549 = vmatpush2.bf16.xpose.msra.mxu0 0
  %3550 = vmatprep.subr.bf16.mxu0 0
  %3551 = vmatpush2.bf16.xpose.msra.mxu0 0
  %3552 = vmatprep.subr.bf16.mxu0 0
  %3553 = vmatpush2.bf16.xpose.msra.mxu0 0
  %3554 = vmatprep.subr.bf16.mxu0 0
  %3555 = vmatpush2.bf16.xpose.msra.mxu0 0
  %3556 = vmatprep.mubr.bf16.mxu0 %v694
  %3557 = vmatmul.mubr.bf16.gmra.mxu0 %v680
  %v3558 = vpop.f32.mrf.mxu0
  %v3559 = vadd.f32 %v3519, %v3558
  %v3560 = vpop.f32.mrf.mxu0
  %v3561 = vpop.f32.mrf.mxu0
  %v3562 = vpop.f32.mrf.mxu0
  %3563 = vdwg.mxu0
  %3564 = vmatprep.subr.bf16.mxu0 0
  %3565 = vmatpush1.bf16.xpose.msra.mxu0 0
  %3566 = vmatprep.subr.bf16.mxu0 0
  %3567 = vmatpush1.bf16.xpose.msra.mxu0 0
  %3568 = vmatprep.subr.bf16.mxu0 0
  %3569 = vmatpush1.bf16.xpose.msra.mxu0 0
  %3570 = vmatprep.subr.bf16.mxu0 0
  %3571 = vmatpush1.bf16.xpose.msra.mxu0 0
  %3572 = vmatprep.subr.bf16.mxu0 %v2178
  %3573 = vmatpush1.bf16.xpose.msra.mxu0 %v2177
  %3574 = vmatprep.subr.bf16.mxu0 %v2093
  %3575 = vmatpush1.bf16.xpose.msra.mxu0 %v2092
  %3576 = vmatprep.subr.bf16.mxu0 %v2008
  %3577 = vmatpush1.bf16.xpose.msra.mxu0 %v2007
  %3578 = vmatprep.subr.bf16.mxu0 %v1923
  %3579 = vmatpush1.bf16.xpose.msra.mxu0 %v1922
  %3580 = vmatprep.subr.bf16.mxu0 0
  %3581 = vmatpush2.bf16.xpose.msra.mxu0 0
  %3582 = vmatprep.subr.bf16.mxu0 0
  %3583 = vmatpush2.bf16.xpose.msra.mxu0 0
  %3584 = vmatprep.subr.bf16.mxu0 0
  %3585 = vmatpush2.bf16.xpose.msra.mxu0 0
  %3586 = vmatprep.subr.bf16.mxu0 0
  %3587 = vmatpush2.bf16.xpose.msra.mxu0 0
  %3588 = vmatprep.subr.bf16.mxu0 0
  %3589 = vmatpush2.bf16.xpose.msra.mxu0 0
  %3590 = vmatprep.subr.bf16.mxu0 0
  %3591 = vmatpush2.bf16.xpose.msra.mxu0 0
  %3592 = vmatprep.subr.bf16.mxu0 0
  %3593 = vmatpush2.bf16.xpose.msra.mxu0 0
  %3594 = vmatprep.subr.bf16.mxu0 0
  %3595 = vmatpush2.bf16.xpose.msra.mxu0 0
  %3596 = vmatprep.mubr.bf16.mxu0 %v704
  %3597 = vmatmul.mubr.bf16.gmra.mxu0 %v702
  %v3598 = vpop.f32.mrf.mxu0
  %v3599 = vadd.f32 %v3559, %v3598
  %v3600 = vpop.f32.mrf.mxu0
  %v3601 = vpop.f32.mrf.mxu0
  %v3602 = vpop.f32.mrf.mxu0
  %3603 = vdwg.mxu0
  %3604 = vmatprep.subr.bf16.mxu0 0
  %3605 = vmatpush1.bf16.xpose.msra.mxu0 0
  %3606 = vmatprep.subr.bf16.mxu0 0
  %3607 = vmatpush1.bf16.xpose.msra.mxu0 0
  %3608 = vmatprep.subr.bf16.mxu0 0
  %3609 = vmatpush1.bf16.xpose.msra.mxu0 0
  %3610 = vmatprep.subr.bf16.mxu0 0
  %3611 = vmatpush1.bf16.xpose.msra.mxu0 0
  %3612 = vmatprep.subr.bf16.mxu0 %v2180
  %3613 = vmatpush1.bf16.xpose.msra.mxu0 %v2179
  %3614 = vmatprep.subr.bf16.mxu0 %v2095
  %3615 = vmatpush1.bf16.xpose.msra.mxu0 %v2094
  %3616 = vmatprep.subr.bf16.mxu0 %v2010
  %3617 = vmatpush1.bf16.xpose.msra.mxu0 %v2009
  %3618 = vmatprep.subr.bf16.mxu0 %v1925
  %3619 = vmatpush1.bf16.xpose.msra.mxu0 %v1924
  %3620 = vmatprep.subr.bf16.mxu0 0
  %3621 = vmatpush2.bf16.xpose.msra.mxu0 0
  %3622 = vmatprep.subr.bf16.mxu0 0
  %3623 = vmatpush2.bf16.xpose.msra.mxu0 0
  %3624 = vmatprep.subr.bf16.mxu0 0
  %3625 = vmatpush2.bf16.xpose.msra.mxu0 0
  %3626 = vmatprep.subr.bf16.mxu0 0
  %3627 = vmatpush2.bf16.xpose.msra.mxu0 0
  %3628 = vmatprep.subr.bf16.mxu0 0
  %3629 = vmatpush2.bf16.xpose.msra.mxu0 0
  %3630 = vmatprep.subr.bf16.mxu0 0
  %3631 = vmatpush2.bf16.xpose.msra.mxu0 0
  %3632 = vmatprep.subr.bf16.mxu0 0
  %3633 = vmatpush2.bf16.xpose.msra.mxu0 0
  %3634 = vmatprep.subr.bf16.mxu0 0
  %3635 = vmatpush2.bf16.xpose.msra.mxu0 0
  %3636 = vmatprep.mubr.bf16.mxu0 %v701
  %3637 = vmatmul.mubr.bf16.gmra.mxu0 %v687
  %v3638 = vpop.f32.mrf.mxu0
  %v3639 = vadd.f32 %v3599, %v3638
  %v3640 = vpop.f32.mrf.mxu0
  %v3641 = vpop.f32.mrf.mxu0
  %v3642 = vpop.f32.mrf.mxu0
  %3643 = vdwg.mxu0
  %3644 = vmatprep.subr.bf16.mxu0 0
  %3645 = vmatpush1.bf16.xpose.msra.mxu0 0
  %3646 = vmatprep.subr.bf16.mxu0 0
  %3647 = vmatpush1.bf16.xpose.msra.mxu0 0
  %3648 = vmatprep.subr.bf16.mxu0 0
  %3649 = vmatpush1.bf16.xpose.msra.mxu0 0
  %3650 = vmatprep.subr.bf16.mxu0 0
  %3651 = vmatpush1.bf16.xpose.msra.mxu0 0
  %3652 = vmatprep.subr.bf16.mxu0 %v2182
  %3653 = vmatpush1.bf16.xpose.msra.mxu0 %v2181
  %3654 = vmatprep.subr.bf16.mxu0 %v2097
  %3655 = vmatpush1.bf16.xpose.msra.mxu0 %v2096
  %3656 = vmatprep.subr.bf16.mxu0 %v2012
  %3657 = vmatpush1.bf16.xpose.msra.mxu0 %v2011
  %3658 = vmatprep.subr.bf16.mxu0 %v1927
  %3659 = vmatpush1.bf16.xpose.msra.mxu0 %v1926
  %3660 = vmatprep.subr.bf16.mxu0 0
  %3661 = vmatpush2.bf16.xpose.msra.mxu0 0
  %3662 = vmatprep.subr.bf16.mxu0 0
  %3663 = vmatpush2.bf16.xpose.msra.mxu0 0
  %3664 = vmatprep.subr.bf16.mxu0 0
  %3665 = vmatpush2.bf16.xpose.msra.mxu0 0
  %3666 = vmatprep.subr.bf16.mxu0 0
  %3667 = vmatpush2.bf16.xpose.msra.mxu0 0
  %3668 = vmatprep.subr.bf16.mxu0 0
  %3669 = vmatpush2.bf16.xpose.msra.mxu0 0
  %3670 = vmatprep.subr.bf16.mxu0 0
  %3671 = vmatpush2.bf16.xpose.msra.mxu0 0
  %3672 = vmatprep.subr.bf16.mxu0 0
  %3673 = vmatpush2.bf16.xpose.msra.mxu0 0
  %3674 = vmatprep.subr.bf16.mxu0 0
  %3675 = vmatpush2.bf16.xpose.msra.mxu0 0
  %3676 = vmatprep.mubr.bf16.mxu0 %v705
  %3677 = vmatmul.mubr.bf16.gmra.mxu0 %v703
  %v3678 = vpop.f32.mrf.mxu0
  %v3679 = vadd.f32 %v3639, %v3678
  %v3680 = vpop.f32.mrf.mxu0
  %v3681 = vpop.f32.mrf.mxu0
  %v3682 = vpop.f32.mrf.mxu0
  %3683 = vdwg.mxu0
  %3684 = vmatprep.subr.bf16.mxu0 0
  %3685 = vmatpush1.bf16.xpose.msra.mxu0 0
  %3686 = vmatprep.subr.bf16.mxu0 0
  %3687 = vmatpush1.bf16.xpose.msra.mxu0 0
  %3688 = vmatprep.subr.bf16.mxu0 0
  %3689 = vmatpush1.bf16.xpose.msra.mxu0 0
  %3690 = vmatprep.subr.bf16.mxu0 0
  %3691 = vmatpush1.bf16.xpose.msra.mxu0 0
  %3692 = vmatprep.subr.bf16.mxu0 %v2184
  %3693 = vmatpush1.bf16.xpose.msra.mxu0 %v2183
  %3694 = vmatprep.subr.bf16.mxu0 %v2099
  %3695 = vmatpush1.bf16.xpose.msra.mxu0 %v2098
  %3696 = vmatprep.subr.bf16.mxu0 %v2014
  %3697 = vmatpush1.bf16.xpose.msra.mxu0 %v2013
  %3698 = vmatprep.subr.bf16.mxu0 %v1929
  %3699 = vmatpush1.bf16.xpose.msra.mxu0 %v1928
  %3700 = vmatprep.subr.bf16.mxu0 0
  %3701 = vmatpush2.bf16.xpose.msra.mxu0 0
  %3702 = vmatprep.subr.bf16.mxu0 0
  %3703 = vmatpush2.bf16.xpose.msra.mxu0 0
  %3704 = vmatprep.subr.bf16.mxu0 0
  %3705 = vmatpush2.bf16.xpose.msra.mxu0 0
  %3706 = vmatprep.subr.bf16.mxu0 0
  %3707 = vmatpush2.bf16.xpose.msra.mxu0 0
  %3708 = vmatprep.subr.bf16.mxu0 0
  %3709 = vmatpush2.bf16.xpose.msra.mxu0 0
  %3710 = vmatprep.subr.bf16.mxu0 0
  %3711 = vmatpush2.bf16.xpose.msra.mxu0 0
  %3712 = vmatprep.subr.bf16.mxu0 0
  %3713 = vmatpush2.bf16.xpose.msra.mxu0 0
  %3714 = vmatprep.subr.bf16.mxu0 0
  %3715 = vmatpush2.bf16.xpose.msra.mxu0 0
  %3716 = vmatprep.mubr.bf16.mxu0 %v743
  %3717 = vmatmul.mubr.bf16.gmra.mxu0 %v729
  %v3718 = vpop.f32.mrf.mxu0
  %v3719 = vadd.f32 %v3679, %v3718
  %v3720 = vpop.f32.mrf.mxu0
  %v3721 = vpop.f32.mrf.mxu0
  %v3722 = vpop.f32.mrf.mxu0
  %3723 = vdwg.mxu0
  %3724 = vmatprep.subr.bf16.mxu0 0
  %3725 = vmatpush1.bf16.xpose.msra.mxu0 0
  %3726 = vmatprep.subr.bf16.mxu0 0
  %3727 = vmatpush1.bf16.xpose.msra.mxu0 0
  %3728 = vmatprep.subr.bf16.mxu0 0
  %3729 = vmatpush1.bf16.xpose.msra.mxu0 0
  %3730 = vmatprep.subr.bf16.mxu0 0
  %3731 = vmatpush1.bf16.xpose.msra.mxu0 0
  %3732 = vmatprep.subr.bf16.mxu0 %v2186
  %3733 = vmatpush1.bf16.xpose.msra.mxu0 %v2185
  %3734 = vmatprep.subr.bf16.mxu0 %v2101
  %3735 = vmatpush1.bf16.xpose.msra.mxu0 %v2100
  %3736 = vmatprep.subr.bf16.mxu0 %v2016
  %3737 = vmatpush1.bf16.xpose.msra.mxu0 %v2015
  %3738 = vmatprep.subr.bf16.mxu0 %v1931
  %3739 = vmatpush1.bf16.xpose.msra.mxu0 %v1930
  %3740 = vmatprep.subr.bf16.mxu0 0
  %3741 = vmatpush2.bf16.xpose.msra.mxu0 0
  %3742 = vmatprep.subr.bf16.mxu0 0
  %3743 = vmatpush2.bf16.xpose.msra.mxu0 0
  %3744 = vmatprep.subr.bf16.mxu0 0
  %3745 = vmatpush2.bf16.xpose.msra.mxu0 0
  %3746 = vmatprep.subr.bf16.mxu0 0
  %3747 = vmatpush2.bf16.xpose.msra.mxu0 0
  %3748 = vmatprep.subr.bf16.mxu0 0
  %3749 = vmatpush2.bf16.xpose.msra.mxu0 0
  %3750 = vmatprep.subr.bf16.mxu0 0
  %3751 = vmatpush2.bf16.xpose.msra.mxu0 0
  %3752 = vmatprep.subr.bf16.mxu0 0
  %3753 = vmatpush2.bf16.xpose.msra.mxu0 0
  %3754 = vmatprep.subr.bf16.mxu0 0
  %3755 = vmatpush2.bf16.xpose.msra.mxu0 0
  %3756 = vmatprep.mubr.bf16.mxu0 %v753
  %3757 = vmatmul.mubr.bf16.gmra.mxu0 %v751
  %v3758 = vpop.f32.mrf.mxu0
  %v3759 = vadd.f32 %v3719, %v3758
  %v3760 = vpop.f32.mrf.mxu0
  %v3761 = vpop.f32.mrf.mxu0
  %v3762 = vpop.f32.mrf.mxu0
  %3763 = vdwg.mxu0
  %3764 = vmatprep.subr.bf16.mxu0 0
  %3765 = vmatpush1.bf16.xpose.msra.mxu0 0
  %3766 = vmatprep.subr.bf16.mxu0 0
  %3767 = vmatpush1.bf16.xpose.msra.mxu0 0
  %3768 = vmatprep.subr.bf16.mxu0 0
  %3769 = vmatpush1.bf16.xpose.msra.mxu0 0
  %3770 = vmatprep.subr.bf16.mxu0 0
  %3771 = vmatpush1.bf16.xpose.msra.mxu0 0
  %3772 = vmatprep.subr.bf16.mxu0 %v2188
  %3773 = vmatpush1.bf16.xpose.msra.mxu0 %v2187
  %3774 = vmatprep.subr.bf16.mxu0 %v2103
  %3775 = vmatpush1.bf16.xpose.msra.mxu0 %v2102
  %3776 = vmatprep.subr.bf16.mxu0 %v2018
  %3777 = vmatpush1.bf16.xpose.msra.mxu0 %v2017
  %3778 = vmatprep.subr.bf16.mxu0 %v1933
  %3779 = vmatpush1.bf16.xpose.msra.mxu0 %v1932
  %3780 = vmatprep.subr.bf16.mxu0 0
  %3781 = vmatpush2.bf16.xpose.msra.mxu0 0
  %3782 = vmatprep.subr.bf16.mxu0 0
  %3783 = vmatpush2.bf16.xpose.msra.mxu0 0
  %3784 = vmatprep.subr.bf16.mxu0 0
  %3785 = vmatpush2.bf16.xpose.msra.mxu0 0
  %3786 = vmatprep.subr.bf16.mxu0 0
  %3787 = vmatpush2.bf16.xpose.msra.mxu0 0
  %3788 = vmatprep.subr.bf16.mxu0 0
  %3789 = vmatpush2.bf16.xpose.msra.mxu0 0
  %3790 = vmatprep.subr.bf16.mxu0 0
  %3791 = vmatpush2.bf16.xpose.msra.mxu0 0
  %3792 = vmatprep.subr.bf16.mxu0 0
  %3793 = vmatpush2.bf16.xpose.msra.mxu0 0
  %3794 = vmatprep.subr.bf16.mxu0 0
  %3795 = vmatpush2.bf16.xpose.msra.mxu0 0
  %3796 = vmatprep.mubr.bf16.mxu0 %v750
  %3797 = vmatmul.mubr.bf16.gmra.mxu0 %v736
  %v3798 = vpop.f32.mrf.mxu0
  %v3799 = vadd.f32 %v3759, %v3798
  %v3800 = vpop.f32.mrf.mxu0
  %v3801 = vpop.f32.mrf.mxu0
  %v3802 = vpop.f32.mrf.mxu0
  %3803 = vdwg.mxu0
  %3804 = vmatprep.subr.bf16.mxu0 0
  %3805 = vmatpush1.bf16.xpose.msra.mxu0 0
  %3806 = vmatprep.subr.bf16.mxu0 0
  %3807 = vmatpush1.bf16.xpose.msra.mxu0 0
  %3808 = vmatprep.subr.bf16.mxu0 0
  %3809 = vmatpush1.bf16.xpose.msra.mxu0 0
  %3810 = vmatprep.subr.bf16.mxu0 0
  %3811 = vmatpush1.bf16.xpose.msra.mxu0 0
  %3812 = vmatprep.subr.bf16.mxu0 %v2190
  %3813 = vmatpush1.bf16.xpose.msra.mxu0 %v2189
  %3814 = vmatprep.subr.bf16.mxu0 %v2105
  %3815 = vmatpush1.bf16.xpose.msra.mxu0 %v2104
  %3816 = vmatprep.subr.bf16.mxu0 %v2020
  %3817 = vmatpush1.bf16.xpose.msra.mxu0 %v2019
  %3818 = vmatprep.subr.bf16.mxu0 %v1935
  %3819 = vmatpush1.bf16.xpose.msra.mxu0 %v1934
  %3820 = vmatprep.subr.bf16.mxu0 0
  %3821 = vmatpush2.bf16.xpose.msra.mxu0 0
  %3822 = vmatprep.subr.bf16.mxu0 0
  %3823 = vmatpush2.bf16.xpose.msra.mxu0 0
  %3824 = vmatprep.subr.bf16.mxu0 0
  %3825 = vmatpush2.bf16.xpose.msra.mxu0 0
  %3826 = vmatprep.subr.bf16.mxu0 0
  %3827 = vmatpush2.bf16.xpose.msra.mxu0 0
  %3828 = vmatprep.subr.bf16.mxu0 0
  %3829 = vmatpush2.bf16.xpose.msra.mxu0 0
  %3830 = vmatprep.subr.bf16.mxu0 0
  %3831 = vmatpush2.bf16.xpose.msra.mxu0 0
  %3832 = vmatprep.subr.bf16.mxu0 0
  %3833 = vmatpush2.bf16.xpose.msra.mxu0 0
  %3834 = vmatprep.subr.bf16.mxu0 0
  %3835 = vmatpush2.bf16.xpose.msra.mxu0 0
  %3836 = vmatprep.mubr.bf16.mxu0 %v754
  %3837 = vmatmul.mubr.bf16.gmra.mxu0 %v752
  %v3838 = vpop.f32.mrf.mxu0
  %v3839 = vadd.f32 %v3799, %v3838
  %v3840 = vpop.f32.mrf.mxu0
  %v3841 = vpop.f32.mrf.mxu0
  %v3842 = vpop.f32.mrf.mxu0
  %3843 = vdwg.mxu0
  %3844 = vmatprep.subr.bf16.mxu0 0
  %3845 = vmatpush1.bf16.xpose.msra.mxu0 0
  %3846 = vmatprep.subr.bf16.mxu0 0
  %3847 = vmatpush1.bf16.xpose.msra.mxu0 0
  %3848 = vmatprep.subr.bf16.mxu0 0
  %3849 = vmatpush1.bf16.xpose.msra.mxu0 0
  %3850 = vmatprep.subr.bf16.mxu0 0
  %3851 = vmatpush1.bf16.xpose.msra.mxu0 0
  %3852 = vmatprep.subr.bf16.mxu0 %v2192
  %3853 = vmatpush1.bf16.xpose.msra.mxu0 %v2191
  %3854 = vmatprep.subr.bf16.mxu0 %v2107
  %3855 = vmatpush1.bf16.xpose.msra.mxu0 %v2106
  %3856 = vmatprep.subr.bf16.mxu0 %v2022
  %3857 = vmatpush1.bf16.xpose.msra.mxu0 %v2021
  %3858 = vmatprep.subr.bf16.mxu0 %v1937
  %3859 = vmatpush1.bf16.xpose.msra.mxu0 %v1936
  %3860 = vmatprep.subr.bf16.mxu0 0
  %3861 = vmatpush2.bf16.xpose.msra.mxu0 0
  %3862 = vmatprep.subr.bf16.mxu0 0
  %3863 = vmatpush2.bf16.xpose.msra.mxu0 0
  %3864 = vmatprep.subr.bf16.mxu0 0
  %3865 = vmatpush2.bf16.xpose.msra.mxu0 0
  %3866 = vmatprep.subr.bf16.mxu0 0
  %3867 = vmatpush2.bf16.xpose.msra.mxu0 0
  %3868 = vmatprep.subr.bf16.mxu0 0
  %3869 = vmatpush2.bf16.xpose.msra.mxu0 0
  %3870 = vmatprep.subr.bf16.mxu0 0
  %3871 = vmatpush2.bf16.xpose.msra.mxu0 0
  %3872 = vmatprep.subr.bf16.mxu0 0
  %3873 = vmatpush2.bf16.xpose.msra.mxu0 0
  %3874 = vmatprep.subr.bf16.mxu0 0
  %3875 = vmatpush2.bf16.xpose.msra.mxu0 0
  %3876 = vmatprep.mubr.bf16.mxu0 %v792
  %3877 = vmatmul.mubr.bf16.gmra.mxu0 %v778
  %v3878 = vpop.f32.mrf.mxu0
  %v3879 = vadd.f32 %v3839, %v3878
  %v3880 = vpop.f32.mrf.mxu0
  %v3881 = vpop.f32.mrf.mxu0
  %v3882 = vpop.f32.mrf.mxu0
  %3883 = vdwg.mxu0
  %3884 = vmatprep.subr.bf16.mxu0 0
  %3885 = vmatpush1.bf16.xpose.msra.mxu0 0
  %3886 = vmatprep.subr.bf16.mxu0 0
  %3887 = vmatpush1.bf16.xpose.msra.mxu0 0
  %3888 = vmatprep.subr.bf16.mxu0 0
  %3889 = vmatpush1.bf16.xpose.msra.mxu0 0
  %3890 = vmatprep.subr.bf16.mxu0 0
  %3891 = vmatpush1.bf16.xpose.msra.mxu0 0
  %3892 = vmatprep.subr.bf16.mxu0 %v2194
  %3893 = vmatpush1.bf16.xpose.msra.mxu0 %v2193
  %3894 = vmatprep.subr.bf16.mxu0 %v2109
  %3895 = vmatpush1.bf16.xpose.msra.mxu0 %v2108
  %3896 = vmatprep.subr.bf16.mxu0 %v2024
  %3897 = vmatpush1.bf16.xpose.msra.mxu0 %v2023
  %3898 = vmatprep.subr.bf16.mxu0 %v1939
  %3899 = vmatpush1.bf16.xpose.msra.mxu0 %v1938
  %3900 = vmatprep.subr.bf16.mxu0 0
  %3901 = vmatpush2.bf16.xpose.msra.mxu0 0
  %3902 = vmatprep.subr.bf16.mxu0 0
  %3903 = vmatpush2.bf16.xpose.msra.mxu0 0
  %3904 = vmatprep.subr.bf16.mxu0 0
  %3905 = vmatpush2.bf16.xpose.msra.mxu0 0
  %3906 = vmatprep.subr.bf16.mxu0 0
  %3907 = vmatpush2.bf16.xpose.msra.mxu0 0
  %3908 = vmatprep.subr.bf16.mxu0 0
  %3909 = vmatpush2.bf16.xpose.msra.mxu0 0
  %3910 = vmatprep.subr.bf16.mxu0 0
  %3911 = vmatpush2.bf16.xpose.msra.mxu0 0
  %3912 = vmatprep.subr.bf16.mxu0 0
  %3913 = vmatpush2.bf16.xpose.msra.mxu0 0
  %3914 = vmatprep.subr.bf16.mxu0 0
  %3915 = vmatpush2.bf16.xpose.msra.mxu0 0
  %3916 = vmatprep.mubr.bf16.mxu0 %v802
  %3917 = vmatmul.mubr.bf16.gmra.mxu0 %v800
  %v3918 = vpop.f32.mrf.mxu0
  %v3919 = vadd.f32 %v3879, %v3918
  %v3920 = vpop.f32.mrf.mxu0
  %v3921 = vpop.f32.mrf.mxu0
  %v3922 = vpop.f32.mrf.mxu0
  %3923 = vdwg.mxu0
  %3924 = vmatprep.subr.bf16.mxu0 0
  %3925 = vmatpush1.bf16.xpose.msra.mxu0 0
  %3926 = vmatprep.subr.bf16.mxu0 0
  %3927 = vmatpush1.bf16.xpose.msra.mxu0 0
  %3928 = vmatprep.subr.bf16.mxu0 0
  %3929 = vmatpush1.bf16.xpose.msra.mxu0 0
  %3930 = vmatprep.subr.bf16.mxu0 0
  %3931 = vmatpush1.bf16.xpose.msra.mxu0 0
  %3932 = vmatprep.subr.bf16.mxu0 %v2196
  %3933 = vmatpush1.bf16.xpose.msra.mxu0 %v2195
  %3934 = vmatprep.subr.bf16.mxu0 %v2111
  %3935 = vmatpush1.bf16.xpose.msra.mxu0 %v2110
  %3936 = vmatprep.subr.bf16.mxu0 %v2026
  %3937 = vmatpush1.bf16.xpose.msra.mxu0 %v2025
  %3938 = vmatprep.subr.bf16.mxu0 %v1941
  %3939 = vmatpush1.bf16.xpose.msra.mxu0 %v1940
  %3940 = vmatprep.subr.bf16.mxu0 0
  %3941 = vmatpush2.bf16.xpose.msra.mxu0 0
  %3942 = vmatprep.subr.bf16.mxu0 0
  %3943 = vmatpush2.bf16.xpose.msra.mxu0 0
  %3944 = vmatprep.subr.bf16.mxu0 0
  %3945 = vmatpush2.bf16.xpose.msra.mxu0 0
  %3946 = vmatprep.subr.bf16.mxu0 0
  %3947 = vmatpush2.bf16.xpose.msra.mxu0 0
  %3948 = vmatprep.subr.bf16.mxu0 0
  %3949 = vmatpush2.bf16.xpose.msra.mxu0 0
  %3950 = vmatprep.subr.bf16.mxu0 0
  %3951 = vmatpush2.bf16.xpose.msra.mxu0 0
  %3952 = vmatprep.subr.bf16.mxu0 0
  %3953 = vmatpush2.bf16.xpose.msra.mxu0 0
  %3954 = vmatprep.subr.bf16.mxu0 0
  %3955 = vmatpush2.bf16.xpose.msra.mxu0 0
  %3956 = vmatprep.mubr.bf16.mxu0 %v799
  %3957 = vmatmul.mubr.bf16.gmra.mxu0 %v785
  %v3958 = vpop.f32.mrf.mxu0
  %v3959 = vadd.f32 %v3919, %v3958
  %v3960 = vpop.f32.mrf.mxu0
  %v3961 = vpop.f32.mrf.mxu0
  %v3962 = vpop.f32.mrf.mxu0
  %3963 = vdwg.mxu0
  %3964 = vmatprep.subr.bf16.mxu0 0
  %3965 = vmatpush1.bf16.xpose.msra.mxu0 0
  %3966 = vmatprep.subr.bf16.mxu0 0
  %3967 = vmatpush1.bf16.xpose.msra.mxu0 0
  %3968 = vmatprep.subr.bf16.mxu0 0
  %3969 = vmatpush1.bf16.xpose.msra.mxu0 0
  %3970 = vmatprep.subr.bf16.mxu0 0
  %3971 = vmatpush1.bf16.xpose.msra.mxu0 0
  %3972 = vmatprep.subr.bf16.mxu0 %v2198
  %3973 = vmatpush1.bf16.xpose.msra.mxu0 %v2197
  %3974 = vmatprep.subr.bf16.mxu0 %v2113
  %3975 = vmatpush1.bf16.xpose.msra.mxu0 %v2112
  %3976 = vmatprep.subr.bf16.mxu0 %v2028
  %3977 = vmatpush1.bf16.xpose.msra.mxu0 %v2027
  %3978 = vmatprep.subr.bf16.mxu0 %v1943
  %3979 = vmatpush1.bf16.xpose.msra.mxu0 %v1942
  %3980 = vmatprep.subr.bf16.mxu0 0
  %3981 = vmatpush2.bf16.xpose.msra.mxu0 0
  %3982 = vmatprep.subr.bf16.mxu0 0
  %3983 = vmatpush2.bf16.xpose.msra.mxu0 0
  %3984 = vmatprep.subr.bf16.mxu0 0
  %3985 = vmatpush2.bf16.xpose.msra.mxu0 0
  %3986 = vmatprep.subr.bf16.mxu0 0
  %3987 = vmatpush2.bf16.xpose.msra.mxu0 0
  %3988 = vmatprep.subr.bf16.mxu0 0
  %3989 = vmatpush2.bf16.xpose.msra.mxu0 0
  %3990 = vmatprep.subr.bf16.mxu0 0
  %3991 = vmatpush2.bf16.xpose.msra.mxu0 0
  %3992 = vmatprep.subr.bf16.mxu0 0
  %3993 = vmatpush2.bf16.xpose.msra.mxu0 0
  %3994 = vmatprep.subr.bf16.mxu0 0
  %3995 = vmatpush2.bf16.xpose.msra.mxu0 0
  %3996 = vmatprep.mubr.bf16.mxu0 %v803
  %3997 = vmatmul.mubr.bf16.gmra.mxu0 %v801
  %v3998 = vpop.f32.mrf.mxu0
  %v3999 = vadd.f32 %v3959, %v3998
  %v4000 = vpop.f32.mrf.mxu0
  %v4001 = vpop.f32.mrf.mxu0
  %v4002 = vpop.f32.mrf.mxu0
  %4003 = vdwg.mxu0
  %4004 = vmatprep.subr.bf16.mxu0 0
  %4005 = vmatpush1.bf16.xpose.msra.mxu0 0
  %4006 = vmatprep.subr.bf16.mxu0 0
  %4007 = vmatpush1.bf16.xpose.msra.mxu0 0
  %4008 = vmatprep.subr.bf16.mxu0 0
  %4009 = vmatpush1.bf16.xpose.msra.mxu0 0
  %4010 = vmatprep.subr.bf16.mxu0 0
  %4011 = vmatpush1.bf16.xpose.msra.mxu0 0
  %4012 = vmatprep.subr.bf16.mxu0 %v2200
  %4013 = vmatpush1.bf16.xpose.msra.mxu0 %v2199
  %4014 = vmatprep.subr.bf16.mxu0 %v2115
  %4015 = vmatpush1.bf16.xpose.msra.mxu0 %v2114
  %4016 = vmatprep.subr.bf16.mxu0 %v2030
  %4017 = vmatpush1.bf16.xpose.msra.mxu0 %v2029
  %4018 = vmatprep.subr.bf16.mxu0 %v1945
  %4019 = vmatpush1.bf16.xpose.msra.mxu0 %v1944
  %4020 = vmatprep.subr.bf16.mxu0 0
  %4021 = vmatpush2.bf16.xpose.msra.mxu0 0
  %4022 = vmatprep.subr.bf16.mxu0 0
  %4023 = vmatpush2.bf16.xpose.msra.mxu0 0
  %4024 = vmatprep.subr.bf16.mxu0 0
  %4025 = vmatpush2.bf16.xpose.msra.mxu0 0
  %4026 = vmatprep.subr.bf16.mxu0 0
  %4027 = vmatpush2.bf16.xpose.msra.mxu0 0
  %4028 = vmatprep.subr.bf16.mxu0 0
  %4029 = vmatpush2.bf16.xpose.msra.mxu0 0
  %4030 = vmatprep.subr.bf16.mxu0 0
  %4031 = vmatpush2.bf16.xpose.msra.mxu0 0
  %4032 = vmatprep.subr.bf16.mxu0 0
  %4033 = vmatpush2.bf16.xpose.msra.mxu0 0
  %4034 = vmatprep.subr.bf16.mxu0 0
  %4035 = vmatpush2.bf16.xpose.msra.mxu0 0
  %4036 = vmatprep.mubr.bf16.mxu0 %v841
  %4037 = vmatmul.mubr.bf16.gmra.mxu0 %v827
  %v4038 = vpop.f32.mrf.mxu0
  %v4039 = vadd.f32 %v3999, %v4038
  %v4040 = vpop.f32.mrf.mxu0
  %v4041 = vpop.f32.mrf.mxu0
  %v4042 = vpop.f32.mrf.mxu0
  %4043 = vdwg.mxu0
  %4044 = vmatprep.subr.bf16.mxu0 0
  %4045 = vmatpush1.bf16.xpose.msra.mxu0 0
  %4046 = vmatprep.subr.bf16.mxu0 0
  %4047 = vmatpush1.bf16.xpose.msra.mxu0 0
  %4048 = vmatprep.subr.bf16.mxu0 0
  %4049 = vmatpush1.bf16.xpose.msra.mxu0 0
  %4050 = vmatprep.subr.bf16.mxu0 0
  %4051 = vmatpush1.bf16.xpose.msra.mxu0 0
  %4052 = vmatprep.subr.bf16.mxu0 %v2202
  %4053 = vmatpush1.bf16.xpose.msra.mxu0 %v2201
  %4054 = vmatprep.subr.bf16.mxu0 %v2117
  %4055 = vmatpush1.bf16.xpose.msra.mxu0 %v2116
  %4056 = vmatprep.subr.bf16.mxu0 %v2032
  %4057 = vmatpush1.bf16.xpose.msra.mxu0 %v2031
  %4058 = vmatprep.subr.bf16.mxu0 %v1947
  %4059 = vmatpush1.bf16.xpose.msra.mxu0 %v1946
  %4060 = vmatprep.subr.bf16.mxu0 0
  %4061 = vmatpush2.bf16.xpose.msra.mxu0 0
  %4062 = vmatprep.subr.bf16.mxu0 0
  %4063 = vmatpush2.bf16.xpose.msra.mxu0 0
  %4064 = vmatprep.subr.bf16.mxu0 0
  %4065 = vmatpush2.bf16.xpose.msra.mxu0 0
  %4066 = vmatprep.subr.bf16.mxu0 0
  %4067 = vmatpush2.bf16.xpose.msra.mxu0 0
  %4068 = vmatprep.subr.bf16.mxu0 0
  %4069 = vmatpush2.bf16.xpose.msra.mxu0 0
  %4070 = vmatprep.subr.bf16.mxu0 0
  %4071 = vmatpush2.bf16.xpose.msra.mxu0 0
  %4072 = vmatprep.subr.bf16.mxu0 0
  %4073 = vmatpush2.bf16.xpose.msra.mxu0 0
  %4074 = vmatprep.subr.bf16.mxu0 0
  %4075 = vmatpush2.bf16.xpose.msra.mxu0 0
  %4076 = vmatprep.mubr.bf16.mxu0 %v851
  %4077 = vmatmul.mubr.bf16.gmra.mxu0 %v849
  %v4078 = vpop.f32.mrf.mxu0
  %v4079 = vadd.f32 %v4039, %v4078
  %v4080 = vpop.f32.mrf.mxu0
  %v4081 = vpop.f32.mrf.mxu0
  %v4082 = vpop.f32.mrf.mxu0
  %4083 = vdwg.mxu0
  %4084 = vmatprep.subr.bf16.mxu0 0
  %4085 = vmatpush1.bf16.xpose.msra.mxu0 0
  %4086 = vmatprep.subr.bf16.mxu0 0
  %4087 = vmatpush1.bf16.xpose.msra.mxu0 0
  %4088 = vmatprep.subr.bf16.mxu0 0
  %4089 = vmatpush1.bf16.xpose.msra.mxu0 0
  %4090 = vmatprep.subr.bf16.mxu0 0
  %4091 = vmatpush1.bf16.xpose.msra.mxu0 0
  %4092 = vmatprep.subr.bf16.mxu0 %v2204
  %4093 = vmatpush1.bf16.xpose.msra.mxu0 %v2203
  %4094 = vmatprep.subr.bf16.mxu0 %v2119
  %4095 = vmatpush1.bf16.xpose.msra.mxu0 %v2118
  %4096 = vmatprep.subr.bf16.mxu0 %v2034
  %4097 = vmatpush1.bf16.xpose.msra.mxu0 %v2033
  %4098 = vmatprep.subr.bf16.mxu0 %v1949
  %4099 = vmatpush1.bf16.xpose.msra.mxu0 %v1948
  %4100 = vmatprep.subr.bf16.mxu0 0
  %4101 = vmatpush2.bf16.xpose.msra.mxu0 0
  %4102 = vmatprep.subr.bf16.mxu0 0
  %4103 = vmatpush2.bf16.xpose.msra.mxu0 0
  %4104 = vmatprep.subr.bf16.mxu0 0
  %4105 = vmatpush2.bf16.xpose.msra.mxu0 0
  %4106 = vmatprep.subr.bf16.mxu0 0
  %4107 = vmatpush2.bf16.xpose.msra.mxu0 0
  %4108 = vmatprep.subr.bf16.mxu0 0
  %4109 = vmatpush2.bf16.xpose.msra.mxu0 0
  %4110 = vmatprep.subr.bf16.mxu0 0
  %4111 = vmatpush2.bf16.xpose.msra.mxu0 0
  %4112 = vmatprep.subr.bf16.mxu0 0
  %4113 = vmatpush2.bf16.xpose.msra.mxu0 0
  %4114 = vmatprep.subr.bf16.mxu0 0
  %4115 = vmatpush2.bf16.xpose.msra.mxu0 0
  %4116 = vmatprep.mubr.bf16.mxu0 %v848
  %4117 = vmatmul.mubr.bf16.gmra.mxu0 %v834
  %v4118 = vpop.f32.mrf.mxu0
  %v4119 = vadd.f32 %v4079, %v4118
  %v4120 = vpop.f32.mrf.mxu0
  %v4121 = vpop.f32.mrf.mxu0
  %v4122 = vpop.f32.mrf.mxu0
  %4123 = vdwg.mxu0
  %4124 = vmatprep.subr.bf16.mxu0 0
  %4125 = vmatpush1.bf16.xpose.msra.mxu0 0
  %4126 = vmatprep.subr.bf16.mxu0 0
  %4127 = vmatpush1.bf16.xpose.msra.mxu0 0
  %4128 = vmatprep.subr.bf16.mxu0 0
  %4129 = vmatpush1.bf16.xpose.msra.mxu0 0
  %4130 = vmatprep.subr.bf16.mxu0 0
  %4131 = vmatpush1.bf16.xpose.msra.mxu0 0
  %4132 = vmatprep.subr.bf16.mxu0 %v2206
  %4133 = vmatpush1.bf16.xpose.msra.mxu0 %v2205
  %4134 = vmatprep.subr.bf16.mxu0 %v2121
  %4135 = vmatpush1.bf16.xpose.msra.mxu0 %v2120
  %4136 = vmatprep.subr.bf16.mxu0 %v2036
  %4137 = vmatpush1.bf16.xpose.msra.mxu0 %v2035
  %4138 = vmatprep.subr.bf16.mxu0 %v1951
  %4139 = vmatpush1.bf16.xpose.msra.mxu0 %v1950
  %4140 = vmatprep.subr.bf16.mxu0 0
  %4141 = vmatpush2.bf16.xpose.msra.mxu0 0
  %4142 = vmatprep.subr.bf16.mxu0 0
  %4143 = vmatpush2.bf16.xpose.msra.mxu0 0
  %4144 = vmatprep.subr.bf16.mxu0 0
  %4145 = vmatpush2.bf16.xpose.msra.mxu0 0
  %4146 = vmatprep.subr.bf16.mxu0 0
  %4147 = vmatpush2.bf16.xpose.msra.mxu0 0
  %4148 = vmatprep.subr.bf16.mxu0 0
  %4149 = vmatpush2.bf16.xpose.msra.mxu0 0
  %4150 = vmatprep.subr.bf16.mxu0 0
  %4151 = vmatpush2.bf16.xpose.msra.mxu0 0
  %4152 = vmatprep.subr.bf16.mxu0 0
  %4153 = vmatpush2.bf16.xpose.msra.mxu0 0
  %4154 = vmatprep.subr.bf16.mxu0 0
  %4155 = vmatpush2.bf16.xpose.msra.mxu0 0
  %4156 = vmatprep.mubr.bf16.mxu0 %v852
  %4157 = vmatmul.mubr.bf16.gmra.mxu0 %v850
  %v4158 = vpop.f32.mrf.mxu0
  %v4159 = vadd.f32 %v4119, %v4158
  %v4160 = vpop.f32.mrf.mxu0
  %v4161 = vpop.f32.mrf.mxu0
  %v4162 = vpop.f32.mrf.mxu0
  %4163 = vdwg.mxu0
  %4164 = vmatprep.subr.bf16.mxu0 0
  %4165 = vmatpush1.bf16.xpose.msra.mxu0 0
  %4166 = vmatprep.subr.bf16.mxu0 0
  %4167 = vmatpush1.bf16.xpose.msra.mxu0 0
  %4168 = vmatprep.subr.bf16.mxu0 0
  %4169 = vmatpush1.bf16.xpose.msra.mxu0 0
  %4170 = vmatprep.subr.bf16.mxu0 0
  %4171 = vmatpush1.bf16.xpose.msra.mxu0 0
  %4172 = vmatprep.subr.bf16.mxu0 %v2208
  %4173 = vmatpush1.bf16.xpose.msra.mxu0 %v2207
  %4174 = vmatprep.subr.bf16.mxu0 %v2123
  %4175 = vmatpush1.bf16.xpose.msra.mxu0 %v2122
  %4176 = vmatprep.subr.bf16.mxu0 %v2038
  %4177 = vmatpush1.bf16.xpose.msra.mxu0 %v2037
  %4178 = vmatprep.subr.bf16.mxu0 %v1953
  %4179 = vmatpush1.bf16.xpose.msra.mxu0 %v1952
  %4180 = vmatprep.subr.bf16.mxu0 0
  %4181 = vmatpush2.bf16.xpose.msra.mxu0 0
  %4182 = vmatprep.subr.bf16.mxu0 0
  %4183 = vmatpush2.bf16.xpose.msra.mxu0 0
  %4184 = vmatprep.subr.bf16.mxu0 0
  %4185 = vmatpush2.bf16.xpose.msra.mxu0 0
  %4186 = vmatprep.subr.bf16.mxu0 0
  %4187 = vmatpush2.bf16.xpose.msra.mxu0 0
  %4188 = vmatprep.subr.bf16.mxu0 0
  %4189 = vmatpush2.bf16.xpose.msra.mxu0 0
  %4190 = vmatprep.subr.bf16.mxu0 0
  %4191 = vmatpush2.bf16.xpose.msra.mxu0 0
  %4192 = vmatprep.subr.bf16.mxu0 0
  %4193 = vmatpush2.bf16.xpose.msra.mxu0 0
  %4194 = vmatprep.subr.bf16.mxu0 0
  %4195 = vmatpush2.bf16.xpose.msra.mxu0 0
  %4196 = vmatprep.mubr.bf16.mxu0 %v889
  %4197 = vmatmul.mubr.bf16.gmra.mxu0 %v875
  %v4198 = vpop.f32.mrf.mxu0
  %v4199 = vadd.f32 %v4159, %v4198
  %v4200 = vpop.f32.mrf.mxu0
  %v4201 = vpop.f32.mrf.mxu0
  %v4202 = vpop.f32.mrf.mxu0
  %4203 = vdwg.mxu0
  %4204 = vmatprep.subr.bf16.mxu0 0
  %4205 = vmatpush1.bf16.xpose.msra.mxu0 0
  %4206 = vmatprep.subr.bf16.mxu0 0
  %4207 = vmatpush1.bf16.xpose.msra.mxu0 0
  %4208 = vmatprep.subr.bf16.mxu0 0
  %4209 = vmatpush1.bf16.xpose.msra.mxu0 0
  %4210 = vmatprep.subr.bf16.mxu0 0
  %4211 = vmatpush1.bf16.xpose.msra.mxu0 0
  %4212 = vmatprep.subr.bf16.mxu0 %v2210
  %4213 = vmatpush1.bf16.xpose.msra.mxu0 %v2209
  %4214 = vmatprep.subr.bf16.mxu0 %v2125
  %4215 = vmatpush1.bf16.xpose.msra.mxu0 %v2124
  %4216 = vmatprep.subr.bf16.mxu0 %v2040
  %4217 = vmatpush1.bf16.xpose.msra.mxu0 %v2039
  %4218 = vmatprep.subr.bf16.mxu0 %v1955
  %4219 = vmatpush1.bf16.xpose.msra.mxu0 %v1954
  %4220 = vmatprep.subr.bf16.mxu0 0
  %4221 = vmatpush2.bf16.xpose.msra.mxu0 0
  %4222 = vmatprep.subr.bf16.mxu0 0
  %4223 = vmatpush2.bf16.xpose.msra.mxu0 0
  %4224 = vmatprep.subr.bf16.mxu0 0
  %4225 = vmatpush2.bf16.xpose.msra.mxu0 0
  %4226 = vmatprep.subr.bf16.mxu0 0
  %4227 = vmatpush2.bf16.xpose.msra.mxu0 0
  %4228 = vmatprep.subr.bf16.mxu0 0
  %4229 = vmatpush2.bf16.xpose.msra.mxu0 0
  %4230 = vmatprep.subr.bf16.mxu0 0
  %4231 = vmatpush2.bf16.xpose.msra.mxu0 0
  %4232 = vmatprep.subr.bf16.mxu0 0
  %4233 = vmatpush2.bf16.xpose.msra.mxu0 0
  %4234 = vmatprep.subr.bf16.mxu0 0
  %4235 = vmatpush2.bf16.xpose.msra.mxu0 0
  %4236 = vmatprep.mubr.bf16.mxu0 %v891
  %4237 = vmatmul.mubr.bf16.gmra.mxu0 %v890
  %v4238 = vpop.f32.mrf.mxu0
  %v4239 = vadd.f32 %v4199, %v4238
  %v4240 = vpop.f32.mrf.mxu0
  %v4241 = vpop.f32.mrf.mxu0
  %v4242 = vpop.f32.mrf.mxu0
  %4243 = vdwg.mxu0
  %4244 = vmatprep.subr.bf16.mxu0 0
  %4245 = vmatpush1.bf16.xpose.msra.mxu0 0
  %4246 = vmatprep.subr.bf16.mxu0 0
  %4247 = vmatpush1.bf16.xpose.msra.mxu0 0
  %4248 = vmatprep.subr.bf16.mxu0 0
  %4249 = vmatpush1.bf16.xpose.msra.mxu0 0
  %4250 = vmatprep.subr.bf16.mxu0 0
  %4251 = vmatpush1.bf16.xpose.msra.mxu0 0
  %4252 = vmatprep.subr.bf16.mxu0 0
  %4253 = vmatpush1.bf16.xpose.msra.mxu0 %v2562
  %4254 = vmatprep.subr.bf16.mxu0 0
  %4255 = vmatpush1.bf16.xpose.msra.mxu0 %v2559
  %4256 = vmatprep.subr.bf16.mxu0 0
  %4257 = vmatpush1.bf16.xpose.msra.mxu0 %v2556
  %4258 = vmatprep.subr.bf16.mxu0 0
  %4259 = vmatpush1.bf16.xpose.msra.mxu0 %v2553
  %4260 = vmatprep.subr.bf16.mxu0 0
  %4261 = vmatpush2.bf16.xpose.msra.mxu0 0
  %4262 = vmatprep.subr.bf16.mxu0 0
  %4263 = vmatpush2.bf16.xpose.msra.mxu0 0
  %4264 = vmatprep.subr.bf16.mxu0 0
  %4265 = vmatpush2.bf16.xpose.msra.mxu0 0
  %4266 = vmatprep.subr.bf16.mxu0 0
  %4267 = vmatpush2.bf16.xpose.msra.mxu0 0
  %4268 = vmatprep.subr.bf16.mxu0 0
  %4269 = vmatpush2.bf16.xpose.msra.mxu0 0
  %4270 = vmatprep.subr.bf16.mxu0 0
  %4271 = vmatpush2.bf16.xpose.msra.mxu0 0
  %4272 = vmatprep.subr.bf16.mxu0 0
  %4273 = vmatpush2.bf16.xpose.msra.mxu0 0
  %4274 = vmatprep.subr.bf16.mxu0 0
  %4275 = vmatpush2.bf16.xpose.msra.mxu0 0
  %4276 = vmatprep.mubr.bf16.mxu0 0
  %4277 = vmatmul.mubr.bf16.gmra.mxu0 %v2550
  %v4278 = vpop.f32.mrf.mxu0
  %v4279 = vadd.f32 %v4239, %v4278
  %v4280 = vpop.f32.mrf.mxu0
  %v4281 = vpop.f32.mrf.mxu0
  %v4282 = vpop.f32.mrf.mxu0
  %4283 = vdwg.mxu0
  %v4284 = vmax.f32 %v4279, 0.0
  %v4285 = vld [vmem:[%s3] sm:$0xff]
  %v4286 = vld [vmem:[%s3 + $0x8] sm:$0xff]
  %v4287 = vld [vmem:[%s3 + $0x10] sm:$0xff]
  %v4288 = vld [vmem:[%s3 + $0x18] sm:$0xf]
  %v4289 = vld [vmem:[%s4] sm:$0x1]
  %v4291 = vlaneseq
  %v4292 = vshrl.u32 %v4291, 7
  %v4293 = vsub.s32 0, %v4292
  %v4294 = vrot.slane %v4289, %v4293
  %vm4296 = vcmask 457728
  %v4298 = vsel %vm4296, %v4284, 0
  %v4301 = vsel %vm4296, %v4285, 0
  %v4304 = vsel %vm4296, %v4286, 0
  %v4307 = vsel %vm4296, %v4287, 0
  %v4310 = vsel %vm4296, %v4288, 0
  %4312 = vmatprep.subr.mxu0 0.0
  %4313 = vmatpush1.xpose.msra.mxu0 0.0
  %4314 = vmatprep.subr.mxu0 0.0
  %4315 = vmatpush1.xpose.msra.mxu0 0.0
  %4316 = vmatprep.subr.mxu0 0.0
  %4317 = vmatpush1.xpose.msra.mxu0 0.0
  %4318 = vmatprep.subr.mxu0 0.0
  %4319 = vmatpush1.xpose.msra.mxu0 0.0
  %4320 = vmatprep.subr.mxu0 0.0
  %4321 = vmatpush1.xpose.msra.mxu0 0.0
  %4322 = vmatprep.subr.mxu0 0.0
  %4323 = vmatpush1.xpose.msra.mxu0 0.0
  %4324 = vmatprep.subr.mxu0 0.0
  %4325 = vmatpush1.xpose.msra.mxu0 0.0
  %4326 = vmatprep.subr.mxu0 0.0
  %4327 = vmatpush1.xpose.msra.mxu0 0.0
  %4328 = vmatprep.subr.mxu0 0.0
  %4329 = vmatpush1.xpose.msra.mxu0 0.0
  %4330 = vmatprep.subr.mxu0 0.0
  %4331 = vmatpush1.xpose.msra.mxu0 0.0
  %4332 = vmatprep.subr.mxu0 0.0
  %4333 = vmatpush1.xpose.msra.mxu0 0.0
  %4334 = vmatprep.subr.mxu0 0.0
  %4335 = vmatpush1.xpose.msra.mxu0 0.0
  %4336 = vmatprep.subr.mxu0 0.0
  %4337 = vmatpush1.xpose.msra.mxu0 %v4310
  %4338 = vmatprep.subr.mxu0 0.0
  %4339 = vmatpush1.xpose.msra.mxu0 %v4307
  %4340 = vmatprep.subr.mxu0 0.0
  %4341 = vmatpush1.xpose.msra.mxu0 %v4304
  %4342 = vmatprep.subr.mxu0 0.0
  %4343 = vmatpush1.xpose.msra.mxu0 %v4301
  %4344 = vmatprep.subr.mxu0 0.0
  %4345 = vmatpush2.xpose.msra.mxu0 0.0
  %4346 = vmatprep.subr.mxu0 0.0
  %4347 = vmatpush2.xpose.msra.mxu0 0.0
  %4348 = vmatprep.subr.mxu0 0.0
  %4349 = vmatpush2.xpose.msra.mxu0 0.0
  %4350 = vmatprep.subr.mxu0 0.0
  %4351 = vmatpush2.xpose.msra.mxu0 0.0
  %4352 = vmatprep.subr.mxu0 0.0
  %4353 = vmatpush2.xpose.msra.mxu0 0.0
  %4354 = vmatprep.subr.mxu0 0.0
  %4355 = vmatpush2.xpose.msra.mxu0 0.0
  %4356 = vmatprep.subr.mxu0 0.0
  %4357 = vmatpush2.xpose.msra.mxu0 0.0
  %4358 = vmatprep.subr.mxu0 0.0
  %4359 = vmatpush2.xpose.msra.mxu0 0.0
  %4360 = vmatprep.subr.mxu0 0.0
  %4361 = vmatpush2.xpose.msra.mxu0 0.0
  %4362 = vmatprep.subr.mxu0 0.0
  %4363 = vmatpush2.xpose.msra.mxu0 0.0
  %4364 = vmatprep.subr.mxu0 0.0
  %4365 = vmatpush2.xpose.msra.mxu0 0.0
  %4366 = vmatprep.subr.mxu0 0.0
  %4367 = vmatpush2.xpose.msra.mxu0 0.0
  %4368 = vmatprep.subr.mxu0 0.0
  %4369 = vmatpush2.xpose.msra.mxu0 0.0
  %4370 = vmatprep.subr.mxu0 0.0
  %4371 = vmatpush2.xpose.msra.mxu0 0.0
  %4372 = vmatprep.subr.mxu0 0.0
  %4373 = vmatpush2.xpose.msra.mxu0 0.0
  %4374 = vmatprep.subr.mxu0 0.0
  %4375 = vmatpush2.xpose.msra.mxu0 0.0
  %4376 = vmatprep.mubr.f32.mxu0 0.0
  %4377 = vmatmul.mubr.f32.gmra.mxu0 %v4298
  %v4378 = vpop.f32.mrf.mxu0
  %v4379 = vadd.f32 %v4294, %v4378
  %v4380 = vpop.f32.mrf.mxu0
  %4381 = vdwg.mxu0
  %v4382 = vmax.f32 %v4379, 0.0
  %v4383 = vld [vmem:[%s5] sm:$0xff]
  %v4384 = vld [vmem:[%s5 + $0x8] sm:$0xff]
  %v4385 = vld [vmem:[%s5 + $0x10] sm:$0xff]
  %v4386 = vld [vmem:[%s5 + $0x18] sm:$0xf]
  %v4387 = vld [vmem:[%s6] sm:$0x1]
  %v4389 = vlaneseq
  %v4390 = vshrl.u32 %v4389, 7
  %v4391 = vsub.s32 0, %v4390
  %v4392 = vrot.slane %v4387, %v4391
  %vm4394 = vcmask 228352
  %v4396 = vsel %vm4394, %v4382, 0
  %v4399 = vsel %vm4394, %v4383, 0
  %v4402 = vsel %vm4394, %v4384, 0
  %v4405 = vsel %vm4394, %v4385, 0
  %v4408 = vsel %vm4394, %v4386, 0
  %4410 = vmatprep.subr.mxu0 0.0
  %4411 = vmatpush1.xpose.msra.mxu0 0.0
  %4412 = vmatprep.subr.mxu0 0.0
  %4413 = vmatpush1.xpose.msra.mxu0 0.0
  %4414 = vmatprep.subr.mxu0 0.0
  %4415 = vmatpush1.xpose.msra.mxu0 0.0
  %4416 = vmatprep.subr.mxu0 0.0
  %4417 = vmatpush1.xpose.msra.mxu0 0.0
  %4418 = vmatprep.subr.mxu0 0.0
  %4419 = vmatpush1.xpose.msra.mxu0 0.0
  %4420 = vmatprep.subr.mxu0 0.0
  %4421 = vmatpush1.xpose.msra.mxu0 0.0
  %4422 = vmatprep.subr.mxu0 0.0
  %4423 = vmatpush1.xpose.msra.mxu0 0.0
  %4424 = vmatprep.subr.mxu0 0.0
  %4425 = vmatpush1.xpose.msra.mxu0 0.0
  %4426 = vmatprep.subr.mxu0 0.0
  %4427 = vmatpush1.xpose.msra.mxu0 0.0
  %4428 = vmatprep.subr.mxu0 0.0
  %4429 = vmatpush1.xpose.msra.mxu0 0.0
  %4430 = vmatprep.subr.mxu0 0.0
  %4431 = vmatpush1.xpose.msra.mxu0 0.0
  %4432 = vmatprep.subr.mxu0 0.0
  %4433 = vmatpush1.xpose.msra.mxu0 0.0
  %4434 = vmatprep.subr.mxu0 0.0
  %4435 = vmatpush1.xpose.msra.mxu0 %v4408
  %4436 = vmatprep.subr.mxu0 0.0
  %4437 = vmatpush1.xpose.msra.mxu0 %v4405
  %4438 = vmatprep.subr.mxu0 0.0
  %4439 = vmatpush1.xpose.msra.mxu0 %v4402
  %4440 = vmatprep.subr.mxu0 0.0
  %4441 = vmatpush1.xpose.msra.mxu0 %v4399
  %4442 = vmatprep.subr.mxu0 0.0
  %4443 = vmatpush2.xpose.msra.mxu0 0.0
  %4444 = vmatprep.subr.mxu0 0.0
  %4445 = vmatpush2.xpose.msra.mxu0 0.0
  %4446 = vmatprep.subr.mxu0 0.0
  %4447 = vmatpush2.xpose.msra.mxu0 0.0
  %4448 = vmatprep.subr.mxu0 0.0
  %4449 = vmatpush2.xpose.msra.mxu0 0.0
  %4450 = vmatprep.subr.mxu0 0.0
  %4451 = vmatpush2.xpose.msra.mxu0 0.0
  %4452 = vmatprep.subr.mxu0 0.0
  %4453 = vmatpush2.xpose.msra.mxu0 0.0
  %4454 = vmatprep.subr.mxu0 0.0
  %4455 = vmatpush2.xpose.msra.mxu0 0.0
  %4456 = vmatprep.subr.mxu0 0.0
  %4457 = vmatpush2.xpose.msra.mxu0 0.0
  %4458 = vmatprep.subr.mxu0 0.0
  %4459 = vmatpush2.xpose.msra.mxu0 0.0
  %4460 = vmatprep.subr.mxu0 0.0
  %4461 = vmatpush2.xpose.msra.mxu0 0.0
  %4462 = vmatprep.subr.mxu0 0.0
  %4463 = vmatpush2.xpose.msra.mxu0 0.0
  %4464 = vmatprep.subr.mxu0 0.0
  %4465 = vmatpush2.xpose.msra.mxu0 0.0
  %4466 = vmatprep.subr.mxu0 0.0
  %4467 = vmatpush2.xpose.msra.mxu0 0.0
  %4468 = vmatprep.subr.mxu0 0.0
  %4469 = vmatpush2.xpose.msra.mxu0 0.0
  %4470 = vmatprep.subr.mxu0 0.0
  %4471 = vmatpush2.xpose.msra.mxu0 0.0
  %4472 = vmatprep.subr.mxu0 0.0
  %4473 = vmatpush2.xpose.msra.mxu0 0.0
  %4474 = vmatprep.mubr.f32.mxu0 0.0
  %4475 = vmatmul.mubr.f32.gmra.mxu0 %v4396
  %v4476 = vpop.f32.mrf.mxu0
  %v4477 = vadd.f32 %v4392, %v4476
  %v4478 = vpop.f32.mrf.mxu0
  %4479 = vdwg.mxu0
  %v4480 = vmax.f32 %v4477, 0.0
  %v4481 = vld [vmem:[%s7] sm:$0xff]
  %v4482 = vld [vmem:[%s7 + $0x8] sm:$0xff]
  %v4483 = vld [vmem:[%s7 + $0x10] sm:$0xff]
  %v4484 = vld [vmem:[%s7 + $0x18] sm:$0xff]
  %v4485 = vld [vmem:[%s7 + $0x20] sm:$0x3f]
  %v4486 = vld [vmem:[%s8] sm:$0x1]
  %v4488 = vlaneseq
  %v4489 = vshrl.u32 %v4488, 7
  %v4490 = vsub.s32 0, %v4489
  %v4491 = vrot.slane %v4486, %v4490
  %v4494 = vsel %vm4394, %v4480, 0
  %v4497 = vsel %vm4394, %v4481, 0
  %v4500 = vsel %vm4394, %v4482, 0
  %v4503 = vsel %vm4394, %v4483, 0
  %v4506 = vsel %vm4394, %v4484, 0
  %v4509 = vsel %vm4394, %v4485, 0
  %4511 = vmatprep.subr.mxu0 0.0
  %4512 = vmatpush1.xpose.msra.mxu0 0.0
  %4513 = vmatprep.subr.mxu0 0.0
  %4514 = vmatpush1.xpose.msra.mxu0 0.0
  %4515 = vmatprep.subr.mxu0 0.0
  %4516 = vmatpush1.xpose.msra.mxu0 0.0
  %4517 = vmatprep.subr.mxu0 0.0
  %4518 = vmatpush1.xpose.msra.mxu0 0.0
  %4519 = vmatprep.subr.mxu0 0.0
  %4520 = vmatpush1.xpose.msra.mxu0 0.0
  %4521 = vmatprep.subr.mxu0 0.0
  %4522 = vmatpush1.xpose.msra.mxu0 0.0
  %4523 = vmatprep.subr.mxu0 0.0
  %4524 = vmatpush1.xpose.msra.mxu0 0.0
  %4525 = vmatprep.subr.mxu0 0.0
  %4526 = vmatpush1.xpose.msra.mxu0 0.0
  %4527 = vmatprep.subr.mxu0 0.0
  %4528 = vmatpush1.xpose.msra.mxu0 0.0
  %4529 = vmatprep.subr.mxu0 0.0
  %4530 = vmatpush1.xpose.msra.mxu0 0.0
  %4531 = vmatprep.subr.mxu0 0.0
  %4532 = vmatpush1.xpose.msra.mxu0 0.0
  %4533 = vmatprep.subr.mxu0 0.0
  %4534 = vmatpush1.xpose.msra.mxu0 %v4509
  %4535 = vmatprep.subr.mxu0 0.0
  %4536 = vmatpush1.xpose.msra.mxu0 %v4506
  %4537 = vmatprep.subr.mxu0 0.0
  %4538 = vmatpush1.xpose.msra.mxu0 %v4503
  %4539 = vmatprep.subr.mxu0 0.0
  %4540 = vmatpush1.xpose.msra.mxu0 %v4500
  %4541 = vmatprep.subr.mxu0 0.0
  %4542 = vmatpush1.xpose.msra.mxu0 %v4497
  %4543 = vmatprep.subr.mxu0 0.0
  %4544 = vmatpush2.xpose.msra.mxu0 0.0
  %4545 = vmatprep.subr.mxu0 0.0
  %4546 = vmatpush2.xpose.msra.mxu0 0.0
  %4547 = vmatprep.subr.mxu0 0.0
  %4548 = vmatpush2.xpose.msra.mxu0 0.0
  %4549 = vmatprep.subr.mxu0 0.0
  %4550 = vmatpush2.xpose.msra.mxu0 0.0
  %4551 = vmatprep.subr.mxu0 0.0
  %4552 = vmatpush2.xpose.msra.mxu0 0.0
  %4553 = vmatprep.subr.mxu0 0.0
  %4554 = vmatpush2.xpose.msra.mxu0 0.0
  %4555 = vmatprep.subr.mxu0 0.0
  %4556 = vmatpush2.xpose.msra.mxu0 0.0
  %4557 = vmatprep.subr.mxu0 0.0
  %4558 = vmatpush2.xpose.msra.mxu0 0.0
  %4559 = vmatprep.subr.mxu0 0.0
  %4560 = vmatpush2.xpose.msra.mxu0 0.0
  %4561 = vmatprep.subr.mxu0 0.0
  %4562 = vmatpush2.xpose.msra.mxu0 0.0
  %4563 = vmatprep.subr.mxu0 0.0
  %4564 = vmatpush2.xpose.msra.mxu0 0.0
  %4565 = vmatprep.subr.mxu0 0.0
  %4566 = vmatpush2.xpose.msra.mxu0 0.0
  %4567 = vmatprep.subr.mxu0 0.0
  %4568 = vmatpush2.xpose.msra.mxu0 0.0
  %4569 = vmatprep.subr.mxu0 0.0
  %4570 = vmatpush2.xpose.msra.mxu0 0.0
  %4571 = vmatprep.subr.mxu0 0.0
  %4572 = vmatpush2.xpose.msra.mxu0 0.0
  %4573 = vmatprep.subr.mxu0 0.0
  %4574 = vmatpush2.xpose.msra.mxu0 0.0
  %4575 = vmatprep.mubr.f32.mxu0 0.0
  %4576 = vmatmul.mubr.f32.gmra.mxu0 %v4494
  %v4577 = vpop.f32.mrf.mxu0
  %v4578 = vadd.f32 %v4491, %v4577
  %v4579 = vpop.f32.mrf.mxu0
  %4580 = vdwg.mxu0
  %vm4581 = vcmask 304128
  %4582 = vst.msk [vmem:[%s9] sm:$0x3] %vm4581, %v4578
  // Predicated region
  $region38: #{simple_cnn_forward.9} parent=0 // pred_check
    _
  $region39: #{simple_cnn_forward.9} parent=0 // pred_check_branch
    %4584 = sbr.rel (0) target = $region41
  $region40: #{simple_cnn_forward.9} parent=0 // pred_region
    _
  $region41: #{simple_cnn_forward.9} parent=0 // pred_fallthru
    _
  // Predicated region
  $region42: #{simple_cnn_forward.9} parent=0 // pred_check
    _
  $region43: #{simple_cnn_forward.9} parent=0 // pred_check_branch
    %4586 = sbr.rel (0) target = $region45
  $region44: #{simple_cnn_forward.9} parent=0 // pred_region
    _
  $region45: #{simple_cnn_forward.9} parent=0 // pred_fallthru
    _

</llo_original>
